<compile_context>
chip_gen: v6e
topology: v6e:2x2x1
jax: 0.10.0
libtpu: 0.0.40
codegen_flags: <defaults>
</compile_context>

<pallas_src>
import functools

import jax
import jax.numpy as jnp
from jax.experimental import pallas as pl
from jax.experimental.pallas import tpu as pltpu


# ---------------------------------------------------------------------------
# Pallas kernel:  out^T = W^T @ A^T + bias  [+ LeakyReLU(0.1) | partial sigmoid]
# ---------------------------------------------------------------------------
def _make_mm_kernel(act, sig_start=None):
    def kernel(a_ref, w_ref, b_ref, o_ref):
        # a_ref: (tm, K) bf16   w_ref: (Cout, K) bf16   b_ref: (Cout, 1) f32
        acc = jax.lax.dot_general(
            w_ref[...],
            a_ref[...],
            dimension_numbers=(((1,), (1,)), ((), ())),  # contract K with K -> (Cout, tm)
            preferred_element_type=jnp.float32,
        )
        acc = acc + b_ref[...]
        if act == "lrelu":
            acc = jnp.where(acc >= 0.0, acc, 0.1 * acc)
        elif act == "offset_mask":
            # Fused conv_offset_mask epilogue: sigmoid only on the mask channels
            # (output rows >= sig_start); offset channels stay linear.
            row = jax.lax.broadcasted_iota(jnp.int32, acc.shape, 0)
            sig = 1.0 / (1.0 + jnp.exp(-acc))
            acc = jnp.where(row >= sig_start, sig, acc)
        o_ref[...] = acc

    return kernel


def _round_up(x, m):
    return ((x + m - 1) // m) * m


def _pick_tm(M):
    """Adaptive row tile: big lane-dense tiles for large M, no 128-row padding for tiny M."""
    if M < 128:
        return _round_up(max(M, 1), 8)  # single block == full (padded) array
    for tm in (512, 256, 128):
        if M % tm == 0:
            return tm
    return 128


def matmul_bias_act(a, w_t, b, act="linear", sig_start=None):
    """a: (M, K) [bf16/f32], w_t: (Cout, K), b: (Cout,).  Returns (M, Cout) f32."""
    M, K = a.shape
    Cout = w_t.shape[0]
    tm = _pick_tm(M)
    Mp = _round_up(M, tm)

    a = a.astype(jnp.bfloat16)
    if Mp != M:
        # Padding is only non-zero for the tiny pyramid levels / ragged tails; XLA fuses
        # this pad into the bf16 im2col materialization, so it is not an extra HBM pass.
        a = jnp.pad(a, ((0, Mp - M), (0, 0)))
    w_t = w_t.astype(jnp.bfloat16)
    b2 = b.astype(jnp.float32).reshape(Cout, 1)

    out_t = pl.pallas_call(
        _make_mm_kernel(act, sig_start),
        out_shape=jax.ShapeDtypeStruct((Cout, Mp), jnp.float32),
        grid=(Mp // tm,),
        in_specs=[
            pl.BlockSpec((tm, K), lambda i: (i, 0)),
            pl.BlockSpec((Cout, K), lambda i: (0, 0)),
            pl.BlockSpec((Cout, 1), lambda i: (0, 0)),
        ],
        out_specs=pl.BlockSpec((Cout, tm), lambda i: (0, i)),
        compiler_params=pltpu.CompilerParams(
            dimension_semantics=("parallel",),
            vmem_limit_bytes=32 * 1024 * 1024,  # explicit budget; fits v7x's smaller VMEM
        ),
    )(a, w_t, b2)
    # Lane-dense (Cout, M) blocks in the kernel; transpose back to row-major here.
    return out_t[:, :M].T


# ---------------------------------------------------------------------------
# 3x3 conv (stride 1 or 2, pad 1) = bf16 im2col (glue) + Pallas matmul kernel
# TODO(synk): stride-1 convs could avoid the im2col HBM round-trip with an in-pipeline
#             9-tap accumulation (grid tap axis + pl.Element windows); kept as im2col.
# ---------------------------------------------------------------------------
def conv3x3(x, w, b, stride=1, act="linear", sig_start=None):
    N, H, W, Cin = x.shape
    Cout = w.shape[-1]
    Hout = (H + 2 - 3) // stride + 1
    Wout = (W + 2 - 3) // stride + 1
    xp = jnp.pad(x.astype(jnp.bfloat16), ((0, 0), (1, 1), (1, 1), (0, 0)))
    taps = []
    for i in range(3):
        for j in range(3):
            taps.append(xp[:, i : i + stride * Hout : stride, j : j + stride * Wout : stride, :])
    patches = jnp.stack(taps, axis=3)                      # (N, Hout, Wout, 9, Cin) bf16
    A = patches.reshape(N * Hout * Wout, 9 * Cin)
    Wt = jnp.transpose(w.reshape(9 * Cin, Cout))           # (Cout, 9*Cin), tiny
    out = matmul_bias_act(A, Wt, b, act=act, sig_start=sig_start)
    return out.reshape(N, Hout, Wout, Cout)


# ---------------------------------------------------------------------------
# bilinear x2 upsample (align_corners=False), matches F.interpolate semantics.
# TODO(synk): fixed-pattern bilinear upsample kept in plain JAX (not a hot path).
# ---------------------------------------------------------------------------
def up2(x):
    def up_axis(x, axis):
        n = x.shape[axis]
        src = jnp.maximum((jnp.arange(2 * n, dtype=jnp.float32) + 0.5) * 0.5 - 0.5, 0.0)
        i0 = jnp.floor(src).astype(jnp.int32)
        i1 = jnp.minimum(i0 + 1, n - 1)
        w1 = src - i0.astype(jnp.float32)
        w0 = 1.0 - w1
        x0 = jnp.take(x, i0, axis=axis)
        x1 = jnp.take(x, i1, axis=axis)
        shp = [1] * x.ndim
        shp[axis] = 2 * n
        return x0 * w0.reshape(shp) + x1 * w1.reshape(shp)

    return up_axis(up_axis(x, 1), 2)


# ---------------------------------------------------------------------------
# Modulated deformable conv (DCNv2, extra_offset_mask=True), groups=1,
# deformable_groups=dg.  Bilinear gather in JAX (mask folded into the gather
# weights), masked conv reduced to a single lane-dense Pallas matmul.
# TODO(synk): the data-dependent bilinear gather (per-element dynamic gather) stays in
#             JAX; moving it into a Pallas DMA-gather fused with the matmul is future work.
# ---------------------------------------------------------------------------
def _deform_sample(x, offset, mask, dg):
    N, H, W, C = x.shape
    Cpg = C // dg
    off = offset.reshape(N, H, W, dg, 9, 2)
    dy, dx = off[..., 0], off[..., 1]                    # (N,H,W,dg,9) f32
    m = mask.reshape(N, H, W, dg, 9)                     # sigmoid already applied in-kernel
    kk_y = jnp.repeat(jnp.arange(3), 3)                  # kernel tap row
    kk_x = jnp.tile(jnp.arange(3), 3)                    # kernel tap col
    py = (jnp.arange(H)[None, :, None, None, None] - 1 + kk_y[None, None, None, None, :]).astype(jnp.float32) + dy
    px = (jnp.arange(W)[None, None, :, None, None] - 1 + kk_x[None, None, None, None, :]).astype(jnp.float32) + dx

    h0 = jnp.floor(py)
    w0 = jnp.floor(px)
    lh = py - h0
    lw = px - w0
    h0i = h0.astype(jnp.int32)
    w0i = w0.astype(jnp.int32)

    x_r = x.astype(jnp.bfloat16).reshape(N, H * W, dg, Cpg)

    def corner(hi, wi, wgt):
        valid = (hi >= 0) & (hi < H) & (wi >= 0) & (wi < W)
        hic = jnp.clip(hi, 0, H - 1)
        wic = jnp.clip(wi, 0, W - 1)
        flat = (hic * W + wic).reshape(N, H * W, dg, 9)
        g = jnp.take_along_axis(
            jnp.broadcast_to(x_r[:, :, :, None, :], (N, H * W, dg, 9, Cpg)),
            jnp.broadcast_to(flat[..., None], (N, H * W, dg, 9, Cpg)),
            axis=1,
        )
        # Fold the DCN modulation mask into the bilinear weights (no mask tensor reaches
        # the Pallas kernel; halves the DCN matmul's input DMA vs. a separate mask input).
        wv = (wgt * valid.astype(jnp.float32) * m).reshape(N, H * W, dg, 9)
        return g.astype(jnp.float32) * wv[..., None]

    val = (
        corner(h0i, w0i, (1 - lh) * (1 - lw))
        + corner(h0i, w0i + 1, (1 - lh) * lw)
        + corner(h0i + 1, w0i, lh * (1 - lw))
        + corner(h0i + 1, w0i + 1, lh * lw)
    )  # (N, HW, dg, 9, Cpg) f32

    # -> (N, HW, 9, dg, Cpg) -> (M, 9*C)  (tap-major, channel-minor; matches weight reshape)
    patches = jnp.transpose(val.astype(jnp.bfloat16), (0, 1, 3, 2, 4)).reshape(N * H * W, 9 * C)
    return patches


def dcn_apply(p, x, feat, dg):
    # conv_offset_mask on the "extra offset" feature; sigmoid on the mask channels is
    # fused into the Pallas matmul epilogue (act="offset_mask").
    c = dg * 9
    om = conv3x3(feat, p["w_om"], p["b_om"], 1, act="offset_mask", sig_start=2 * c)  # (N,H,W, dg*27)
    offset = om[..., : 2 * c]      # [o1 | o2] = first 2*dg*9 channels (order preserved by cat)
    mask = om[..., 2 * c :]        # sigmoid already applied

    patches = _deform_sample(x, offset, mask, dg)
    N, H, W, C = x.shape
    Cout = p["w"].shape[-1]
    Wt = jnp.transpose(p["w"].reshape(9 * C, Cout))
    out = matmul_bias_act(patches, Wt, p["b"], act="linear")
    return out.reshape(N, H, W, Cout)


def get_offset_apply(p, ali, ref):
    x = jnp.concatenate([ali, ref], axis=-1)
    o = conv3x3(x, p["w1"], p["b1"], 1, "lrelu")
    o = conv3x3(o, p["w2"], p["b2"], 1, "lrelu")
    return o


# ---------------------------------------------------------------------------
# Parameter init (deterministic, synthetic)
# ---------------------------------------------------------------------------
def _conv_params(key, cin, cout, scale=0.05):
    k1, k2 = jax.random.split(key)
    return {
        "w": scale * jax.random.normal(k1, (3, 3, cin, cout), jnp.float32),
        "b": scale * jax.random.normal(k2, (cout,), jnp.float32),
    }


def init_params(key, filters_in, nf, dg):
    P = {}
    keys = jax.random.split(key, 40)
    ki = iter(keys)

    for name, cin in [("L1_a", filters_in), ("L2_a", nf), ("L3_a", nf), ("L4_a", nf),
                      ("L1_r", filters_in), ("L2_r", nf), ("L3_r", nf), ("L4_r", nf)]:
        P[name] = _conv_params(next(ki), cin, nf)

    for name in ["go4", "go3", "go2", "go1", "go0"]:
        c1 = _conv_params(next(ki), 2 * nf, nf)
        c2 = _conv_params(next(ki), nf, nf)
        P[name] = {"w1": c1["w"], "b1": c1["b"], "w2": c2["w"], "b2": c2["b"]}

    for name in ["dcn3", "dcn2", "dcn1", "dcn0", "dcn_out"]:
        om = _conv_params(next(ki), nf, dg * 27)
        wc = _conv_params(next(ki), nf, nf)
        P[name] = {"w_om": om["w"], "b_om": om["b"], "w": wc["w"], "b": wc["b"]}
    return P


# ---------------------------------------------------------------------------
# Alignnet forward
# TODO(synk): coarse pyramid levels (M<=8 rows) produce grid=(1,); batching the a/r
#             towers per level would keep both v7x TensorCores busy on those launches.
# ---------------------------------------------------------------------------
def alignnet_forward(P, ali, ref, dg):
    ali_L1 = conv3x3(ali, P["L1_a"]["w"], P["L1_a"]["b"], 2, "lrelu")
    ali_L2 = conv3x3(ali_L1, P["L2_a"]["w"], P["L2_a"]["b"], 2, "lrelu")
    ali_L3 = conv3x3(ali_L2, P["L3_a"]["w"], P["L3_a"]["b"], 2, "lrelu")
    ali_L4 = conv3x3(ali_L3, P["L4_a"]["w"], P["L4_a"]["b"], 2, "lrelu")

    ref_L1 = conv3x3(ref, P["L1_r"]["w"], P["L1_r"]["b"], 2, "lrelu")
    ref_L2 = conv3x3(ref_L1, P["L2_r"]["w"], P["L2_r"]["b"], 2, "lrelu")
    ref_L3 = conv3x3(ref_L2, P["L3_r"]["w"], P["L3_r"]["b"], 2, "lrelu")
    ref_L4 = conv3x3(ref_L3, P["L4_r"]["w"], P["L4_r"]["b"], 2, "lrelu")

    L4_offset = get_offset_apply(P["go4"], ali_L4, ref_L4)

    L3_offset = up2(L4_offset)
    L3_aligned = dcn_apply(P["dcn3"], ali_L3, L3_offset, dg)
    L3_offset = get_offset_apply(P["go3"], L3_aligned, ref_L3) + L3_offset

    L2_offset = up2(L3_offset)
    L2_aligned = dcn_apply(P["dcn2"], ali_L2, L2_offset, dg)
    L2_offset = get_offset_apply(P["go2"], L2_aligned, ref_L2) + L2_offset

    L1_offset = up2(L2_offset)
    L1_aligned = dcn_apply(P["dcn1"], ali_L1, L1_offset, dg)
    L1_offset = get_offset_apply(P["go1"], L1_aligned, ref_L1) + L1_offset

    L0_offset = up2(L1_offset)
    L0_aligned = dcn_apply(P["dcn0"], ali, L0_offset, dg)
    L0_offset = get_offset_apply(P["go0"], L0_aligned, ref) + L0_offset

    output = dcn_apply(P["dcn_out"], ali, L0_offset, dg)
    return output


if __name__ == "__main__":
    filters_in = 32
    nf = 32
    groups = 8
    N, H, W = 2, 16, 16

    key = jax.random.PRNGKey(0)
    kp, ka, kr = jax.random.split(key, 3)
    P = init_params(kp, filters_in, nf, groups)
    ali = jax.random.normal(ka, (N, H, W, filters_in), jnp.float32)
    ref = jax.random.normal(kr, (N, H, W, filters_in), jnp.float32)

    fwd = jax.jit(functools.partial(alignnet_forward, P, dg=groups))
    out = fwd(ali, ref)
    jax.block_until_ready(out)
    assert out.shape == (N, H, W, nf), out.shape
    assert jnp.all(jnp.isfinite(out))
    print("KERNEL_OK")
</pallas_src>

<mosaic_0001>
module attributes {stable_mosaic.version = 11 : i64} {
  func.func @kernel(%arg0: i32, %arg1: memref<128x288xbf16, #tpu.memory_space<vmem>>, %arg2: memref<32x288xbf16, #tpu.memory_space<vmem>>, %arg3: memref<32x1xf32, #tpu.memory_space<vmem>>, %arg4: memref<32x128xf32, #tpu.memory_space<vmem>>) attributes {dimension_semantics = [#tpu.dimension_semantics<parallel>], iteration_bounds = array<i64: 1>, scalar_prefetch = 0 : i64, scratch_operands = 0 : i64, tpu.core_type = #tpu.core_type<tc>, window_params = [{transform_indices = @transform_0, window_bounds = array<i64: 128, 288>}, {pipeline_mode = #tpu.pipeline_mode<synchronous>, transform_indices = @transform_1, window_bounds = array<i64: 32, 288>}, {pipeline_mode = #tpu.pipeline_mode<synchronous>, transform_indices = @transform_2, window_bounds = array<i64: 32, 1>}, {transform_indices = @transform_3, window_bounds = array<i64: 32, 128>}]} {
    %c0 = arith.constant 0 : index
    %c0_0 = arith.constant 0 : index
    %0 = vector.load %arg2[%c0, %c0_0] : memref<32x288xbf16, #tpu.memory_space<vmem>>, vector<32x288xbf16>
    %c0_1 = arith.constant 0 : index
    %c0_2 = arith.constant 0 : index
    %1 = vector.load %arg1[%c0_1, %c0_2] : memref<128x288xbf16, #tpu.memory_space<vmem>>, vector<128x288xbf16>
    %cst = arith.constant dense<0.000000e+00> : vector<32x128xf32>
    %2 = tpu.matmul %0, %1, %cst {dimension_numbers = #tpu.dot_dimension_numbers<[1], [1], [0], [0], [0, 0, 1, 0], [], []>} : vector<32x288xbf16>, vector<128x288xbf16>, vector<32x128xf32> -> vector<32x128xf32>
    %c0_3 = arith.constant 0 : index
    %c0_4 = arith.constant 0 : index
    %3 = vector.load %arg3[%c0_3, %c0_4] : memref<32x1xf32, #tpu.memory_space<vmem>>, vector<32x1xf32>
    %4 = vector.broadcast %3 : vector<32x1xf32> to vector<32x128xf32>
    %5 = arith.addf %2, %4 : vector<32x128xf32>
    %cst_5 = arith.constant 0.000000e+00 : f32
    %6 = vector.broadcast %cst_5 : f32 to vector<32x128xf32>
    %7 = arith.cmpf oge, %5, %6 : vector<32x128xf32>
    %cst_6 = arith.constant 1.000000e-01 : f32
    %8 = vector.broadcast %cst_6 : f32 to vector<32x128xf32>
    %9 = arith.mulf %8, %5 : vector<32x128xf32>
    %10 = arith.select %7, %5, %9 : vector<32x128xi1>, vector<32x128xf32>
    %c0_7 = arith.constant 0 : index
    %c0_8 = arith.constant 0 : index
    %11 = vector.load %arg4[%c0_7, %c0_8] : memref<32x128xf32, #tpu.memory_space<vmem>>, vector<32x128xf32>
    tpu.vector_store %arg4[%c0_7, %c0_8], %10 {strides = array<i32>} : memref<32x128xf32, #tpu.memory_space<vmem>>, vector<32x128xf32>,
    return
  }
  func.func @transform_0(%arg0: i32) -> (i32, i32) {
    %c0_i32 = arith.constant 0 : i32
    %c0_i32_0 = arith.constant 0 : i32
    return %arg0, %c0_i32 : i32, i32
  }
  func.func @transform_1(%arg0: i32) -> (i32, i32) {
    %c0_i32 = arith.constant 0 : i32
    %c0_i32_0 = arith.constant 0 : i32
    %c0_i32_1 = arith.constant 0 : i32
    return %c0_i32, %c0_i32_0 : i32, i32
  }
  func.func @transform_2(%arg0: i32) -> (i32, i32) {
    %c0_i32 = arith.constant 0 : i32
    %c0_i32_0 = arith.constant 0 : i32
    %c0_i32_1 = arith.constant 0 : i32
    return %c0_i32, %c0_i32_0 : i32, i32
  }
  func.func @transform_3(%arg0: i32) -> (i32, i32) {
    %c0_i32 = arith.constant 0 : i32
    %c0_i32_0 = arith.constant 0 : i32
    return %c0_i32, %arg0 : i32, i32
  }
}

module attributes {stable_mosaic.version = 11 : i64} {
  func.func @kernel(%arg0: i32, %arg1: memref<32x288xbf16, #tpu.memory_space<vmem>>, %arg2: memref<32x288xbf16, #tpu.memory_space<vmem>>, %arg3: memref<32x1xf32, #tpu.memory_space<vmem>>, %arg4: memref<32x32xf32, #tpu.memory_space<vmem>>) attributes {dimension_semantics = [#tpu.dimension_semantics<parallel>], iteration_bounds = array<i64: 1>, scalar_prefetch = 0 : i64, scratch_operands = 0 : i64, tpu.core_type = #tpu.core_type<tc>, window_params = [{transform_indices = @transform_0, window_bounds = array<i64: 32, 288>}, {pipeline_mode = #tpu.pipeline_mode<synchronous>, transform_indices = @transform_1, window_bounds = array<i64: 32, 288>}, {pipeline_mode = #tpu.pipeline_mode<synchronous>, transform_indices = @transform_2, window_bounds = array<i64: 32, 1>}, {transform_indices = @transform_3, window_bounds = array<i64: 32, 32>}]} {
    %c0 = arith.constant 0 : index
    %c0_0 = arith.constant 0 : index
    %0 = vector.load %arg2[%c0, %c0_0] : memref<32x288xbf16, #tpu.memory_space<vmem>>, vector<32x288xbf16>
    %c0_1 = arith.constant 0 : index
    %c0_2 = arith.constant 0 : index
    %1 = vector.load %arg1[%c0_1, %c0_2] : memref<32x288xbf16, #tpu.memory_space<vmem>>, vector<32x288xbf16>
    %cst = arith.constant dense<0.000000e+00> : vector<32x32xf32>
    %2 = tpu.matmul %0, %1, %cst {dimension_numbers = #tpu.dot_dimension_numbers<[1], [1], [0], [0], [0, 0, 1, 0], [], []>} : vector<32x288xbf16>, vector<32x288xbf16>, vector<32x32xf32> -> vector<32x32xf32>
    %c0_3 = arith.constant 0 : index
    %c0_4 = arith.constant 0 : index
    %3 = vector.load %arg3[%c0_3, %c0_4] : memref<32x1xf32, #tpu.memory_space<vmem>>, vector<32x1xf32>
    %4 = vector.broadcast %3 : vector<32x1xf32> to vector<32x32xf32>
    %5 = arith.addf %2, %4 : vector<32x32xf32>
    %cst_5 = arith.constant 0.000000e+00 : f32
    %6 = vector.broadcast %cst_5 : f32 to vector<32x32xf32>
    %7 = arith.cmpf oge, %5, %6 : vector<32x32xf32>
    %cst_6 = arith.constant 1.000000e-01 : f32
    %8 = vector.broadcast %cst_6 : f32 to vector<32x32xf32>
    %9 = arith.mulf %8, %5 : vector<32x32xf32>
    %10 = arith.select %7, %5, %9 : vector<32x32xi1>, vector<32x32xf32>
    %c0_7 = arith.constant 0 : index
    %c0_8 = arith.constant 0 : index
    %11 = vector.load %arg4[%c0_7, %c0_8] : memref<32x32xf32, #tpu.memory_space<vmem>>, vector<32x32xf32>
    tpu.vector_store %arg4[%c0_7, %c0_8], %10 {strides = array<i32>} : memref<32x32xf32, #tpu.memory_space<vmem>>, vector<32x32xf32>,
    return
  }
  func.func @transform_0(%arg0: i32) -> (i32, i32) {
    %c0_i32 = arith.constant 0 : i32
    %c0_i32_0 = arith.constant 0 : i32
    return %arg0, %c0_i32 : i32, i32
  }
  func.func @transform_1(%arg0: i32) -> (i32, i32) {
    %c0_i32 = arith.constant 0 : i32
    %c0_i32_0 = arith.constant 0 : i32
    %c0_i32_1 = arith.constant 0 : i32
    return %c0_i32, %c0_i32_0 : i32, i32
  }
  func.func @transform_2(%arg0: i32) -> (i32, i32) {
    %c0_i32 = arith.constant 0 : i32
    %c0_i32_0 = arith.constant 0 : i32
    %c0_i32_1 = arith.constant 0 : i32
    return %c0_i32, %c0_i32_0 : i32, i32
  }
  func.func @transform_3(%arg0: i32) -> (i32, i32) {
    %c0_i32 = arith.constant 0 : i32
    %c0_i32_0 = arith.constant 0 : i32
    return %c0_i32, %arg0 : i32, i32
  }
}

module attributes {stable_mosaic.version = 11 : i64} {
  func.func @kernel(%arg0: i32, %arg1: memref<8x288xbf16, #tpu.memory_space<vmem>>, %arg2: memref<32x288xbf16, #tpu.memory_space<vmem>>, %arg3: memref<32x1xf32, #tpu.memory_space<vmem>>, %arg4: memref<32x8xf32, #tpu.memory_space<vmem>>) attributes {dimension_semantics = [#tpu.dimension_semantics<parallel>], iteration_bounds = array<i64: 1>, scalar_prefetch = 0 : i64, scratch_operands = 0 : i64, tpu.core_type = #tpu.core_type<tc>, window_params = [{transform_indices = @transform_0, window_bounds = array<i64: 8, 288>}, {pipeline_mode = #tpu.pipeline_mode<synchronous>, transform_indices = @transform_1, window_bounds = array<i64: 32, 288>}, {pipeline_mode = #tpu.pipeline_mode<synchronous>, transform_indices = @transform_2, window_bounds = array<i64: 32, 1>}, {transform_indices = @transform_3, window_bounds = array<i64: 32, 8>}]} {
    %c0 = arith.constant 0 : index
    %c0_0 = arith.constant 0 : index
    %0 = vector.load %arg2[%c0, %c0_0] : memref<32x288xbf16, #tpu.memory_space<vmem>>, vector<32x288xbf16>
    %c0_1 = arith.constant 0 : index
    %c0_2 = arith.constant 0 : index
    %1 = vector.load %arg1[%c0_1, %c0_2] : memref<8x288xbf16, #tpu.memory_space<vmem>>, vector<8x288xbf16>
    %cst = arith.constant dense<0.000000e+00> : vector<32x8xf32>
    %2 = tpu.matmul %0, %1, %cst {dimension_numbers = #tpu.dot_dimension_numbers<[1], [1], [0], [0], [0, 0, 1, 0], [], []>} : vector<32x288xbf16>, vector<8x288xbf16>, vector<32x8xf32> -> vector<32x8xf32>
    %c0_3 = arith.constant 0 : index
    %c0_4 = arith.constant 0 : index
    %3 = vector.load %arg3[%c0_3, %c0_4] : memref<32x1xf32, #tpu.memory_space<vmem>>, vector<32x1xf32>
    %4 = vector.broadcast %3 : vector<32x1xf32> to vector<32x8xf32>
    %5 = arith.addf %2, %4 : vector<32x8xf32>
    %cst_5 = arith.constant 0.000000e+00 : f32
    %6 = vector.broadcast %cst_5 : f32 to vector<32x8xf32>
    %7 = arith.cmpf oge, %5, %6 : vector<32x8xf32>
    %cst_6 = arith.constant 1.000000e-01 : f32
    %8 = vector.broadcast %cst_6 : f32 to vector<32x8xf32>
    %9 = arith.mulf %8, %5 : vector<32x8xf32>
    %10 = arith.select %7, %5, %9 : vector<32x8xi1>, vector<32x8xf32>
    %c0_7 = arith.constant 0 : index
    %c0_8 = arith.constant 0 : index
    %11 = vector.load %arg4[%c0_7, %c0_8] : memref<32x8xf32, #tpu.memory_space<vmem>>, vector<32x8xf32>
    tpu.vector_store %arg4[%c0_7, %c0_8], %10 {strides = array<i32>} : memref<32x8xf32, #tpu.memory_space<vmem>>, vector<32x8xf32>,
    return
  }
  func.func @transform_0(%arg0: i32) -> (i32, i32) {
    %c0_i32 = arith.constant 0 : i32
    %c0_i32_0 = arith.constant 0 : i32
    return %arg0, %c0_i32 : i32, i32
  }
  func.func @transform_1(%arg0: i32) -> (i32, i32) {
    %c0_i32 = arith.constant 0 : i32
    %c0_i32_0 = arith.constant 0 : i32
    %c0_i32_1 = arith.constant 0 : i32
    return %c0_i32, %c0_i32_0 : i32, i32
  }
  func.func @transform_2(%arg0: i32) -> (i32, i32) {
    %c0_i32 = arith.constant 0 : i32
    %c0_i32_0 = arith.constant 0 : i32
    %c0_i32_1 = arith.constant 0 : i32
    return %c0_i32, %c0_i32_0 : i32, i32
  }
  func.func @transform_3(%arg0: i32) -> (i32, i32) {
    %c0_i32 = arith.constant 0 : i32
    %c0_i32_0 = arith.constant 0 : i32
    return %c0_i32, %arg0 : i32, i32
  }
}

module attributes {stable_mosaic.version = 11 : i64} {
  func.func @kernel(%arg0: i32, %arg1: memref<128x288xbf16, #tpu.memory_space<vmem>>, %arg2: memref<32x288xbf16, #tpu.memory_space<vmem>>, %arg3: memref<32x1xf32, #tpu.memory_space<vmem>>, %arg4: memref<32x128xf32, #tpu.memory_space<vmem>>) attributes {dimension_semantics = [#tpu.dimension_semantics<parallel>], iteration_bounds = array<i64: 1>, scalar_prefetch = 0 : i64, scratch_operands = 0 : i64, tpu.core_type = #tpu.core_type<tc>, window_params = [{transform_indices = @transform_0, window_bounds = array<i64: 128, 288>}, {pipeline_mode = #tpu.pipeline_mode<synchronous>, transform_indices = @transform_1, window_bounds = array<i64: 32, 288>}, {pipeline_mode = #tpu.pipeline_mode<synchronous>, transform_indices = @transform_2, window_bounds = array<i64: 32, 1>}, {transform_indices = @transform_3, window_bounds = array<i64: 32, 128>}]} {
    %c0 = arith.constant 0 : index
    %c0_0 = arith.constant 0 : index
    %0 = vector.load %arg2[%c0, %c0_0] : memref<32x288xbf16, #tpu.memory_space<vmem>>, vector<32x288xbf16>
    %c0_1 = arith.constant 0 : index
    %c0_2 = arith.constant 0 : index
    %1 = vector.load %arg1[%c0_1, %c0_2] : memref<128x288xbf16, #tpu.memory_space<vmem>>, vector<128x288xbf16>
    %cst = arith.constant dense<0.000000e+00> : vector<32x128xf32>
    %2 = tpu.matmul %0, %1, %cst {dimension_numbers = #tpu.dot_dimension_numbers<[1], [1], [0], [0], [0, 0, 1, 0], [], []>} : vector<32x288xbf16>, vector<128x288xbf16>, vector<32x128xf32> -> vector<32x128xf32>
    %c0_3 = arith.constant 0 : index
    %c0_4 = arith.constant 0 : index
    %3 = vector.load %arg3[%c0_3, %c0_4] : memref<32x1xf32, #tpu.memory_space<vmem>>, vector<32x1xf32>
    %4 = vector.broadcast %3 : vector<32x1xf32> to vector<32x128xf32>
    %5 = arith.addf %2, %4 : vector<32x128xf32>
    %cst_5 = arith.constant 0.000000e+00 : f32
    %6 = vector.broadcast %cst_5 : f32 to vector<32x128xf32>
    %7 = arith.cmpf oge, %5, %6 : vector<32x128xf32>
    %cst_6 = arith.constant 1.000000e-01 : f32
    %8 = vector.broadcast %cst_6 : f32 to vector<32x128xf32>
    %9 = arith.mulf %8, %5 : vector<32x128xf32>
    %10 = arith.select %7, %5, %9 : vector<32x128xi1>, vector<32x128xf32>
    %c0_7 = arith.constant 0 : index
    %c0_8 = arith.constant 0 : index
    %11 = vector.load %arg4[%c0_7, %c0_8] : memref<32x128xf32, #tpu.memory_space<vmem>>, vector<32x128xf32>
    tpu.vector_store %arg4[%c0_7, %c0_8], %10 {strides = array<i32>} : memref<32x128xf32, #tpu.memory_space<vmem>>, vector<32x128xf32>,
    return
  }
  func.func @transform_0(%arg0: i32) -> (i32, i32) {
    %c0_i32 = arith.constant 0 : i32
    %c0_i32_0 = arith.constant 0 : i32
    return %arg0, %c0_i32 : i32, i32
  }
  func.func @transform_1(%arg0: i32) -> (i32, i32) {
    %c0_i32 = arith.constant 0 : i32
    %c0_i32_0 = arith.constant 0 : i32
    %c0_i32_1 = arith.constant 0 : i32
    return %c0_i32, %c0_i32_0 : i32, i32
  }
  func.func @transform_2(%arg0: i32) -> (i32, i32) {
    %c0_i32 = arith.constant 0 : i32
    %c0_i32_0 = arith.constant 0 : i32
    %c0_i32_1 = arith.constant 0 : i32
    return %c0_i32, %c0_i32_0 : i32, i32
  }
  func.func @transform_3(%arg0: i32) -> (i32, i32) {
    %c0_i32 = arith.constant 0 : i32
    %c0_i32_0 = arith.constant 0 : i32
    return %c0_i32, %arg0 : i32, i32
  }
}

module attributes {stable_mosaic.version = 11 : i64} {
  func.func @kernel(%arg0: i32, %arg1: memref<8x576xbf16, #tpu.memory_space<vmem>>, %arg2: memref<32x576xbf16, #tpu.memory_space<vmem>>, %arg3: memref<32x1xf32, #tpu.memory_space<vmem>>, %arg4: memref<32x8xf32, #tpu.memory_space<vmem>>) attributes {dimension_semantics = [#tpu.dimension_semantics<parallel>], iteration_bounds = array<i64: 1>, scalar_prefetch = 0 : i64, scratch_operands = 0 : i64, tpu.core_type = #tpu.core_type<tc>, window_params = [{transform_indices = @transform_0, window_bounds = array<i64: 8, 576>}, {pipeline_mode = #tpu.pipeline_mode<synchronous>, transform_indices = @transform_1, window_bounds = array<i64: 32, 576>}, {pipeline_mode = #tpu.pipeline_mode<synchronous>, transform_indices = @transform_2, window_bounds = array<i64: 32, 1>}, {transform_indices = @transform_3, window_bounds = array<i64: 32, 8>}]} {
    %c0 = arith.constant 0 : index
    %c0_0 = arith.constant 0 : index
    %0 = vector.load %arg2[%c0, %c0_0] : memref<32x576xbf16, #tpu.memory_space<vmem>>, vector<32x576xbf16>
    %c0_1 = arith.constant 0 : index
    %c0_2 = arith.constant 0 : index
    %1 = vector.load %arg1[%c0_1, %c0_2] : memref<8x576xbf16, #tpu.memory_space<vmem>>, vector<8x576xbf16>
    %cst = arith.constant dense<0.000000e+00> : vector<32x8xf32>
    %2 = tpu.matmul %0, %1, %cst {dimension_numbers = #tpu.dot_dimension_numbers<[1], [1], [0], [0], [0, 0, 1, 0], [], []>} : vector<32x576xbf16>, vector<8x576xbf16>, vector<32x8xf32> -> vector<32x8xf32>
    %c0_3 = arith.constant 0 : index
    %c0_4 = arith.constant 0 : index
    %3 = vector.load %arg3[%c0_3, %c0_4] : memref<32x1xf32, #tpu.memory_space<vmem>>, vector<32x1xf32>
    %4 = vector.broadcast %3 : vector<32x1xf32> to vector<32x8xf32>
    %5 = arith.addf %2, %4 : vector<32x8xf32>
    %cst_5 = arith.constant 0.000000e+00 : f32
    %6 = vector.broadcast %cst_5 : f32 to vector<32x8xf32>
    %7 = arith.cmpf oge, %5, %6 : vector<32x8xf32>
    %cst_6 = arith.constant 1.000000e-01 : f32
    %8 = vector.broadcast %cst_6 : f32 to vector<32x8xf32>
    %9 = arith.mulf %8, %5 : vector<32x8xf32>
    %10 = arith.select %7, %5, %9 : vector<32x8xi1>, vector<32x8xf32>
    %c0_7 = arith.constant 0 : index
    %c0_8 = arith.constant 0 : index
    %11 = vector.load %arg4[%c0_7, %c0_8] : memref<32x8xf32, #tpu.memory_space<vmem>>, vector<32x8xf32>
    tpu.vector_store %arg4[%c0_7, %c0_8], %10 {strides = array<i32>} : memref<32x8xf32, #tpu.memory_space<vmem>>, vector<32x8xf32>,
    return
  }
  func.func @transform_0(%arg0: i32) -> (i32, i32) {
    %c0_i32 = arith.constant 0 : i32
    %c0_i32_0 = arith.constant 0 : i32
    return %arg0, %c0_i32 : i32, i32
  }
  func.func @transform_1(%arg0: i32) -> (i32, i32) {
    %c0_i32 = arith.constant 0 : i32
    %c0_i32_0 = arith.constant 0 : i32
    %c0_i32_1 = arith.constant 0 : i32
    return %c0_i32, %c0_i32_0 : i32, i32
  }
  func.func @transform_2(%arg0: i32) -> (i32, i32) {
    %c0_i32 = arith.constant 0 : i32
    %c0_i32_0 = arith.constant 0 : i32
    %c0_i32_1 = arith.constant 0 : i32
    return %c0_i32, %c0_i32_0 : i32, i32
  }
  func.func @transform_3(%arg0: i32) -> (i32, i32) {
    %c0_i32 = arith.constant 0 : i32
    %c0_i32_0 = arith.constant 0 : i32
    return %c0_i32, %arg0 : i32, i32
  }
}

module attributes {stable_mosaic.version = 11 : i64} {
  func.func @kernel(%arg0: i32, %arg1: memref<32x288xbf16, #tpu.memory_space<vmem>>, %arg2: memref<32x288xbf16, #tpu.memory_space<vmem>>, %arg3: memref<32x1xf32, #tpu.memory_space<vmem>>, %arg4: memref<32x32xf32, #tpu.memory_space<vmem>>) attributes {dimension_semantics = [#tpu.dimension_semantics<parallel>], iteration_bounds = array<i64: 1>, scalar_prefetch = 0 : i64, scratch_operands = 0 : i64, tpu.core_type = #tpu.core_type<tc>, window_params = [{transform_indices = @transform_0, window_bounds = array<i64: 32, 288>}, {pipeline_mode = #tpu.pipeline_mode<synchronous>, transform_indices = @transform_1, window_bounds = array<i64: 32, 288>}, {pipeline_mode = #tpu.pipeline_mode<synchronous>, transform_indices = @transform_2, window_bounds = array<i64: 32, 1>}, {transform_indices = @transform_3, window_bounds = array<i64: 32, 32>}]} {
    %c0 = arith.constant 0 : index
    %c0_0 = arith.constant 0 : index
    %0 = vector.load %arg2[%c0, %c0_0] : memref<32x288xbf16, #tpu.memory_space<vmem>>, vector<32x288xbf16>
    %c0_1 = arith.constant 0 : index
    %c0_2 = arith.constant 0 : index
    %1 = vector.load %arg1[%c0_1, %c0_2] : memref<32x288xbf16, #tpu.memory_space<vmem>>, vector<32x288xbf16>
    %cst = arith.constant dense<0.000000e+00> : vector<32x32xf32>
    %2 = tpu.matmul %0, %1, %cst {dimension_numbers = #tpu.dot_dimension_numbers<[1], [1], [0], [0], [0, 0, 1, 0], [], []>} : vector<32x288xbf16>, vector<32x288xbf16>, vector<32x32xf32> -> vector<32x32xf32>
    %c0_3 = arith.constant 0 : index
    %c0_4 = arith.constant 0 : index
    %3 = vector.load %arg3[%c0_3, %c0_4] : memref<32x1xf32, #tpu.memory_space<vmem>>, vector<32x1xf32>
    %4 = vector.broadcast %3 : vector<32x1xf32> to vector<32x32xf32>
    %5 = arith.addf %2, %4 : vector<32x32xf32>
    %cst_5 = arith.constant 0.000000e+00 : f32
    %6 = vector.broadcast %cst_5 : f32 to vector<32x32xf32>
    %7 = arith.cmpf oge, %5, %6 : vector<32x32xf32>
    %cst_6 = arith.constant 1.000000e-01 : f32
    %8 = vector.broadcast %cst_6 : f32 to vector<32x32xf32>
    %9 = arith.mulf %8, %5 : vector<32x32xf32>
    %10 = arith.select %7, %5, %9 : vector<32x32xi1>, vector<32x32xf32>
    %c0_7 = arith.constant 0 : index
    %c0_8 = arith.constant 0 : index
    %11 = vector.load %arg4[%c0_7, %c0_8] : memref<32x32xf32, #tpu.memory_space<vmem>>, vector<32x32xf32>
    tpu.vector_store %arg4[%c0_7, %c0_8], %10 {strides = array<i32>} : memref<32x32xf32, #tpu.memory_space<vmem>>, vector<32x32xf32>,
    return
  }
  func.func @transform_0(%arg0: i32) -> (i32, i32) {
    %c0_i32 = arith.constant 0 : i32
    %c0_i32_0 = arith.constant 0 : i32
    return %arg0, %c0_i32 : i32, i32
  }
  func.func @transform_1(%arg0: i32) -> (i32, i32) {
    %c0_i32 = arith.constant 0 : i32
    %c0_i32_0 = arith.constant 0 : i32
    %c0_i32_1 = arith.constant 0 : i32
    return %c0_i32, %c0_i32_0 : i32, i32
  }
  func.func @transform_2(%arg0: i32) -> (i32, i32) {
    %c0_i32 = arith.constant 0 : i32
    %c0_i32_0 = arith.constant 0 : i32
    %c0_i32_1 = arith.constant 0 : i32
    return %c0_i32, %c0_i32_0 : i32, i32
  }
  func.func @transform_3(%arg0: i32) -> (i32, i32) {
    %c0_i32 = arith.constant 0 : i32
    %c0_i32_0 = arith.constant 0 : i32
    return %c0_i32, %arg0 : i32, i32
  }
}

module attributes {stable_mosaic.version = 11 : i64} {
  func.func @kernel(%arg0: i32, %arg1: memref<8x288xbf16, #tpu.memory_space<vmem>>, %arg2: memref<216x288xbf16, #tpu.memory_space<vmem>>, %arg3: memref<216x1xf32, #tpu.memory_space<vmem>>, %arg4: memref<216x8xf32, #tpu.memory_space<vmem>>) attributes {dimension_semantics = [#tpu.dimension_semantics<parallel>], iteration_bounds = array<i64: 1>, scalar_prefetch = 0 : i64, scratch_operands = 0 : i64, tpu.core_type = #tpu.core_type<tc>, window_params = [{transform_indices = @transform_0, window_bounds = array<i64: 8, 288>}, {pipeline_mode = #tpu.pipeline_mode<synchronous>, transform_indices = @transform_1, window_bounds = array<i64: 216, 288>}, {pipeline_mode = #tpu.pipeline_mode<synchronous>, transform_indices = @transform_2, window_bounds = array<i64: 216, 1>}, {transform_indices = @transform_3, window_bounds = array<i64: 216, 8>}]} {
    %c0 = arith.constant 0 : index
    %c0_0 = arith.constant 0 : index
    %0 = vector.load %arg2[%c0, %c0_0] : memref<216x288xbf16, #tpu.memory_space<vmem>>, vector<216x288xbf16>
    %c0_1 = arith.constant 0 : index
    %c0_2 = arith.constant 0 : index
    %1 = vector.load %arg1[%c0_1, %c0_2] : memref<8x288xbf16, #tpu.memory_space<vmem>>, vector<8x288xbf16>
    %cst = arith.constant dense<0.000000e+00> : vector<216x8xf32>
    %2 = tpu.matmul %0, %1, %cst {dimension_numbers = #tpu.dot_dimension_numbers<[1], [1], [0], [0], [0, 0, 1, 0], [], []>} : vector<216x288xbf16>, vector<8x288xbf16>, vector<216x8xf32> -> vector<216x8xf32>
    %c0_3 = arith.constant 0 : index
    %c0_4 = arith.constant 0 : index
    %3 = vector.load %arg3[%c0_3, %c0_4] : memref<216x1xf32, #tpu.memory_space<vmem>>, vector<216x1xf32>
    %4 = vector.broadcast %3 : vector<216x1xf32> to vector<216x8xf32>
    %5 = arith.addf %2, %4 : vector<216x8xf32>
    %6 = tpu.iota {dimensions = array<i32: 0>} : vector<216x8xi32>
    %cst_5 = arith.constant 0.000000e+00 : f32
    %7 = vector.broadcast %cst_5 : f32 to vector<216x8xf32>
    %8 = arith.subf %7, %5 : vector<216x8xf32>
    %9 = math.exp %8 : vector<216x8xf32>
    %cst_6 = arith.constant 1.000000e+00 : f32
    %10 = vector.broadcast %cst_6 : f32 to vector<216x8xf32>
    %11 = arith.addf %10, %9 : vector<216x8xf32>
    %cst_7 = arith.constant 1.000000e+00 : f32
    %12 = vector.broadcast %cst_7 : f32 to vector<216x8xf32>
    %13 = arith.divf %12, %11 : vector<216x8xf32>
    %c144_i32 = arith.constant 144 : i32
    %14 = vector.broadcast %c144_i32 : i32 to vector<216x8xi32>
    %15 = arith.cmpi sge, %6, %14 : vector<216x8xi32>
    %16 = arith.select %15, %13, %5 : vector<216x8xi1>, vector<216x8xf32>
    %c0_8 = arith.constant 0 : index
    %c0_9 = arith.constant 0 : index
    %17 = vector.load %arg4[%c0_8, %c0_9] : memref<216x8xf32, #tpu.memory_space<vmem>>, vector<216x8xf32>
    tpu.vector_store %arg4[%c0_8, %c0_9], %16 {strides = array<i32>} : memref<216x8xf32, #tpu.memory_space<vmem>>, vector<216x8xf32>,
    return
  }
  func.func @transform_0(%arg0: i32) -> (i32, i32) {
    %c0_i32 = arith.constant 0 : i32
    %c0_i32_0 = arith.constant 0 : i32
    return %arg0, %c0_i32 : i32, i32
  }
  func.func @transform_1(%arg0: i32) -> (i32, i32) {
    %c0_i32 = arith.constant 0 : i32
    %c0_i32_0 = arith.constant 0 : i32
    %c0_i32_1 = arith.constant 0 : i32
    return %c0_i32, %c0_i32_0 : i32, i32
  }
  func.func @transform_2(%arg0: i32) -> (i32, i32) {
    %c0_i32 = arith.constant 0 : i32
    %c0_i32_0 = arith.constant 0 : i32
    %c0_i32_1 = arith.constant 0 : i32
    return %c0_i32, %c0_i32_0 : i32, i32
  }
  func.func @transform_3(%arg0: i32) -> (i32, i32) {
    %c0_i32 = arith.constant 0 : i32
    %c0_i32_0 = arith.constant 0 : i32
    return %c0_i32, %arg0 : i32, i32
  }
}

module attributes {stable_mosaic.version = 11 : i64} {
  func.func @kernel(%arg0: i32, %arg1: memref<8x288xbf16, #tpu.memory_space<vmem>>, %arg2: memref<32x288xbf16, #tpu.memory_space<vmem>>, %arg3: memref<32x1xf32, #tpu.memory_space<vmem>>, %arg4: memref<32x8xf32, #tpu.memory_space<vmem>>) attributes {dimension_semantics = [#tpu.dimension_semantics<parallel>], iteration_bounds = array<i64: 1>, scalar_prefetch = 0 : i64, scratch_operands = 0 : i64, tpu.core_type = #tpu.core_type<tc>, window_params = [{transform_indices = @transform_0, window_bounds = array<i64: 8, 288>}, {pipeline_mode = #tpu.pipeline_mode<synchronous>, transform_indices = @transform_1, window_bounds = array<i64: 32, 288>}, {pipeline_mode = #tpu.pipeline_mode<synchronous>, transform_indices = @transform_2, window_bounds = array<i64: 32, 1>}, {transform_indices = @transform_3, window_bounds = array<i64: 32, 8>}]} {
    %c0 = arith.constant 0 : index
    %c0_0 = arith.constant 0 : index
    %0 = vector.load %arg2[%c0, %c0_0] : memref<32x288xbf16, #tpu.memory_space<vmem>>, vector<32x288xbf16>
    %c0_1 = arith.constant 0 : index
    %c0_2 = arith.constant 0 : index
    %1 = vector.load %arg1[%c0_1, %c0_2] : memref<8x288xbf16, #tpu.memory_space<vmem>>, vector<8x288xbf16>
    %cst = arith.constant dense<0.000000e+00> : vector<32x8xf32>
    %2 = tpu.matmul %0, %1, %cst {dimension_numbers = #tpu.dot_dimension_numbers<[1], [1], [0], [0], [0, 0, 1, 0], [], []>} : vector<32x288xbf16>, vector<8x288xbf16>, vector<32x8xf32> -> vector<32x8xf32>
    %c0_3 = arith.constant 0 : index
    %c0_4 = arith.constant 0 : index
    %3 = vector.load %arg3[%c0_3, %c0_4] : memref<32x1xf32, #tpu.memory_space<vmem>>, vector<32x1xf32>
    %4 = vector.broadcast %3 : vector<32x1xf32> to vector<32x8xf32>
    %5 = arith.addf %2, %4 : vector<32x8xf32>
    %c0_5 = arith.constant 0 : index
    %c0_6 = arith.constant 0 : index
    %6 = vector.load %arg4[%c0_5, %c0_6] : memref<32x8xf32, #tpu.memory_space<vmem>>, vector<32x8xf32>
    tpu.vector_store %arg4[%c0_5, %c0_6], %5 {strides = array<i32>} : memref<32x8xf32, #tpu.memory_space<vmem>>, vector<32x8xf32>,
    return
  }
  func.func @transform_0(%arg0: i32) -> (i32, i32) {
    %c0_i32 = arith.constant 0 : i32
    %c0_i32_0 = arith.constant 0 : i32
    return %arg0, %c0_i32 : i32, i32
  }
  func.func @transform_1(%arg0: i32) -> (i32, i32) {
    %c0_i32 = arith.constant 0 : i32
    %c0_i32_0 = arith.constant 0 : i32
    %c0_i32_1 = arith.constant 0 : i32
    return %c0_i32, %c0_i32_0 : i32, i32
  }
  func.func @transform_2(%arg0: i32) -> (i32, i32) {
    %c0_i32 = arith.constant 0 : i32
    %c0_i32_0 = arith.constant 0 : i32
    %c0_i32_1 = arith.constant 0 : i32
    return %c0_i32, %c0_i32_0 : i32, i32
  }
  func.func @transform_3(%arg0: i32) -> (i32, i32) {
    %c0_i32 = arith.constant 0 : i32
    %c0_i32_0 = arith.constant 0 : i32
    return %c0_i32, %arg0 : i32, i32
  }
}

module attributes {stable_mosaic.version = 11 : i64} {
  func.func @kernel(%arg0: i32, %arg1: memref<32x288xbf16, #tpu.memory_space<vmem>>, %arg2: memref<216x288xbf16, #tpu.memory_space<vmem>>, %arg3: memref<216x1xf32, #tpu.memory_space<vmem>>, %arg4: memref<216x32xf32, #tpu.memory_space<vmem>>) attributes {dimension_semantics = [#tpu.dimension_semantics<parallel>], iteration_bounds = array<i64: 1>, scalar_prefetch = 0 : i64, scratch_operands = 0 : i64, tpu.core_type = #tpu.core_type<tc>, window_params = [{transform_indices = @transform_0, window_bounds = array<i64: 32, 288>}, {pipeline_mode = #tpu.pipeline_mode<synchronous>, transform_indices = @transform_1, window_bounds = array<i64: 216, 288>}, {pipeline_mode = #tpu.pipeline_mode<synchronous>, transform_indices = @transform_2, window_bounds = array<i64: 216, 1>}, {transform_indices = @transform_3, window_bounds = array<i64: 216, 32>}]} {
    %c0 = arith.constant 0 : index
    %c0_0 = arith.constant 0 : index
    %0 = vector.load %arg2[%c0, %c0_0] : memref<216x288xbf16, #tpu.memory_space<vmem>>, vector<216x288xbf16>
    %c0_1 = arith.constant 0 : index
    %c0_2 = arith.constant 0 : index
    %1 = vector.load %arg1[%c0_1, %c0_2] : memref<32x288xbf16, #tpu.memory_space<vmem>>, vector<32x288xbf16>
    %cst = arith.constant dense<0.000000e+00> : vector<216x32xf32>
    %2 = tpu.matmul %0, %1, %cst {dimension_numbers = #tpu.dot_dimension_numbers<[1], [1], [0], [0], [0, 0, 1, 0], [], []>} : vector<216x288xbf16>, vector<32x288xbf16>, vector<216x32xf32> -> vector<216x32xf32>
    %c0_3 = arith.constant 0 : index
    %c0_4 = arith.constant 0 : index
    %3 = vector.load %arg3[%c0_3, %c0_4] : memref<216x1xf32, #tpu.memory_space<vmem>>, vector<216x1xf32>
    %4 = vector.broadcast %3 : vector<216x1xf32> to vector<216x32xf32>
    %5 = arith.addf %2, %4 : vector<216x32xf32>
    %6 = tpu.iota {dimensions = array<i32: 0>} : vector<216x32xi32>
    %cst_5 = arith.constant 0.000000e+00 : f32
    %7 = vector.broadcast %cst_5 : f32 to vector<216x32xf32>
    %8 = arith.subf %7, %5 : vector<216x32xf32>
    %9 = math.exp %8 : vector<216x32xf32>
    %cst_6 = arith.constant 1.000000e+00 : f32
    %10 = vector.broadcast %cst_6 : f32 to vector<216x32xf32>
    %11 = arith.addf %10, %9 : vector<216x32xf32>
    %cst_7 = arith.constant 1.000000e+00 : f32
    %12 = vector.broadcast %cst_7 : f32 to vector<216x32xf32>
    %13 = arith.divf %12, %11 : vector<216x32xf32>
    %c144_i32 = arith.constant 144 : i32
    %14 = vector.broadcast %c144_i32 : i32 to vector<216x32xi32>
    %15 = arith.cmpi sge, %6, %14 : vector<216x32xi32>
    %16 = arith.select %15, %13, %5 : vector<216x32xi1>, vector<216x32xf32>
    %c0_8 = arith.constant 0 : index
    %c0_9 = arith.constant 0 : index
    %17 = vector.load %arg4[%c0_8, %c0_9] : memref<216x32xf32, #tpu.memory_space<vmem>>, vector<216x32xf32>
    tpu.vector_store %arg4[%c0_8, %c0_9], %16 {strides = array<i32>} : memref<216x32xf32, #tpu.memory_space<vmem>>, vector<216x32xf32>,
    return
  }
  func.func @transform_0(%arg0: i32) -> (i32, i32) {
    %c0_i32 = arith.constant 0 : i32
    %c0_i32_0 = arith.constant 0 : i32
    return %arg0, %c0_i32 : i32, i32
  }
  func.func @transform_1(%arg0: i32) -> (i32, i32) {
    %c0_i32 = arith.constant 0 : i32
    %c0_i32_0 = arith.constant 0 : i32
    %c0_i32_1 = arith.constant 0 : i32
    return %c0_i32, %c0_i32_0 : i32, i32
  }
  func.func @transform_2(%arg0: i32) -> (i32, i32) {
    %c0_i32 = arith.constant 0 : i32
    %c0_i32_0 = arith.constant 0 : i32
    %c0_i32_1 = arith.constant 0 : i32
    return %c0_i32, %c0_i32_0 : i32, i32
  }
  func.func @transform_3(%arg0: i32) -> (i32, i32) {
    %c0_i32 = arith.constant 0 : i32
    %c0_i32_0 = arith.constant 0 : i32
    return %c0_i32, %arg0 : i32, i32
  }
}

module attributes {stable_mosaic.version = 11 : i64} {
  func.func @kernel(%arg0: i32, %arg1: memref<32x288xbf16, #tpu.memory_space<vmem>>, %arg2: memref<32x288xbf16, #tpu.memory_space<vmem>>, %arg3: memref<32x1xf32, #tpu.memory_space<vmem>>, %arg4: memref<32x32xf32, #tpu.memory_space<vmem>>) attributes {dimension_semantics = [#tpu.dimension_semantics<parallel>], iteration_bounds = array<i64: 1>, scalar_prefetch = 0 : i64, scratch_operands = 0 : i64, tpu.core_type = #tpu.core_type<tc>, window_params = [{transform_indices = @transform_0, window_bounds = array<i64: 32, 288>}, {pipeline_mode = #tpu.pipeline_mode<synchronous>, transform_indices = @transform_1, window_bounds = array<i64: 32, 288>}, {pipeline_mode = #tpu.pipeline_mode<synchronous>, transform_indices = @transform_2, window_bounds = array<i64: 32, 1>}, {transform_indices = @transform_3, window_bounds = array<i64: 32, 32>}]} {
    %c0 = arith.constant 0 : index
    %c0_0 = arith.constant 0 : index
    %0 = vector.load %arg2[%c0, %c0_0] : memref<32x288xbf16, #tpu.memory_space<vmem>>, vector<32x288xbf16>
    %c0_1 = arith.constant 0 : index
    %c0_2 = arith.constant 0 : index
    %1 = vector.load %arg1[%c0_1, %c0_2] : memref<32x288xbf16, #tpu.memory_space<vmem>>, vector<32x288xbf16>
    %cst = arith.constant dense<0.000000e+00> : vector<32x32xf32>
    %2 = tpu.matmul %0, %1, %cst {dimension_numbers = #tpu.dot_dimension_numbers<[1], [1], [0], [0], [0, 0, 1, 0], [], []>} : vector<32x288xbf16>, vector<32x288xbf16>, vector<32x32xf32> -> vector<32x32xf32>
    %c0_3 = arith.constant 0 : index
    %c0_4 = arith.constant 0 : index
    %3 = vector.load %arg3[%c0_3, %c0_4] : memref<32x1xf32, #tpu.memory_space<vmem>>, vector<32x1xf32>
    %4 = vector.broadcast %3 : vector<32x1xf32> to vector<32x32xf32>
    %5 = arith.addf %2, %4 : vector<32x32xf32>
    %c0_5 = arith.constant 0 : index
    %c0_6 = arith.constant 0 : index
    %6 = vector.load %arg4[%c0_5, %c0_6] : memref<32x32xf32, #tpu.memory_space<vmem>>, vector<32x32xf32>
    tpu.vector_store %arg4[%c0_5, %c0_6], %5 {strides = array<i32>} : memref<32x32xf32, #tpu.memory_space<vmem>>, vector<32x32xf32>,
    return
  }
  func.func @transform_0(%arg0: i32) -> (i32, i32) {
    %c0_i32 = arith.constant 0 : i32
    %c0_i32_0 = arith.constant 0 : i32
    return %arg0, %c0_i32 : i32, i32
  }
  func.func @transform_1(%arg0: i32) -> (i32, i32) {
    %c0_i32 = arith.constant 0 : i32
    %c0_i32_0 = arith.constant 0 : i32
    %c0_i32_1 = arith.constant 0 : i32
    return %c0_i32, %c0_i32_0 : i32, i32
  }
  func.func @transform_2(%arg0: i32) -> (i32, i32) {
    %c0_i32 = arith.constant 0 : i32
    %c0_i32_0 = arith.constant 0 : i32
    %c0_i32_1 = arith.constant 0 : i32
    return %c0_i32, %c0_i32_0 : i32, i32
  }
  func.func @transform_3(%arg0: i32) -> (i32, i32) {
    %c0_i32 = arith.constant 0 : i32
    %c0_i32_0 = arith.constant 0 : i32
    return %c0_i32, %arg0 : i32, i32
  }
}

module attributes {stable_mosaic.version = 11 : i64} {
  func.func @kernel(%arg0: i32, %arg1: memref<32x576xbf16, #tpu.memory_space<vmem>>, %arg2: memref<32x576xbf16, #tpu.memory_space<vmem>>, %arg3: memref<32x1xf32, #tpu.memory_space<vmem>>, %arg4: memref<32x32xf32, #tpu.memory_space<vmem>>) attributes {dimension_semantics = [#tpu.dimension_semantics<parallel>], iteration_bounds = array<i64: 1>, scalar_prefetch = 0 : i64, scratch_operands = 0 : i64, tpu.core_type = #tpu.core_type<tc>, window_params = [{transform_indices = @transform_0, window_bounds = array<i64: 32, 576>}, {pipeline_mode = #tpu.pipeline_mode<synchronous>, transform_indices = @transform_1, window_bounds = array<i64: 32, 576>}, {pipeline_mode = #tpu.pipeline_mode<synchronous>, transform_indices = @transform_2, window_bounds = array<i64: 32, 1>}, {transform_indices = @transform_3, window_bounds = array<i64: 32, 32>}]} {
    %c0 = arith.constant 0 : index
    %c0_0 = arith.constant 0 : index
    %0 = vector.load %arg2[%c0, %c0_0] : memref<32x576xbf16, #tpu.memory_space<vmem>>, vector<32x576xbf16>
    %c0_1 = arith.constant 0 : index
    %c0_2 = arith.constant 0 : index
    %1 = vector.load %arg1[%c0_1, %c0_2] : memref<32x576xbf16, #tpu.memory_space<vmem>>, vector<32x576xbf16>
    %cst = arith.constant dense<0.000000e+00> : vector<32x32xf32>
    %2 = tpu.matmul %0, %1, %cst {dimension_numbers = #tpu.dot_dimension_numbers<[1], [1], [0], [0], [0, 0, 1, 0], [], []>} : vector<32x576xbf16>, vector<32x576xbf16>, vector<32x32xf32> -> vector<32x32xf32>
    %c0_3 = arith.constant 0 : index
    %c0_4 = arith.constant 0 : index
    %3 = vector.load %arg3[%c0_3, %c0_4] : memref<32x1xf32, #tpu.memory_space<vmem>>, vector<32x1xf32>
    %4 = vector.broadcast %3 : vector<32x1xf32> to vector<32x32xf32>
    %5 = arith.addf %2, %4 : vector<32x32xf32>
    %cst_5 = arith.constant 0.000000e+00 : f32
    %6 = vector.broadcast %cst_5 : f32 to vector<32x32xf32>
    %7 = arith.cmpf oge, %5, %6 : vector<32x32xf32>
    %cst_6 = arith.constant 1.000000e-01 : f32
    %8 = vector.broadcast %cst_6 : f32 to vector<32x32xf32>
    %9 = arith.mulf %8, %5 : vector<32x32xf32>
    %10 = arith.select %7, %5, %9 : vector<32x32xi1>, vector<32x32xf32>
    %c0_7 = arith.constant 0 : index
    %c0_8 = arith.constant 0 : index
    %11 = vector.load %arg4[%c0_7, %c0_8] : memref<32x32xf32, #tpu.memory_space<vmem>>, vector<32x32xf32>
    tpu.vector_store %arg4[%c0_7, %c0_8], %10 {strides = array<i32>} : memref<32x32xf32, #tpu.memory_space<vmem>>, vector<32x32xf32>,
    return
  }
  func.func @transform_0(%arg0: i32) -> (i32, i32) {
    %c0_i32 = arith.constant 0 : i32
    %c0_i32_0 = arith.constant 0 : i32
    return %arg0, %c0_i32 : i32, i32
  }
  func.func @transform_1(%arg0: i32) -> (i32, i32) {
    %c0_i32 = arith.constant 0 : i32
    %c0_i32_0 = arith.constant 0 : i32
    %c0_i32_1 = arith.constant 0 : i32
    return %c0_i32, %c0_i32_0 : i32, i32
  }
  func.func @transform_2(%arg0: i32) -> (i32, i32) {
    %c0_i32 = arith.constant 0 : i32
    %c0_i32_0 = arith.constant 0 : i32
    %c0_i32_1 = arith.constant 0 : i32
    return %c0_i32, %c0_i32_0 : i32, i32
  }
  func.func @transform_3(%arg0: i32) -> (i32, i32) {
    %c0_i32 = arith.constant 0 : i32
    %c0_i32_0 = arith.constant 0 : i32
    return %c0_i32, %arg0 : i32, i32
  }
}

module attributes {stable_mosaic.version = 11 : i64} {
  func.func @kernel(%arg0: i32, %arg1: memref<128x288xbf16, #tpu.memory_space<vmem>>, %arg2: memref<216x288xbf16, #tpu.memory_space<vmem>>, %arg3: memref<216x1xf32, #tpu.memory_space<vmem>>, %arg4: memref<216x128xf32, #tpu.memory_space<vmem>>) attributes {dimension_semantics = [#tpu.dimension_semantics<parallel>], iteration_bounds = array<i64: 1>, scalar_prefetch = 0 : i64, scratch_operands = 0 : i64, tpu.core_type = #tpu.core_type<tc>, window_params = [{transform_indices = @transform_0, window_bounds = array<i64: 128, 288>}, {pipeline_mode = #tpu.pipeline_mode<synchronous>, transform_indices = @transform_1, window_bounds = array<i64: 216, 288>}, {pipeline_mode = #tpu.pipeline_mode<synchronous>, transform_indices = @transform_2, window_bounds = array<i64: 216, 1>}, {transform_indices = @transform_3, window_bounds = array<i64: 216, 128>}]} {
    %c0 = arith.constant 0 : index
    %c0_0 = arith.constant 0 : index
    %0 = vector.load %arg2[%c0, %c0_0] : memref<216x288xbf16, #tpu.memory_space<vmem>>, vector<216x288xbf16>
    %c0_1 = arith.constant 0 : index
    %c0_2 = arith.constant 0 : index
    %1 = vector.load %arg1[%c0_1, %c0_2] : memref<128x288xbf16, #tpu.memory_space<vmem>>, vector<128x288xbf16>
    %cst = arith.constant dense<0.000000e+00> : vector<216x128xf32>
    %2 = tpu.matmul %0, %1, %cst {dimension_numbers = #tpu.dot_dimension_numbers<[1], [1], [0], [0], [0, 0, 1, 0], [], []>} : vector<216x288xbf16>, vector<128x288xbf16>, vector<216x128xf32> -> vector<216x128xf32>
    %c0_3 = arith.constant 0 : index
    %c0_4 = arith.constant 0 : index
    %3 = vector.load %arg3[%c0_3, %c0_4] : memref<216x1xf32, #tpu.memory_space<vmem>>, vector<216x1xf32>
    %4 = vector.broadcast %3 : vector<216x1xf32> to vector<216x128xf32>
    %5 = arith.addf %2, %4 : vector<216x128xf32>
    %6 = tpu.iota {dimensions = array<i32: 0>} : vector<216x128xi32>
    %cst_5 = arith.constant 0.000000e+00 : f32
    %7 = vector.broadcast %cst_5 : f32 to vector<216x128xf32>
    %8 = arith.subf %7, %5 : vector<216x128xf32>
    %9 = math.exp %8 : vector<216x128xf32>
    %cst_6 = arith.constant 1.000000e+00 : f32
    %10 = vector.broadcast %cst_6 : f32 to vector<216x128xf32>
    %11 = arith.addf %10, %9 : vector<216x128xf32>
    %cst_7 = arith.constant 1.000000e+00 : f32
    %12 = vector.broadcast %cst_7 : f32 to vector<216x128xf32>
    %13 = arith.divf %12, %11 : vector<216x128xf32>
    %c144_i32 = arith.constant 144 : i32
    %14 = vector.broadcast %c144_i32 : i32 to vector<216x128xi32>
    %15 = arith.cmpi sge, %6, %14 : vector<216x128xi32>
    %16 = arith.select %15, %13, %5 : vector<216x128xi1>, vector<216x128xf32>
    %c0_8 = arith.constant 0 : index
    %c0_9 = arith.constant 0 : index
    %17 = vector.load %arg4[%c0_8, %c0_9] : memref<216x128xf32, #tpu.memory_space<vmem>>, vector<216x128xf32>
    tpu.vector_store %arg4[%c0_8, %c0_9], %16 {strides = array<i32>} : memref<216x128xf32, #tpu.memory_space<vmem>>, vector<216x128xf32>,
    return
  }
  func.func @transform_0(%arg0: i32) -> (i32, i32) {
    %c0_i32 = arith.constant 0 : i32
    %c0_i32_0 = arith.constant 0 : i32
    return %arg0, %c0_i32 : i32, i32
  }
  func.func @transform_1(%arg0: i32) -> (i32, i32) {
    %c0_i32 = arith.constant 0 : i32
    %c0_i32_0 = arith.constant 0 : i32
    %c0_i32_1 = arith.constant 0 : i32
    return %c0_i32, %c0_i32_0 : i32, i32
  }
  func.func @transform_2(%arg0: i32) -> (i32, i32) {
    %c0_i32 = arith.constant 0 : i32
    %c0_i32_0 = arith.constant 0 : i32
    %c0_i32_1 = arith.constant 0 : i32
    return %c0_i32, %c0_i32_0 : i32, i32
  }
  func.func @transform_3(%arg0: i32) -> (i32, i32) {
    %c0_i32 = arith.constant 0 : i32
    %c0_i32_0 = arith.constant 0 : i32
    return %c0_i32, %arg0 : i32, i32
  }
}

module attributes {stable_mosaic.version = 11 : i64} {
  func.func @kernel(%arg0: i32, %arg1: memref<128x288xbf16, #tpu.memory_space<vmem>>, %arg2: memref<32x288xbf16, #tpu.memory_space<vmem>>, %arg3: memref<32x1xf32, #tpu.memory_space<vmem>>, %arg4: memref<32x128xf32, #tpu.memory_space<vmem>>) attributes {dimension_semantics = [#tpu.dimension_semantics<parallel>], iteration_bounds = array<i64: 1>, scalar_prefetch = 0 : i64, scratch_operands = 0 : i64, tpu.core_type = #tpu.core_type<tc>, window_params = [{transform_indices = @transform_0, window_bounds = array<i64: 128, 288>}, {pipeline_mode = #tpu.pipeline_mode<synchronous>, transform_indices = @transform_1, window_bounds = array<i64: 32, 288>}, {pipeline_mode = #tpu.pipeline_mode<synchronous>, transform_indices = @transform_2, window_bounds = array<i64: 32, 1>}, {transform_indices = @transform_3, window_bounds = array<i64: 32, 128>}]} {
    %c0 = arith.constant 0 : index
    %c0_0 = arith.constant 0 : index
    %0 = vector.load %arg2[%c0, %c0_0] : memref<32x288xbf16, #tpu.memory_space<vmem>>, vector<32x288xbf16>
    %c0_1 = arith.constant 0 : index
    %c0_2 = arith.constant 0 : index
    %1 = vector.load %arg1[%c0_1, %c0_2] : memref<128x288xbf16, #tpu.memory_space<vmem>>, vector<128x288xbf16>
    %cst = arith.constant dense<0.000000e+00> : vector<32x128xf32>
    %2 = tpu.matmul %0, %1, %cst {dimension_numbers = #tpu.dot_dimension_numbers<[1], [1], [0], [0], [0, 0, 1, 0], [], []>} : vector<32x288xbf16>, vector<128x288xbf16>, vector<32x128xf32> -> vector<32x128xf32>
    %c0_3 = arith.constant 0 : index
    %c0_4 = arith.constant 0 : index
    %3 = vector.load %arg3[%c0_3, %c0_4] : memref<32x1xf32, #tpu.memory_space<vmem>>, vector<32x1xf32>
    %4 = vector.broadcast %3 : vector<32x1xf32> to vector<32x128xf32>
    %5 = arith.addf %2, %4 : vector<32x128xf32>
    %c0_5 = arith.constant 0 : index
    %c0_6 = arith.constant 0 : index
    %6 = vector.load %arg4[%c0_5, %c0_6] : memref<32x128xf32, #tpu.memory_space<vmem>>, vector<32x128xf32>
    tpu.vector_store %arg4[%c0_5, %c0_6], %5 {strides = array<i32>} : memref<32x128xf32, #tpu.memory_space<vmem>>, vector<32x128xf32>,
    return
  }
  func.func @transform_0(%arg0: i32) -> (i32, i32) {
    %c0_i32 = arith.constant 0 : i32
    %c0_i32_0 = arith.constant 0 : i32
    return %arg0, %c0_i32 : i32, i32
  }
  func.func @transform_1(%arg0: i32) -> (i32, i32) {
    %c0_i32 = arith.constant 0 : i32
    %c0_i32_0 = arith.constant 0 : i32
    %c0_i32_1 = arith.constant 0 : i32
    return %c0_i32, %c0_i32_0 : i32, i32
  }
  func.func @transform_2(%arg0: i32) -> (i32, i32) {
    %c0_i32 = arith.constant 0 : i32
    %c0_i32_0 = arith.constant 0 : i32
    %c0_i32_1 = arith.constant 0 : i32
    return %c0_i32, %c0_i32_0 : i32, i32
  }
  func.func @transform_3(%arg0: i32) -> (i32, i32) {
    %c0_i32 = arith.constant 0 : i32
    %c0_i32_0 = arith.constant 0 : i32
    return %c0_i32, %arg0 : i32, i32
  }
}

module attributes {stable_mosaic.version = 11 : i64} {
  func.func @kernel(%arg0: i32, %arg1: memref<128x576xbf16, #tpu.memory_space<vmem>>, %arg2: memref<32x576xbf16, #tpu.memory_space<vmem>>, %arg3: memref<32x1xf32, #tpu.memory_space<vmem>>, %arg4: memref<32x128xf32, #tpu.memory_space<vmem>>) attributes {dimension_semantics = [#tpu.dimension_semantics<parallel>], iteration_bounds = array<i64: 1>, scalar_prefetch = 0 : i64, scratch_operands = 0 : i64, tpu.core_type = #tpu.core_type<tc>, window_params = [{transform_indices = @transform_0, window_bounds = array<i64: 128, 576>}, {pipeline_mode = #tpu.pipeline_mode<synchronous>, transform_indices = @transform_1, window_bounds = array<i64: 32, 576>}, {pipeline_mode = #tpu.pipeline_mode<synchronous>, transform_indices = @transform_2, window_bounds = array<i64: 32, 1>}, {transform_indices = @transform_3, window_bounds = array<i64: 32, 128>}]} {
    %c0 = arith.constant 0 : index
    %c0_0 = arith.constant 0 : index
    %0 = vector.load %arg2[%c0, %c0_0] : memref<32x576xbf16, #tpu.memory_space<vmem>>, vector<32x576xbf16>
    %c0_1 = arith.constant 0 : index
    %c0_2 = arith.constant 0 : index
    %1 = vector.load %arg1[%c0_1, %c0_2] : memref<128x576xbf16, #tpu.memory_space<vmem>>, vector<128x576xbf16>
    %cst = arith.constant dense<0.000000e+00> : vector<32x128xf32>
    %2 = tpu.matmul %0, %1, %cst {dimension_numbers = #tpu.dot_dimension_numbers<[1], [1], [0], [0], [0, 0, 1, 0], [], []>} : vector<32x576xbf16>, vector<128x576xbf16>, vector<32x128xf32> -> vector<32x128xf32>
    %c0_3 = arith.constant 0 : index
    %c0_4 = arith.constant 0 : index
    %3 = vector.load %arg3[%c0_3, %c0_4] : memref<32x1xf32, #tpu.memory_space<vmem>>, vector<32x1xf32>
    %4 = vector.broadcast %3 : vector<32x1xf32> to vector<32x128xf32>
    %5 = arith.addf %2, %4 : vector<32x128xf32>
    %cst_5 = arith.constant 0.000000e+00 : f32
    %6 = vector.broadcast %cst_5 : f32 to vector<32x128xf32>
    %7 = arith.cmpf oge, %5, %6 : vector<32x128xf32>
    %cst_6 = arith.constant 1.000000e-01 : f32
    %8 = vector.broadcast %cst_6 : f32 to vector<32x128xf32>
    %9 = arith.mulf %8, %5 : vector<32x128xf32>
    %10 = arith.select %7, %5, %9 : vector<32x128xi1>, vector<32x128xf32>
    %c0_7 = arith.constant 0 : index
    %c0_8 = arith.constant 0 : index
    %11 = vector.load %arg4[%c0_7, %c0_8] : memref<32x128xf32, #tpu.memory_space<vmem>>, vector<32x128xf32>
    tpu.vector_store %arg4[%c0_7, %c0_8], %10 {strides = array<i32>} : memref<32x128xf32, #tpu.memory_space<vmem>>, vector<32x128xf32>,
    return
  }
  func.func @transform_0(%arg0: i32) -> (i32, i32) {
    %c0_i32 = arith.constant 0 : i32
    %c0_i32_0 = arith.constant 0 : i32
    return %arg0, %c0_i32 : i32, i32
  }
  func.func @transform_1(%arg0: i32) -> (i32, i32) {
    %c0_i32 = arith.constant 0 : i32
    %c0_i32_0 = arith.constant 0 : i32
    %c0_i32_1 = arith.constant 0 : i32
    return %c0_i32, %c0_i32_0 : i32, i32
  }
  func.func @transform_2(%arg0: i32) -> (i32, i32) {
    %c0_i32 = arith.constant 0 : i32
    %c0_i32_0 = arith.constant 0 : i32
    %c0_i32_1 = arith.constant 0 : i32
    return %c0_i32, %c0_i32_0 : i32, i32
  }
  func.func @transform_3(%arg0: i32) -> (i32, i32) {
    %c0_i32 = arith.constant 0 : i32
    %c0_i32_0 = arith.constant 0 : i32
    return %c0_i32, %arg0 : i32, i32
  }
}

module attributes {stable_mosaic.version = 11 : i64} {
  func.func @kernel(%arg0: i32, %arg1: memref<512x288xbf16, #tpu.memory_space<vmem>>, %arg2: memref<216x288xbf16, #tpu.memory_space<vmem>>, %arg3: memref<216x1xf32, #tpu.memory_space<vmem>>, %arg4: memref<216x512xf32, #tpu.memory_space<vmem>>) attributes {dimension_semantics = [#tpu.dimension_semantics<parallel>], iteration_bounds = array<i64: 1>, scalar_prefetch = 0 : i64, scratch_operands = 0 : i64, tpu.core_type = #tpu.core_type<tc>, window_params = [{transform_indices = @transform_0, window_bounds = array<i64: 512, 288>}, {pipeline_mode = #tpu.pipeline_mode<synchronous>, transform_indices = @transform_1, window_bounds = array<i64: 216, 288>}, {pipeline_mode = #tpu.pipeline_mode<synchronous>, transform_indices = @transform_2, window_bounds = array<i64: 216, 1>}, {transform_indices = @transform_3, window_bounds = array<i64: 216, 512>}]} {
    %c0 = arith.constant 0 : index
    %c0_0 = arith.constant 0 : index
    %0 = vector.load %arg2[%c0, %c0_0] : memref<216x288xbf16, #tpu.memory_space<vmem>>, vector<216x288xbf16>
    %c0_1 = arith.constant 0 : index
    %c0_2 = arith.constant 0 : index
    %1 = vector.load %arg1[%c0_1, %c0_2] : memref<512x288xbf16, #tpu.memory_space<vmem>>, vector<512x288xbf16>
    %cst = arith.constant dense<0.000000e+00> : vector<216x512xf32>
    %2 = tpu.matmul %0, %1, %cst {dimension_numbers = #tpu.dot_dimension_numbers<[1], [1], [0], [0], [0, 0, 1, 0], [], []>} : vector<216x288xbf16>, vector<512x288xbf16>, vector<216x512xf32> -> vector<216x512xf32>
    %c0_3 = arith.constant 0 : index
    %c0_4 = arith.constant 0 : index
    %3 = vector.load %arg3[%c0_3, %c0_4] : memref<216x1xf32, #tpu.memory_space<vmem>>, vector<216x1xf32>
    %4 = vector.broadcast %3 : vector<216x1xf32> to vector<216x512xf32>
    %5 = arith.addf %2, %4 : vector<216x512xf32>
    %6 = tpu.iota {dimensions = array<i32: 0>} : vector<216x512xi32>
    %cst_5 = arith.constant 0.000000e+00 : f32
    %7 = vector.broadcast %cst_5 : f32 to vector<216x512xf32>
    %8 = arith.subf %7, %5 : vector<216x512xf32>
    %9 = math.exp %8 : vector<216x512xf32>
    %cst_6 = arith.constant 1.000000e+00 : f32
    %10 = vector.broadcast %cst_6 : f32 to vector<216x512xf32>
    %11 = arith.addf %10, %9 : vector<216x512xf32>
    %cst_7 = arith.constant 1.000000e+00 : f32
    %12 = vector.broadcast %cst_7 : f32 to vector<216x512xf32>
    %13 = arith.divf %12, %11 : vector<216x512xf32>
    %c144_i32 = arith.constant 144 : i32
    %14 = vector.broadcast %c144_i32 : i32 to vector<216x512xi32>
    %15 = arith.cmpi sge, %6, %14 : vector<216x512xi32>
    %16 = arith.select %15, %13, %5 : vector<216x512xi1>, vector<216x512xf32>
    %c0_8 = arith.constant 0 : index
    %c0_9 = arith.constant 0 : index
    %17 = vector.load %arg4[%c0_8, %c0_9] : memref<216x512xf32, #tpu.memory_space<vmem>>, vector<216x512xf32>
    tpu.vector_store %arg4[%c0_8, %c0_9], %16 {strides = array<i32>} : memref<216x512xf32, #tpu.memory_space<vmem>>, vector<216x512xf32>,
    return
  }
  func.func @transform_0(%arg0: i32) -> (i32, i32) {
    %c0_i32 = arith.constant 0 : i32
    %c0_i32_0 = arith.constant 0 : i32
    return %arg0, %c0_i32 : i32, i32
  }
  func.func @transform_1(%arg0: i32) -> (i32, i32) {
    %c0_i32 = arith.constant 0 : i32
    %c0_i32_0 = arith.constant 0 : i32
    %c0_i32_1 = arith.constant 0 : i32
    return %c0_i32, %c0_i32_0 : i32, i32
  }
  func.func @transform_2(%arg0: i32) -> (i32, i32) {
    %c0_i32 = arith.constant 0 : i32
    %c0_i32_0 = arith.constant 0 : i32
    %c0_i32_1 = arith.constant 0 : i32
    return %c0_i32, %c0_i32_0 : i32, i32
  }
  func.func @transform_3(%arg0: i32) -> (i32, i32) {
    %c0_i32 = arith.constant 0 : i32
    %c0_i32_0 = arith.constant 0 : i32
    return %c0_i32, %arg0 : i32, i32
  }
}

module attributes {stable_mosaic.version = 11 : i64} {
  func.func @kernel(%arg0: i32, %arg1: memref<512x288xbf16, #tpu.memory_space<vmem>>, %arg2: memref<32x288xbf16, #tpu.memory_space<vmem>>, %arg3: memref<32x1xf32, #tpu.memory_space<vmem>>, %arg4: memref<32x512xf32, #tpu.memory_space<vmem>>) attributes {dimension_semantics = [#tpu.dimension_semantics<parallel>], iteration_bounds = array<i64: 1>, scalar_prefetch = 0 : i64, scratch_operands = 0 : i64, tpu.core_type = #tpu.core_type<tc>, window_params = [{transform_indices = @transform_0, window_bounds = array<i64: 512, 288>}, {pipeline_mode = #tpu.pipeline_mode<synchronous>, transform_indices = @transform_1, window_bounds = array<i64: 32, 288>}, {pipeline_mode = #tpu.pipeline_mode<synchronous>, transform_indices = @transform_2, window_bounds = array<i64: 32, 1>}, {transform_indices = @transform_3, window_bounds = array<i64: 32, 512>}]} {
    %c0 = arith.constant 0 : index
    %c0_0 = arith.constant 0 : index
    %0 = vector.load %arg2[%c0, %c0_0] : memref<32x288xbf16, #tpu.memory_space<vmem>>, vector<32x288xbf16>
    %c0_1 = arith.constant 0 : index
    %c0_2 = arith.constant 0 : index
    %1 = vector.load %arg1[%c0_1, %c0_2] : memref<512x288xbf16, #tpu.memory_space<vmem>>, vector<512x288xbf16>
    %cst = arith.constant dense<0.000000e+00> : vector<32x512xf32>
    %2 = tpu.matmul %0, %1, %cst {dimension_numbers = #tpu.dot_dimension_numbers<[1], [1], [0], [0], [0, 0, 1, 0], [], []>} : vector<32x288xbf16>, vector<512x288xbf16>, vector<32x512xf32> -> vector<32x512xf32>
    %c0_3 = arith.constant 0 : index
    %c0_4 = arith.constant 0 : index
    %3 = vector.load %arg3[%c0_3, %c0_4] : memref<32x1xf32, #tpu.memory_space<vmem>>, vector<32x1xf32>
    %4 = vector.broadcast %3 : vector<32x1xf32> to vector<32x512xf32>
    %5 = arith.addf %2, %4 : vector<32x512xf32>
    %c0_5 = arith.constant 0 : index
    %c0_6 = arith.constant 0 : index
    %6 = vector.load %arg4[%c0_5, %c0_6] : memref<32x512xf32, #tpu.memory_space<vmem>>, vector<32x512xf32>
    tpu.vector_store %arg4[%c0_5, %c0_6], %5 {strides = array<i32>} : memref<32x512xf32, #tpu.memory_space<vmem>>, vector<32x512xf32>,
    return
  }
  func.func @transform_0(%arg0: i32) -> (i32, i32) {
    %c0_i32 = arith.constant 0 : i32
    %c0_i32_0 = arith.constant 0 : i32
    return %arg0, %c0_i32 : i32, i32
  }
  func.func @transform_1(%arg0: i32) -> (i32, i32) {
    %c0_i32 = arith.constant 0 : i32
    %c0_i32_0 = arith.constant 0 : i32
    %c0_i32_1 = arith.constant 0 : i32
    return %c0_i32, %c0_i32_0 : i32, i32
  }
  func.func @transform_2(%arg0: i32) -> (i32, i32) {
    %c0_i32 = arith.constant 0 : i32
    %c0_i32_0 = arith.constant 0 : i32
    %c0_i32_1 = arith.constant 0 : i32
    return %c0_i32, %c0_i32_0 : i32, i32
  }
  func.func @transform_3(%arg0: i32) -> (i32, i32) {
    %c0_i32 = arith.constant 0 : i32
    %c0_i32_0 = arith.constant 0 : i32
    return %c0_i32, %arg0 : i32, i32
  }
}

module attributes {stable_mosaic.version = 11 : i64} {
  func.func @kernel(%arg0: i32, %arg1: memref<512x576xbf16, #tpu.memory_space<vmem>>, %arg2: memref<32x576xbf16, #tpu.memory_space<vmem>>, %arg3: memref<32x1xf32, #tpu.memory_space<vmem>>, %arg4: memref<32x512xf32, #tpu.memory_space<vmem>>) attributes {dimension_semantics = [#tpu.dimension_semantics<parallel>], iteration_bounds = array<i64: 1>, scalar_prefetch = 0 : i64, scratch_operands = 0 : i64, tpu.core_type = #tpu.core_type<tc>, window_params = [{transform_indices = @transform_0, window_bounds = array<i64: 512, 576>}, {pipeline_mode = #tpu.pipeline_mode<synchronous>, transform_indices = @transform_1, window_bounds = array<i64: 32, 576>}, {pipeline_mode = #tpu.pipeline_mode<synchronous>, transform_indices = @transform_2, window_bounds = array<i64: 32, 1>}, {transform_indices = @transform_3, window_bounds = array<i64: 32, 512>}]} {
    %c0 = arith.constant 0 : index
    %c0_0 = arith.constant 0 : index
    %0 = vector.load %arg2[%c0, %c0_0] : memref<32x576xbf16, #tpu.memory_space<vmem>>, vector<32x576xbf16>
    %c0_1 = arith.constant 0 : index
    %c0_2 = arith.constant 0 : index
    %1 = vector.load %arg1[%c0_1, %c0_2] : memref<512x576xbf16, #tpu.memory_space<vmem>>, vector<512x576xbf16>
    %cst = arith.constant dense<0.000000e+00> : vector<32x512xf32>
    %2 = tpu.matmul %0, %1, %cst {dimension_numbers = #tpu.dot_dimension_numbers<[1], [1], [0], [0], [0, 0, 1, 0], [], []>} : vector<32x576xbf16>, vector<512x576xbf16>, vector<32x512xf32> -> vector<32x512xf32>
    %c0_3 = arith.constant 0 : index
    %c0_4 = arith.constant 0 : index
    %3 = vector.load %arg3[%c0_3, %c0_4] : memref<32x1xf32, #tpu.memory_space<vmem>>, vector<32x1xf32>
    %4 = vector.broadcast %3 : vector<32x1xf32> to vector<32x512xf32>
    %5 = arith.addf %2, %4 : vector<32x512xf32>
    %cst_5 = arith.constant 0.000000e+00 : f32
    %6 = vector.broadcast %cst_5 : f32 to vector<32x512xf32>
    %7 = arith.cmpf oge, %5, %6 : vector<32x512xf32>
    %cst_6 = arith.constant 1.000000e-01 : f32
    %8 = vector.broadcast %cst_6 : f32 to vector<32x512xf32>
    %9 = arith.mulf %8, %5 : vector<32x512xf32>
    %10 = arith.select %7, %5, %9 : vector<32x512xi1>, vector<32x512xf32>
    %c0_7 = arith.constant 0 : index
    %c0_8 = arith.constant 0 : index
    %11 = vector.load %arg4[%c0_7, %c0_8] : memref<32x512xf32, #tpu.memory_space<vmem>>, vector<32x512xf32>
    tpu.vector_store %arg4[%c0_7, %c0_8], %10 {strides = array<i32>} : memref<32x512xf32, #tpu.memory_space<vmem>>, vector<32x512xf32>,
    return
  }
  func.func @transform_0(%arg0: i32) -> (i32, i32) {
    %c0_i32 = arith.constant 0 : i32
    %c0_i32_0 = arith.constant 0 : i32
    return %arg0, %c0_i32 : i32, i32
  }
  func.func @transform_1(%arg0: i32) -> (i32, i32) {
    %c0_i32 = arith.constant 0 : i32
    %c0_i32_0 = arith.constant 0 : i32
    %c0_i32_1 = arith.constant 0 : i32
    return %c0_i32, %c0_i32_0 : i32, i32
  }
  func.func @transform_2(%arg0: i32) -> (i32, i32) {
    %c0_i32 = arith.constant 0 : i32
    %c0_i32_0 = arith.constant 0 : i32
    %c0_i32_1 = arith.constant 0 : i32
    return %c0_i32, %c0_i32_0 : i32, i32
  }
  func.func @transform_3(%arg0: i32) -> (i32, i32) {
    %c0_i32 = arith.constant 0 : i32
    %c0_i32_0 = arith.constant 0 : i32
    return %c0_i32, %arg0 : i32, i32
  }
}

module attributes {stable_mosaic.version = 11 : i64} {
  func.func @kernel(%arg0: i32, %arg1: memref<512x288xbf16, #tpu.memory_space<vmem>>, %arg2: memref<32x288xbf16, #tpu.memory_space<vmem>>, %arg3: memref<32x1xf32, #tpu.memory_space<vmem>>, %arg4: memref<32x512xf32, #tpu.memory_space<vmem>>) attributes {dimension_semantics = [#tpu.dimension_semantics<parallel>], iteration_bounds = array<i64: 1>, scalar_prefetch = 0 : i64, scratch_operands = 0 : i64, tpu.core_type = #tpu.core_type<tc>, window_params = [{transform_indices = @transform_0, window_bounds = array<i64: 512, 288>}, {pipeline_mode = #tpu.pipeline_mode<synchronous>, transform_indices = @transform_1, window_bounds = array<i64: 32, 288>}, {pipeline_mode = #tpu.pipeline_mode<synchronous>, transform_indices = @transform_2, window_bounds = array<i64: 32, 1>}, {transform_indices = @transform_3, window_bounds = array<i64: 32, 512>}]} {
    %c0 = arith.constant 0 : index
    %c0_0 = arith.constant 0 : index
    %0 = vector.load %arg2[%c0, %c0_0] : memref<32x288xbf16, #tpu.memory_space<vmem>>, vector<32x288xbf16>
    %c0_1 = arith.constant 0 : index
    %c0_2 = arith.constant 0 : index
    %1 = vector.load %arg1[%c0_1, %c0_2] : memref<512x288xbf16, #tpu.memory_space<vmem>>, vector<512x288xbf16>
    %cst = arith.constant dense<0.000000e+00> : vector<32x512xf32>
    %2 = tpu.matmul %0, %1, %cst {dimension_numbers = #tpu.dot_dimension_numbers<[1], [1], [0], [0], [0, 0, 1, 0], [], []>} : vector<32x288xbf16>, vector<512x288xbf16>, vector<32x512xf32> -> vector<32x512xf32>
    %c0_3 = arith.constant 0 : index
    %c0_4 = arith.constant 0 : index
    %3 = vector.load %arg3[%c0_3, %c0_4] : memref<32x1xf32, #tpu.memory_space<vmem>>, vector<32x1xf32>
    %4 = vector.broadcast %3 : vector<32x1xf32> to vector<32x512xf32>
    %5 = arith.addf %2, %4 : vector<32x512xf32>
    %cst_5 = arith.constant 0.000000e+00 : f32
    %6 = vector.broadcast %cst_5 : f32 to vector<32x512xf32>
    %7 = arith.cmpf oge, %5, %6 : vector<32x512xf32>
    %cst_6 = arith.constant 1.000000e-01 : f32
    %8 = vector.broadcast %cst_6 : f32 to vector<32x512xf32>
    %9 = arith.mulf %8, %5 : vector<32x512xf32>
    %10 = arith.select %7, %5, %9 : vector<32x512xi1>, vector<32x512xf32>
    %c0_7 = arith.constant 0 : index
    %c0_8 = arith.constant 0 : index
    %11 = vector.load %arg4[%c0_7, %c0_8] : memref<32x512xf32, #tpu.memory_space<vmem>>, vector<32x512xf32>
    tpu.vector_store %arg4[%c0_7, %c0_8], %10 {strides = array<i32>} : memref<32x512xf32, #tpu.memory_space<vmem>>, vector<32x512xf32>,
    return
  }
  func.func @transform_0(%arg0: i32) -> (i32, i32) {
    %c0_i32 = arith.constant 0 : i32
    %c0_i32_0 = arith.constant 0 : i32
    return %arg0, %c0_i32 : i32, i32
  }
  func.func @transform_1(%arg0: i32) -> (i32, i32) {
    %c0_i32 = arith.constant 0 : i32
    %c0_i32_0 = arith.constant 0 : i32
    %c0_i32_1 = arith.constant 0 : i32
    return %c0_i32, %c0_i32_0 : i32, i32
  }
  func.func @transform_2(%arg0: i32) -> (i32, i32) {
    %c0_i32 = arith.constant 0 : i32
    %c0_i32_0 = arith.constant 0 : i32
    %c0_i32_1 = arith.constant 0 : i32
    return %c0_i32, %c0_i32_0 : i32, i32
  }
  func.func @transform_3(%arg0: i32) -> (i32, i32) {
    %c0_i32 = arith.constant 0 : i32
    %c0_i32_0 = arith.constant 0 : i32
    return %c0_i32, %arg0 : i32, i32
  }
}

</mosaic_0001>

<llo_original>
// kernel: alignnet_forward.32
$region0: #{alignnet_forward.32}
  #allocation0 [shape = 'u32[]', space=smem, size = 0x4, offset = 0x4, fixed_abs, tag = 'smem constant byte address 0x4 - core index']
  #allocation1 [shape = 'u32[144,128]{1,0:T(1,128)}', space=vmem, size = 0x12000, scoped, tag = 'internal scratch']
  %s0 = inlined_call_operand.vmem [shape: bf16[128,288], index: 0, kind: input, shape index: {}]
  %s1 = inlined_call_operand.hbm [shape: bf16[32,288], index: 1, kind: input, shape index: {}]
  %s2 = inlined_call_operand.hbm [shape: f32[32,1], index: 2, kind: input, shape index: {}]
  %s3 = inlined_call_operand.vmem [shape: f32[32,128], index: 3, kind: output, shape index: {}]
  %s4 = sld [smem:[#allocation0]]
  $region30: #{alignnet_forward.32} parent=0
    _
  %s6 = ssub.s32 1, %s4
  %s7 = scalar_select 0, %s6, %s4
  $region1: #{alignnet_forward.32} parent=0
    #allocation2 [shape = 'u8[24576]{0}', space=vmem, size = 0x6000, scoped, tag = 'input window, operand 1, single buffered']
    #allocation3 [shape = 's32[1]{0}', space=sflag, size = 0x4, scoped, tag = 'scoped memory for alignnet_forward.32']
    #allocation4 [shape = 'u8[16384]{0}', space=vmem, size = 0x4000, scoped, tag = 'input window, operand 2, single buffered']
    #allocation5 [shape = 's32[1]{0}', space=sflag, size = 0x4, scoped, tag = 'scoped memory for alignnet_forward.32']
    %8 = vsyncpa [#allocation3], 0
    %9 = vsyncpa [#allocation5], 0
    // Predicated region
    $region2: #{alignnet_forward.32} parent=1 // pred_check
      _
    $region3: #{alignnet_forward.32} parent=1 // pred_check_branch
      %11 = sbr.rel (0) target = $region5
    $region4: #{alignnet_forward.32} parent=1 // pred_region
      _
    $region5: #{alignnet_forward.32} parent=1 // pred_fallthru
      _
    // Predicated region
    $region6: #{alignnet_forward.32} parent=1 // pred_check
      _
    $region7: #{alignnet_forward.32} parent=1 // pred_check_branch
      %13 = sbr.rel (0) target = $region9
    $region8: #{alignnet_forward.32} parent=1 // pred_region
      %s15 = ssub.s32 768, 768
      %16 = vsyncadd [#allocation3], %s15
      %s17 = sshll.u32 [#allocation2], 4
      %s18 = int_to_ptr.vmem [resolvable:$true] %s17
      %23 = dma.hbm_to_vmem [thread:$0]  %s1, 768, %s18, [#allocation3], 192, 192, 12
    $region9: #{alignnet_forward.32} parent=1 // pred_fallthru
      _
    // Predicated region
    $region10: #{alignnet_forward.32} parent=1 // pred_check
      _
    $region11: #{alignnet_forward.32} parent=1 // pred_check_branch
      %25 = sbr.rel (0) target = $region13
    $region12: #{alignnet_forward.32} parent=1 // pred_region
      %s27 = ssub.s32 512, 512
      %28 = vsyncadd [#allocation5], %s27
      %s29 = sshll.u32 [#allocation4], 4
      %s30 = int_to_ptr.vmem [resolvable:$true] %s29
      %35 = dma.hbm_to_vmem [thread:$0]  %s2, 512, %s30, [#allocation5], 128, 128, 8
    $region13: #{alignnet_forward.32} parent=1 // pred_fallthru
      _
    // Predicated region
    $region14: #{alignnet_forward.32} parent=1 // pred_check
      _
    $region15: #{alignnet_forward.32} parent=1 // pred_check_branch
      %37 = sbr.rel (0) target = $region17
    $region16: #{alignnet_forward.32} parent=1 // pred_region
      %38 = dma.done [#allocation3], 768
    $region17: #{alignnet_forward.32} parent=1 // pred_fallthru
      _
    // Predicated region
    $region18: #{alignnet_forward.32} parent=1 // pred_check
      _
    $region19: #{alignnet_forward.32} parent=1 // pred_check_branch
      %40 = sbr.rel (0) target = $region21
    $region20: #{alignnet_forward.32} parent=1 // pred_region
      %41 = dma.done [#allocation5], 512
    $region21: #{alignnet_forward.32} parent=1 // pred_fallthru
      _
    %v43 = vld [vmem:[#allocation2] sm:$0xff]
    %v44 = vld [vmem:[#allocation2 + $0x8] sm:$0xf]
    %v45 = vld [vmem:[#allocation2 + $0xc] sm:$0xff]
    %v46 = vld [vmem:[#allocation2 + $0x14] sm:$0xf]
    %v47 = vld [vmem:[#allocation2 + $0x18] sm:$0xff]
    %v48 = vld [vmem:[#allocation2 + $0x20] sm:$0xf]
    %v49 = vld [vmem:[#allocation2 + $0x24] sm:$0xff]
    %v50 = vld [vmem:[#allocation2 + $0x2c] sm:$0xf]
    %v51 = vld [vmem:[%s0] sm:$0xff]
    %v52 = vld [vmem:[%s0 + $0x8] sm:$0xf]
    %v53 = vld [vmem:[%s0 + $0xc] sm:$0xff]
    %v54 = vld [vmem:[%s0 + $0x14] sm:$0xf]
    %v55 = vld [vmem:[%s0 + $0x18] sm:$0xff]
    %v56 = vld [vmem:[%s0 + $0x20] sm:$0xf]
    %v57 = vld [vmem:[%s0 + $0x24] sm:$0xff]
    %v58 = vld [vmem:[%s0 + $0x2c] sm:$0xf]
    %v59 = vld [vmem:[%s0 + $0x30] sm:$0xff]
    %v60 = vld [vmem:[%s0 + $0x38] sm:$0xf]
    %v61 = vld [vmem:[%s0 + $0x3c] sm:$0xff]
    %v62 = vld [vmem:[%s0 + $0x44] sm:$0xf]
    %v63 = vld [vmem:[%s0 + $0x48] sm:$0xff]
    %v64 = vld [vmem:[%s0 + $0x50] sm:$0xf]
    %v65 = vld [vmem:[%s0 + $0x54] sm:$0xff]
    %v66 = vld [vmem:[%s0 + $0x5c] sm:$0xf]
    %v67 = vld [vmem:[%s0 + $0x60] sm:$0xff]
    %v68 = vld [vmem:[%s0 + $0x68] sm:$0xf]
    %v69 = vld [vmem:[%s0 + $0x6c] sm:$0xff]
    %v70 = vld [vmem:[%s0 + $0x74] sm:$0xf]
    %v71 = vld [vmem:[%s0 + $0x78] sm:$0xff]
    %v72 = vld [vmem:[%s0 + $0x80] sm:$0xf]
    %v73 = vld [vmem:[%s0 + $0x84] sm:$0xff]
    %v74 = vld [vmem:[%s0 + $0x8c] sm:$0xf]
    %v75 = vld [vmem:[%s0 + $0x90] sm:$0xff]
    %v76 = vld [vmem:[%s0 + $0x98] sm:$0xf]
    %v77 = vld [vmem:[%s0 + $0x9c] sm:$0xff]
    %v78 = vld [vmem:[%s0 + $0xa4] sm:$0xf]
    %v79 = vld [vmem:[%s0 + $0xa8] sm:$0xff]
    %v80 = vld [vmem:[%s0 + $0xb0] sm:$0xf]
    %v81 = vld [vmem:[%s0 + $0xb4] sm:$0xff]
    %v82 = vld [vmem:[%s0 + $0xbc] sm:$0xf]
    %v83 = vld [vmem:[#allocation4] sm:$0xff]
    %v84 = vld [vmem:[#allocation4 + $0x8] sm:$0xff]
    %v85 = vld [vmem:[#allocation4 + $0x10] sm:$0xff]
    %v86 = vld [vmem:[#allocation4 + $0x18] sm:$0xff]
    %88 = vset.pattern.permute.xlu0 0
    %89 = vperm.xlu0 %88, %v83
    %v90 = vpop.permute.xlu0 %89
    %93 = vset.pattern.permute.xlu0 0
    %94 = vperm.xlu0 %93, %v84
    %v95 = vpop.permute.xlu0 %94
    %98 = vset.pattern.permute.xlu0 0
    %99 = vperm.xlu0 %98, %v85
    %v100 = vpop.permute.xlu0 %99
    %103 = vset.pattern.permute.xlu0 0
    %104 = vperm.xlu0 %103, %v86
    %v105 = vpop.permute.xlu0 %104
    %v115 = vunpack.c.l.b16 %v43
    %v116 = vunpack.c.h.b16 %v43
    %v117 = vunpack.c.l.b16 %v44
    %v118 = vunpack.c.l.b16 %v45
    %v119 = vunpack.c.h.b16 %v45
    %v120 = vunpack.c.l.b16 %v46
    %v121 = vunpack.c.l.b16 %v47
    %v122 = vunpack.c.h.b16 %v47
    %v123 = vunpack.c.l.b16 %v48
    %v124 = vunpack.c.l.b16 %v49
    %v125 = vunpack.c.h.b16 %v49
    %v126 = vunpack.c.l.b16 %v50
    %v127 = vpack.c.b16 %v118, %v115
    %v128 = vpack.c.b16 %v119, %v116
    %v129 = vpack.c.b16 %v120, %v117
    %v130 = vpack.c.b16 %v124, %v121
    %v131 = vpack.c.b16 %v125, %v122
    %v132 = vpack.c.b16 %v126, %v123
    %v169 = vunpack.c.l.b16 %v51
    %v170 = vunpack.c.h.b16 %v51
    %v171 = vunpack.c.l.b16 %v52
    %v172 = vunpack.c.l.b16 %v53
    %v173 = vunpack.c.h.b16 %v53
    %v174 = vunpack.c.l.b16 %v54
    %v175 = vunpack.c.l.b16 %v55
    %v176 = vunpack.c.h.b16 %v55
    %v177 = vunpack.c.l.b16 %v56
    %v178 = vunpack.c.l.b16 %v57
    %v179 = vunpack.c.h.b16 %v57
    %v180 = vunpack.c.l.b16 %v58
    %v181 = vunpack.c.l.b16 %v59
    %v182 = vunpack.c.h.b16 %v59
    %v183 = vunpack.c.l.b16 %v60
    %v184 = vunpack.c.l.b16 %v61
    %v185 = vunpack.c.h.b16 %v61
    %v186 = vunpack.c.l.b16 %v62
    %v187 = vunpack.c.l.b16 %v63
    %v188 = vunpack.c.h.b16 %v63
    %v189 = vunpack.c.l.b16 %v64
    %v190 = vunpack.c.l.b16 %v65
    %v191 = vunpack.c.h.b16 %v65
    %v192 = vunpack.c.l.b16 %v66
    %v193 = vunpack.c.l.b16 %v67
    %v194 = vunpack.c.h.b16 %v67
    %v195 = vunpack.c.l.b16 %v68
    %v196 = vunpack.c.l.b16 %v69
    %v197 = vunpack.c.h.b16 %v69
    %v198 = vunpack.c.l.b16 %v70
    %v199 = vunpack.c.l.b16 %v71
    %v200 = vunpack.c.h.b16 %v71
    %v201 = vunpack.c.l.b16 %v72
    %v202 = vunpack.c.l.b16 %v73
    %v203 = vunpack.c.h.b16 %v73
    %v204 = vunpack.c.l.b16 %v74
    %v205 = vunpack.c.l.b16 %v75
    %v206 = vunpack.c.h.b16 %v75
    %v207 = vunpack.c.l.b16 %v76
    %v208 = vunpack.c.l.b16 %v77
    %v209 = vunpack.c.h.b16 %v77
    %v210 = vunpack.c.l.b16 %v78
    %v211 = vunpack.c.l.b16 %v79
    %v212 = vunpack.c.h.b16 %v79
    %v213 = vunpack.c.l.b16 %v80
    %v214 = vunpack.c.l.b16 %v81
    %v215 = vunpack.c.h.b16 %v81
    %v216 = vunpack.c.l.b16 %v82
    %v217 = vpack.c.b16 %v172, %v169
    %v218 = vpack.c.b16 %v173, %v170
    %v219 = vpack.c.b16 %v174, %v171
    %v220 = vpack.c.b16 %v178, %v175
    %v221 = vpack.c.b16 %v179, %v176
    %v222 = vpack.c.b16 %v180, %v177
    %v223 = vpack.c.b16 %v184, %v181
    %v224 = vpack.c.b16 %v185, %v182
    %v225 = vpack.c.b16 %v186, %v183
    %v226 = vpack.c.b16 %v190, %v187
    %v227 = vpack.c.b16 %v191, %v188
    %v228 = vpack.c.b16 %v192, %v189
    %v229 = vpack.c.b16 %v196, %v193
    %v230 = vpack.c.b16 %v197, %v194
    %v231 = vpack.c.b16 %v198, %v195
    %v232 = vpack.c.b16 %v202, %v199
    %v233 = vpack.c.b16 %v203, %v200
    %v234 = vpack.c.b16 %v204, %v201
    %v235 = vpack.c.b16 %v208, %v205
    %v236 = vpack.c.b16 %v209, %v206
    %v237 = vpack.c.b16 %v210, %v207
    %v238 = vpack.c.b16 %v214, %v211
    %v239 = vpack.c.b16 %v215, %v212
    %v240 = vpack.c.b16 %v216, %v213
    %vm257 = vcmask 261120
    %v259 = vsel %vm257, %v129, 0
    %v262 = vsel %vm257, %v132, 0
    %v265 = vsel %vm257, %v219, 0
    %v268 = vsel %vm257, %v222, 0
    %v271 = vsel %vm257, %v225, 0
    %v274 = vsel %vm257, %v228, 0
    %v277 = vsel %vm257, %v231, 0
    %v280 = vsel %vm257, %v234, 0
    %v283 = vsel %vm257, %v237, 0
    %v286 = vsel %vm257, %v240, 0
    %288 = vmatprep.subr.bf16.mxu0 %v239
    %289 = vmatpush1.bf16.xpose.msra.mxu0 %v238
    %290 = vmatprep.subr.bf16.mxu0 %v236
    %291 = vmatpush1.bf16.xpose.msra.mxu0 %v235
    %292 = vmatprep.subr.bf16.mxu0 %v233
    %293 = vmatpush1.bf16.xpose.msra.mxu0 %v232
    %294 = vmatprep.subr.bf16.mxu0 %v230
    %295 = vmatpush1.bf16.xpose.msra.mxu0 %v229
    %296 = vmatprep.subr.bf16.mxu0 %v227
    %297 = vmatpush1.bf16.xpose.msra.mxu0 %v226
    %298 = vmatprep.subr.bf16.mxu0 %v224
    %299 = vmatpush1.bf16.xpose.msra.mxu0 %v223
    %300 = vmatprep.subr.bf16.mxu0 %v221
    %301 = vmatpush1.bf16.xpose.msra.mxu0 %v220
    %302 = vmatprep.subr.bf16.mxu0 %v218
    %303 = vmatpush1.bf16.xpose.msra.mxu0 %v217
    %304 = vmatprep.subr.bf16.mxu0 0
    %305 = vmatpush2.bf16.xpose.msra.mxu0 0
    %306 = vmatprep.subr.bf16.mxu0 0
    %307 = vmatpush2.bf16.xpose.msra.mxu0 0
    %308 = vmatprep.subr.bf16.mxu0 0
    %309 = vmatpush2.bf16.xpose.msra.mxu0 0
    %310 = vmatprep.subr.bf16.mxu0 0
    %311 = vmatpush2.bf16.xpose.msra.mxu0 0
    %312 = vmatprep.subr.bf16.mxu0 0
    %313 = vmatpush2.bf16.xpose.msra.mxu0 0
    %314 = vmatprep.subr.bf16.mxu0 0
    %315 = vmatpush2.bf16.xpose.msra.mxu0 0
    %316 = vmatprep.subr.bf16.mxu0 0
    %317 = vmatpush2.bf16.xpose.msra.mxu0 0
    %318 = vmatprep.subr.bf16.mxu0 0
    %319 = vmatpush2.bf16.xpose.msra.mxu0 0
    %320 = vmatprep.mubr.bf16.mxu0 %v128
    %321 = vmatmul.mubr.bf16.gmra.mxu0 %v127
    %v322 = vpop.f32.mrf.mxu0
    %v323 = vadd.f32 %v90, %v322
    %v324 = vpop.f32.mrf.mxu0
    %v325 = vpop.f32.mrf.mxu0
    %v326 = vadd.f32 %v95, %v325
    %v327 = vpop.f32.mrf.mxu0
    %328 = vmatprep.mubr.bf16.mxu0 %v131
    %329 = vmatmul.mubr.bf16.gmra.mxu0 %v130
    %v330 = vpop.f32.mrf.mxu0
    %v331 = vadd.f32 %v100, %v330
    %v332 = vpop.f32.mrf.mxu0
    %v333 = vpop.f32.mrf.mxu0
    %v334 = vadd.f32 %v105, %v333
    %v335 = vpop.f32.mrf.mxu0
    %336 = vdwg.mxu0
    %337 = vmatprep.subr.bf16.mxu0 0
    %338 = vmatpush1.bf16.xpose.msra.mxu0 %v286
    %339 = vmatprep.subr.bf16.mxu0 0
    %340 = vmatpush1.bf16.xpose.msra.mxu0 %v283
    %341 = vmatprep.subr.bf16.mxu0 0
    %342 = vmatpush1.bf16.xpose.msra.mxu0 %v280
    %343 = vmatprep.subr.bf16.mxu0 0
    %344 = vmatpush1.bf16.xpose.msra.mxu0 %v277
    %345 = vmatprep.subr.bf16.mxu0 0
    %346 = vmatpush1.bf16.xpose.msra.mxu0 %v274
    %347 = vmatprep.subr.bf16.mxu0 0
    %348 = vmatpush1.bf16.xpose.msra.mxu0 %v271
    %349 = vmatprep.subr.bf16.mxu0 0
    %350 = vmatpush1.bf16.xpose.msra.mxu0 %v268
    %351 = vmatprep.subr.bf16.mxu0 0
    %352 = vmatpush1.bf16.xpose.msra.mxu0 %v265
    %353 = vmatprep.subr.bf16.mxu0 0
    %354 = vmatpush2.bf16.xpose.msra.mxu0 0
    %355 = vmatprep.subr.bf16.mxu0 0
    %356 = vmatpush2.bf16.xpose.msra.mxu0 0
    %357 = vmatprep.subr.bf16.mxu0 0
    %358 = vmatpush2.bf16.xpose.msra.mxu0 0
    %359 = vmatprep.subr.bf16.mxu0 0
    %360 = vmatpush2.bf16.xpose.msra.mxu0 0
    %361 = vmatprep.subr.bf16.mxu0 0
    %362 = vmatpush2.bf16.xpose.msra.mxu0 0
    %363 = vmatprep.subr.bf16.mxu0 0
    %364 = vmatpush2.bf16.xpose.msra.mxu0 0
    %365 = vmatprep.subr.bf16.mxu0 0
    %366 = vmatpush2.bf16.xpose.msra.mxu0 0
    %367 = vmatprep.subr.bf16.mxu0 0
    %368 = vmatpush2.bf16.xpose.msra.mxu0 0
    %369 = vmatprep.mubr.bf16.mxu0 0
    %370 = vmatmul.mubr.bf16.gmra.mxu0 %v259
    %v371 = vpop.f32.mrf.mxu0
    %v372 = vadd.f32 %v323, %v371
    %v373 = vpop.f32.mrf.mxu0
    %v374 = vpop.f32.mrf.mxu0
    %v375 = vadd.f32 %v326, %v374
    %v376 = vpop.f32.mrf.mxu0
    %377 = vmatprep.mubr.bf16.mxu0 0
    %378 = vmatmul.mubr.bf16.gmra.mxu0 %v262
    %v379 = vpop.f32.mrf.mxu0
    %v380 = vadd.f32 %v331, %v379
    %v381 = vpop.f32.mrf.mxu0
    %v382 = vpop.f32.mrf.mxu0
    %v383 = vadd.f32 %v334, %v382
    %v384 = vpop.f32.mrf.mxu0
    %385 = vdwg.mxu0
    %vm386 = vcmp.ge.f32.partialorder %v372, 0.0
    %vm387 = vcmp.ge.f32.partialorder %v375, 0.0
    %vm388 = vcmp.ge.f32.partialorder %v380, 0.0
    %vm389 = vcmp.ge.f32.partialorder %v383, 0.0
    %v390 = vmul.f32 %v372, 0.1
    %v391 = vmul.f32 %v375, 0.1
    %v392 = vmul.f32 %v380, 0.1
    %v393 = vmul.f32 %v383, 0.1
    %v394 = vsel %vm386, %v372, %v390
    %v395 = vsel %vm387, %v375, %v391
    %v396 = vsel %vm388, %v380, %v392
    %v397 = vsel %vm389, %v383, %v393
    %398 = vst [vmem:[%s3] sm:$0xff] %v394
    %399 = vst [vmem:[%s3 + $0x8] sm:$0xff] %v395
    %400 = vst [vmem:[%s3 + $0x10] sm:$0xff] %v396
    %401 = vst [vmem:[%s3 + $0x18] sm:$0xff] %v397
    // Predicated region
    $region22: #{alignnet_forward.32} parent=1 // pred_check
      _
    $region23: #{alignnet_forward.32} parent=1 // pred_check_branch
      %403 = sbr.rel (0) target = $region25
    $region24: #{alignnet_forward.32} parent=1 // pred_region
      _
    $region25: #{alignnet_forward.32} parent=1 // pred_fallthru
      _
    // Predicated region
    $region26: #{alignnet_forward.32} parent=1 // pred_check
      _
    $region27: #{alignnet_forward.32} parent=1 // pred_check_branch
      %405 = sbr.rel (0) target = $region29
    $region28: #{alignnet_forward.32} parent=1 // pred_region
      _
    $region29: #{alignnet_forward.32} parent=1 // pred_fallthru
      _
    %406 = vsyncpa [#allocation3], 1
    %407 = vsyncpa [#allocation5], 1

// kernel: alignnet_forward.33
$region0: #{alignnet_forward.33}
  #allocation0 [shape = 'u32[]', space=smem, size = 0x4, offset = 0x4, fixed_abs, tag = 'smem constant byte address 0x4 - core index']
  #allocation1 [shape = 'u32[144,128]{1,0:T(1,128)}', space=vmem, size = 0x12000, scoped, tag = 'internal scratch']
  %s0 = inlined_call_operand.vmem [shape: bf16[32,288], index: 0, kind: input, shape index: {}]
  %s1 = inlined_call_operand.hbm [shape: bf16[32,288], index: 1, kind: input, shape index: {}]
  %s2 = inlined_call_operand.hbm [shape: f32[32,1], index: 2, kind: input, shape index: {}]
  %s3 = inlined_call_operand.vmem [shape: f32[32,32], index: 3, kind: output, shape index: {}]
  %s4 = sld [smem:[#allocation0]]
  $region30: #{alignnet_forward.33} parent=0
    _
  %s6 = ssub.s32 1, %s4
  %s7 = scalar_select 0, %s6, %s4
  $region1: #{alignnet_forward.33} parent=0
    #allocation2 [shape = 'u8[24576]{0}', space=vmem, size = 0x6000, scoped, tag = 'input window, operand 1, single buffered']
    #allocation3 [shape = 's32[1]{0}', space=sflag, size = 0x4, scoped, tag = 'scoped memory for alignnet_forward.33']
    #allocation4 [shape = 'u8[16384]{0}', space=vmem, size = 0x4000, scoped, tag = 'input window, operand 2, single buffered']
    #allocation5 [shape = 's32[1]{0}', space=sflag, size = 0x4, scoped, tag = 'scoped memory for alignnet_forward.33']
    %8 = vsyncpa [#allocation3], 0
    %9 = vsyncpa [#allocation5], 0
    // Predicated region
    $region2: #{alignnet_forward.33} parent=1 // pred_check
      _
    $region3: #{alignnet_forward.33} parent=1 // pred_check_branch
      %11 = sbr.rel (0) target = $region5
    $region4: #{alignnet_forward.33} parent=1 // pred_region
      _
    $region5: #{alignnet_forward.33} parent=1 // pred_fallthru
      _
    // Predicated region
    $region6: #{alignnet_forward.33} parent=1 // pred_check
      _
    $region7: #{alignnet_forward.33} parent=1 // pred_check_branch
      %13 = sbr.rel (0) target = $region9
    $region8: #{alignnet_forward.33} parent=1 // pred_region
      %s15 = ssub.s32 768, 768
      %16 = vsyncadd [#allocation3], %s15
      %s17 = sshll.u32 [#allocation2], 4
      %s18 = int_to_ptr.vmem [resolvable:$true] %s17
      %23 = dma.hbm_to_vmem [thread:$0]  %s1, 768, %s18, [#allocation3], 192, 192, 12
    $region9: #{alignnet_forward.33} parent=1 // pred_fallthru
      _
    // Predicated region
    $region10: #{alignnet_forward.33} parent=1 // pred_check
      _
    $region11: #{alignnet_forward.33} parent=1 // pred_check_branch
      %25 = sbr.rel (0) target = $region13
    $region12: #{alignnet_forward.33} parent=1 // pred_region
      %s27 = ssub.s32 512, 512
      %28 = vsyncadd [#allocation5], %s27
      %s29 = sshll.u32 [#allocation4], 4
      %s30 = int_to_ptr.vmem [resolvable:$true] %s29
      %35 = dma.hbm_to_vmem [thread:$0]  %s2, 512, %s30, [#allocation5], 128, 128, 8
    $region13: #{alignnet_forward.33} parent=1 // pred_fallthru
      _
    // Predicated region
    $region14: #{alignnet_forward.33} parent=1 // pred_check
      _
    $region15: #{alignnet_forward.33} parent=1 // pred_check_branch
      %37 = sbr.rel (0) target = $region17
    $region16: #{alignnet_forward.33} parent=1 // pred_region
      %38 = dma.done [#allocation3], 768
    $region17: #{alignnet_forward.33} parent=1 // pred_fallthru
      _
    // Predicated region
    $region18: #{alignnet_forward.33} parent=1 // pred_check
      _
    $region19: #{alignnet_forward.33} parent=1 // pred_check_branch
      %40 = sbr.rel (0) target = $region21
    $region20: #{alignnet_forward.33} parent=1 // pred_region
      %41 = dma.done [#allocation5], 512
    $region21: #{alignnet_forward.33} parent=1 // pred_fallthru
      _
    %v43 = vld [vmem:[#allocation2] sm:$0xff]
    %v44 = vld [vmem:[#allocation2 + $0x8] sm:$0xf]
    %v45 = vld [vmem:[#allocation2 + $0xc] sm:$0xff]
    %v46 = vld [vmem:[#allocation2 + $0x14] sm:$0xf]
    %v47 = vld [vmem:[#allocation2 + $0x18] sm:$0xff]
    %v48 = vld [vmem:[#allocation2 + $0x20] sm:$0xf]
    %v49 = vld [vmem:[#allocation2 + $0x24] sm:$0xff]
    %v50 = vld [vmem:[#allocation2 + $0x2c] sm:$0xf]
    %v51 = vld [vmem:[%s0] sm:$0xff]
    %v52 = vld [vmem:[%s0 + $0x8] sm:$0xf]
    %v53 = vld [vmem:[%s0 + $0xc] sm:$0xff]
    %v54 = vld [vmem:[%s0 + $0x14] sm:$0xf]
    %v55 = vld [vmem:[%s0 + $0x18] sm:$0xff]
    %v56 = vld [vmem:[%s0 + $0x20] sm:$0xf]
    %v57 = vld [vmem:[%s0 + $0x24] sm:$0xff]
    %v58 = vld [vmem:[%s0 + $0x2c] sm:$0xf]
    %v59 = vld [vmem:[#allocation4] sm:$0xff]
    %v60 = vld [vmem:[#allocation4 + $0x8] sm:$0xff]
    %v61 = vld [vmem:[#allocation4 + $0x10] sm:$0xff]
    %v62 = vld [vmem:[#allocation4 + $0x18] sm:$0xff]
    %64 = vset.pattern.permute.xlu0 0
    %65 = vperm.xlu0 %64, %v59
    %v66 = vpop.permute.xlu0 %65
    %69 = vset.pattern.permute.xlu0 0
    %70 = vperm.xlu0 %69, %v60
    %v71 = vpop.permute.xlu0 %70
    %74 = vset.pattern.permute.xlu0 0
    %75 = vperm.xlu0 %74, %v61
    %v76 = vpop.permute.xlu0 %75
    %79 = vset.pattern.permute.xlu0 0
    %80 = vperm.xlu0 %79, %v62
    %v81 = vpop.permute.xlu0 %80
    %v91 = vunpack.c.l.b16 %v43
    %v92 = vunpack.c.h.b16 %v43
    %v93 = vunpack.c.l.b16 %v44
    %v94 = vunpack.c.l.b16 %v45
    %v95 = vunpack.c.h.b16 %v45
    %v96 = vunpack.c.l.b16 %v46
    %v97 = vunpack.c.l.b16 %v47
    %v98 = vunpack.c.h.b16 %v47
    %v99 = vunpack.c.l.b16 %v48
    %v100 = vunpack.c.l.b16 %v49
    %v101 = vunpack.c.h.b16 %v49
    %v102 = vunpack.c.l.b16 %v50
    %v103 = vpack.c.b16 %v94, %v91
    %v104 = vpack.c.b16 %v95, %v92
    %v105 = vpack.c.b16 %v96, %v93
    %v106 = vpack.c.b16 %v100, %v97
    %v107 = vpack.c.b16 %v101, %v98
    %v108 = vpack.c.b16 %v102, %v99
    %v121 = vunpack.c.l.b16 %v51
    %v122 = vunpack.c.h.b16 %v51
    %v123 = vunpack.c.l.b16 %v52
    %v124 = vunpack.c.l.b16 %v53
    %v125 = vunpack.c.h.b16 %v53
    %v126 = vunpack.c.l.b16 %v54
    %v127 = vunpack.c.l.b16 %v55
    %v128 = vunpack.c.h.b16 %v55
    %v129 = vunpack.c.l.b16 %v56
    %v130 = vunpack.c.l.b16 %v57
    %v131 = vunpack.c.h.b16 %v57
    %v132 = vunpack.c.l.b16 %v58
    %v133 = vpack.c.b16 %v124, %v121
    %v134 = vpack.c.b16 %v125, %v122
    %v135 = vpack.c.b16 %v126, %v123
    %v136 = vpack.c.b16 %v130, %v127
    %v137 = vpack.c.b16 %v131, %v128
    %v138 = vpack.c.b16 %v132, %v129
    %vm143 = vcmask 261120
    %v145 = vsel %vm143, %v105, 0
    %v148 = vsel %vm143, %v108, 0
    %v151 = vsel %vm143, %v135, 0
    %v154 = vsel %vm143, %v138, 0
    %156 = vmatprep.subr.bf16.mxu0 0
    %157 = vmatpush1.bf16.xpose.msra.mxu0 0
    %158 = vmatprep.subr.bf16.mxu0 0
    %159 = vmatpush1.bf16.xpose.msra.mxu0 0
    %160 = vmatprep.subr.bf16.mxu0 0
    %161 = vmatpush1.bf16.xpose.msra.mxu0 0
    %162 = vmatprep.subr.bf16.mxu0 0
    %163 = vmatpush1.bf16.xpose.msra.mxu0 0
    %164 = vmatprep.subr.bf16.mxu0 0
    %165 = vmatpush1.bf16.xpose.msra.mxu0 0
    %166 = vmatprep.subr.bf16.mxu0 0
    %167 = vmatpush1.bf16.xpose.msra.mxu0 0
    %168 = vmatprep.subr.bf16.mxu0 %v137
    %169 = vmatpush1.bf16.xpose.msra.mxu0 %v136
    %170 = vmatprep.subr.bf16.mxu0 %v134
    %171 = vmatpush1.bf16.xpose.msra.mxu0 %v133
    %172 = vmatprep.subr.bf16.mxu0 0
    %173 = vmatpush2.bf16.xpose.msra.mxu0 0
    %174 = vmatprep.subr.bf16.mxu0 0
    %175 = vmatpush2.bf16.xpose.msra.mxu0 0
    %176 = vmatprep.subr.bf16.mxu0 0
    %177 = vmatpush2.bf16.xpose.msra.mxu0 0
    %178 = vmatprep.subr.bf16.mxu0 0
    %179 = vmatpush2.bf16.xpose.msra.mxu0 0
    %180 = vmatprep.subr.bf16.mxu0 0
    %181 = vmatpush2.bf16.xpose.msra.mxu0 0
    %182 = vmatprep.subr.bf16.mxu0 0
    %183 = vmatpush2.bf16.xpose.msra.mxu0 0
    %184 = vmatprep.subr.bf16.mxu0 0
    %185 = vmatpush2.bf16.xpose.msra.mxu0 0
    %186 = vmatprep.subr.bf16.mxu0 0
    %187 = vmatpush2.bf16.xpose.msra.mxu0 0
    %188 = vmatprep.mubr.bf16.mxu0 %v104
    %189 = vmatmul.mubr.bf16.gmra.mxu0 %v103
    %v190 = vpop.f32.mrf.mxu0
    %v191 = vadd.f32 %v66, %v190
    %v192 = vpop.f32.mrf.mxu0
    %v193 = vpop.f32.mrf.mxu0
    %v194 = vadd.f32 %v71, %v193
    %v195 = vpop.f32.mrf.mxu0
    %196 = vmatprep.mubr.bf16.mxu0 %v107
    %197 = vmatmul.mubr.bf16.gmra.mxu0 %v106
    %v198 = vpop.f32.mrf.mxu0
    %v199 = vadd.f32 %v76, %v198
    %v200 = vpop.f32.mrf.mxu0
    %v201 = vpop.f32.mrf.mxu0
    %v202 = vadd.f32 %v81, %v201
    %v203 = vpop.f32.mrf.mxu0
    %204 = vdwg.mxu0
    %205 = vmatprep.subr.bf16.mxu0 0
    %206 = vmatpush1.bf16.xpose.msra.mxu0 0
    %207 = vmatprep.subr.bf16.mxu0 0
    %208 = vmatpush1.bf16.xpose.msra.mxu0 0
    %209 = vmatprep.subr.bf16.mxu0 0
    %210 = vmatpush1.bf16.xpose.msra.mxu0 0
    %211 = vmatprep.subr.bf16.mxu0 0
    %212 = vmatpush1.bf16.xpose.msra.mxu0 0
    %213 = vmatprep.subr.bf16.mxu0 0
    %214 = vmatpush1.bf16.xpose.msra.mxu0 0
    %215 = vmatprep.subr.bf16.mxu0 0
    %216 = vmatpush1.bf16.xpose.msra.mxu0 0
    %217 = vmatprep.subr.bf16.mxu0 0
    %218 = vmatpush1.bf16.xpose.msra.mxu0 %v154
    %219 = vmatprep.subr.bf16.mxu0 0
    %220 = vmatpush1.bf16.xpose.msra.mxu0 %v151
    %221 = vmatprep.subr.bf16.mxu0 0
    %222 = vmatpush2.bf16.xpose.msra.mxu0 0
    %223 = vmatprep.subr.bf16.mxu0 0
    %224 = vmatpush2.bf16.xpose.msra.mxu0 0
    %225 = vmatprep.subr.bf16.mxu0 0
    %226 = vmatpush2.bf16.xpose.msra.mxu0 0
    %227 = vmatprep.subr.bf16.mxu0 0
    %228 = vmatpush2.bf16.xpose.msra.mxu0 0
    %229 = vmatprep.subr.bf16.mxu0 0
    %230 = vmatpush2.bf16.xpose.msra.mxu0 0
    %231 = vmatprep.subr.bf16.mxu0 0
    %232 = vmatpush2.bf16.xpose.msra.mxu0 0
    %233 = vmatprep.subr.bf16.mxu0 0
    %234 = vmatpush2.bf16.xpose.msra.mxu0 0
    %235 = vmatprep.subr.bf16.mxu0 0
    %236 = vmatpush2.bf16.xpose.msra.mxu0 0
    %237 = vmatprep.mubr.bf16.mxu0 0
    %238 = vmatmul.mubr.bf16.gmra.mxu0 %v145
    %v239 = vpop.f32.mrf.mxu0
    %v240 = vadd.f32 %v191, %v239
    %v241 = vpop.f32.mrf.mxu0
    %v242 = vpop.f32.mrf.mxu0
    %v243 = vadd.f32 %v194, %v242
    %v244 = vpop.f32.mrf.mxu0
    %245 = vmatprep.mubr.bf16.mxu0 0
    %246 = vmatmul.mubr.bf16.gmra.mxu0 %v148
    %v247 = vpop.f32.mrf.mxu0
    %v248 = vadd.f32 %v199, %v247
    %v249 = vpop.f32.mrf.mxu0
    %v250 = vpop.f32.mrf.mxu0
    %v251 = vadd.f32 %v202, %v250
    %v252 = vpop.f32.mrf.mxu0
    %253 = vdwg.mxu0
    %vm254 = vcmp.ge.f32.partialorder %v240, 0.0
    %vm255 = vcmp.ge.f32.partialorder %v243, 0.0
    %vm256 = vcmp.ge.f32.partialorder %v248, 0.0
    %vm257 = vcmp.ge.f32.partialorder %v251, 0.0
    %v258 = vmul.f32 %v240, 0.1
    %v259 = vmul.f32 %v243, 0.1
    %v260 = vmul.f32 %v248, 0.1
    %v261 = vmul.f32 %v251, 0.1
    %v262 = vsel %vm254, %v240, %v258
    %v263 = vsel %vm255, %v243, %v259
    %v264 = vsel %vm256, %v248, %v260
    %v265 = vsel %vm257, %v251, %v261
    %266 = vst.msk [vmem:[%s3] sm:$0xff] %vm143, %v262
    %267 = vst.msk [vmem:[%s3 + $0x8] sm:$0xff] %vm143, %v263
    %268 = vst.msk [vmem:[%s3 + $0x10] sm:$0xff] %vm143, %v264
    %269 = vst.msk [vmem:[%s3 + $0x18] sm:$0xff] %vm143, %v265
    // Predicated region
    $region22: #{alignnet_forward.33} parent=1 // pred_check
      _
    $region23: #{alignnet_forward.33} parent=1 // pred_check_branch
      %271 = sbr.rel (0) target = $region25
    $region24: #{alignnet_forward.33} parent=1 // pred_region
      _
    $region25: #{alignnet_forward.33} parent=1 // pred_fallthru
      _
    // Predicated region
    $region26: #{alignnet_forward.33} parent=1 // pred_check
      _
    $region27: #{alignnet_forward.33} parent=1 // pred_check_branch
      %273 = sbr.rel (0) target = $region29
    $region28: #{alignnet_forward.33} parent=1 // pred_region
      _
    $region29: #{alignnet_forward.33} parent=1 // pred_fallthru
      _
    %274 = vsyncpa [#allocation3], 1
    %275 = vsyncpa [#allocation5], 1

// kernel: alignnet_forward.34
$region0: #{alignnet_forward.34}
  #allocation0 [shape = 'u32[]', space=smem, size = 0x4, offset = 0x4, fixed_abs, tag = 'smem constant byte address 0x4 - core index']
  #allocation1 [shape = 'u32[144,128]{1,0:T(1,128)}', space=vmem, size = 0x12000, scoped, tag = 'internal scratch']
  %s0 = inlined_call_operand.vmem [shape: bf16[8,288], index: 0, kind: input, shape index: {}]
  %s1 = inlined_call_operand.vmem [shape: bf16[32,288], index: 1, kind: input, shape index: {}]
  %s2 = inlined_call_operand.vmem [shape: f32[32,1], index: 2, kind: input, shape index: {}]
  %s3 = inlined_call_operand.vmem [shape: f32[32,8], index: 3, kind: output, shape index: {}]
  %s4 = sld [smem:[#allocation0]]
  $region22: #{alignnet_forward.34} parent=0
    _
  %s6 = ssub.s32 1, %s4
  %s7 = scalar_select 0, %s6, %s4
  // Predicated region
  $region2: #{alignnet_forward.34} parent=0 // pred_check
    _
  $region3: #{alignnet_forward.34} parent=0 // pred_check_branch
    %9 = sbr.rel (0) target = $region5
  $region4: #{alignnet_forward.34} parent=0 // pred_region
    _
  $region5: #{alignnet_forward.34} parent=0 // pred_fallthru
    _
  // Predicated region
  $region6: #{alignnet_forward.34} parent=0 // pred_check
    _
  $region7: #{alignnet_forward.34} parent=0 // pred_check_branch
    %11 = sbr.rel (0) target = $region9
  $region8: #{alignnet_forward.34} parent=0 // pred_region
    _
  $region9: #{alignnet_forward.34} parent=0 // pred_fallthru
    _
  // Predicated region
  $region10: #{alignnet_forward.34} parent=0 // pred_check
    _
  $region11: #{alignnet_forward.34} parent=0 // pred_check_branch
    %13 = sbr.rel (0) target = $region13
  $region12: #{alignnet_forward.34} parent=0 // pred_region
    _
  $region13: #{alignnet_forward.34} parent=0 // pred_fallthru
    _
  %v15 = vld [vmem:[%s1] sm:$0xff]
  %v16 = vld [vmem:[%s1 + $0x8] sm:$0xf]
  %v17 = vld [vmem:[%s1 + $0xc] sm:$0xff]
  %v18 = vld [vmem:[%s1 + $0x14] sm:$0xf]
  %v19 = vld [vmem:[%s1 + $0x18] sm:$0xff]
  %v20 = vld [vmem:[%s1 + $0x20] sm:$0xf]
  %v21 = vld [vmem:[%s1 + $0x24] sm:$0xff]
  %v22 = vld [vmem:[%s1 + $0x2c] sm:$0xf]
  %v23 = vld [vmem:[%s0] sm:$0xff]
  %v24 = vld [vmem:[%s0 + $0x8] sm:$0xf]
  %v25 = vld [vmem:[%s2] sm:$0xff]
  %v26 = vld [vmem:[%s2 + $0x8] sm:$0xff]
  %v27 = vld [vmem:[%s2 + $0x10] sm:$0xff]
  %v28 = vld [vmem:[%s2 + $0x18] sm:$0xff]
  %30 = vset.pattern.permute.xlu0 0
  %31 = vperm.xlu0 %30, %v25
  %v32 = vpop.permute.xlu0 %31
  %35 = vset.pattern.permute.xlu0 0
  %36 = vperm.xlu0 %35, %v26
  %v37 = vpop.permute.xlu0 %36
  %40 = vset.pattern.permute.xlu0 0
  %41 = vperm.xlu0 %40, %v27
  %v42 = vpop.permute.xlu0 %41
  %45 = vset.pattern.permute.xlu0 0
  %46 = vperm.xlu0 %45, %v28
  %v47 = vpop.permute.xlu0 %46
  %v57 = vunpack.c.l.b16 %v15
  %v58 = vunpack.c.h.b16 %v15
  %v59 = vunpack.c.l.b16 %v16
  %v60 = vunpack.c.l.b16 %v17
  %v61 = vunpack.c.h.b16 %v17
  %v62 = vunpack.c.l.b16 %v18
  %v63 = vunpack.c.l.b16 %v19
  %v64 = vunpack.c.h.b16 %v19
  %v65 = vunpack.c.l.b16 %v20
  %v66 = vunpack.c.l.b16 %v21
  %v67 = vunpack.c.h.b16 %v21
  %v68 = vunpack.c.l.b16 %v22
  %v69 = vpack.c.b16 %v60, %v57
  %v70 = vpack.c.b16 %v61, %v58
  %v71 = vpack.c.b16 %v62, %v59
  %v72 = vpack.c.b16 %v66, %v63
  %v73 = vpack.c.b16 %v67, %v64
  %v74 = vpack.c.b16 %v68, %v65
  %v81 = vunpack.c.l.b16 %v23
  %v82 = vunpack.c.h.b16 %v23
  %v83 = vunpack.c.l.b16 %v24
  %v84 = vpack.c.b16 %v81, %v81
  %v85 = vpack.c.b16 %v82, %v82
  %v86 = vpack.c.b16 %v83, %v83
  %vm89 = vcmask 261120
  %v91 = vsel %vm89, %v71, 0
  %v94 = vsel %vm89, %v74, 0
  %v97 = vsel %vm89, %v86, 0
  %99 = vmatprep.subr.bf16.mxu0 0
  %100 = vmatpush1.bf16.xpose.msra.mxu0 0
  %101 = vmatprep.subr.bf16.mxu0 0
  %102 = vmatpush1.bf16.xpose.msra.mxu0 0
  %103 = vmatprep.subr.bf16.mxu0 0
  %104 = vmatpush1.bf16.xpose.msra.mxu0 0
  %105 = vmatprep.subr.bf16.mxu0 0
  %106 = vmatpush1.bf16.xpose.msra.mxu0 0
  %107 = vmatprep.subr.bf16.mxu0 0
  %108 = vmatpush1.bf16.xpose.msra.mxu0 0
  %109 = vmatprep.subr.bf16.mxu0 0
  %110 = vmatpush1.bf16.xpose.msra.mxu0 0
  %111 = vmatprep.subr.bf16.mxu0 0
  %112 = vmatpush1.bf16.xpose.msra.mxu0 0
  %113 = vmatprep.subr.bf16.mxu0 %v85
  %114 = vmatpush1.bf16.xpose.msra.mxu0 %v84
  %115 = vmatprep.subr.bf16.mxu0 0
  %116 = vmatpush2.bf16.xpose.msra.mxu0 0
  %117 = vmatprep.subr.bf16.mxu0 0
  %118 = vmatpush2.bf16.xpose.msra.mxu0 0
  %119 = vmatprep.subr.bf16.mxu0 0
  %120 = vmatpush2.bf16.xpose.msra.mxu0 0
  %121 = vmatprep.subr.bf16.mxu0 0
  %122 = vmatpush2.bf16.xpose.msra.mxu0 0
  %123 = vmatprep.subr.bf16.mxu0 0
  %124 = vmatpush2.bf16.xpose.msra.mxu0 0
  %125 = vmatprep.subr.bf16.mxu0 0
  %126 = vmatpush2.bf16.xpose.msra.mxu0 0
  %127 = vmatprep.subr.bf16.mxu0 0
  %128 = vmatpush2.bf16.xpose.msra.mxu0 0
  %129 = vmatprep.subr.bf16.mxu0 0
  %130 = vmatpush2.bf16.xpose.msra.mxu0 0
  %131 = vmatprep.mubr.bf16.mxu0 %v70
  %132 = vmatmul.mubr.bf16.gmra.mxu0 %v69
  %v133 = vpop.f32.mrf.mxu0
  %v134 = vadd.f32 %v32, %v133
  %v135 = vpop.f32.mrf.mxu0
  %v136 = vpop.f32.mrf.mxu0
  %v137 = vadd.f32 %v37, %v136
  %v138 = vpop.f32.mrf.mxu0
  %139 = vmatprep.mubr.bf16.mxu0 %v73
  %140 = vmatmul.mubr.bf16.gmra.mxu0 %v72
  %v141 = vpop.f32.mrf.mxu0
  %v142 = vadd.f32 %v42, %v141
  %v143 = vpop.f32.mrf.mxu0
  %v144 = vpop.f32.mrf.mxu0
  %v145 = vadd.f32 %v47, %v144
  %v146 = vpop.f32.mrf.mxu0
  %147 = vdwg.mxu0
  %148 = vmatprep.subr.bf16.mxu0 0
  %149 = vmatpush1.bf16.xpose.msra.mxu0 0
  %150 = vmatprep.subr.bf16.mxu0 0
  %151 = vmatpush1.bf16.xpose.msra.mxu0 0
  %152 = vmatprep.subr.bf16.mxu0 0
  %153 = vmatpush1.bf16.xpose.msra.mxu0 0
  %154 = vmatprep.subr.bf16.mxu0 0
  %155 = vmatpush1.bf16.xpose.msra.mxu0 0
  %156 = vmatprep.subr.bf16.mxu0 0
  %157 = vmatpush1.bf16.xpose.msra.mxu0 0
  %158 = vmatprep.subr.bf16.mxu0 0
  %159 = vmatpush1.bf16.xpose.msra.mxu0 0
  %160 = vmatprep.subr.bf16.mxu0 0
  %161 = vmatpush1.bf16.xpose.msra.mxu0 0
  %162 = vmatprep.subr.bf16.mxu0 0
  %163 = vmatpush1.bf16.xpose.msra.mxu0 %v97
  %164 = vmatprep.subr.bf16.mxu0 0
  %165 = vmatpush2.bf16.xpose.msra.mxu0 0
  %166 = vmatprep.subr.bf16.mxu0 0
  %167 = vmatpush2.bf16.xpose.msra.mxu0 0
  %168 = vmatprep.subr.bf16.mxu0 0
  %169 = vmatpush2.bf16.xpose.msra.mxu0 0
  %170 = vmatprep.subr.bf16.mxu0 0
  %171 = vmatpush2.bf16.xpose.msra.mxu0 0
  %172 = vmatprep.subr.bf16.mxu0 0
  %173 = vmatpush2.bf16.xpose.msra.mxu0 0
  %174 = vmatprep.subr.bf16.mxu0 0
  %175 = vmatpush2.bf16.xpose.msra.mxu0 0
  %176 = vmatprep.subr.bf16.mxu0 0
  %177 = vmatpush2.bf16.xpose.msra.mxu0 0
  %178 = vmatprep.subr.bf16.mxu0 0
  %179 = vmatpush2.bf16.xpose.msra.mxu0 0
  %180 = vmatprep.mubr.bf16.mxu0 0
  %181 = vmatmul.mubr.bf16.gmra.mxu0 %v91
  %v182 = vpop.f32.mrf.mxu0
  %v183 = vadd.f32 %v134, %v182
  %v184 = vpop.f32.mrf.mxu0
  %v185 = vpop.f32.mrf.mxu0
  %v186 = vadd.f32 %v137, %v185
  %v187 = vpop.f32.mrf.mxu0
  %188 = vmatprep.mubr.bf16.mxu0 0
  %189 = vmatmul.mubr.bf16.gmra.mxu0 %v94
  %v190 = vpop.f32.mrf.mxu0
  %v191 = vadd.f32 %v142, %v190
  %v192 = vpop.f32.mrf.mxu0
  %v193 = vpop.f32.mrf.mxu0
  %v194 = vadd.f32 %v145, %v193
  %v195 = vpop.f32.mrf.mxu0
  %196 = vdwg.mxu0
  %vm197 = vcmp.ge.f32.partialorder %v183, 0.0
  %vm198 = vcmp.ge.f32.partialorder %v186, 0.0
  %vm199 = vcmp.ge.f32.partialorder %v191, 0.0
  %vm200 = vcmp.ge.f32.partialorder %v194, 0.0
  %v201 = vmul.f32 %v183, 0.1
  %v202 = vmul.f32 %v186, 0.1
  %v203 = vmul.f32 %v191, 0.1
  %v204 = vmul.f32 %v194, 0.1
  %v205 = vsel %vm197, %v183, %v201
  %v206 = vsel %vm198, %v186, %v202
  %v207 = vsel %vm199, %v191, %v203
  %v208 = vsel %vm200, %v194, %v204
  %vm209 = vcmask 64512
  %210 = vst.msk [vmem:[%s3] sm:$0xff] %vm209, %v205
  %211 = vst.msk [vmem:[%s3 + $0x8] sm:$0xff] %vm209, %v206
  %212 = vst.msk [vmem:[%s3 + $0x10] sm:$0xff] %vm209, %v207
  %213 = vst.msk [vmem:[%s3 + $0x18] sm:$0xff] %vm209, %v208
  // Predicated region
  $region14: #{alignnet_forward.34} parent=0 // pred_check
    _
  $region15: #{alignnet_forward.34} parent=0 // pred_check_branch
    %215 = sbr.rel (0) target = $region17
  $region16: #{alignnet_forward.34} parent=0 // pred_region
    _
  $region17: #{alignnet_forward.34} parent=0 // pred_fallthru
    _
  // Predicated region
  $region18: #{alignnet_forward.34} parent=0 // pred_check
    _
  $region19: #{alignnet_forward.34} parent=0 // pred_check_branch
    %217 = sbr.rel (0) target = $region21
  $region20: #{alignnet_forward.34} parent=0 // pred_region
    _
  $region21: #{alignnet_forward.34} parent=0 // pred_fallthru
    _

// kernel: alignnet_forward.28
$region0: #{alignnet_forward.28}
  #allocation0 [shape = 'u32[]', space=smem, size = 0x4, offset = 0x4, fixed_abs, tag = 'smem constant byte address 0x4 - core index']
  #allocation1 [shape = 'u32[144,128]{1,0:T(1,128)}', space=vmem, size = 0x12000, scoped, tag = 'internal scratch']
  %s0 = inlined_call_operand.vmem [shape: bf16[128,288], index: 0, kind: input, shape index: {}]
  %s1 = inlined_call_operand.vmem [shape: bf16[32,288], index: 1, kind: input, shape index: {}]
  %s2 = inlined_call_operand.vmem [shape: f32[32,1], index: 2, kind: input, shape index: {}]
  %s3 = inlined_call_operand.vmem [shape: f32[32,128], index: 3, kind: output, shape index: {}]
  %s4 = sld [smem:[#allocation0]]
  $region22: #{alignnet_forward.28} parent=0
    _
  %s6 = ssub.s32 1, %s4
  %s7 = scalar_select 0, %s6, %s4
  // Predicated region
  $region2: #{alignnet_forward.28} parent=0 // pred_check
    _
  $region3: #{alignnet_forward.28} parent=0 // pred_check_branch
    %9 = sbr.rel (0) target = $region5
  $region4: #{alignnet_forward.28} parent=0 // pred_region
    _
  $region5: #{alignnet_forward.28} parent=0 // pred_fallthru
    _
  // Predicated region
  $region6: #{alignnet_forward.28} parent=0 // pred_check
    _
  $region7: #{alignnet_forward.28} parent=0 // pred_check_branch
    %11 = sbr.rel (0) target = $region9
  $region8: #{alignnet_forward.28} parent=0 // pred_region
    _
  $region9: #{alignnet_forward.28} parent=0 // pred_fallthru
    _
  // Predicated region
  $region10: #{alignnet_forward.28} parent=0 // pred_check
    _
  $region11: #{alignnet_forward.28} parent=0 // pred_check_branch
    %13 = sbr.rel (0) target = $region13
  $region12: #{alignnet_forward.28} parent=0 // pred_region
    _
  $region13: #{alignnet_forward.28} parent=0 // pred_fallthru
    _
  %v15 = vld [vmem:[%s1] sm:$0xff]
  %v16 = vld [vmem:[%s1 + $0x8] sm:$0xf]
  %v17 = vld [vmem:[%s1 + $0xc] sm:$0xff]
  %v18 = vld [vmem:[%s1 + $0x14] sm:$0xf]
  %v19 = vld [vmem:[%s1 + $0x18] sm:$0xff]
  %v20 = vld [vmem:[%s1 + $0x20] sm:$0xf]
  %v21 = vld [vmem:[%s1 + $0x24] sm:$0xff]
  %v22 = vld [vmem:[%s1 + $0x2c] sm:$0xf]
  %v23 = vld [vmem:[%s0] sm:$0xff]
  %v24 = vld [vmem:[%s0 + $0x8] sm:$0xf]
  %v25 = vld [vmem:[%s0 + $0xc] sm:$0xff]
  %v26 = vld [vmem:[%s0 + $0x14] sm:$0xf]
  %v27 = vld [vmem:[%s0 + $0x18] sm:$0xff]
  %v28 = vld [vmem:[%s0 + $0x20] sm:$0xf]
  %v29 = vld [vmem:[%s0 + $0x24] sm:$0xff]
  %v30 = vld [vmem:[%s0 + $0x2c] sm:$0xf]
  %v31 = vld [vmem:[%s0 + $0x30] sm:$0xff]
  %v32 = vld [vmem:[%s0 + $0x38] sm:$0xf]
  %v33 = vld [vmem:[%s0 + $0x3c] sm:$0xff]
  %v34 = vld [vmem:[%s0 + $0x44] sm:$0xf]
  %v35 = vld [vmem:[%s0 + $0x48] sm:$0xff]
  %v36 = vld [vmem:[%s0 + $0x50] sm:$0xf]
  %v37 = vld [vmem:[%s0 + $0x54] sm:$0xff]
  %v38 = vld [vmem:[%s0 + $0x5c] sm:$0xf]
  %v39 = vld [vmem:[%s0 + $0x60] sm:$0xff]
  %v40 = vld [vmem:[%s0 + $0x68] sm:$0xf]
  %v41 = vld [vmem:[%s0 + $0x6c] sm:$0xff]
  %v42 = vld [vmem:[%s0 + $0x74] sm:$0xf]
  %v43 = vld [vmem:[%s0 + $0x78] sm:$0xff]
  %v44 = vld [vmem:[%s0 + $0x80] sm:$0xf]
  %v45 = vld [vmem:[%s0 + $0x84] sm:$0xff]
  %v46 = vld [vmem:[%s0 + $0x8c] sm:$0xf]
  %v47 = vld [vmem:[%s0 + $0x90] sm:$0xff]
  %v48 = vld [vmem:[%s0 + $0x98] sm:$0xf]
  %v49 = vld [vmem:[%s0 + $0x9c] sm:$0xff]
  %v50 = vld [vmem:[%s0 + $0xa4] sm:$0xf]
  %v51 = vld [vmem:[%s0 + $0xa8] sm:$0xff]
  %v52 = vld [vmem:[%s0 + $0xb0] sm:$0xf]
  %v53 = vld [vmem:[%s0 + $0xb4] sm:$0xff]
  %v54 = vld [vmem:[%s0 + $0xbc] sm:$0xf]
  %v55 = vld [vmem:[%s2] sm:$0xff]
  %v56 = vld [vmem:[%s2 + $0x8] sm:$0xff]
  %v57 = vld [vmem:[%s2 + $0x10] sm:$0xff]
  %v58 = vld [vmem:[%s2 + $0x18] sm:$0xff]
  %60 = vset.pattern.permute.xlu0 0
  %61 = vperm.xlu0 %60, %v55
  %v62 = vpop.permute.xlu0 %61
  %65 = vset.pattern.permute.xlu0 0
  %66 = vperm.xlu0 %65, %v56
  %v67 = vpop.permute.xlu0 %66
  %70 = vset.pattern.permute.xlu0 0
  %71 = vperm.xlu0 %70, %v57
  %v72 = vpop.permute.xlu0 %71
  %75 = vset.pattern.permute.xlu0 0
  %76 = vperm.xlu0 %75, %v58
  %v77 = vpop.permute.xlu0 %76
  %v87 = vunpack.c.l.b16 %v15
  %v88 = vunpack.c.h.b16 %v15
  %v89 = vunpack.c.l.b16 %v16
  %v90 = vunpack.c.l.b16 %v17
  %v91 = vunpack.c.h.b16 %v17
  %v92 = vunpack.c.l.b16 %v18
  %v93 = vunpack.c.l.b16 %v19
  %v94 = vunpack.c.h.b16 %v19
  %v95 = vunpack.c.l.b16 %v20
  %v96 = vunpack.c.l.b16 %v21
  %v97 = vunpack.c.h.b16 %v21
  %v98 = vunpack.c.l.b16 %v22
  %v99 = vpack.c.b16 %v90, %v87
  %v100 = vpack.c.b16 %v91, %v88
  %v101 = vpack.c.b16 %v92, %v89
  %v102 = vpack.c.b16 %v96, %v93
  %v103 = vpack.c.b16 %v97, %v94
  %v104 = vpack.c.b16 %v98, %v95
  %v141 = vunpack.c.l.b16 %v23
  %v142 = vunpack.c.h.b16 %v23
  %v143 = vunpack.c.l.b16 %v24
  %v144 = vunpack.c.l.b16 %v25
  %v145 = vunpack.c.h.b16 %v25
  %v146 = vunpack.c.l.b16 %v26
  %v147 = vunpack.c.l.b16 %v27
  %v148 = vunpack.c.h.b16 %v27
  %v149 = vunpack.c.l.b16 %v28
  %v150 = vunpack.c.l.b16 %v29
  %v151 = vunpack.c.h.b16 %v29
  %v152 = vunpack.c.l.b16 %v30
  %v153 = vunpack.c.l.b16 %v31
  %v154 = vunpack.c.h.b16 %v31
  %v155 = vunpack.c.l.b16 %v32
  %v156 = vunpack.c.l.b16 %v33
  %v157 = vunpack.c.h.b16 %v33
  %v158 = vunpack.c.l.b16 %v34
  %v159 = vunpack.c.l.b16 %v35
  %v160 = vunpack.c.h.b16 %v35
  %v161 = vunpack.c.l.b16 %v36
  %v162 = vunpack.c.l.b16 %v37
  %v163 = vunpack.c.h.b16 %v37
  %v164 = vunpack.c.l.b16 %v38
  %v165 = vunpack.c.l.b16 %v39
  %v166 = vunpack.c.h.b16 %v39
  %v167 = vunpack.c.l.b16 %v40
  %v168 = vunpack.c.l.b16 %v41
  %v169 = vunpack.c.h.b16 %v41
  %v170 = vunpack.c.l.b16 %v42
  %v171 = vunpack.c.l.b16 %v43
  %v172 = vunpack.c.h.b16 %v43
  %v173 = vunpack.c.l.b16 %v44
  %v174 = vunpack.c.l.b16 %v45
  %v175 = vunpack.c.h.b16 %v45
  %v176 = vunpack.c.l.b16 %v46
  %v177 = vunpack.c.l.b16 %v47
  %v178 = vunpack.c.h.b16 %v47
  %v179 = vunpack.c.l.b16 %v48
  %v180 = vunpack.c.l.b16 %v49
  %v181 = vunpack.c.h.b16 %v49
  %v182 = vunpack.c.l.b16 %v50
  %v183 = vunpack.c.l.b16 %v51
  %v184 = vunpack.c.h.b16 %v51
  %v185 = vunpack.c.l.b16 %v52
  %v186 = vunpack.c.l.b16 %v53
  %v187 = vunpack.c.h.b16 %v53
  %v188 = vunpack.c.l.b16 %v54
  %v189 = vpack.c.b16 %v144, %v141
  %v190 = vpack.c.b16 %v145, %v142
  %v191 = vpack.c.b16 %v146, %v143
  %v192 = vpack.c.b16 %v150, %v147
  %v193 = vpack.c.b16 %v151, %v148
  %v194 = vpack.c.b16 %v152, %v149
  %v195 = vpack.c.b16 %v156, %v153
  %v196 = vpack.c.b16 %v157, %v154
  %v197 = vpack.c.b16 %v158, %v155
  %v198 = vpack.c.b16 %v162, %v159
  %v199 = vpack.c.b16 %v163, %v160
  %v200 = vpack.c.b16 %v164, %v161
  %v201 = vpack.c.b16 %v168, %v165
  %v202 = vpack.c.b16 %v169, %v166
  %v203 = vpack.c.b16 %v170, %v167
  %v204 = vpack.c.b16 %v174, %v171
  %v205 = vpack.c.b16 %v175, %v172
  %v206 = vpack.c.b16 %v176, %v173
  %v207 = vpack.c.b16 %v180, %v177
  %v208 = vpack.c.b16 %v181, %v178
  %v209 = vpack.c.b16 %v182, %v179
  %v210 = vpack.c.b16 %v186, %v183
  %v211 = vpack.c.b16 %v187, %v184
  %v212 = vpack.c.b16 %v188, %v185
  %vm229 = vcmask 261120
  %v231 = vsel %vm229, %v101, 0
  %v234 = vsel %vm229, %v104, 0
  %v237 = vsel %vm229, %v191, 0
  %v240 = vsel %vm229, %v194, 0
  %v243 = vsel %vm229, %v197, 0
  %v246 = vsel %vm229, %v200, 0
  %v249 = vsel %vm229, %v203, 0
  %v252 = vsel %vm229, %v206, 0
  %v255 = vsel %vm229, %v209, 0
  %v258 = vsel %vm229, %v212, 0
  %260 = vmatprep.subr.bf16.mxu0 %v211
  %261 = vmatpush1.bf16.xpose.msra.mxu0 %v210
  %262 = vmatprep.subr.bf16.mxu0 %v208
  %263 = vmatpush1.bf16.xpose.msra.mxu0 %v207
  %264 = vmatprep.subr.bf16.mxu0 %v205
  %265 = vmatpush1.bf16.xpose.msra.mxu0 %v204
  %266 = vmatprep.subr.bf16.mxu0 %v202
  %267 = vmatpush1.bf16.xpose.msra.mxu0 %v201
  %268 = vmatprep.subr.bf16.mxu0 %v199
  %269 = vmatpush1.bf16.xpose.msra.mxu0 %v198
  %270 = vmatprep.subr.bf16.mxu0 %v196
  %271 = vmatpush1.bf16.xpose.msra.mxu0 %v195
  %272 = vmatprep.subr.bf16.mxu0 %v193
  %273 = vmatpush1.bf16.xpose.msra.mxu0 %v192
  %274 = vmatprep.subr.bf16.mxu0 %v190
  %275 = vmatpush1.bf16.xpose.msra.mxu0 %v189
  %276 = vmatprep.subr.bf16.mxu0 0
  %277 = vmatpush2.bf16.xpose.msra.mxu0 0
  %278 = vmatprep.subr.bf16.mxu0 0
  %279 = vmatpush2.bf16.xpose.msra.mxu0 0
  %280 = vmatprep.subr.bf16.mxu0 0
  %281 = vmatpush2.bf16.xpose.msra.mxu0 0
  %282 = vmatprep.subr.bf16.mxu0 0
  %283 = vmatpush2.bf16.xpose.msra.mxu0 0
  %284 = vmatprep.subr.bf16.mxu0 0
  %285 = vmatpush2.bf16.xpose.msra.mxu0 0
  %286 = vmatprep.subr.bf16.mxu0 0
  %287 = vmatpush2.bf16.xpose.msra.mxu0 0
  %288 = vmatprep.subr.bf16.mxu0 0
  %289 = vmatpush2.bf16.xpose.msra.mxu0 0
  %290 = vmatprep.subr.bf16.mxu0 0
  %291 = vmatpush2.bf16.xpose.msra.mxu0 0
  %292 = vmatprep.mubr.bf16.mxu0 %v100
  %293 = vmatmul.mubr.bf16.gmra.mxu0 %v99
  %v294 = vpop.f32.mrf.mxu0
  %v295 = vadd.f32 %v62, %v294
  %v296 = vpop.f32.mrf.mxu0
  %v297 = vpop.f32.mrf.mxu0
  %v298 = vadd.f32 %v67, %v297
  %v299 = vpop.f32.mrf.mxu0
  %300 = vmatprep.mubr.bf16.mxu0 %v103
  %301 = vmatmul.mubr.bf16.gmra.mxu0 %v102
  %v302 = vpop.f32.mrf.mxu0
  %v303 = vadd.f32 %v72, %v302
  %v304 = vpop.f32.mrf.mxu0
  %v305 = vpop.f32.mrf.mxu0
  %v306 = vadd.f32 %v77, %v305
  %v307 = vpop.f32.mrf.mxu0
  %308 = vdwg.mxu0
  %309 = vmatprep.subr.bf16.mxu0 0
  %310 = vmatpush1.bf16.xpose.msra.mxu0 %v258
  %311 = vmatprep.subr.bf16.mxu0 0
  %312 = vmatpush1.bf16.xpose.msra.mxu0 %v255
  %313 = vmatprep.subr.bf16.mxu0 0
  %314 = vmatpush1.bf16.xpose.msra.mxu0 %v252
  %315 = vmatprep.subr.bf16.mxu0 0
  %316 = vmatpush1.bf16.xpose.msra.mxu0 %v249
  %317 = vmatprep.subr.bf16.mxu0 0
  %318 = vmatpush1.bf16.xpose.msra.mxu0 %v246
  %319 = vmatprep.subr.bf16.mxu0 0
  %320 = vmatpush1.bf16.xpose.msra.mxu0 %v243
  %321 = vmatprep.subr.bf16.mxu0 0
  %322 = vmatpush1.bf16.xpose.msra.mxu0 %v240
  %323 = vmatprep.subr.bf16.mxu0 0
  %324 = vmatpush1.bf16.xpose.msra.mxu0 %v237
  %325 = vmatprep.subr.bf16.mxu0 0
  %326 = vmatpush2.bf16.xpose.msra.mxu0 0
  %327 = vmatprep.subr.bf16.mxu0 0
  %328 = vmatpush2.bf16.xpose.msra.mxu0 0
  %329 = vmatprep.subr.bf16.mxu0 0
  %330 = vmatpush2.bf16.xpose.msra.mxu0 0
  %331 = vmatprep.subr.bf16.mxu0 0
  %332 = vmatpush2.bf16.xpose.msra.mxu0 0
  %333 = vmatprep.subr.bf16.mxu0 0
  %334 = vmatpush2.bf16.xpose.msra.mxu0 0
  %335 = vmatprep.subr.bf16.mxu0 0
  %336 = vmatpush2.bf16.xpose.msra.mxu0 0
  %337 = vmatprep.subr.bf16.mxu0 0
  %338 = vmatpush2.bf16.xpose.msra.mxu0 0
  %339 = vmatprep.subr.bf16.mxu0 0
  %340 = vmatpush2.bf16.xpose.msra.mxu0 0
  %341 = vmatprep.mubr.bf16.mxu0 0
  %342 = vmatmul.mubr.bf16.gmra.mxu0 %v231
  %v343 = vpop.f32.mrf.mxu0
  %v344 = vadd.f32 %v295, %v343
  %v345 = vpop.f32.mrf.mxu0
  %v346 = vpop.f32.mrf.mxu0
  %v347 = vadd.f32 %v298, %v346
  %v348 = vpop.f32.mrf.mxu0
  %349 = vmatprep.mubr.bf16.mxu0 0
  %350 = vmatmul.mubr.bf16.gmra.mxu0 %v234
  %v351 = vpop.f32.mrf.mxu0
  %v352 = vadd.f32 %v303, %v351
  %v353 = vpop.f32.mrf.mxu0
  %v354 = vpop.f32.mrf.mxu0
  %v355 = vadd.f32 %v306, %v354
  %v356 = vpop.f32.mrf.mxu0
  %357 = vdwg.mxu0
  %vm358 = vcmp.ge.f32.partialorder %v344, 0.0
  %vm359 = vcmp.ge.f32.partialorder %v347, 0.0
  %vm360 = vcmp.ge.f32.partialorder %v352, 0.0
  %vm361 = vcmp.ge.f32.partialorder %v355, 0.0
  %v362 = vmul.f32 %v344, 0.1
  %v363 = vmul.f32 %v347, 0.1
  %v364 = vmul.f32 %v352, 0.1
  %v365 = vmul.f32 %v355, 0.1
  %v366 = vsel %vm358, %v344, %v362
  %v367 = vsel %vm359, %v347, %v363
  %v368 = vsel %vm360, %v352, %v364
  %v369 = vsel %vm361, %v355, %v365
  %370 = vst [vmem:[%s3] sm:$0xff] %v366
  %371 = vst [vmem:[%s3 + $0x8] sm:$0xff] %v367
  %372 = vst [vmem:[%s3 + $0x10] sm:$0xff] %v368
  %373 = vst [vmem:[%s3 + $0x18] sm:$0xff] %v369
  // Predicated region
  $region14: #{alignnet_forward.28} parent=0 // pred_check
    _
  $region15: #{alignnet_forward.28} parent=0 // pred_check_branch
    %375 = sbr.rel (0) target = $region17
  $region16: #{alignnet_forward.28} parent=0 // pred_region
    _
  $region17: #{alignnet_forward.28} parent=0 // pred_fallthru
    _
  // Predicated region
  $region18: #{alignnet_forward.28} parent=0 // pred_check
    _
  $region19: #{alignnet_forward.28} parent=0 // pred_check_branch
    %377 = sbr.rel (0) target = $region21
  $region20: #{alignnet_forward.28} parent=0 // pred_region
    _
  $region21: #{alignnet_forward.28} parent=0 // pred_fallthru
    _

// kernel: alignnet_forward.36
$region0: #{alignnet_forward.36}
  #allocation0 [shape = 'u32[]', space=smem, size = 0x4, offset = 0x4, fixed_abs, tag = 'smem constant byte address 0x4 - core index']
  #allocation1 [shape = 'u32[144,128]{1,0:T(1,128)}', space=vmem, size = 0x12000, scoped, tag = 'internal scratch']
  %s0 = inlined_call_operand.vmem [shape: bf16[8,576], index: 0, kind: input, shape index: {}]
  %s1 = inlined_call_operand.vmem [shape: bf16[32,576], index: 1, kind: input, shape index: {}]
  %s2 = inlined_call_operand.vmem [shape: f32[32,1], index: 2, kind: input, shape index: {}]
  %s3 = inlined_call_operand.vmem [shape: f32[32,8], index: 3, kind: output, shape index: {}]
  %s4 = sld [smem:[#allocation0]]
  $region22: #{alignnet_forward.36} parent=0
    _
  %s6 = ssub.s32 1, %s4
  %s7 = scalar_select 0, %s6, %s4
  // Predicated region
  $region2: #{alignnet_forward.36} parent=0 // pred_check
    _
  $region3: #{alignnet_forward.36} parent=0 // pred_check_branch
    %9 = sbr.rel (0) target = $region5
  $region4: #{alignnet_forward.36} parent=0 // pred_region
    _
  $region5: #{alignnet_forward.36} parent=0 // pred_fallthru
    _
  // Predicated region
  $region6: #{alignnet_forward.36} parent=0 // pred_check
    _
  $region7: #{alignnet_forward.36} parent=0 // pred_check_branch
    %11 = sbr.rel (0) target = $region9
  $region8: #{alignnet_forward.36} parent=0 // pred_region
    _
  $region9: #{alignnet_forward.36} parent=0 // pred_fallthru
    _
  // Predicated region
  $region10: #{alignnet_forward.36} parent=0 // pred_check
    _
  $region11: #{alignnet_forward.36} parent=0 // pred_check_branch
    %13 = sbr.rel (0) target = $region13
  $region12: #{alignnet_forward.36} parent=0 // pred_region
    _
  $region13: #{alignnet_forward.36} parent=0 // pred_fallthru
    _
  %v15 = vld [vmem:[%s1] sm:$0xff]
  %v16 = vld [vmem:[%s1 + $0x8] sm:$0xff]
  %v17 = vld [vmem:[%s1 + $0x10] sm:$0xf]
  %v18 = vld [vmem:[%s1 + $0x14] sm:$0xff]
  %v19 = vld [vmem:[%s1 + $0x1c] sm:$0xff]
  %v20 = vld [vmem:[%s1 + $0x24] sm:$0xf]
  %v21 = vld [vmem:[%s1 + $0x28] sm:$0xff]
  %v22 = vld [vmem:[%s1 + $0x30] sm:$0xff]
  %v23 = vld [vmem:[%s1 + $0x38] sm:$0xf]
  %v24 = vld [vmem:[%s1 + $0x3c] sm:$0xff]
  %v25 = vld [vmem:[%s1 + $0x44] sm:$0xff]
  %v26 = vld [vmem:[%s1 + $0x4c] sm:$0xf]
  %v27 = vld [vmem:[%s0] sm:$0xff]
  %v28 = vld [vmem:[%s0 + $0x8] sm:$0xff]
  %v29 = vld [vmem:[%s0 + $0x10] sm:$0xf]
  %v30 = vld [vmem:[%s2] sm:$0xff]
  %v31 = vld [vmem:[%s2 + $0x8] sm:$0xff]
  %v32 = vld [vmem:[%s2 + $0x10] sm:$0xff]
  %v33 = vld [vmem:[%s2 + $0x18] sm:$0xff]
  %35 = vset.pattern.permute.xlu0 0
  %36 = vperm.xlu0 %35, %v30
  %v37 = vpop.permute.xlu0 %36
  %40 = vset.pattern.permute.xlu0 0
  %41 = vperm.xlu0 %40, %v31
  %v42 = vpop.permute.xlu0 %41
  %45 = vset.pattern.permute.xlu0 0
  %46 = vperm.xlu0 %45, %v32
  %v47 = vpop.permute.xlu0 %46
  %50 = vset.pattern.permute.xlu0 0
  %51 = vperm.xlu0 %50, %v33
  %v52 = vpop.permute.xlu0 %51
  %v66 = vunpack.c.l.b16 %v15
  %v67 = vunpack.c.h.b16 %v15
  %v68 = vunpack.c.l.b16 %v16
  %v69 = vunpack.c.h.b16 %v16
  %v70 = vunpack.c.l.b16 %v17
  %v71 = vunpack.c.l.b16 %v18
  %v72 = vunpack.c.h.b16 %v18
  %v73 = vunpack.c.l.b16 %v19
  %v74 = vunpack.c.h.b16 %v19
  %v75 = vunpack.c.l.b16 %v20
  %v76 = vunpack.c.l.b16 %v21
  %v77 = vunpack.c.h.b16 %v21
  %v78 = vunpack.c.l.b16 %v22
  %v79 = vunpack.c.h.b16 %v22
  %v80 = vunpack.c.l.b16 %v23
  %v81 = vunpack.c.l.b16 %v24
  %v82 = vunpack.c.h.b16 %v24
  %v83 = vunpack.c.l.b16 %v25
  %v84 = vunpack.c.h.b16 %v25
  %v85 = vunpack.c.l.b16 %v26
  %v86 = vpack.c.b16 %v71, %v66
  %v87 = vpack.c.b16 %v72, %v67
  %v88 = vpack.c.b16 %v73, %v68
  %v89 = vpack.c.b16 %v74, %v69
  %v90 = vpack.c.b16 %v75, %v70
  %v91 = vpack.c.b16 %v81, %v76
  %v92 = vpack.c.b16 %v82, %v77
  %v93 = vpack.c.b16 %v83, %v78
  %v94 = vpack.c.b16 %v84, %v79
  %v95 = vpack.c.b16 %v85, %v80
  %v107 = vunpack.c.l.b16 %v27
  %v108 = vunpack.c.h.b16 %v27
  %v109 = vunpack.c.l.b16 %v28
  %v110 = vunpack.c.h.b16 %v28
  %v111 = vunpack.c.l.b16 %v29
  %v112 = vpack.c.b16 %v107, %v107
  %v113 = vpack.c.b16 %v108, %v108
  %v114 = vpack.c.b16 %v109, %v109
  %v115 = vpack.c.b16 %v110, %v110
  %v116 = vpack.c.b16 %v111, %v111
  %vm121 = vcmask 523264
  %v123 = vsel %vm121, %v90, 0
  %v126 = vsel %vm121, %v95, 0
  %v129 = vsel %vm121, %v116, 0
  %131 = vmatprep.subr.bf16.mxu0 0
  %132 = vmatpush1.bf16.xpose.msra.mxu0 0
  %133 = vmatprep.subr.bf16.mxu0 0
  %134 = vmatpush1.bf16.xpose.msra.mxu0 0
  %135 = vmatprep.subr.bf16.mxu0 0
  %136 = vmatpush1.bf16.xpose.msra.mxu0 0
  %137 = vmatprep.subr.bf16.mxu0 0
  %138 = vmatpush1.bf16.xpose.msra.mxu0 0
  %139 = vmatprep.subr.bf16.mxu0 0
  %140 = vmatpush1.bf16.xpose.msra.mxu0 0
  %141 = vmatprep.subr.bf16.mxu0 0
  %142 = vmatpush1.bf16.xpose.msra.mxu0 0
  %143 = vmatprep.subr.bf16.mxu0 0
  %144 = vmatpush1.bf16.xpose.msra.mxu0 0
  %145 = vmatprep.subr.bf16.mxu0 %v113
  %146 = vmatpush1.bf16.xpose.msra.mxu0 %v112
  %147 = vmatprep.subr.bf16.mxu0 0
  %148 = vmatpush2.bf16.xpose.msra.mxu0 0
  %149 = vmatprep.subr.bf16.mxu0 0
  %150 = vmatpush2.bf16.xpose.msra.mxu0 0
  %151 = vmatprep.subr.bf16.mxu0 0
  %152 = vmatpush2.bf16.xpose.msra.mxu0 0
  %153 = vmatprep.subr.bf16.mxu0 0
  %154 = vmatpush2.bf16.xpose.msra.mxu0 0
  %155 = vmatprep.subr.bf16.mxu0 0
  %156 = vmatpush2.bf16.xpose.msra.mxu0 0
  %157 = vmatprep.subr.bf16.mxu0 0
  %158 = vmatpush2.bf16.xpose.msra.mxu0 0
  %159 = vmatprep.subr.bf16.mxu0 0
  %160 = vmatpush2.bf16.xpose.msra.mxu0 0
  %161 = vmatprep.subr.bf16.mxu0 0
  %162 = vmatpush2.bf16.xpose.msra.mxu0 0
  %163 = vmatprep.mubr.bf16.mxu0 %v87
  %164 = vmatmul.mubr.bf16.gmra.mxu0 %v86
  %v165 = vpop.f32.mrf.mxu0
  %v166 = vadd.f32 %v37, %v165
  %v167 = vpop.f32.mrf.mxu0
  %v168 = vpop.f32.mrf.mxu0
  %v169 = vadd.f32 %v42, %v168
  %v170 = vpop.f32.mrf.mxu0
  %171 = vmatprep.mubr.bf16.mxu0 %v92
  %172 = vmatmul.mubr.bf16.gmra.mxu0 %v91
  %v173 = vpop.f32.mrf.mxu0
  %v174 = vadd.f32 %v47, %v173
  %v175 = vpop.f32.mrf.mxu0
  %v176 = vpop.f32.mrf.mxu0
  %v177 = vadd.f32 %v52, %v176
  %v178 = vpop.f32.mrf.mxu0
  %179 = vdwg.mxu0
  %180 = vmatprep.subr.bf16.mxu0 0
  %181 = vmatpush1.bf16.xpose.msra.mxu0 0
  %182 = vmatprep.subr.bf16.mxu0 0
  %183 = vmatpush1.bf16.xpose.msra.mxu0 0
  %184 = vmatprep.subr.bf16.mxu0 0
  %185 = vmatpush1.bf16.xpose.msra.mxu0 0
  %186 = vmatprep.subr.bf16.mxu0 0
  %187 = vmatpush1.bf16.xpose.msra.mxu0 0
  %188 = vmatprep.subr.bf16.mxu0 0
  %189 = vmatpush1.bf16.xpose.msra.mxu0 0
  %190 = vmatprep.subr.bf16.mxu0 0
  %191 = vmatpush1.bf16.xpose.msra.mxu0 0
  %192 = vmatprep.subr.bf16.mxu0 0
  %193 = vmatpush1.bf16.xpose.msra.mxu0 0
  %194 = vmatprep.subr.bf16.mxu0 %v115
  %195 = vmatpush1.bf16.xpose.msra.mxu0 %v114
  %196 = vmatprep.subr.bf16.mxu0 0
  %197 = vmatpush2.bf16.xpose.msra.mxu0 0
  %198 = vmatprep.subr.bf16.mxu0 0
  %199 = vmatpush2.bf16.xpose.msra.mxu0 0
  %200 = vmatprep.subr.bf16.mxu0 0
  %201 = vmatpush2.bf16.xpose.msra.mxu0 0
  %202 = vmatprep.subr.bf16.mxu0 0
  %203 = vmatpush2.bf16.xpose.msra.mxu0 0
  %204 = vmatprep.subr.bf16.mxu0 0
  %205 = vmatpush2.bf16.xpose.msra.mxu0 0
  %206 = vmatprep.subr.bf16.mxu0 0
  %207 = vmatpush2.bf16.xpose.msra.mxu0 0
  %208 = vmatprep.subr.bf16.mxu0 0
  %209 = vmatpush2.bf16.xpose.msra.mxu0 0
  %210 = vmatprep.subr.bf16.mxu0 0
  %211 = vmatpush2.bf16.xpose.msra.mxu0 0
  %212 = vmatprep.mubr.bf16.mxu0 %v89
  %213 = vmatmul.mubr.bf16.gmra.mxu0 %v88
  %v214 = vpop.f32.mrf.mxu0
  %v215 = vadd.f32 %v166, %v214
  %v216 = vpop.f32.mrf.mxu0
  %v217 = vpop.f32.mrf.mxu0
  %v218 = vadd.f32 %v169, %v217
  %v219 = vpop.f32.mrf.mxu0
  %220 = vmatprep.mubr.bf16.mxu0 %v94
  %221 = vmatmul.mubr.bf16.gmra.mxu0 %v93
  %v222 = vpop.f32.mrf.mxu0
  %v223 = vadd.f32 %v174, %v222
  %v224 = vpop.f32.mrf.mxu0
  %v225 = vpop.f32.mrf.mxu0
  %v226 = vadd.f32 %v177, %v225
  %v227 = vpop.f32.mrf.mxu0
  %228 = vdwg.mxu0
  %229 = vmatprep.subr.bf16.mxu0 0
  %230 = vmatpush1.bf16.xpose.msra.mxu0 0
  %231 = vmatprep.subr.bf16.mxu0 0
  %232 = vmatpush1.bf16.xpose.msra.mxu0 0
  %233 = vmatprep.subr.bf16.mxu0 0
  %234 = vmatpush1.bf16.xpose.msra.mxu0 0
  %235 = vmatprep.subr.bf16.mxu0 0
  %236 = vmatpush1.bf16.xpose.msra.mxu0 0
  %237 = vmatprep.subr.bf16.mxu0 0
  %238 = vmatpush1.bf16.xpose.msra.mxu0 0
  %239 = vmatprep.subr.bf16.mxu0 0
  %240 = vmatpush1.bf16.xpose.msra.mxu0 0
  %241 = vmatprep.subr.bf16.mxu0 0
  %242 = vmatpush1.bf16.xpose.msra.mxu0 0
  %243 = vmatprep.subr.bf16.mxu0 0
  %244 = vmatpush1.bf16.xpose.msra.mxu0 %v129
  %245 = vmatprep.subr.bf16.mxu0 0
  %246 = vmatpush2.bf16.xpose.msra.mxu0 0
  %247 = vmatprep.subr.bf16.mxu0 0
  %248 = vmatpush2.bf16.xpose.msra.mxu0 0
  %249 = vmatprep.subr.bf16.mxu0 0
  %250 = vmatpush2.bf16.xpose.msra.mxu0 0
  %251 = vmatprep.subr.bf16.mxu0 0
  %252 = vmatpush2.bf16.xpose.msra.mxu0 0
  %253 = vmatprep.subr.bf16.mxu0 0
  %254 = vmatpush2.bf16.xpose.msra.mxu0 0
  %255 = vmatprep.subr.bf16.mxu0 0
  %256 = vmatpush2.bf16.xpose.msra.mxu0 0
  %257 = vmatprep.subr.bf16.mxu0 0
  %258 = vmatpush2.bf16.xpose.msra.mxu0 0
  %259 = vmatprep.subr.bf16.mxu0 0
  %260 = vmatpush2.bf16.xpose.msra.mxu0 0
  %261 = vmatprep.mubr.bf16.mxu0 0
  %262 = vmatmul.mubr.bf16.gmra.mxu0 %v123
  %v263 = vpop.f32.mrf.mxu0
  %v264 = vadd.f32 %v215, %v263
  %v265 = vpop.f32.mrf.mxu0
  %v266 = vpop.f32.mrf.mxu0
  %v267 = vadd.f32 %v218, %v266
  %v268 = vpop.f32.mrf.mxu0
  %269 = vmatprep.mubr.bf16.mxu0 0
  %270 = vmatmul.mubr.bf16.gmra.mxu0 %v126
  %v271 = vpop.f32.mrf.mxu0
  %v272 = vadd.f32 %v223, %v271
  %v273 = vpop.f32.mrf.mxu0
  %v274 = vpop.f32.mrf.mxu0
  %v275 = vadd.f32 %v226, %v274
  %v276 = vpop.f32.mrf.mxu0
  %277 = vdwg.mxu0
  %vm278 = vcmp.ge.f32.partialorder %v264, 0.0
  %vm279 = vcmp.ge.f32.partialorder %v267, 0.0
  %vm280 = vcmp.ge.f32.partialorder %v272, 0.0
  %vm281 = vcmp.ge.f32.partialorder %v275, 0.0
  %v282 = vmul.f32 %v264, 0.1
  %v283 = vmul.f32 %v267, 0.1
  %v284 = vmul.f32 %v272, 0.1
  %v285 = vmul.f32 %v275, 0.1
  %v286 = vsel %vm278, %v264, %v282
  %v287 = vsel %vm279, %v267, %v283
  %v288 = vsel %vm280, %v272, %v284
  %v289 = vsel %vm281, %v275, %v285
  %vm290 = vcmask 64512
  %291 = vst.msk [vmem:[%s3] sm:$0xff] %vm290, %v286
  %292 = vst.msk [vmem:[%s3 + $0x8] sm:$0xff] %vm290, %v287
  %293 = vst.msk [vmem:[%s3 + $0x10] sm:$0xff] %vm290, %v288
  %294 = vst.msk [vmem:[%s3 + $0x18] sm:$0xff] %vm290, %v289
  // Predicated region
  $region14: #{alignnet_forward.36} parent=0 // pred_check
    _
  $region15: #{alignnet_forward.36} parent=0 // pred_check_branch
    %296 = sbr.rel (0) target = $region17
  $region16: #{alignnet_forward.36} parent=0 // pred_region
    _
  $region17: #{alignnet_forward.36} parent=0 // pred_fallthru
    _
  // Predicated region
  $region18: #{alignnet_forward.36} parent=0 // pred_check
    _
  $region19: #{alignnet_forward.36} parent=0 // pred_check_branch
    %298 = sbr.rel (0) target = $region21
  $region20: #{alignnet_forward.36} parent=0 // pred_region
    _
  $region21: #{alignnet_forward.36} parent=0 // pred_fallthru
    _

// kernel: alignnet_forward.29
$region0: #{alignnet_forward.29}
  #allocation0 [shape = 'u32[]', space=smem, size = 0x4, offset = 0x4, fixed_abs, tag = 'smem constant byte address 0x4 - core index']
  #allocation1 [shape = 'u32[144,128]{1,0:T(1,128)}', space=vmem, size = 0x12000, scoped, tag = 'internal scratch']
  %s0 = inlined_call_operand.vmem [shape: bf16[32,288], index: 0, kind: input, shape index: {}]
  %s1 = inlined_call_operand.vmem [shape: bf16[32,288], index: 1, kind: input, shape index: {}]
  %s2 = inlined_call_operand.vmem [shape: f32[32,1], index: 2, kind: input, shape index: {}]
  %s3 = inlined_call_operand.vmem [shape: f32[32,32], index: 3, kind: output, shape index: {}]
  %s4 = sld [smem:[#allocation0]]
  $region22: #{alignnet_forward.29} parent=0
    _
  %s6 = ssub.s32 1, %s4
  %s7 = scalar_select 0, %s6, %s4
  // Predicated region
  $region2: #{alignnet_forward.29} parent=0 // pred_check
    _
  $region3: #{alignnet_forward.29} parent=0 // pred_check_branch
    %9 = sbr.rel (0) target = $region5
  $region4: #{alignnet_forward.29} parent=0 // pred_region
    _
  $region5: #{alignnet_forward.29} parent=0 // pred_fallthru
    _
  // Predicated region
  $region6: #{alignnet_forward.29} parent=0 // pred_check
    _
  $region7: #{alignnet_forward.29} parent=0 // pred_check_branch
    %11 = sbr.rel (0) target = $region9
  $region8: #{alignnet_forward.29} parent=0 // pred_region
    _
  $region9: #{alignnet_forward.29} parent=0 // pred_fallthru
    _
  // Predicated region
  $region10: #{alignnet_forward.29} parent=0 // pred_check
    _
  $region11: #{alignnet_forward.29} parent=0 // pred_check_branch
    %13 = sbr.rel (0) target = $region13
  $region12: #{alignnet_forward.29} parent=0 // pred_region
    _
  $region13: #{alignnet_forward.29} parent=0 // pred_fallthru
    _
  %v15 = vld [vmem:[%s1] sm:$0xff]
  %v16 = vld [vmem:[%s1 + $0x8] sm:$0xf]
  %v17 = vld [vmem:[%s1 + $0xc] sm:$0xff]
  %v18 = vld [vmem:[%s1 + $0x14] sm:$0xf]
  %v19 = vld [vmem:[%s1 + $0x18] sm:$0xff]
  %v20 = vld [vmem:[%s1 + $0x20] sm:$0xf]
  %v21 = vld [vmem:[%s1 + $0x24] sm:$0xff]
  %v22 = vld [vmem:[%s1 + $0x2c] sm:$0xf]
  %v23 = vld [vmem:[%s0] sm:$0xff]
  %v24 = vld [vmem:[%s0 + $0x8] sm:$0xf]
  %v25 = vld [vmem:[%s0 + $0xc] sm:$0xff]
  %v26 = vld [vmem:[%s0 + $0x14] sm:$0xf]
  %v27 = vld [vmem:[%s0 + $0x18] sm:$0xff]
  %v28 = vld [vmem:[%s0 + $0x20] sm:$0xf]
  %v29 = vld [vmem:[%s0 + $0x24] sm:$0xff]
  %v30 = vld [vmem:[%s0 + $0x2c] sm:$0xf]
  %v31 = vld [vmem:[%s2] sm:$0xff]
  %v32 = vld [vmem:[%s2 + $0x8] sm:$0xff]
  %v33 = vld [vmem:[%s2 + $0x10] sm:$0xff]
  %v34 = vld [vmem:[%s2 + $0x18] sm:$0xff]
  %36 = vset.pattern.permute.xlu0 0
  %37 = vperm.xlu0 %36, %v31
  %v38 = vpop.permute.xlu0 %37
  %41 = vset.pattern.permute.xlu0 0
  %42 = vperm.xlu0 %41, %v32
  %v43 = vpop.permute.xlu0 %42
  %46 = vset.pattern.permute.xlu0 0
  %47 = vperm.xlu0 %46, %v33
  %v48 = vpop.permute.xlu0 %47
  %51 = vset.pattern.permute.xlu0 0
  %52 = vperm.xlu0 %51, %v34
  %v53 = vpop.permute.xlu0 %52
  %v63 = vunpack.c.l.b16 %v15
  %v64 = vunpack.c.h.b16 %v15
  %v65 = vunpack.c.l.b16 %v16
  %v66 = vunpack.c.l.b16 %v17
  %v67 = vunpack.c.h.b16 %v17
  %v68 = vunpack.c.l.b16 %v18
  %v69 = vunpack.c.l.b16 %v19
  %v70 = vunpack.c.h.b16 %v19
  %v71 = vunpack.c.l.b16 %v20
  %v72 = vunpack.c.l.b16 %v21
  %v73 = vunpack.c.h.b16 %v21
  %v74 = vunpack.c.l.b16 %v22
  %v75 = vpack.c.b16 %v66, %v63
  %v76 = vpack.c.b16 %v67, %v64
  %v77 = vpack.c.b16 %v68, %v65
  %v78 = vpack.c.b16 %v72, %v69
  %v79 = vpack.c.b16 %v73, %v70
  %v80 = vpack.c.b16 %v74, %v71
  %v93 = vunpack.c.l.b16 %v23
  %v94 = vunpack.c.h.b16 %v23
  %v95 = vunpack.c.l.b16 %v24
  %v96 = vunpack.c.l.b16 %v25
  %v97 = vunpack.c.h.b16 %v25
  %v98 = vunpack.c.l.b16 %v26
  %v99 = vunpack.c.l.b16 %v27
  %v100 = vunpack.c.h.b16 %v27
  %v101 = vunpack.c.l.b16 %v28
  %v102 = vunpack.c.l.b16 %v29
  %v103 = vunpack.c.h.b16 %v29
  %v104 = vunpack.c.l.b16 %v30
  %v105 = vpack.c.b16 %v96, %v93
  %v106 = vpack.c.b16 %v97, %v94
  %v107 = vpack.c.b16 %v98, %v95
  %v108 = vpack.c.b16 %v102, %v99
  %v109 = vpack.c.b16 %v103, %v100
  %v110 = vpack.c.b16 %v104, %v101
  %vm115 = vcmask 261120
  %v117 = vsel %vm115, %v77, 0
  %v120 = vsel %vm115, %v80, 0
  %v123 = vsel %vm115, %v107, 0
  %v126 = vsel %vm115, %v110, 0
  %128 = vmatprep.subr.bf16.mxu0 0
  %129 = vmatpush1.bf16.xpose.msra.mxu0 0
  %130 = vmatprep.subr.bf16.mxu0 0
  %131 = vmatpush1.bf16.xpose.msra.mxu0 0
  %132 = vmatprep.subr.bf16.mxu0 0
  %133 = vmatpush1.bf16.xpose.msra.mxu0 0
  %134 = vmatprep.subr.bf16.mxu0 0
  %135 = vmatpush1.bf16.xpose.msra.mxu0 0
  %136 = vmatprep.subr.bf16.mxu0 0
  %137 = vmatpush1.bf16.xpose.msra.mxu0 0
  %138 = vmatprep.subr.bf16.mxu0 0
  %139 = vmatpush1.bf16.xpose.msra.mxu0 0
  %140 = vmatprep.subr.bf16.mxu0 %v109
  %141 = vmatpush1.bf16.xpose.msra.mxu0 %v108
  %142 = vmatprep.subr.bf16.mxu0 %v106
  %143 = vmatpush1.bf16.xpose.msra.mxu0 %v105
  %144 = vmatprep.subr.bf16.mxu0 0
  %145 = vmatpush2.bf16.xpose.msra.mxu0 0
  %146 = vmatprep.subr.bf16.mxu0 0
  %147 = vmatpush2.bf16.xpose.msra.mxu0 0
  %148 = vmatprep.subr.bf16.mxu0 0
  %149 = vmatpush2.bf16.xpose.msra.mxu0 0
  %150 = vmatprep.subr.bf16.mxu0 0
  %151 = vmatpush2.bf16.xpose.msra.mxu0 0
  %152 = vmatprep.subr.bf16.mxu0 0
  %153 = vmatpush2.bf16.xpose.msra.mxu0 0
  %154 = vmatprep.subr.bf16.mxu0 0
  %155 = vmatpush2.bf16.xpose.msra.mxu0 0
  %156 = vmatprep.subr.bf16.mxu0 0
  %157 = vmatpush2.bf16.xpose.msra.mxu0 0
  %158 = vmatprep.subr.bf16.mxu0 0
  %159 = vmatpush2.bf16.xpose.msra.mxu0 0
  %160 = vmatprep.mubr.bf16.mxu0 %v76
  %161 = vmatmul.mubr.bf16.gmra.mxu0 %v75
  %v162 = vpop.f32.mrf.mxu0
  %v163 = vadd.f32 %v38, %v162
  %v164 = vpop.f32.mrf.mxu0
  %v165 = vpop.f32.mrf.mxu0
  %v166 = vadd.f32 %v43, %v165
  %v167 = vpop.f32.mrf.mxu0
  %168 = vmatprep.mubr.bf16.mxu0 %v79
  %169 = vmatmul.mubr.bf16.gmra.mxu0 %v78
  %v170 = vpop.f32.mrf.mxu0
  %v171 = vadd.f32 %v48, %v170
  %v172 = vpop.f32.mrf.mxu0
  %v173 = vpop.f32.mrf.mxu0
  %v174 = vadd.f32 %v53, %v173
  %v175 = vpop.f32.mrf.mxu0
  %176 = vdwg.mxu0
  %177 = vmatprep.subr.bf16.mxu0 0
  %178 = vmatpush1.bf16.xpose.msra.mxu0 0
  %179 = vmatprep.subr.bf16.mxu0 0
  %180 = vmatpush1.bf16.xpose.msra.mxu0 0
  %181 = vmatprep.subr.bf16.mxu0 0
  %182 = vmatpush1.bf16.xpose.msra.mxu0 0
  %183 = vmatprep.subr.bf16.mxu0 0
  %184 = vmatpush1.bf16.xpose.msra.mxu0 0
  %185 = vmatprep.subr.bf16.mxu0 0
  %186 = vmatpush1.bf16.xpose.msra.mxu0 0
  %187 = vmatprep.subr.bf16.mxu0 0
  %188 = vmatpush1.bf16.xpose.msra.mxu0 0
  %189 = vmatprep.subr.bf16.mxu0 0
  %190 = vmatpush1.bf16.xpose.msra.mxu0 %v126
  %191 = vmatprep.subr.bf16.mxu0 0
  %192 = vmatpush1.bf16.xpose.msra.mxu0 %v123
  %193 = vmatprep.subr.bf16.mxu0 0
  %194 = vmatpush2.bf16.xpose.msra.mxu0 0
  %195 = vmatprep.subr.bf16.mxu0 0
  %196 = vmatpush2.bf16.xpose.msra.mxu0 0
  %197 = vmatprep.subr.bf16.mxu0 0
  %198 = vmatpush2.bf16.xpose.msra.mxu0 0
  %199 = vmatprep.subr.bf16.mxu0 0
  %200 = vmatpush2.bf16.xpose.msra.mxu0 0
  %201 = vmatprep.subr.bf16.mxu0 0
  %202 = vmatpush2.bf16.xpose.msra.mxu0 0
  %203 = vmatprep.subr.bf16.mxu0 0
  %204 = vmatpush2.bf16.xpose.msra.mxu0 0
  %205 = vmatprep.subr.bf16.mxu0 0
  %206 = vmatpush2.bf16.xpose.msra.mxu0 0
  %207 = vmatprep.subr.bf16.mxu0 0
  %208 = vmatpush2.bf16.xpose.msra.mxu0 0
  %209 = vmatprep.mubr.bf16.mxu0 0
  %210 = vmatmul.mubr.bf16.gmra.mxu0 %v117
  %v211 = vpop.f32.mrf.mxu0
  %v212 = vadd.f32 %v163, %v211
  %v213 = vpop.f32.mrf.mxu0
  %v214 = vpop.f32.mrf.mxu0
  %v215 = vadd.f32 %v166, %v214
  %v216 = vpop.f32.mrf.mxu0
  %217 = vmatprep.mubr.bf16.mxu0 0
  %218 = vmatmul.mubr.bf16.gmra.mxu0 %v120
  %v219 = vpop.f32.mrf.mxu0
  %v220 = vadd.f32 %v171, %v219
  %v221 = vpop.f32.mrf.mxu0
  %v222 = vpop.f32.mrf.mxu0
  %v223 = vadd.f32 %v174, %v222
  %v224 = vpop.f32.mrf.mxu0
  %225 = vdwg.mxu0
  %vm226 = vcmp.ge.f32.partialorder %v212, 0.0
  %vm227 = vcmp.ge.f32.partialorder %v215, 0.0
  %vm228 = vcmp.ge.f32.partialorder %v220, 0.0
  %vm229 = vcmp.ge.f32.partialorder %v223, 0.0
  %v230 = vmul.f32 %v212, 0.1
  %v231 = vmul.f32 %v215, 0.1
  %v232 = vmul.f32 %v220, 0.1
  %v233 = vmul.f32 %v223, 0.1
  %v234 = vsel %vm226, %v212, %v230
  %v235 = vsel %vm227, %v215, %v231
  %v236 = vsel %vm228, %v220, %v232
  %v237 = vsel %vm229, %v223, %v233
  %238 = vst.msk [vmem:[%s3] sm:$0xff] %vm115, %v234
  %239 = vst.msk [vmem:[%s3 + $0x8] sm:$0xff] %vm115, %v235
  %240 = vst.msk [vmem:[%s3 + $0x10] sm:$0xff] %vm115, %v236
  %241 = vst.msk [vmem:[%s3 + $0x18] sm:$0xff] %vm115, %v237
  // Predicated region
  $region14: #{alignnet_forward.29} parent=0 // pred_check
    _
  $region15: #{alignnet_forward.29} parent=0 // pred_check_branch
    %243 = sbr.rel (0) target = $region17
  $region16: #{alignnet_forward.29} parent=0 // pred_region
    _
  $region17: #{alignnet_forward.29} parent=0 // pred_fallthru
    _
  // Predicated region
  $region18: #{alignnet_forward.29} parent=0 // pred_check
    _
  $region19: #{alignnet_forward.29} parent=0 // pred_check_branch
    %245 = sbr.rel (0) target = $region21
  $region20: #{alignnet_forward.29} parent=0 // pred_region
    _
  $region21: #{alignnet_forward.29} parent=0 // pred_fallthru
    _

// kernel: alignnet_forward.38
$region0: #{alignnet_forward.38}
  #allocation0 [shape = 'u32[]', space=smem, size = 0x4, offset = 0x4, fixed_abs, tag = 'smem constant byte address 0x4 - core index']
  #allocation1 [shape = 'u32[144,128]{1,0:T(1,128)}', space=vmem, size = 0x12000, scoped, tag = 'internal scratch']
  %s0 = inlined_call_operand.vmem [shape: bf16[8,288], index: 0, kind: input, shape index: {}]
  %s1 = inlined_call_operand.vmem [shape: bf16[216,288], index: 1, kind: input, shape index: {}]
  %s2 = inlined_call_operand.vmem [shape: f32[216,1], index: 2, kind: input, shape index: {}]
  %s3 = inlined_call_operand.vmem [shape: f32[216,8], index: 3, kind: output, shape index: {}]
  %s4 = sld [smem:[#allocation0]]
  $region22: #{alignnet_forward.38} parent=0
    _
  %s6 = ssub.s32 1, %s4
  %s7 = scalar_select 0, %s6, %s4
  // Predicated region
  $region2: #{alignnet_forward.38} parent=0 // pred_check
    _
  $region3: #{alignnet_forward.38} parent=0 // pred_check_branch
    %9 = sbr.rel (0) target = $region5
  $region4: #{alignnet_forward.38} parent=0 // pred_region
    _
  $region5: #{alignnet_forward.38} parent=0 // pred_fallthru
    _
  // Predicated region
  $region6: #{alignnet_forward.38} parent=0 // pred_check
    _
  $region7: #{alignnet_forward.38} parent=0 // pred_check_branch
    %11 = sbr.rel (0) target = $region9
  $region8: #{alignnet_forward.38} parent=0 // pred_region
    _
  $region9: #{alignnet_forward.38} parent=0 // pred_fallthru
    _
  // Predicated region
  $region10: #{alignnet_forward.38} parent=0 // pred_check
    _
  $region11: #{alignnet_forward.38} parent=0 // pred_check_branch
    %13 = sbr.rel (0) target = $region13
  $region12: #{alignnet_forward.38} parent=0 // pred_region
    _
  $region13: #{alignnet_forward.38} parent=0 // pred_fallthru
    _
  %v15 = vld [vmem:[%s1] sm:$0xff]
  %v16 = vld [vmem:[%s1 + $0x8] sm:$0xf]
  %v17 = vld [vmem:[%s1 + $0xc] sm:$0xff]
  %v18 = vld [vmem:[%s1 + $0x14] sm:$0xf]
  %v19 = vld [vmem:[%s1 + $0x18] sm:$0xff]
  %v20 = vld [vmem:[%s1 + $0x20] sm:$0xf]
  %v21 = vld [vmem:[%s1 + $0x24] sm:$0xff]
  %v22 = vld [vmem:[%s1 + $0x2c] sm:$0xf]
  %v23 = vld [vmem:[%s1 + $0x30] sm:$0xff]
  %v24 = vld [vmem:[%s1 + $0x38] sm:$0xf]
  %v25 = vld [vmem:[%s1 + $0x3c] sm:$0xff]
  %v26 = vld [vmem:[%s1 + $0x44] sm:$0xf]
  %v27 = vld [vmem:[%s1 + $0x48] sm:$0xff]
  %v28 = vld [vmem:[%s1 + $0x50] sm:$0xf]
  %v29 = vld [vmem:[%s1 + $0x54] sm:$0xff]
  %v30 = vld [vmem:[%s1 + $0x5c] sm:$0xf]
  %v31 = vld [vmem:[%s1 + $0x60] sm:$0xff]
  %v32 = vld [vmem:[%s1 + $0x68] sm:$0xf]
  %v33 = vld [vmem:[%s1 + $0x6c] sm:$0xff]
  %v34 = vld [vmem:[%s1 + $0x74] sm:$0xf]
  %v35 = vld [vmem:[%s1 + $0x78] sm:$0xff]
  %v36 = vld [vmem:[%s1 + $0x80] sm:$0xf]
  %v37 = vld [vmem:[%s1 + $0x84] sm:$0xff]
  %v38 = vld [vmem:[%s1 + $0x8c] sm:$0xf]
  %v39 = vld [vmem:[%s1 + $0x90] sm:$0xff]
  %v40 = vld [vmem:[%s1 + $0x98] sm:$0xf]
  %v41 = vld [vmem:[%s1 + $0x9c] sm:$0xff]
  %v42 = vld [vmem:[%s1 + $0xa4] sm:$0xf]
  %v43 = vld [vmem:[%s1 + $0xa8] sm:$0xff]
  %v44 = vld [vmem:[%s1 + $0xb0] sm:$0xf]
  %v45 = vld [vmem:[%s1 + $0xb4] sm:$0xff]
  %v46 = vld [vmem:[%s1 + $0xbc] sm:$0xf]
  %v47 = vld [vmem:[%s1 + $0xc0] sm:$0xff]
  %v48 = vld [vmem:[%s1 + $0xc8] sm:$0xf]
  %v49 = vld [vmem:[%s1 + $0xcc] sm:$0xff]
  %v50 = vld [vmem:[%s1 + $0xd4] sm:$0xf]
  %v51 = vld [vmem:[%s1 + $0xd8] sm:$0xff]
  %v52 = vld [vmem:[%s1 + $0xe0] sm:$0xf]
  %v53 = vld [vmem:[%s1 + $0xe4] sm:$0xff]
  %v54 = vld [vmem:[%s1 + $0xec] sm:$0xf]
  %v55 = vld [vmem:[%s1 + $0xf0] sm:$0xff]
  %v56 = vld [vmem:[%s1 + $0xf8] sm:$0xf]
  %v57 = vld [vmem:[%s1 + $0xfc] sm:$0xff]
  %v58 = vld [vmem:[%s1 + $0x104] sm:$0xf]
  %v59 = vld [vmem:[%s1 + $0x108] sm:$0xff]
  %v60 = vld [vmem:[%s1 + $0x110] sm:$0xf]
  %v61 = vld [vmem:[%s1 + $0x114] sm:$0xff]
  %v62 = vld [vmem:[%s1 + $0x11c] sm:$0xf]
  %v63 = vld [vmem:[%s1 + $0x120] sm:$0xff]
  %v64 = vld [vmem:[%s1 + $0x128] sm:$0xf]
  %v65 = vld [vmem:[%s1 + $0x12c] sm:$0xff]
  %v66 = vld [vmem:[%s1 + $0x134] sm:$0xf]
  %v67 = vld [vmem:[%s1 + $0x138] sm:$0xff]
  %v68 = vld [vmem:[%s1 + $0x140] sm:$0xf]
  %v69 = vld [vmem:[%s0] sm:$0xff]
  %v70 = vld [vmem:[%s0 + $0x8] sm:$0xf]
  %v71 = vld [vmem:[%s2] sm:$0xff]
  %v72 = vld [vmem:[%s2 + $0x8] sm:$0xff]
  %v73 = vld [vmem:[%s2 + $0x10] sm:$0xff]
  %v74 = vld [vmem:[%s2 + $0x18] sm:$0xff]
  %v75 = vld [vmem:[%s2 + $0x20] sm:$0xff]
  %v76 = vld [vmem:[%s2 + $0x28] sm:$0xff]
  %v77 = vld [vmem:[%s2 + $0x30] sm:$0xff]
  %v78 = vld [vmem:[%s2 + $0x38] sm:$0xff]
  %v79 = vld [vmem:[%s2 + $0x40] sm:$0xff]
  %v80 = vld [vmem:[%s2 + $0x48] sm:$0xff]
  %v81 = vld [vmem:[%s2 + $0x50] sm:$0xff]
  %v82 = vld [vmem:[%s2 + $0x58] sm:$0xff]
  %v83 = vld [vmem:[%s2 + $0x60] sm:$0xff]
  %v84 = vld [vmem:[%s2 + $0x68] sm:$0xff]
  %v85 = vld [vmem:[%s2 + $0x70] sm:$0xff]
  %v86 = vld [vmem:[%s2 + $0x78] sm:$0xff]
  %v87 = vld [vmem:[%s2 + $0x80] sm:$0xff]
  %v88 = vld [vmem:[%s2 + $0x88] sm:$0xff]
  %v89 = vld [vmem:[%s2 + $0x90] sm:$0xff]
  %v90 = vld [vmem:[%s2 + $0x98] sm:$0xff]
  %v91 = vld [vmem:[%s2 + $0xa0] sm:$0xff]
  %v92 = vld [vmem:[%s2 + $0xa8] sm:$0xff]
  %v93 = vld [vmem:[%s2 + $0xb0] sm:$0xff]
  %v94 = vld [vmem:[%s2 + $0xb8] sm:$0xff]
  %v95 = vld [vmem:[%s2 + $0xc0] sm:$0xff]
  %v96 = vld [vmem:[%s2 + $0xc8] sm:$0xff]
  %v97 = vld [vmem:[%s2 + $0xd0] sm:$0xff]
  %99 = vset.pattern.permute.xlu0 0
  %100 = vperm.xlu0 %99, %v71
  %v101 = vpop.permute.xlu0 %100
  %104 = vset.pattern.permute.xlu0 0
  %105 = vperm.xlu0 %104, %v72
  %v106 = vpop.permute.xlu0 %105
  %109 = vset.pattern.permute.xlu0 0
  %110 = vperm.xlu0 %109, %v73
  %v111 = vpop.permute.xlu0 %110
  %114 = vset.pattern.permute.xlu0 0
  %115 = vperm.xlu0 %114, %v74
  %v116 = vpop.permute.xlu0 %115
  %119 = vset.pattern.permute.xlu0 0
  %120 = vperm.xlu0 %119, %v75
  %v121 = vpop.permute.xlu0 %120
  %124 = vset.pattern.permute.xlu0 0
  %125 = vperm.xlu0 %124, %v76
  %v126 = vpop.permute.xlu0 %125
  %129 = vset.pattern.permute.xlu0 0
  %130 = vperm.xlu0 %129, %v77
  %v131 = vpop.permute.xlu0 %130
  %134 = vset.pattern.permute.xlu0 0
  %135 = vperm.xlu0 %134, %v78
  %v136 = vpop.permute.xlu0 %135
  %139 = vset.pattern.permute.xlu0 0
  %140 = vperm.xlu0 %139, %v79
  %v141 = vpop.permute.xlu0 %140
  %144 = vset.pattern.permute.xlu0 0
  %145 = vperm.xlu0 %144, %v80
  %v146 = vpop.permute.xlu0 %145
  %149 = vset.pattern.permute.xlu0 0
  %150 = vperm.xlu0 %149, %v81
  %v151 = vpop.permute.xlu0 %150
  %154 = vset.pattern.permute.xlu0 0
  %155 = vperm.xlu0 %154, %v82
  %v156 = vpop.permute.xlu0 %155
  %159 = vset.pattern.permute.xlu0 0
  %160 = vperm.xlu0 %159, %v83
  %v161 = vpop.permute.xlu0 %160
  %164 = vset.pattern.permute.xlu0 0
  %165 = vperm.xlu0 %164, %v84
  %v166 = vpop.permute.xlu0 %165
  %169 = vset.pattern.permute.xlu0 0
  %170 = vperm.xlu0 %169, %v85
  %v171 = vpop.permute.xlu0 %170
  %174 = vset.pattern.permute.xlu0 0
  %175 = vperm.xlu0 %174, %v86
  %v176 = vpop.permute.xlu0 %175
  %179 = vset.pattern.permute.xlu0 0
  %180 = vperm.xlu0 %179, %v87
  %v181 = vpop.permute.xlu0 %180
  %184 = vset.pattern.permute.xlu0 0
  %185 = vperm.xlu0 %184, %v88
  %v186 = vpop.permute.xlu0 %185
  %189 = vset.pattern.permute.xlu0 0
  %190 = vperm.xlu0 %189, %v89
  %v191 = vpop.permute.xlu0 %190
  %194 = vset.pattern.permute.xlu0 0
  %195 = vperm.xlu0 %194, %v90
  %v196 = vpop.permute.xlu0 %195
  %199 = vset.pattern.permute.xlu0 0
  %200 = vperm.xlu0 %199, %v91
  %v201 = vpop.permute.xlu0 %200
  %204 = vset.pattern.permute.xlu0 0
  %205 = vperm.xlu0 %204, %v92
  %v206 = vpop.permute.xlu0 %205
  %209 = vset.pattern.permute.xlu0 0
  %210 = vperm.xlu0 %209, %v93
  %v211 = vpop.permute.xlu0 %210
  %214 = vset.pattern.permute.xlu0 0
  %215 = vperm.xlu0 %214, %v94
  %v216 = vpop.permute.xlu0 %215
  %219 = vset.pattern.permute.xlu0 0
  %220 = vperm.xlu0 %219, %v95
  %v221 = vpop.permute.xlu0 %220
  %224 = vset.pattern.permute.xlu0 0
  %225 = vperm.xlu0 %224, %v96
  %v226 = vpop.permute.xlu0 %225
  %229 = vset.pattern.permute.xlu0 0
  %230 = vperm.xlu0 %229, %v97
  %v231 = vpop.permute.xlu0 %230
  %v287 = vunpack.c.l.b16 %v15
  %v288 = vunpack.c.h.b16 %v15
  %v289 = vunpack.c.l.b16 %v16
  %v290 = vunpack.c.l.b16 %v17
  %v291 = vunpack.c.h.b16 %v17
  %v292 = vunpack.c.l.b16 %v18
  %v293 = vunpack.c.l.b16 %v19
  %v294 = vunpack.c.h.b16 %v19
  %v295 = vunpack.c.l.b16 %v20
  %v296 = vunpack.c.l.b16 %v21
  %v297 = vunpack.c.h.b16 %v21
  %v298 = vunpack.c.l.b16 %v22
  %v299 = vunpack.c.l.b16 %v23
  %v300 = vunpack.c.h.b16 %v23
  %v301 = vunpack.c.l.b16 %v24
  %v302 = vunpack.c.l.b16 %v25
  %v303 = vunpack.c.h.b16 %v25
  %v304 = vunpack.c.l.b16 %v26
  %v305 = vunpack.c.l.b16 %v27
  %v306 = vunpack.c.h.b16 %v27
  %v307 = vunpack.c.l.b16 %v28
  %v308 = vunpack.c.l.b16 %v29
  %v309 = vunpack.c.h.b16 %v29
  %v310 = vunpack.c.l.b16 %v30
  %v311 = vunpack.c.l.b16 %v31
  %v312 = vunpack.c.h.b16 %v31
  %v313 = vunpack.c.l.b16 %v32
  %v314 = vunpack.c.l.b16 %v33
  %v315 = vunpack.c.h.b16 %v33
  %v316 = vunpack.c.l.b16 %v34
  %v317 = vunpack.c.l.b16 %v35
  %v318 = vunpack.c.h.b16 %v35
  %v319 = vunpack.c.l.b16 %v36
  %v320 = vunpack.c.l.b16 %v37
  %v321 = vunpack.c.h.b16 %v37
  %v322 = vunpack.c.l.b16 %v38
  %v323 = vunpack.c.l.b16 %v39
  %v324 = vunpack.c.h.b16 %v39
  %v325 = vunpack.c.l.b16 %v40
  %v326 = vunpack.c.l.b16 %v41
  %v327 = vunpack.c.h.b16 %v41
  %v328 = vunpack.c.l.b16 %v42
  %v329 = vunpack.c.l.b16 %v43
  %v330 = vunpack.c.h.b16 %v43
  %v331 = vunpack.c.l.b16 %v44
  %v332 = vunpack.c.l.b16 %v45
  %v333 = vunpack.c.h.b16 %v45
  %v334 = vunpack.c.l.b16 %v46
  %v335 = vunpack.c.l.b16 %v47
  %v336 = vunpack.c.h.b16 %v47
  %v337 = vunpack.c.l.b16 %v48
  %v338 = vunpack.c.l.b16 %v49
  %v339 = vunpack.c.h.b16 %v49
  %v340 = vunpack.c.l.b16 %v50
  %v341 = vunpack.c.l.b16 %v51
  %v342 = vunpack.c.h.b16 %v51
  %v343 = vunpack.c.l.b16 %v52
  %v344 = vunpack.c.l.b16 %v53
  %v345 = vunpack.c.h.b16 %v53
  %v346 = vunpack.c.l.b16 %v54
  %v347 = vunpack.c.l.b16 %v55
  %v348 = vunpack.c.h.b16 %v55
  %v349 = vunpack.c.l.b16 %v56
  %v350 = vunpack.c.l.b16 %v57
  %v351 = vunpack.c.h.b16 %v57
  %v352 = vunpack.c.l.b16 %v58
  %v353 = vunpack.c.l.b16 %v59
  %v354 = vunpack.c.h.b16 %v59
  %v355 = vunpack.c.l.b16 %v60
  %v356 = vunpack.c.l.b16 %v61
  %v357 = vunpack.c.h.b16 %v61
  %v358 = vunpack.c.l.b16 %v62
  %v359 = vunpack.c.l.b16 %v63
  %v360 = vunpack.c.h.b16 %v63
  %v361 = vunpack.c.l.b16 %v64
  %v362 = vunpack.c.l.b16 %v65
  %v363 = vunpack.c.h.b16 %v65
  %v364 = vunpack.c.l.b16 %v66
  %v365 = vunpack.c.l.b16 %v67
  %v366 = vunpack.c.h.b16 %v67
  %v367 = vunpack.c.l.b16 %v68
  %v368 = vpack.c.b16 %v290, %v287
  %v369 = vpack.c.b16 %v291, %v288
  %v370 = vpack.c.b16 %v292, %v289
  %v371 = vpack.c.b16 %v296, %v293
  %v372 = vpack.c.b16 %v297, %v294
  %v373 = vpack.c.b16 %v298, %v295
  %v374 = vpack.c.b16 %v302, %v299
  %v375 = vpack.c.b16 %v303, %v300
  %v376 = vpack.c.b16 %v304, %v301
  %v377 = vpack.c.b16 %v308, %v305
  %v378 = vpack.c.b16 %v309, %v306
  %v379 = vpack.c.b16 %v310, %v307
  %v380 = vpack.c.b16 %v314, %v311
  %v381 = vpack.c.b16 %v315, %v312
  %v382 = vpack.c.b16 %v316, %v313
  %v383 = vpack.c.b16 %v320, %v317
  %v384 = vpack.c.b16 %v321, %v318
  %v385 = vpack.c.b16 %v322, %v319
  %v386 = vpack.c.b16 %v326, %v323
  %v387 = vpack.c.b16 %v327, %v324
  %v388 = vpack.c.b16 %v328, %v325
  %v389 = vpack.c.b16 %v332, %v329
  %v390 = vpack.c.b16 %v333, %v330
  %v391 = vpack.c.b16 %v334, %v331
  %v392 = vpack.c.b16 %v338, %v335
  %v393 = vpack.c.b16 %v339, %v336
  %v394 = vpack.c.b16 %v340, %v337
  %v395 = vpack.c.b16 %v344, %v341
  %v396 = vpack.c.b16 %v345, %v342
  %v397 = vpack.c.b16 %v346, %v343
  %v398 = vpack.c.b16 %v350, %v347
  %v399 = vpack.c.b16 %v351, %v348
  %v400 = vpack.c.b16 %v352, %v349
  %v401 = vpack.c.b16 %v356, %v353
  %v402 = vpack.c.b16 %v357, %v354
  %v403 = vpack.c.b16 %v358, %v355
  %v404 = vpack.c.b16 %v362, %v359
  %v405 = vpack.c.b16 %v363, %v360
  %v406 = vpack.c.b16 %v364, %v361
  %v407 = vpack.c.b16 %v365, %v365
  %v408 = vpack.c.b16 %v366, %v366
  %v409 = vpack.c.b16 %v367, %v367
  %v440 = vunpack.c.l.b16 %v69
  %v441 = vunpack.c.h.b16 %v69
  %v442 = vunpack.c.l.b16 %v70
  %v443 = vpack.c.b16 %v440, %v440
  %v444 = vpack.c.b16 %v441, %v441
  %v445 = vpack.c.b16 %v442, %v442
  %vm448 = vcmask 261120
  %v450 = vsel %vm448, %v370, 0
  %v453 = vsel %vm448, %v373, 0
  %v456 = vsel %vm448, %v376, 0
  %v459 = vsel %vm448, %v379, 0
  %v462 = vsel %vm448, %v382, 0
  %v465 = vsel %vm448, %v385, 0
  %v468 = vsel %vm448, %v388, 0
  %v471 = vsel %vm448, %v391, 0
  %v474 = vsel %vm448, %v394, 0
  %v477 = vsel %vm448, %v397, 0
  %v480 = vsel %vm448, %v400, 0
  %v483 = vsel %vm448, %v403, 0
  %v486 = vsel %vm448, %v406, 0
  %v489 = vsel %vm448, %v409, 0
  %v492 = vsel %vm448, %v445, 0
  %494 = vmatprep.subr.bf16.mxu0 0
  %495 = vmatpush1.bf16.xpose.msra.mxu0 0
  %496 = vmatprep.subr.bf16.mxu0 0
  %497 = vmatpush1.bf16.xpose.msra.mxu0 0
  %498 = vmatprep.subr.bf16.mxu0 0
  %499 = vmatpush1.bf16.xpose.msra.mxu0 0
  %500 = vmatprep.subr.bf16.mxu0 0
  %501 = vmatpush1.bf16.xpose.msra.mxu0 0
  %502 = vmatprep.subr.bf16.mxu0 0
  %503 = vmatpush1.bf16.xpose.msra.mxu0 0
  %504 = vmatprep.subr.bf16.mxu0 0
  %505 = vmatpush1.bf16.xpose.msra.mxu0 0
  %506 = vmatprep.subr.bf16.mxu0 0
  %507 = vmatpush1.bf16.xpose.msra.mxu0 0
  %508 = vmatprep.subr.bf16.mxu0 %v444
  %509 = vmatpush1.bf16.xpose.msra.mxu0 %v443
  %510 = vmatprep.subr.bf16.mxu0 0
  %511 = vmatpush2.bf16.xpose.msra.mxu0 0
  %512 = vmatprep.subr.bf16.mxu0 0
  %513 = vmatpush2.bf16.xpose.msra.mxu0 0
  %514 = vmatprep.subr.bf16.mxu0 0
  %515 = vmatpush2.bf16.xpose.msra.mxu0 0
  %516 = vmatprep.subr.bf16.mxu0 0
  %517 = vmatpush2.bf16.xpose.msra.mxu0 0
  %518 = vmatprep.subr.bf16.mxu0 0
  %519 = vmatpush2.bf16.xpose.msra.mxu0 0
  %520 = vmatprep.subr.bf16.mxu0 0
  %521 = vmatpush2.bf16.xpose.msra.mxu0 0
  %522 = vmatprep.subr.bf16.mxu0 0
  %523 = vmatpush2.bf16.xpose.msra.mxu0 0
  %524 = vmatprep.subr.bf16.mxu0 0
  %525 = vmatpush2.bf16.xpose.msra.mxu0 0
  %526 = vmatprep.mubr.bf16.mxu0 %v369
  %527 = vmatmul.mubr.bf16.gmra.mxu0 %v368
  %v528 = vpop.f32.mrf.mxu0
  %v529 = vadd.f32 %v101, %v528
  %v530 = vpop.f32.mrf.mxu0
  %v531 = vpop.f32.mrf.mxu0
  %v532 = vadd.f32 %v106, %v531
  %v533 = vpop.f32.mrf.mxu0
  %534 = vmatprep.mubr.bf16.mxu0 %v372
  %535 = vmatmul.mubr.bf16.gmra.mxu0 %v371
  %v536 = vpop.f32.mrf.mxu0
  %v537 = vadd.f32 %v111, %v536
  %v538 = vpop.f32.mrf.mxu0
  %v539 = vpop.f32.mrf.mxu0
  %v540 = vadd.f32 %v116, %v539
  %v541 = vpop.f32.mrf.mxu0
  %542 = vmatprep.mubr.bf16.mxu0 %v375
  %543 = vmatmul.mubr.bf16.gmra.mxu0 %v374
  %v544 = vpop.f32.mrf.mxu0
  %v545 = vadd.f32 %v121, %v544
  %v546 = vpop.f32.mrf.mxu0
  %v547 = vpop.f32.mrf.mxu0
  %v548 = vadd.f32 %v126, %v547
  %v549 = vpop.f32.mrf.mxu0
  %550 = vmatprep.mubr.bf16.mxu0 %v378
  %551 = vmatmul.mubr.bf16.gmra.mxu0 %v377
  %v552 = vpop.f32.mrf.mxu0
  %v553 = vadd.f32 %v131, %v552
  %v554 = vpop.f32.mrf.mxu0
  %v555 = vpop.f32.mrf.mxu0
  %v556 = vadd.f32 %v136, %v555
  %v557 = vpop.f32.mrf.mxu0
  %558 = vmatprep.mubr.bf16.mxu0 %v381
  %559 = vmatmul.mubr.bf16.gmra.mxu0 %v380
  %v560 = vpop.f32.mrf.mxu0
  %v561 = vadd.f32 %v141, %v560
  %v562 = vpop.f32.mrf.mxu0
  %v563 = vpop.f32.mrf.mxu0
  %v564 = vadd.f32 %v146, %v563
  %v565 = vpop.f32.mrf.mxu0
  %566 = vmatprep.mubr.bf16.mxu0 %v384
  %567 = vmatmul.mubr.bf16.gmra.mxu0 %v383
  %v568 = vpop.f32.mrf.mxu0
  %v569 = vadd.f32 %v151, %v568
  %v570 = vpop.f32.mrf.mxu0
  %v571 = vpop.f32.mrf.mxu0
  %v572 = vadd.f32 %v156, %v571
  %v573 = vpop.f32.mrf.mxu0
  %574 = vmatprep.mubr.bf16.mxu0 %v387
  %575 = vmatmul.mubr.bf16.gmra.mxu0 %v386
  %v576 = vpop.f32.mrf.mxu0
  %v577 = vadd.f32 %v161, %v576
  %v578 = vpop.f32.mrf.mxu0
  %v579 = vpop.f32.mrf.mxu0
  %v580 = vadd.f32 %v166, %v579
  %v581 = vpop.f32.mrf.mxu0
  %582 = vmatprep.mubr.bf16.mxu0 %v390
  %583 = vmatmul.mubr.bf16.gmra.mxu0 %v389
  %v584 = vpop.f32.mrf.mxu0
  %v585 = vadd.f32 %v171, %v584
  %v586 = vpop.f32.mrf.mxu0
  %v587 = vpop.f32.mrf.mxu0
  %v588 = vadd.f32 %v176, %v587
  %v589 = vpop.f32.mrf.mxu0
  %590 = vmatprep.mubr.bf16.mxu0 %v393
  %591 = vmatmul.mubr.bf16.gmra.mxu0 %v392
  %v592 = vpop.f32.mrf.mxu0
  %v593 = vadd.f32 %v181, %v592
  %v594 = vpop.f32.mrf.mxu0
  %v595 = vpop.f32.mrf.mxu0
  %v596 = vadd.f32 %v186, %v595
  %v597 = vpop.f32.mrf.mxu0
  %598 = vmatprep.mubr.bf16.mxu0 %v396
  %599 = vmatmul.mubr.bf16.gmra.mxu0 %v395
  %v600 = vpop.f32.mrf.mxu0
  %v601 = vadd.f32 %v191, %v600
  %v602 = vpop.f32.mrf.mxu0
  %v603 = vpop.f32.mrf.mxu0
  %v604 = vadd.f32 %v196, %v603
  %v605 = vpop.f32.mrf.mxu0
  %606 = vmatprep.mubr.bf16.mxu0 %v399
  %607 = vmatmul.mubr.bf16.gmra.mxu0 %v398
  %v608 = vpop.f32.mrf.mxu0
  %v609 = vadd.f32 %v201, %v608
  %v610 = vpop.f32.mrf.mxu0
  %v611 = vpop.f32.mrf.mxu0
  %v612 = vadd.f32 %v206, %v611
  %v613 = vpop.f32.mrf.mxu0
  %614 = vmatprep.mubr.bf16.mxu0 %v402
  %615 = vmatmul.mubr.bf16.gmra.mxu0 %v401
  %v616 = vpop.f32.mrf.mxu0
  %v617 = vadd.f32 %v211, %v616
  %v618 = vpop.f32.mrf.mxu0
  %v619 = vpop.f32.mrf.mxu0
  %v620 = vadd.f32 %v216, %v619
  %v621 = vpop.f32.mrf.mxu0
  %622 = vmatprep.mubr.bf16.mxu0 %v405
  %623 = vmatmul.mubr.bf16.gmra.mxu0 %v404
  %v624 = vpop.f32.mrf.mxu0
  %v625 = vadd.f32 %v221, %v624
  %v626 = vpop.f32.mrf.mxu0
  %v627 = vpop.f32.mrf.mxu0
  %v628 = vadd.f32 %v226, %v627
  %v629 = vpop.f32.mrf.mxu0
  %630 = vmatprep.mubr.bf16.mxu0 %v408
  %631 = vmatmul.mubr.bf16.gmra.mxu0 %v407
  %v632 = vpop.f32.mrf.mxu0
  %v633 = vadd.f32 %v231, %v632
  %v634 = vpop.f32.mrf.mxu0
  %v635 = vpop.f32.mrf.mxu0
  %v636 = vpop.f32.mrf.mxu0
  %637 = vdwg.mxu0
  %638 = vmatprep.subr.bf16.mxu0 0
  %639 = vmatpush1.bf16.xpose.msra.mxu0 0
  %640 = vmatprep.subr.bf16.mxu0 0
  %641 = vmatpush1.bf16.xpose.msra.mxu0 0
  %642 = vmatprep.subr.bf16.mxu0 0
  %643 = vmatpush1.bf16.xpose.msra.mxu0 0
  %644 = vmatprep.subr.bf16.mxu0 0
  %645 = vmatpush1.bf16.xpose.msra.mxu0 0
  %646 = vmatprep.subr.bf16.mxu0 0
  %647 = vmatpush1.bf16.xpose.msra.mxu0 0
  %648 = vmatprep.subr.bf16.mxu0 0
  %649 = vmatpush1.bf16.xpose.msra.mxu0 0
  %650 = vmatprep.subr.bf16.mxu0 0
  %651 = vmatpush1.bf16.xpose.msra.mxu0 0
  %652 = vmatprep.subr.bf16.mxu0 0
  %653 = vmatpush1.bf16.xpose.msra.mxu0 %v492
  %654 = vmatprep.subr.bf16.mxu0 0
  %655 = vmatpush2.bf16.xpose.msra.mxu0 0
  %656 = vmatprep.subr.bf16.mxu0 0
  %657 = vmatpush2.bf16.xpose.msra.mxu0 0
  %658 = vmatprep.subr.bf16.mxu0 0
  %659 = vmatpush2.bf16.xpose.msra.mxu0 0
  %660 = vmatprep.subr.bf16.mxu0 0
  %661 = vmatpush2.bf16.xpose.msra.mxu0 0
  %662 = vmatprep.subr.bf16.mxu0 0
  %663 = vmatpush2.bf16.xpose.msra.mxu0 0
  %664 = vmatprep.subr.bf16.mxu0 0
  %665 = vmatpush2.bf16.xpose.msra.mxu0 0
  %666 = vmatprep.subr.bf16.mxu0 0
  %667 = vmatpush2.bf16.xpose.msra.mxu0 0
  %668 = vmatprep.subr.bf16.mxu0 0
  %669 = vmatpush2.bf16.xpose.msra.mxu0 0
  %670 = vmatprep.mubr.bf16.mxu0 0
  %671 = vmatmul.mubr.bf16.gmra.mxu0 %v450
  %v672 = vpop.f32.mrf.mxu0
  %v673 = vadd.f32 %v529, %v672
  %v674 = vpop.f32.mrf.mxu0
  %v675 = vpop.f32.mrf.mxu0
  %v676 = vadd.f32 %v532, %v675
  %v677 = vpop.f32.mrf.mxu0
  %678 = vmatprep.mubr.bf16.mxu0 0
  %679 = vmatmul.mubr.bf16.gmra.mxu0 %v453
  %v680 = vpop.f32.mrf.mxu0
  %v681 = vadd.f32 %v537, %v680
  %v682 = vpop.f32.mrf.mxu0
  %v683 = vpop.f32.mrf.mxu0
  %v684 = vadd.f32 %v540, %v683
  %v685 = vpop.f32.mrf.mxu0
  %686 = vmatprep.mubr.bf16.mxu0 0
  %687 = vmatmul.mubr.bf16.gmra.mxu0 %v456
  %v688 = vpop.f32.mrf.mxu0
  %v689 = vadd.f32 %v545, %v688
  %v690 = vpop.f32.mrf.mxu0
  %v691 = vpop.f32.mrf.mxu0
  %v692 = vadd.f32 %v548, %v691
  %v693 = vpop.f32.mrf.mxu0
  %694 = vmatprep.mubr.bf16.mxu0 0
  %695 = vmatmul.mubr.bf16.gmra.mxu0 %v459
  %v696 = vpop.f32.mrf.mxu0
  %v697 = vadd.f32 %v553, %v696
  %v698 = vpop.f32.mrf.mxu0
  %v699 = vpop.f32.mrf.mxu0
  %v700 = vadd.f32 %v556, %v699
  %v701 = vpop.f32.mrf.mxu0
  %702 = vmatprep.mubr.bf16.mxu0 0
  %703 = vmatmul.mubr.bf16.gmra.mxu0 %v462
  %v704 = vpop.f32.mrf.mxu0
  %v705 = vadd.f32 %v561, %v704
  %v706 = vpop.f32.mrf.mxu0
  %v707 = vpop.f32.mrf.mxu0
  %v708 = vadd.f32 %v564, %v707
  %v709 = vpop.f32.mrf.mxu0
  %710 = vmatprep.mubr.bf16.mxu0 0
  %711 = vmatmul.mubr.bf16.gmra.mxu0 %v465
  %v712 = vpop.f32.mrf.mxu0
  %v713 = vadd.f32 %v569, %v712
  %v714 = vpop.f32.mrf.mxu0
  %v715 = vpop.f32.mrf.mxu0
  %v716 = vadd.f32 %v572, %v715
  %v717 = vpop.f32.mrf.mxu0
  %718 = vmatprep.mubr.bf16.mxu0 0
  %719 = vmatmul.mubr.bf16.gmra.mxu0 %v468
  %v720 = vpop.f32.mrf.mxu0
  %v721 = vadd.f32 %v577, %v720
  %v722 = vpop.f32.mrf.mxu0
  %v723 = vpop.f32.mrf.mxu0
  %v724 = vadd.f32 %v580, %v723
  %v725 = vpop.f32.mrf.mxu0
  %726 = vmatprep.mubr.bf16.mxu0 0
  %727 = vmatmul.mubr.bf16.gmra.mxu0 %v471
  %v728 = vpop.f32.mrf.mxu0
  %v729 = vadd.f32 %v585, %v728
  %v730 = vpop.f32.mrf.mxu0
  %v731 = vpop.f32.mrf.mxu0
  %v732 = vadd.f32 %v588, %v731
  %v733 = vpop.f32.mrf.mxu0
  %734 = vmatprep.mubr.bf16.mxu0 0
  %735 = vmatmul.mubr.bf16.gmra.mxu0 %v474
  %v736 = vpop.f32.mrf.mxu0
  %v737 = vadd.f32 %v593, %v736
  %v738 = vpop.f32.mrf.mxu0
  %v739 = vpop.f32.mrf.mxu0
  %v740 = vadd.f32 %v596, %v739
  %v741 = vpop.f32.mrf.mxu0
  %742 = vmatprep.mubr.bf16.mxu0 0
  %743 = vmatmul.mubr.bf16.gmra.mxu0 %v477
  %v744 = vpop.f32.mrf.mxu0
  %v745 = vadd.f32 %v601, %v744
  %v746 = vpop.f32.mrf.mxu0
  %v747 = vpop.f32.mrf.mxu0
  %v748 = vadd.f32 %v604, %v747
  %v749 = vpop.f32.mrf.mxu0
  %750 = vmatprep.mubr.bf16.mxu0 0
  %751 = vmatmul.mubr.bf16.gmra.mxu0 %v480
  %v752 = vpop.f32.mrf.mxu0
  %v753 = vadd.f32 %v609, %v752
  %v754 = vpop.f32.mrf.mxu0
  %v755 = vpop.f32.mrf.mxu0
  %v756 = vadd.f32 %v612, %v755
  %v757 = vpop.f32.mrf.mxu0
  %758 = vmatprep.mubr.bf16.mxu0 0
  %759 = vmatmul.mubr.bf16.gmra.mxu0 %v483
  %v760 = vpop.f32.mrf.mxu0
  %v761 = vadd.f32 %v617, %v760
  %v762 = vpop.f32.mrf.mxu0
  %v763 = vpop.f32.mrf.mxu0
  %v764 = vadd.f32 %v620, %v763
  %v765 = vpop.f32.mrf.mxu0
  %766 = vmatprep.mubr.bf16.mxu0 0
  %767 = vmatmul.mubr.bf16.gmra.mxu0 %v486
  %v768 = vpop.f32.mrf.mxu0
  %v769 = vadd.f32 %v625, %v768
  %v770 = vpop.f32.mrf.mxu0
  %v771 = vpop.f32.mrf.mxu0
  %v772 = vadd.f32 %v628, %v771
  %v773 = vpop.f32.mrf.mxu0
  %774 = vmatprep.mubr.bf16.mxu0 0
  %775 = vmatmul.mubr.bf16.gmra.mxu0 %v489
  %v776 = vpop.f32.mrf.mxu0
  %v777 = vadd.f32 %v633, %v776
  %v778 = vpop.f32.mrf.mxu0
  %v779 = vpop.f32.mrf.mxu0
  %v780 = vpop.f32.mrf.mxu0
  %781 = vdwg.mxu0
  %v782 = vlaneseq
  %v783 = vshrl.u32 %v782, 7
  %v784 = vadd.s32 %v783, 8
  %v785 = vadd.s32 %v783, 16
  %v786 = vadd.s32 %v783, 24
  %v787 = vadd.s32 %v783, 32
  %v788 = vadd.s32 %v783, 40
  %v789 = vadd.s32 %v783, 48
  %v790 = vadd.s32 %v783, 56
  %v791 = vadd.s32 %v783, 64
  %v792 = vadd.s32 %v783, 72
  %v793 = vadd.s32 %v783, 80
  %v794 = vadd.s32 %v783, 88
  %v795 = vadd.s32 %v783, 96
  %v796 = vadd.s32 %v783, 104
  %v797 = vadd.s32 %v783, 112
  %v798 = vadd.s32 %v783, 120
  %v799 = vadd.s32 %v783, 128
  %v800 = vadd.s32 %v783, 136
  %v801 = vadd.s32 %v783, 144
  %v802 = vadd.s32 %v783, 152
  %v803 = vadd.s32 %v783, 160
  %v804 = vadd.s32 %v783, 168
  %v805 = vadd.s32 %v783, 176
  %v806 = vadd.s32 %v783, 184
  %v807 = vadd.s32 %v783, 192
  %v808 = vadd.s32 %v783, 200
  %v809 = vadd.s32 %v783, 208
  %v810 = vsub.f32 0.0, %v673
  %v811 = vsub.f32 0.0, %v676
  %v812 = vsub.f32 0.0, %v681
  %v813 = vsub.f32 0.0, %v684
  %v814 = vsub.f32 0.0, %v689
  %v815 = vsub.f32 0.0, %v692
  %v816 = vsub.f32 0.0, %v697
  %v817 = vsub.f32 0.0, %v700
  %v818 = vsub.f32 0.0, %v705
  %v819 = vsub.f32 0.0, %v708
  %v820 = vsub.f32 0.0, %v713
  %v821 = vsub.f32 0.0, %v716
  %v822 = vsub.f32 0.0, %v721
  %v823 = vsub.f32 0.0, %v724
  %v824 = vsub.f32 0.0, %v729
  %v825 = vsub.f32 0.0, %v732
  %v826 = vsub.f32 0.0, %v737
  %v827 = vsub.f32 0.0, %v740
  %v828 = vsub.f32 0.0, %v745
  %v829 = vsub.f32 0.0, %v748
  %v830 = vsub.f32 0.0, %v753
  %v831 = vsub.f32 0.0, %v756
  %v832 = vsub.f32 0.0, %v761
  %v833 = vsub.f32 0.0, %v764
  %v834 = vsub.f32 0.0, %v769
  %v835 = vsub.f32 0.0, %v772
  %v836 = vsub.f32 0.0, %v777
  %v837 = vmul.f32 %v810, 1.442695
  %v838 = vpow.pop %v837
  %v839 = vmul.f32 %v811, 1.442695
  %v840 = vpow.pop %v839
  %v841 = vmul.f32 %v812, 1.442695
  %v842 = vpow.pop %v841
  %v843 = vmul.f32 %v813, 1.442695
  %v844 = vpow.pop %v843
  %v845 = vmul.f32 %v814, 1.442695
  %v846 = vpow.pop %v845
  %v847 = vmul.f32 %v815, 1.442695
  %v848 = vpow.pop %v847
  %v849 = vmul.f32 %v816, 1.442695
  %v850 = vpow.pop %v849
  %v851 = vmul.f32 %v817, 1.442695
  %v852 = vpow.pop %v851
  %v853 = vmul.f32 %v818, 1.442695
  %v854 = vpow.pop %v853
  %v855 = vmul.f32 %v819, 1.442695
  %v856 = vpow.pop %v855
  %v857 = vmul.f32 %v820, 1.442695
  %v858 = vpow.pop %v857
  %v859 = vmul.f32 %v821, 1.442695
  %v860 = vpow.pop %v859
  %v861 = vmul.f32 %v822, 1.442695
  %v862 = vpow.pop %v861
  %v863 = vmul.f32 %v823, 1.442695
  %v864 = vpow.pop %v863
  %v865 = vmul.f32 %v824, 1.442695
  %v866 = vpow.pop %v865
  %v867 = vmul.f32 %v825, 1.442695
  %v868 = vpow.pop %v867
  %v869 = vmul.f32 %v826, 1.442695
  %v870 = vpow.pop %v869
  %v871 = vmul.f32 %v827, 1.442695
  %v872 = vpow.pop %v871
  %v873 = vmul.f32 %v828, 1.442695
  %v874 = vpow.pop %v873
  %v875 = vmul.f32 %v829, 1.442695
  %v876 = vpow.pop %v875
  %v877 = vmul.f32 %v830, 1.442695
  %v878 = vpow.pop %v877
  %v879 = vmul.f32 %v831, 1.442695
  %v880 = vpow.pop %v879
  %v881 = vmul.f32 %v832, 1.442695
  %v882 = vpow.pop %v881
  %v883 = vmul.f32 %v833, 1.442695
  %v884 = vpow.pop %v883
  %v885 = vmul.f32 %v834, 1.442695
  %v886 = vpow.pop %v885
  %v887 = vmul.f32 %v835, 1.442695
  %v888 = vpow.pop %v887
  %v889 = vmul.f32 %v836, 1.442695
  %v890 = vpow.pop %v889
  %v891 = vadd.f32 %v838, 1.0
  %v892 = vadd.f32 %v840, 1.0
  %v893 = vadd.f32 %v842, 1.0
  %v894 = vadd.f32 %v844, 1.0
  %v895 = vadd.f32 %v846, 1.0
  %v896 = vadd.f32 %v848, 1.0
  %v897 = vadd.f32 %v850, 1.0
  %v898 = vadd.f32 %v852, 1.0
  %v899 = vadd.f32 %v854, 1.0
  %v900 = vadd.f32 %v856, 1.0
  %v901 = vadd.f32 %v858, 1.0
  %v902 = vadd.f32 %v860, 1.0
  %v903 = vadd.f32 %v862, 1.0
  %v904 = vadd.f32 %v864, 1.0
  %v905 = vadd.f32 %v866, 1.0
  %v906 = vadd.f32 %v868, 1.0
  %v907 = vadd.f32 %v870, 1.0
  %v908 = vadd.f32 %v872, 1.0
  %v909 = vadd.f32 %v874, 1.0
  %v910 = vadd.f32 %v876, 1.0
  %v911 = vadd.f32 %v878, 1.0
  %v912 = vadd.f32 %v880, 1.0
  %v913 = vadd.f32 %v882, 1.0
  %v914 = vadd.f32 %v884, 1.0
  %v915 = vadd.f32 %v886, 1.0
  %v916 = vadd.f32 %v888, 1.0
  %v917 = vadd.f32 %v890, 1.0
  %v918 = vrcp.pop %v891
  %v919 = vmul.f32 1.0, %v918
  %v920 = vrcp.pop %v892
  %v921 = vmul.f32 1.0, %v920
  %v922 = vrcp.pop %v893
  %v923 = vmul.f32 1.0, %v922
  %v924 = vrcp.pop %v894
  %v925 = vmul.f32 1.0, %v924
  %v926 = vrcp.pop %v895
  %v927 = vmul.f32 1.0, %v926
  %v928 = vrcp.pop %v896
  %v929 = vmul.f32 1.0, %v928
  %v930 = vrcp.pop %v897
  %v931 = vmul.f32 1.0, %v930
  %v932 = vrcp.pop %v898
  %v933 = vmul.f32 1.0, %v932
  %v934 = vrcp.pop %v899
  %v935 = vmul.f32 1.0, %v934
  %v936 = vrcp.pop %v900
  %v937 = vmul.f32 1.0, %v936
  %v938 = vrcp.pop %v901
  %v939 = vmul.f32 1.0, %v938
  %v940 = vrcp.pop %v902
  %v941 = vmul.f32 1.0, %v940
  %v942 = vrcp.pop %v903
  %v943 = vmul.f32 1.0, %v942
  %v944 = vrcp.pop %v904
  %v945 = vmul.f32 1.0, %v944
  %v946 = vrcp.pop %v905
  %v947 = vmul.f32 1.0, %v946
  %v948 = vrcp.pop %v906
  %v949 = vmul.f32 1.0, %v948
  %v950 = vrcp.pop %v907
  %v951 = vmul.f32 1.0, %v950
  %v952 = vrcp.pop %v908
  %v953 = vmul.f32 1.0, %v952
  %v954 = vrcp.pop %v909
  %v955 = vmul.f32 1.0, %v954
  %v956 = vrcp.pop %v910
  %v957 = vmul.f32 1.0, %v956
  %v958 = vrcp.pop %v911
  %v959 = vmul.f32 1.0, %v958
  %v960 = vrcp.pop %v912
  %v961 = vmul.f32 1.0, %v960
  %v962 = vrcp.pop %v913
  %v963 = vmul.f32 1.0, %v962
  %v964 = vrcp.pop %v914
  %v965 = vmul.f32 1.0, %v964
  %v966 = vrcp.pop %v915
  %v967 = vmul.f32 1.0, %v966
  %v968 = vrcp.pop %v916
  %v969 = vmul.f32 1.0, %v968
  %v970 = vrcp.pop %v917
  %v971 = vmul.f32 1.0, %v970
  %vm972 = vcmp.ge.s32.totalorder %v783, 144
  %vm973 = vcmp.ge.s32.totalorder %v784, 144
  %vm974 = vcmp.ge.s32.totalorder %v785, 144
  %vm975 = vcmp.ge.s32.totalorder %v786, 144
  %vm976 = vcmp.ge.s32.totalorder %v787, 144
  %vm977 = vcmp.ge.s32.totalorder %v788, 144
  %vm978 = vcmp.ge.s32.totalorder %v789, 144
  %vm979 = vcmp.ge.s32.totalorder %v790, 144
  %vm980 = vcmp.ge.s32.totalorder %v791, 144
  %vm981 = vcmp.ge.s32.totalorder %v792, 144
  %vm982 = vcmp.ge.s32.totalorder %v793, 144
  %vm983 = vcmp.ge.s32.totalorder %v794, 144
  %vm984 = vcmp.ge.s32.totalorder %v795, 144
  %vm985 = vcmp.ge.s32.totalorder %v796, 144
  %vm986 = vcmp.ge.s32.totalorder %v797, 144
  %vm987 = vcmp.ge.s32.totalorder %v798, 144
  %vm988 = vcmp.ge.s32.totalorder %v799, 144
  %vm989 = vcmp.ge.s32.totalorder %v800, 144
  %vm990 = vcmp.ge.s32.totalorder %v801, 144
  %vm991 = vcmp.ge.s32.totalorder %v802, 144
  %vm992 = vcmp.ge.s32.totalorder %v803, 144
  %vm993 = vcmp.ge.s32.totalorder %v804, 144
  %vm994 = vcmp.ge.s32.totalorder %v805, 144
  %vm995 = vcmp.ge.s32.totalorder %v806, 144
  %vm996 = vcmp.ge.s32.totalorder %v807, 144
  %vm997 = vcmp.ge.s32.totalorder %v808, 144
  %vm998 = vcmp.ge.s32.totalorder %v809, 144
  %v999 = vsel %vm972, %v919, %v673
  %v1000 = vsel %vm973, %v921, %v676
  %v1001 = vsel %vm974, %v923, %v681
  %v1002 = vsel %vm975, %v925, %v684
  %v1003 = vsel %vm976, %v927, %v689
  %v1004 = vsel %vm977, %v929, %v692
  %v1005 = vsel %vm978, %v931, %v697
  %v1006 = vsel %vm979, %v933, %v700
  %v1007 = vsel %vm980, %v935, %v705
  %v1008 = vsel %vm981, %v937, %v708
  %v1009 = vsel %vm982, %v939, %v713
  %v1010 = vsel %vm983, %v941, %v716
  %v1011 = vsel %vm984, %v943, %v721
  %v1012 = vsel %vm985, %v945, %v724
  %v1013 = vsel %vm986, %v947, %v729
  %v1014 = vsel %vm987, %v949, %v732
  %v1015 = vsel %vm988, %v951, %v737
  %v1016 = vsel %vm989, %v953, %v740
  %v1017 = vsel %vm990, %v955, %v745
  %v1018 = vsel %vm991, %v957, %v748
  %v1019 = vsel %vm992, %v959, %v753
  %v1020 = vsel %vm993, %v961, %v756
  %v1021 = vsel %vm994, %v963, %v761
  %v1022 = vsel %vm995, %v965, %v764
  %v1023 = vsel %vm996, %v967, %v769
  %v1024 = vsel %vm997, %v969, %v772
  %v1025 = vsel %vm998, %v971, %v777
  %vm1026 = vcmask 64512
  %1027 = vst.msk [vmem:[%s3] sm:$0xff] %vm1026, %v999
  %1028 = vst.msk [vmem:[%s3 + $0x8] sm:$0xff] %vm1026, %v1000
  %1029 = vst.msk [vmem:[%s3 + $0x10] sm:$0xff] %vm1026, %v1001
  %1030 = vst.msk [vmem:[%s3 + $0x18] sm:$0xff] %vm1026, %v1002
  %1031 = vst.msk [vmem:[%s3 + $0x20] sm:$0xff] %vm1026, %v1003
  %1032 = vst.msk [vmem:[%s3 + $0x28] sm:$0xff] %vm1026, %v1004
  %1033 = vst.msk [vmem:[%s3 + $0x30] sm:$0xff] %vm1026, %v1005
  %1034 = vst.msk [vmem:[%s3 + $0x38] sm:$0xff] %vm1026, %v1006
  %1035 = vst.msk [vmem:[%s3 + $0x40] sm:$0xff] %vm1026, %v1007
  %1036 = vst.msk [vmem:[%s3 + $0x48] sm:$0xff] %vm1026, %v1008
  %1037 = vst.msk [vmem:[%s3 + $0x50] sm:$0xff] %vm1026, %v1009
  %1038 = vst.msk [vmem:[%s3 + $0x58] sm:$0xff] %vm1026, %v1010
  %1039 = vst.msk [vmem:[%s3 + $0x60] sm:$0xff] %vm1026, %v1011
  %1040 = vst.msk [vmem:[%s3 + $0x68] sm:$0xff] %vm1026, %v1012
  %1041 = vst.msk [vmem:[%s3 + $0x70] sm:$0xff] %vm1026, %v1013
  %1042 = vst.msk [vmem:[%s3 + $0x78] sm:$0xff] %vm1026, %v1014
  %1043 = vst.msk [vmem:[%s3 + $0x80] sm:$0xff] %vm1026, %v1015
  %1044 = vst.msk [vmem:[%s3 + $0x88] sm:$0xff] %vm1026, %v1016
  %1045 = vst.msk [vmem:[%s3 + $0x90] sm:$0xff] %vm1026, %v1017
  %1046 = vst.msk [vmem:[%s3 + $0x98] sm:$0xff] %vm1026, %v1018
  %1047 = vst.msk [vmem:[%s3 + $0xa0] sm:$0xff] %vm1026, %v1019
  %1048 = vst.msk [vmem:[%s3 + $0xa8] sm:$0xff] %vm1026, %v1020
  %1049 = vst.msk [vmem:[%s3 + $0xb0] sm:$0xff] %vm1026, %v1021
  %1050 = vst.msk [vmem:[%s3 + $0xb8] sm:$0xff] %vm1026, %v1022
  %1051 = vst.msk [vmem:[%s3 + $0xc0] sm:$0xff] %vm1026, %v1023
  %1052 = vst.msk [vmem:[%s3 + $0xc8] sm:$0xff] %vm1026, %v1024
  %1053 = vst.msk [vmem:[%s3 + $0xd0] sm:$0xff] %vm1026, %v1025
  // Predicated region
  $region14: #{alignnet_forward.38} parent=0 // pred_check
    _
  $region15: #{alignnet_forward.38} parent=0 // pred_check_branch
    %1055 = sbr.rel (0) target = $region17
  $region16: #{alignnet_forward.38} parent=0 // pred_region
    _
  $region17: #{alignnet_forward.38} parent=0 // pred_fallthru
    _
  // Predicated region
  $region18: #{alignnet_forward.38} parent=0 // pred_check
    _
  $region19: #{alignnet_forward.38} parent=0 // pred_check_branch
    %1057 = sbr.rel (0) target = $region21
  $region20: #{alignnet_forward.38} parent=0 // pred_region
    _
  $region21: #{alignnet_forward.38} parent=0 // pred_fallthru
    _

// kernel: alignnet_forward.39
$region0: #{alignnet_forward.39}
  #allocation0 [shape = 'u32[]', space=smem, size = 0x4, offset = 0x4, fixed_abs, tag = 'smem constant byte address 0x4 - core index']
  #allocation1 [shape = 'u32[144,128]{1,0:T(1,128)}', space=vmem, size = 0x12000, scoped, tag = 'internal scratch']
  %s0 = inlined_call_operand.vmem [shape: bf16[8,288], index: 0, kind: input, shape index: {}]
  %s1 = inlined_call_operand.vmem [shape: bf16[32,288], index: 1, kind: input, shape index: {}]
  %s2 = inlined_call_operand.vmem [shape: f32[32,1], index: 2, kind: input, shape index: {}]
  %s3 = inlined_call_operand.vmem [shape: f32[32,8], index: 3, kind: output, shape index: {}]
  %s4 = sld [smem:[#allocation0]]
  $region22: #{alignnet_forward.39} parent=0
    _
  %s6 = ssub.s32 1, %s4
  %s7 = scalar_select 0, %s6, %s4
  // Predicated region
  $region2: #{alignnet_forward.39} parent=0 // pred_check
    _
  $region3: #{alignnet_forward.39} parent=0 // pred_check_branch
    %9 = sbr.rel (0) target = $region5
  $region4: #{alignnet_forward.39} parent=0 // pred_region
    _
  $region5: #{alignnet_forward.39} parent=0 // pred_fallthru
    _
  // Predicated region
  $region6: #{alignnet_forward.39} parent=0 // pred_check
    _
  $region7: #{alignnet_forward.39} parent=0 // pred_check_branch
    %11 = sbr.rel (0) target = $region9
  $region8: #{alignnet_forward.39} parent=0 // pred_region
    _
  $region9: #{alignnet_forward.39} parent=0 // pred_fallthru
    _
  // Predicated region
  $region10: #{alignnet_forward.39} parent=0 // pred_check
    _
  $region11: #{alignnet_forward.39} parent=0 // pred_check_branch
    %13 = sbr.rel (0) target = $region13
  $region12: #{alignnet_forward.39} parent=0 // pred_region
    _
  $region13: #{alignnet_forward.39} parent=0 // pred_fallthru
    _
  %v15 = vld [vmem:[%s1] sm:$0xff]
  %v16 = vld [vmem:[%s1 + $0x8] sm:$0xf]
  %v17 = vld [vmem:[%s1 + $0xc] sm:$0xff]
  %v18 = vld [vmem:[%s1 + $0x14] sm:$0xf]
  %v19 = vld [vmem:[%s1 + $0x18] sm:$0xff]
  %v20 = vld [vmem:[%s1 + $0x20] sm:$0xf]
  %v21 = vld [vmem:[%s1 + $0x24] sm:$0xff]
  %v22 = vld [vmem:[%s1 + $0x2c] sm:$0xf]
  %v23 = vld [vmem:[%s0] sm:$0xff]
  %v24 = vld [vmem:[%s0 + $0x8] sm:$0xf]
  %v25 = vld [vmem:[%s2] sm:$0xff]
  %v26 = vld [vmem:[%s2 + $0x8] sm:$0xff]
  %v27 = vld [vmem:[%s2 + $0x10] sm:$0xff]
  %v28 = vld [vmem:[%s2 + $0x18] sm:$0xff]
  %30 = vset.pattern.permute.xlu0 0
  %31 = vperm.xlu0 %30, %v25
  %v32 = vpop.permute.xlu0 %31
  %35 = vset.pattern.permute.xlu0 0
  %36 = vperm.xlu0 %35, %v26
  %v37 = vpop.permute.xlu0 %36
  %40 = vset.pattern.permute.xlu0 0
  %41 = vperm.xlu0 %40, %v27
  %v42 = vpop.permute.xlu0 %41
  %45 = vset.pattern.permute.xlu0 0
  %46 = vperm.xlu0 %45, %v28
  %v47 = vpop.permute.xlu0 %46
  %v57 = vunpack.c.l.b16 %v15
  %v58 = vunpack.c.h.b16 %v15
  %v59 = vunpack.c.l.b16 %v16
  %v60 = vunpack.c.l.b16 %v17
  %v61 = vunpack.c.h.b16 %v17
  %v62 = vunpack.c.l.b16 %v18
  %v63 = vunpack.c.l.b16 %v19
  %v64 = vunpack.c.h.b16 %v19
  %v65 = vunpack.c.l.b16 %v20
  %v66 = vunpack.c.l.b16 %v21
  %v67 = vunpack.c.h.b16 %v21
  %v68 = vunpack.c.l.b16 %v22
  %v69 = vpack.c.b16 %v60, %v57
  %v70 = vpack.c.b16 %v61, %v58
  %v71 = vpack.c.b16 %v62, %v59
  %v72 = vpack.c.b16 %v66, %v63
  %v73 = vpack.c.b16 %v67, %v64
  %v74 = vpack.c.b16 %v68, %v65
  %v81 = vunpack.c.l.b16 %v23
  %v82 = vunpack.c.h.b16 %v23
  %v83 = vunpack.c.l.b16 %v24
  %v84 = vpack.c.b16 %v81, %v81
  %v85 = vpack.c.b16 %v82, %v82
  %v86 = vpack.c.b16 %v83, %v83
  %vm89 = vcmask 261120
  %v91 = vsel %vm89, %v71, 0
  %v94 = vsel %vm89, %v74, 0
  %v97 = vsel %vm89, %v86, 0
  %99 = vmatprep.subr.bf16.mxu0 0
  %100 = vmatpush1.bf16.xpose.msra.mxu0 0
  %101 = vmatprep.subr.bf16.mxu0 0
  %102 = vmatpush1.bf16.xpose.msra.mxu0 0
  %103 = vmatprep.subr.bf16.mxu0 0
  %104 = vmatpush1.bf16.xpose.msra.mxu0 0
  %105 = vmatprep.subr.bf16.mxu0 0
  %106 = vmatpush1.bf16.xpose.msra.mxu0 0
  %107 = vmatprep.subr.bf16.mxu0 0
  %108 = vmatpush1.bf16.xpose.msra.mxu0 0
  %109 = vmatprep.subr.bf16.mxu0 0
  %110 = vmatpush1.bf16.xpose.msra.mxu0 0
  %111 = vmatprep.subr.bf16.mxu0 0
  %112 = vmatpush1.bf16.xpose.msra.mxu0 0
  %113 = vmatprep.subr.bf16.mxu0 %v85
  %114 = vmatpush1.bf16.xpose.msra.mxu0 %v84
  %115 = vmatprep.subr.bf16.mxu0 0
  %116 = vmatpush2.bf16.xpose.msra.mxu0 0
  %117 = vmatprep.subr.bf16.mxu0 0
  %118 = vmatpush2.bf16.xpose.msra.mxu0 0
  %119 = vmatprep.subr.bf16.mxu0 0
  %120 = vmatpush2.bf16.xpose.msra.mxu0 0
  %121 = vmatprep.subr.bf16.mxu0 0
  %122 = vmatpush2.bf16.xpose.msra.mxu0 0
  %123 = vmatprep.subr.bf16.mxu0 0
  %124 = vmatpush2.bf16.xpose.msra.mxu0 0
  %125 = vmatprep.subr.bf16.mxu0 0
  %126 = vmatpush2.bf16.xpose.msra.mxu0 0
  %127 = vmatprep.subr.bf16.mxu0 0
  %128 = vmatpush2.bf16.xpose.msra.mxu0 0
  %129 = vmatprep.subr.bf16.mxu0 0
  %130 = vmatpush2.bf16.xpose.msra.mxu0 0
  %131 = vmatprep.mubr.bf16.mxu0 %v70
  %132 = vmatmul.mubr.bf16.gmra.mxu0 %v69
  %v133 = vpop.f32.mrf.mxu0
  %v134 = vadd.f32 %v32, %v133
  %v135 = vpop.f32.mrf.mxu0
  %v136 = vpop.f32.mrf.mxu0
  %v137 = vadd.f32 %v37, %v136
  %v138 = vpop.f32.mrf.mxu0
  %139 = vmatprep.mubr.bf16.mxu0 %v73
  %140 = vmatmul.mubr.bf16.gmra.mxu0 %v72
  %v141 = vpop.f32.mrf.mxu0
  %v142 = vadd.f32 %v42, %v141
  %v143 = vpop.f32.mrf.mxu0
  %v144 = vpop.f32.mrf.mxu0
  %v145 = vadd.f32 %v47, %v144
  %v146 = vpop.f32.mrf.mxu0
  %147 = vdwg.mxu0
  %148 = vmatprep.subr.bf16.mxu0 0
  %149 = vmatpush1.bf16.xpose.msra.mxu0 0
  %150 = vmatprep.subr.bf16.mxu0 0
  %151 = vmatpush1.bf16.xpose.msra.mxu0 0
  %152 = vmatprep.subr.bf16.mxu0 0
  %153 = vmatpush1.bf16.xpose.msra.mxu0 0
  %154 = vmatprep.subr.bf16.mxu0 0
  %155 = vmatpush1.bf16.xpose.msra.mxu0 0
  %156 = vmatprep.subr.bf16.mxu0 0
  %157 = vmatpush1.bf16.xpose.msra.mxu0 0
  %158 = vmatprep.subr.bf16.mxu0 0
  %159 = vmatpush1.bf16.xpose.msra.mxu0 0
  %160 = vmatprep.subr.bf16.mxu0 0
  %161 = vmatpush1.bf16.xpose.msra.mxu0 0
  %162 = vmatprep.subr.bf16.mxu0 0
  %163 = vmatpush1.bf16.xpose.msra.mxu0 %v97
  %164 = vmatprep.subr.bf16.mxu0 0
  %165 = vmatpush2.bf16.xpose.msra.mxu0 0
  %166 = vmatprep.subr.bf16.mxu0 0
  %167 = vmatpush2.bf16.xpose.msra.mxu0 0
  %168 = vmatprep.subr.bf16.mxu0 0
  %169 = vmatpush2.bf16.xpose.msra.mxu0 0
  %170 = vmatprep.subr.bf16.mxu0 0
  %171 = vmatpush2.bf16.xpose.msra.mxu0 0
  %172 = vmatprep.subr.bf16.mxu0 0
  %173 = vmatpush2.bf16.xpose.msra.mxu0 0
  %174 = vmatprep.subr.bf16.mxu0 0
  %175 = vmatpush2.bf16.xpose.msra.mxu0 0
  %176 = vmatprep.subr.bf16.mxu0 0
  %177 = vmatpush2.bf16.xpose.msra.mxu0 0
  %178 = vmatprep.subr.bf16.mxu0 0
  %179 = vmatpush2.bf16.xpose.msra.mxu0 0
  %180 = vmatprep.mubr.bf16.mxu0 0
  %181 = vmatmul.mubr.bf16.gmra.mxu0 %v91
  %v182 = vpop.f32.mrf.mxu0
  %v183 = vadd.f32 %v134, %v182
  %v184 = vpop.f32.mrf.mxu0
  %v185 = vpop.f32.mrf.mxu0
  %v186 = vadd.f32 %v137, %v185
  %v187 = vpop.f32.mrf.mxu0
  %188 = vmatprep.mubr.bf16.mxu0 0
  %189 = vmatmul.mubr.bf16.gmra.mxu0 %v94
  %v190 = vpop.f32.mrf.mxu0
  %v191 = vadd.f32 %v142, %v190
  %v192 = vpop.f32.mrf.mxu0
  %v193 = vpop.f32.mrf.mxu0
  %v194 = vadd.f32 %v145, %v193
  %v195 = vpop.f32.mrf.mxu0
  %196 = vdwg.mxu0
  %vm197 = vcmask 64512
  %198 = vst.msk [vmem:[%s3] sm:$0xff] %vm197, %v183
  %199 = vst.msk [vmem:[%s3 + $0x8] sm:$0xff] %vm197, %v186
  %200 = vst.msk [vmem:[%s3 + $0x10] sm:$0xff] %vm197, %v191
  %201 = vst.msk [vmem:[%s3 + $0x18] sm:$0xff] %vm197, %v194
  // Predicated region
  $region14: #{alignnet_forward.39} parent=0 // pred_check
    _
  $region15: #{alignnet_forward.39} parent=0 // pred_check_branch
    %203 = sbr.rel (0) target = $region17
  $region16: #{alignnet_forward.39} parent=0 // pred_region
    _
  $region17: #{alignnet_forward.39} parent=0 // pred_fallthru
    _
  // Predicated region
  $region18: #{alignnet_forward.39} parent=0 // pred_check
    _
  $region19: #{alignnet_forward.39} parent=0 // pred_check_branch
    %205 = sbr.rel (0) target = $region21
  $region20: #{alignnet_forward.39} parent=0 // pred_region
    _
  $region21: #{alignnet_forward.39} parent=0 // pred_fallthru
    _

// kernel: alignnet_forward.42
$region0: #{alignnet_forward.42}
  #allocation0 [shape = 'u32[]', space=smem, size = 0x4, offset = 0x4, fixed_abs, tag = 'smem constant byte address 0x4 - core index']
  #allocation1 [shape = 'u32[144,128]{1,0:T(1,128)}', space=vmem, size = 0x12000, scoped, tag = 'internal scratch']
  %s0 = inlined_call_operand.vmem [shape: bf16[32,288], index: 0, kind: input, shape index: {}]
  %s1 = inlined_call_operand.vmem [shape: bf16[216,288], index: 1, kind: input, shape index: {}]
  %s2 = inlined_call_operand.vmem [shape: f32[216,1], index: 2, kind: input, shape index: {}]
  %s3 = inlined_call_operand.vmem [shape: f32[216,32], index: 3, kind: output, shape index: {}]
  %s4 = sld [smem:[#allocation0]]
  $region22: #{alignnet_forward.42} parent=0
    _
  %s6 = ssub.s32 1, %s4
  %s7 = scalar_select 0, %s6, %s4
  // Predicated region
  $region2: #{alignnet_forward.42} parent=0 // pred_check
    _
  $region3: #{alignnet_forward.42} parent=0 // pred_check_branch
    %9 = sbr.rel (0) target = $region5
  $region4: #{alignnet_forward.42} parent=0 // pred_region
    _
  $region5: #{alignnet_forward.42} parent=0 // pred_fallthru
    _
  // Predicated region
  $region6: #{alignnet_forward.42} parent=0 // pred_check
    _
  $region7: #{alignnet_forward.42} parent=0 // pred_check_branch
    %11 = sbr.rel (0) target = $region9
  $region8: #{alignnet_forward.42} parent=0 // pred_region
    _
  $region9: #{alignnet_forward.42} parent=0 // pred_fallthru
    _
  // Predicated region
  $region10: #{alignnet_forward.42} parent=0 // pred_check
    _
  $region11: #{alignnet_forward.42} parent=0 // pred_check_branch
    %13 = sbr.rel (0) target = $region13
  $region12: #{alignnet_forward.42} parent=0 // pred_region
    _
  $region13: #{alignnet_forward.42} parent=0 // pred_fallthru
    _
  %v15 = vld [vmem:[%s1] sm:$0xff]
  %v16 = vld [vmem:[%s1 + $0x8] sm:$0xf]
  %v17 = vld [vmem:[%s1 + $0xc] sm:$0xff]
  %v18 = vld [vmem:[%s1 + $0x14] sm:$0xf]
  %v19 = vld [vmem:[%s1 + $0x18] sm:$0xff]
  %v20 = vld [vmem:[%s1 + $0x20] sm:$0xf]
  %v21 = vld [vmem:[%s1 + $0x24] sm:$0xff]
  %v22 = vld [vmem:[%s1 + $0x2c] sm:$0xf]
  %v23 = vld [vmem:[%s1 + $0x30] sm:$0xff]
  %v24 = vld [vmem:[%s1 + $0x38] sm:$0xf]
  %v25 = vld [vmem:[%s1 + $0x3c] sm:$0xff]
  %v26 = vld [vmem:[%s1 + $0x44] sm:$0xf]
  %v27 = vld [vmem:[%s1 + $0x48] sm:$0xff]
  %v28 = vld [vmem:[%s1 + $0x50] sm:$0xf]
  %v29 = vld [vmem:[%s1 + $0x54] sm:$0xff]
  %v30 = vld [vmem:[%s1 + $0x5c] sm:$0xf]
  %v31 = vld [vmem:[%s1 + $0x60] sm:$0xff]
  %v32 = vld [vmem:[%s1 + $0x68] sm:$0xf]
  %v33 = vld [vmem:[%s1 + $0x6c] sm:$0xff]
  %v34 = vld [vmem:[%s1 + $0x74] sm:$0xf]
  %v35 = vld [vmem:[%s1 + $0x78] sm:$0xff]
  %v36 = vld [vmem:[%s1 + $0x80] sm:$0xf]
  %v37 = vld [vmem:[%s1 + $0x84] sm:$0xff]
  %v38 = vld [vmem:[%s1 + $0x8c] sm:$0xf]
  %v39 = vld [vmem:[%s1 + $0x90] sm:$0xff]
  %v40 = vld [vmem:[%s1 + $0x98] sm:$0xf]
  %v41 = vld [vmem:[%s1 + $0x9c] sm:$0xff]
  %v42 = vld [vmem:[%s1 + $0xa4] sm:$0xf]
  %v43 = vld [vmem:[%s1 + $0xa8] sm:$0xff]
  %v44 = vld [vmem:[%s1 + $0xb0] sm:$0xf]
  %v45 = vld [vmem:[%s1 + $0xb4] sm:$0xff]
  %v46 = vld [vmem:[%s1 + $0xbc] sm:$0xf]
  %v47 = vld [vmem:[%s1 + $0xc0] sm:$0xff]
  %v48 = vld [vmem:[%s1 + $0xc8] sm:$0xf]
  %v49 = vld [vmem:[%s1 + $0xcc] sm:$0xff]
  %v50 = vld [vmem:[%s1 + $0xd4] sm:$0xf]
  %v51 = vld [vmem:[%s1 + $0xd8] sm:$0xff]
  %v52 = vld [vmem:[%s1 + $0xe0] sm:$0xf]
  %v53 = vld [vmem:[%s1 + $0xe4] sm:$0xff]
  %v54 = vld [vmem:[%s1 + $0xec] sm:$0xf]
  %v55 = vld [vmem:[%s1 + $0xf0] sm:$0xff]
  %v56 = vld [vmem:[%s1 + $0xf8] sm:$0xf]
  %v57 = vld [vmem:[%s1 + $0xfc] sm:$0xff]
  %v58 = vld [vmem:[%s1 + $0x104] sm:$0xf]
  %v59 = vld [vmem:[%s1 + $0x108] sm:$0xff]
  %v60 = vld [vmem:[%s1 + $0x110] sm:$0xf]
  %v61 = vld [vmem:[%s1 + $0x114] sm:$0xff]
  %v62 = vld [vmem:[%s1 + $0x11c] sm:$0xf]
  %v63 = vld [vmem:[%s1 + $0x120] sm:$0xff]
  %v64 = vld [vmem:[%s1 + $0x128] sm:$0xf]
  %v65 = vld [vmem:[%s1 + $0x12c] sm:$0xff]
  %v66 = vld [vmem:[%s1 + $0x134] sm:$0xf]
  %v67 = vld [vmem:[%s1 + $0x138] sm:$0xff]
  %v68 = vld [vmem:[%s1 + $0x140] sm:$0xf]
  %v69 = vld [vmem:[%s0] sm:$0xff]
  %v70 = vld [vmem:[%s0 + $0x8] sm:$0xf]
  %v71 = vld [vmem:[%s0 + $0xc] sm:$0xff]
  %v72 = vld [vmem:[%s0 + $0x14] sm:$0xf]
  %v73 = vld [vmem:[%s0 + $0x18] sm:$0xff]
  %v74 = vld [vmem:[%s0 + $0x20] sm:$0xf]
  %v75 = vld [vmem:[%s0 + $0x24] sm:$0xff]
  %v76 = vld [vmem:[%s0 + $0x2c] sm:$0xf]
  %v77 = vld [vmem:[%s2] sm:$0xff]
  %v78 = vld [vmem:[%s2 + $0x8] sm:$0xff]
  %v79 = vld [vmem:[%s2 + $0x10] sm:$0xff]
  %v80 = vld [vmem:[%s2 + $0x18] sm:$0xff]
  %v81 = vld [vmem:[%s2 + $0x20] sm:$0xff]
  %v82 = vld [vmem:[%s2 + $0x28] sm:$0xff]
  %v83 = vld [vmem:[%s2 + $0x30] sm:$0xff]
  %v84 = vld [vmem:[%s2 + $0x38] sm:$0xff]
  %v85 = vld [vmem:[%s2 + $0x40] sm:$0xff]
  %v86 = vld [vmem:[%s2 + $0x48] sm:$0xff]
  %v87 = vld [vmem:[%s2 + $0x50] sm:$0xff]
  %v88 = vld [vmem:[%s2 + $0x58] sm:$0xff]
  %v89 = vld [vmem:[%s2 + $0x60] sm:$0xff]
  %v90 = vld [vmem:[%s2 + $0x68] sm:$0xff]
  %v91 = vld [vmem:[%s2 + $0x70] sm:$0xff]
  %v92 = vld [vmem:[%s2 + $0x78] sm:$0xff]
  %v93 = vld [vmem:[%s2 + $0x80] sm:$0xff]
  %v94 = vld [vmem:[%s2 + $0x88] sm:$0xff]
  %v95 = vld [vmem:[%s2 + $0x90] sm:$0xff]
  %v96 = vld [vmem:[%s2 + $0x98] sm:$0xff]
  %v97 = vld [vmem:[%s2 + $0xa0] sm:$0xff]
  %v98 = vld [vmem:[%s2 + $0xa8] sm:$0xff]
  %v99 = vld [vmem:[%s2 + $0xb0] sm:$0xff]
  %v100 = vld [vmem:[%s2 + $0xb8] sm:$0xff]
  %v101 = vld [vmem:[%s2 + $0xc0] sm:$0xff]
  %v102 = vld [vmem:[%s2 + $0xc8] sm:$0xff]
  %v103 = vld [vmem:[%s2 + $0xd0] sm:$0xff]
  %105 = vset.pattern.permute.xlu0 0
  %106 = vperm.xlu0 %105, %v77
  %v107 = vpop.permute.xlu0 %106
  %110 = vset.pattern.permute.xlu0 0
  %111 = vperm.xlu0 %110, %v78
  %v112 = vpop.permute.xlu0 %111
  %115 = vset.pattern.permute.xlu0 0
  %116 = vperm.xlu0 %115, %v79
  %v117 = vpop.permute.xlu0 %116
  %120 = vset.pattern.permute.xlu0 0
  %121 = vperm.xlu0 %120, %v80
  %v122 = vpop.permute.xlu0 %121
  %125 = vset.pattern.permute.xlu0 0
  %126 = vperm.xlu0 %125, %v81
  %v127 = vpop.permute.xlu0 %126
  %130 = vset.pattern.permute.xlu0 0
  %131 = vperm.xlu0 %130, %v82
  %v132 = vpop.permute.xlu0 %131
  %135 = vset.pattern.permute.xlu0 0
  %136 = vperm.xlu0 %135, %v83
  %v137 = vpop.permute.xlu0 %136
  %140 = vset.pattern.permute.xlu0 0
  %141 = vperm.xlu0 %140, %v84
  %v142 = vpop.permute.xlu0 %141
  %145 = vset.pattern.permute.xlu0 0
  %146 = vperm.xlu0 %145, %v85
  %v147 = vpop.permute.xlu0 %146
  %150 = vset.pattern.permute.xlu0 0
  %151 = vperm.xlu0 %150, %v86
  %v152 = vpop.permute.xlu0 %151
  %155 = vset.pattern.permute.xlu0 0
  %156 = vperm.xlu0 %155, %v87
  %v157 = vpop.permute.xlu0 %156
  %160 = vset.pattern.permute.xlu0 0
  %161 = vperm.xlu0 %160, %v88
  %v162 = vpop.permute.xlu0 %161
  %165 = vset.pattern.permute.xlu0 0
  %166 = vperm.xlu0 %165, %v89
  %v167 = vpop.permute.xlu0 %166
  %170 = vset.pattern.permute.xlu0 0
  %171 = vperm.xlu0 %170, %v90
  %v172 = vpop.permute.xlu0 %171
  %175 = vset.pattern.permute.xlu0 0
  %176 = vperm.xlu0 %175, %v91
  %v177 = vpop.permute.xlu0 %176
  %180 = vset.pattern.permute.xlu0 0
  %181 = vperm.xlu0 %180, %v92
  %v182 = vpop.permute.xlu0 %181
  %185 = vset.pattern.permute.xlu0 0
  %186 = vperm.xlu0 %185, %v93
  %v187 = vpop.permute.xlu0 %186
  %190 = vset.pattern.permute.xlu0 0
  %191 = vperm.xlu0 %190, %v94
  %v192 = vpop.permute.xlu0 %191
  %195 = vset.pattern.permute.xlu0 0
  %196 = vperm.xlu0 %195, %v95
  %v197 = vpop.permute.xlu0 %196
  %200 = vset.pattern.permute.xlu0 0
  %201 = vperm.xlu0 %200, %v96
  %v202 = vpop.permute.xlu0 %201
  %205 = vset.pattern.permute.xlu0 0
  %206 = vperm.xlu0 %205, %v97
  %v207 = vpop.permute.xlu0 %206
  %210 = vset.pattern.permute.xlu0 0
  %211 = vperm.xlu0 %210, %v98
  %v212 = vpop.permute.xlu0 %211
  %215 = vset.pattern.permute.xlu0 0
  %216 = vperm.xlu0 %215, %v99
  %v217 = vpop.permute.xlu0 %216
  %220 = vset.pattern.permute.xlu0 0
  %221 = vperm.xlu0 %220, %v100
  %v222 = vpop.permute.xlu0 %221
  %225 = vset.pattern.permute.xlu0 0
  %226 = vperm.xlu0 %225, %v101
  %v227 = vpop.permute.xlu0 %226
  %230 = vset.pattern.permute.xlu0 0
  %231 = vperm.xlu0 %230, %v102
  %v232 = vpop.permute.xlu0 %231
  %235 = vset.pattern.permute.xlu0 0
  %236 = vperm.xlu0 %235, %v103
  %v237 = vpop.permute.xlu0 %236
  %v293 = vunpack.c.l.b16 %v15
  %v294 = vunpack.c.h.b16 %v15
  %v295 = vunpack.c.l.b16 %v16
  %v296 = vunpack.c.l.b16 %v17
  %v297 = vunpack.c.h.b16 %v17
  %v298 = vunpack.c.l.b16 %v18
  %v299 = vunpack.c.l.b16 %v19
  %v300 = vunpack.c.h.b16 %v19
  %v301 = vunpack.c.l.b16 %v20
  %v302 = vunpack.c.l.b16 %v21
  %v303 = vunpack.c.h.b16 %v21
  %v304 = vunpack.c.l.b16 %v22
  %v305 = vunpack.c.l.b16 %v23
  %v306 = vunpack.c.h.b16 %v23
  %v307 = vunpack.c.l.b16 %v24
  %v308 = vunpack.c.l.b16 %v25
  %v309 = vunpack.c.h.b16 %v25
  %v310 = vunpack.c.l.b16 %v26
  %v311 = vunpack.c.l.b16 %v27
  %v312 = vunpack.c.h.b16 %v27
  %v313 = vunpack.c.l.b16 %v28
  %v314 = vunpack.c.l.b16 %v29
  %v315 = vunpack.c.h.b16 %v29
  %v316 = vunpack.c.l.b16 %v30
  %v317 = vunpack.c.l.b16 %v31
  %v318 = vunpack.c.h.b16 %v31
  %v319 = vunpack.c.l.b16 %v32
  %v320 = vunpack.c.l.b16 %v33
  %v321 = vunpack.c.h.b16 %v33
  %v322 = vunpack.c.l.b16 %v34
  %v323 = vunpack.c.l.b16 %v35
  %v324 = vunpack.c.h.b16 %v35
  %v325 = vunpack.c.l.b16 %v36
  %v326 = vunpack.c.l.b16 %v37
  %v327 = vunpack.c.h.b16 %v37
  %v328 = vunpack.c.l.b16 %v38
  %v329 = vunpack.c.l.b16 %v39
  %v330 = vunpack.c.h.b16 %v39
  %v331 = vunpack.c.l.b16 %v40
  %v332 = vunpack.c.l.b16 %v41
  %v333 = vunpack.c.h.b16 %v41
  %v334 = vunpack.c.l.b16 %v42
  %v335 = vunpack.c.l.b16 %v43
  %v336 = vunpack.c.h.b16 %v43
  %v337 = vunpack.c.l.b16 %v44
  %v338 = vunpack.c.l.b16 %v45
  %v339 = vunpack.c.h.b16 %v45
  %v340 = vunpack.c.l.b16 %v46
  %v341 = vunpack.c.l.b16 %v47
  %v342 = vunpack.c.h.b16 %v47
  %v343 = vunpack.c.l.b16 %v48
  %v344 = vunpack.c.l.b16 %v49
  %v345 = vunpack.c.h.b16 %v49
  %v346 = vunpack.c.l.b16 %v50
  %v347 = vunpack.c.l.b16 %v51
  %v348 = vunpack.c.h.b16 %v51
  %v349 = vunpack.c.l.b16 %v52
  %v350 = vunpack.c.l.b16 %v53
  %v351 = vunpack.c.h.b16 %v53
  %v352 = vunpack.c.l.b16 %v54
  %v353 = vunpack.c.l.b16 %v55
  %v354 = vunpack.c.h.b16 %v55
  %v355 = vunpack.c.l.b16 %v56
  %v356 = vunpack.c.l.b16 %v57
  %v357 = vunpack.c.h.b16 %v57
  %v358 = vunpack.c.l.b16 %v58
  %v359 = vunpack.c.l.b16 %v59
  %v360 = vunpack.c.h.b16 %v59
  %v361 = vunpack.c.l.b16 %v60
  %v362 = vunpack.c.l.b16 %v61
  %v363 = vunpack.c.h.b16 %v61
  %v364 = vunpack.c.l.b16 %v62
  %v365 = vunpack.c.l.b16 %v63
  %v366 = vunpack.c.h.b16 %v63
  %v367 = vunpack.c.l.b16 %v64
  %v368 = vunpack.c.l.b16 %v65
  %v369 = vunpack.c.h.b16 %v65
  %v370 = vunpack.c.l.b16 %v66
  %v371 = vunpack.c.l.b16 %v67
  %v372 = vunpack.c.h.b16 %v67
  %v373 = vunpack.c.l.b16 %v68
  %v374 = vpack.c.b16 %v296, %v293
  %v375 = vpack.c.b16 %v297, %v294
  %v376 = vpack.c.b16 %v298, %v295
  %v377 = vpack.c.b16 %v302, %v299
  %v378 = vpack.c.b16 %v303, %v300
  %v379 = vpack.c.b16 %v304, %v301
  %v380 = vpack.c.b16 %v308, %v305
  %v381 = vpack.c.b16 %v309, %v306
  %v382 = vpack.c.b16 %v310, %v307
  %v383 = vpack.c.b16 %v314, %v311
  %v384 = vpack.c.b16 %v315, %v312
  %v385 = vpack.c.b16 %v316, %v313
  %v386 = vpack.c.b16 %v320, %v317
  %v387 = vpack.c.b16 %v321, %v318
  %v388 = vpack.c.b16 %v322, %v319
  %v389 = vpack.c.b16 %v326, %v323
  %v390 = vpack.c.b16 %v327, %v324
  %v391 = vpack.c.b16 %v328, %v325
  %v392 = vpack.c.b16 %v332, %v329
  %v393 = vpack.c.b16 %v333, %v330
  %v394 = vpack.c.b16 %v334, %v331
  %v395 = vpack.c.b16 %v338, %v335
  %v396 = vpack.c.b16 %v339, %v336
  %v397 = vpack.c.b16 %v340, %v337
  %v398 = vpack.c.b16 %v344, %v341
  %v399 = vpack.c.b16 %v345, %v342
  %v400 = vpack.c.b16 %v346, %v343
  %v401 = vpack.c.b16 %v350, %v347
  %v402 = vpack.c.b16 %v351, %v348
  %v403 = vpack.c.b16 %v352, %v349
  %v404 = vpack.c.b16 %v356, %v353
  %v405 = vpack.c.b16 %v357, %v354
  %v406 = vpack.c.b16 %v358, %v355
  %v407 = vpack.c.b16 %v362, %v359
  %v408 = vpack.c.b16 %v363, %v360
  %v409 = vpack.c.b16 %v364, %v361
  %v410 = vpack.c.b16 %v368, %v365
  %v411 = vpack.c.b16 %v369, %v366
  %v412 = vpack.c.b16 %v370, %v367
  %v413 = vpack.c.b16 %v371, %v371
  %v414 = vpack.c.b16 %v372, %v372
  %v415 = vpack.c.b16 %v373, %v373
  %v452 = vunpack.c.l.b16 %v69
  %v453 = vunpack.c.h.b16 %v69
  %v454 = vunpack.c.l.b16 %v70
  %v455 = vunpack.c.l.b16 %v71
  %v456 = vunpack.c.h.b16 %v71
  %v457 = vunpack.c.l.b16 %v72
  %v458 = vunpack.c.l.b16 %v73
  %v459 = vunpack.c.h.b16 %v73
  %v460 = vunpack.c.l.b16 %v74
  %v461 = vunpack.c.l.b16 %v75
  %v462 = vunpack.c.h.b16 %v75
  %v463 = vunpack.c.l.b16 %v76
  %v464 = vpack.c.b16 %v455, %v452
  %v465 = vpack.c.b16 %v456, %v453
  %v466 = vpack.c.b16 %v457, %v454
  %v467 = vpack.c.b16 %v461, %v458
  %v468 = vpack.c.b16 %v462, %v459
  %v469 = vpack.c.b16 %v463, %v460
  %vm474 = vcmask 261120
  %v476 = vsel %vm474, %v376, 0
  %v479 = vsel %vm474, %v379, 0
  %v482 = vsel %vm474, %v382, 0
  %v485 = vsel %vm474, %v385, 0
  %v488 = vsel %vm474, %v388, 0
  %v491 = vsel %vm474, %v391, 0
  %v494 = vsel %vm474, %v394, 0
  %v497 = vsel %vm474, %v397, 0
  %v500 = vsel %vm474, %v400, 0
  %v503 = vsel %vm474, %v403, 0
  %v506 = vsel %vm474, %v406, 0
  %v509 = vsel %vm474, %v409, 0
  %v512 = vsel %vm474, %v412, 0
  %v515 = vsel %vm474, %v415, 0
  %v518 = vsel %vm474, %v466, 0
  %v521 = vsel %vm474, %v469, 0
  %523 = vmatprep.subr.bf16.mxu0 0
  %524 = vmatpush1.bf16.xpose.msra.mxu0 0
  %525 = vmatprep.subr.bf16.mxu0 0
  %526 = vmatpush1.bf16.xpose.msra.mxu0 0
  %527 = vmatprep.subr.bf16.mxu0 0
  %528 = vmatpush1.bf16.xpose.msra.mxu0 0
  %529 = vmatprep.subr.bf16.mxu0 0
  %530 = vmatpush1.bf16.xpose.msra.mxu0 0
  %531 = vmatprep.subr.bf16.mxu0 0
  %532 = vmatpush1.bf16.xpose.msra.mxu0 0
  %533 = vmatprep.subr.bf16.mxu0 0
  %534 = vmatpush1.bf16.xpose.msra.mxu0 0
  %535 = vmatprep.subr.bf16.mxu0 %v468
  %536 = vmatpush1.bf16.xpose.msra.mxu0 %v467
  %537 = vmatprep.subr.bf16.mxu0 %v465
  %538 = vmatpush1.bf16.xpose.msra.mxu0 %v464
  %539 = vmatprep.subr.bf16.mxu0 0
  %540 = vmatpush2.bf16.xpose.msra.mxu0 0
  %541 = vmatprep.subr.bf16.mxu0 0
  %542 = vmatpush2.bf16.xpose.msra.mxu0 0
  %543 = vmatprep.subr.bf16.mxu0 0
  %544 = vmatpush2.bf16.xpose.msra.mxu0 0
  %545 = vmatprep.subr.bf16.mxu0 0
  %546 = vmatpush2.bf16.xpose.msra.mxu0 0
  %547 = vmatprep.subr.bf16.mxu0 0
  %548 = vmatpush2.bf16.xpose.msra.mxu0 0
  %549 = vmatprep.subr.bf16.mxu0 0
  %550 = vmatpush2.bf16.xpose.msra.mxu0 0
  %551 = vmatprep.subr.bf16.mxu0 0
  %552 = vmatpush2.bf16.xpose.msra.mxu0 0
  %553 = vmatprep.subr.bf16.mxu0 0
  %554 = vmatpush2.bf16.xpose.msra.mxu0 0
  %555 = vmatprep.mubr.bf16.mxu0 %v375
  %556 = vmatmul.mubr.bf16.gmra.mxu0 %v374
  %v557 = vpop.f32.mrf.mxu0
  %v558 = vadd.f32 %v107, %v557
  %v559 = vpop.f32.mrf.mxu0
  %v560 = vpop.f32.mrf.mxu0
  %v561 = vadd.f32 %v112, %v560
  %v562 = vpop.f32.mrf.mxu0
  %563 = vmatprep.mubr.bf16.mxu0 %v378
  %564 = vmatmul.mubr.bf16.gmra.mxu0 %v377
  %v565 = vpop.f32.mrf.mxu0
  %v566 = vadd.f32 %v117, %v565
  %v567 = vpop.f32.mrf.mxu0
  %v568 = vpop.f32.mrf.mxu0
  %v569 = vadd.f32 %v122, %v568
  %v570 = vpop.f32.mrf.mxu0
  %571 = vmatprep.mubr.bf16.mxu0 %v381
  %572 = vmatmul.mubr.bf16.gmra.mxu0 %v380
  %v573 = vpop.f32.mrf.mxu0
  %v574 = vadd.f32 %v127, %v573
  %v575 = vpop.f32.mrf.mxu0
  %v576 = vpop.f32.mrf.mxu0
  %v577 = vadd.f32 %v132, %v576
  %v578 = vpop.f32.mrf.mxu0
  %579 = vmatprep.mubr.bf16.mxu0 %v384
  %580 = vmatmul.mubr.bf16.gmra.mxu0 %v383
  %v581 = vpop.f32.mrf.mxu0
  %v582 = vadd.f32 %v137, %v581
  %v583 = vpop.f32.mrf.mxu0
  %v584 = vpop.f32.mrf.mxu0
  %v585 = vadd.f32 %v142, %v584
  %v586 = vpop.f32.mrf.mxu0
  %587 = vmatprep.mubr.bf16.mxu0 %v387
  %588 = vmatmul.mubr.bf16.gmra.mxu0 %v386
  %v589 = vpop.f32.mrf.mxu0
  %v590 = vadd.f32 %v147, %v589
  %v591 = vpop.f32.mrf.mxu0
  %v592 = vpop.f32.mrf.mxu0
  %v593 = vadd.f32 %v152, %v592
  %v594 = vpop.f32.mrf.mxu0
  %595 = vmatprep.mubr.bf16.mxu0 %v390
  %596 = vmatmul.mubr.bf16.gmra.mxu0 %v389
  %v597 = vpop.f32.mrf.mxu0
  %v598 = vadd.f32 %v157, %v597
  %v599 = vpop.f32.mrf.mxu0
  %v600 = vpop.f32.mrf.mxu0
  %v601 = vadd.f32 %v162, %v600
  %v602 = vpop.f32.mrf.mxu0
  %603 = vmatprep.mubr.bf16.mxu0 %v393
  %604 = vmatmul.mubr.bf16.gmra.mxu0 %v392
  %v605 = vpop.f32.mrf.mxu0
  %v606 = vadd.f32 %v167, %v605
  %v607 = vpop.f32.mrf.mxu0
  %v608 = vpop.f32.mrf.mxu0
  %v609 = vadd.f32 %v172, %v608
  %v610 = vpop.f32.mrf.mxu0
  %611 = vmatprep.mubr.bf16.mxu0 %v396
  %612 = vmatmul.mubr.bf16.gmra.mxu0 %v395
  %v613 = vpop.f32.mrf.mxu0
  %v614 = vadd.f32 %v177, %v613
  %v615 = vpop.f32.mrf.mxu0
  %v616 = vpop.f32.mrf.mxu0
  %v617 = vadd.f32 %v182, %v616
  %v618 = vpop.f32.mrf.mxu0
  %619 = vmatprep.mubr.bf16.mxu0 %v399
  %620 = vmatmul.mubr.bf16.gmra.mxu0 %v398
  %v621 = vpop.f32.mrf.mxu0
  %v622 = vadd.f32 %v187, %v621
  %v623 = vpop.f32.mrf.mxu0
  %v624 = vpop.f32.mrf.mxu0
  %v625 = vadd.f32 %v192, %v624
  %v626 = vpop.f32.mrf.mxu0
  %627 = vmatprep.mubr.bf16.mxu0 %v402
  %628 = vmatmul.mubr.bf16.gmra.mxu0 %v401
  %v629 = vpop.f32.mrf.mxu0
  %v630 = vadd.f32 %v197, %v629
  %v631 = vpop.f32.mrf.mxu0
  %v632 = vpop.f32.mrf.mxu0
  %v633 = vadd.f32 %v202, %v632
  %v634 = vpop.f32.mrf.mxu0
  %635 = vmatprep.mubr.bf16.mxu0 %v405
  %636 = vmatmul.mubr.bf16.gmra.mxu0 %v404
  %v637 = vpop.f32.mrf.mxu0
  %v638 = vadd.f32 %v207, %v637
  %v639 = vpop.f32.mrf.mxu0
  %v640 = vpop.f32.mrf.mxu0
  %v641 = vadd.f32 %v212, %v640
  %v642 = vpop.f32.mrf.mxu0
  %643 = vmatprep.mubr.bf16.mxu0 %v408
  %644 = vmatmul.mubr.bf16.gmra.mxu0 %v407
  %v645 = vpop.f32.mrf.mxu0
  %v646 = vadd.f32 %v217, %v645
  %v647 = vpop.f32.mrf.mxu0
  %v648 = vpop.f32.mrf.mxu0
  %v649 = vadd.f32 %v222, %v648
  %v650 = vpop.f32.mrf.mxu0
  %651 = vmatprep.mubr.bf16.mxu0 %v411
  %652 = vmatmul.mubr.bf16.gmra.mxu0 %v410
  %v653 = vpop.f32.mrf.mxu0
  %v654 = vadd.f32 %v227, %v653
  %v655 = vpop.f32.mrf.mxu0
  %v656 = vpop.f32.mrf.mxu0
  %v657 = vadd.f32 %v232, %v656
  %v658 = vpop.f32.mrf.mxu0
  %659 = vmatprep.mubr.bf16.mxu0 %v414
  %660 = vmatmul.mubr.bf16.gmra.mxu0 %v413
  %v661 = vpop.f32.mrf.mxu0
  %v662 = vadd.f32 %v237, %v661
  %v663 = vpop.f32.mrf.mxu0
  %v664 = vpop.f32.mrf.mxu0
  %v665 = vpop.f32.mrf.mxu0
  %666 = vdwg.mxu0
  %667 = vmatprep.subr.bf16.mxu0 0
  %668 = vmatpush1.bf16.xpose.msra.mxu0 0
  %669 = vmatprep.subr.bf16.mxu0 0
  %670 = vmatpush1.bf16.xpose.msra.mxu0 0
  %671 = vmatprep.subr.bf16.mxu0 0
  %672 = vmatpush1.bf16.xpose.msra.mxu0 0
  %673 = vmatprep.subr.bf16.mxu0 0
  %674 = vmatpush1.bf16.xpose.msra.mxu0 0
  %675 = vmatprep.subr.bf16.mxu0 0
  %676 = vmatpush1.bf16.xpose.msra.mxu0 0
  %677 = vmatprep.subr.bf16.mxu0 0
  %678 = vmatpush1.bf16.xpose.msra.mxu0 0
  %679 = vmatprep.subr.bf16.mxu0 0
  %680 = vmatpush1.bf16.xpose.msra.mxu0 %v521
  %681 = vmatprep.subr.bf16.mxu0 0
  %682 = vmatpush1.bf16.xpose.msra.mxu0 %v518
  %683 = vmatprep.subr.bf16.mxu0 0
  %684 = vmatpush2.bf16.xpose.msra.mxu0 0
  %685 = vmatprep.subr.bf16.mxu0 0
  %686 = vmatpush2.bf16.xpose.msra.mxu0 0
  %687 = vmatprep.subr.bf16.mxu0 0
  %688 = vmatpush2.bf16.xpose.msra.mxu0 0
  %689 = vmatprep.subr.bf16.mxu0 0
  %690 = vmatpush2.bf16.xpose.msra.mxu0 0
  %691 = vmatprep.subr.bf16.mxu0 0
  %692 = vmatpush2.bf16.xpose.msra.mxu0 0
  %693 = vmatprep.subr.bf16.mxu0 0
  %694 = vmatpush2.bf16.xpose.msra.mxu0 0
  %695 = vmatprep.subr.bf16.mxu0 0
  %696 = vmatpush2.bf16.xpose.msra.mxu0 0
  %697 = vmatprep.subr.bf16.mxu0 0
  %698 = vmatpush2.bf16.xpose.msra.mxu0 0
  %699 = vmatprep.mubr.bf16.mxu0 0
  %700 = vmatmul.mubr.bf16.gmra.mxu0 %v476
  %v701 = vpop.f32.mrf.mxu0
  %v702 = vadd.f32 %v558, %v701
  %v703 = vpop.f32.mrf.mxu0
  %v704 = vpop.f32.mrf.mxu0
  %v705 = vadd.f32 %v561, %v704
  %v706 = vpop.f32.mrf.mxu0
  %707 = vmatprep.mubr.bf16.mxu0 0
  %708 = vmatmul.mubr.bf16.gmra.mxu0 %v479
  %v709 = vpop.f32.mrf.mxu0
  %v710 = vadd.f32 %v566, %v709
  %v711 = vpop.f32.mrf.mxu0
  %v712 = vpop.f32.mrf.mxu0
  %v713 = vadd.f32 %v569, %v712
  %v714 = vpop.f32.mrf.mxu0
  %715 = vmatprep.mubr.bf16.mxu0 0
  %716 = vmatmul.mubr.bf16.gmra.mxu0 %v482
  %v717 = vpop.f32.mrf.mxu0
  %v718 = vadd.f32 %v574, %v717
  %v719 = vpop.f32.mrf.mxu0
  %v720 = vpop.f32.mrf.mxu0
  %v721 = vadd.f32 %v577, %v720
  %v722 = vpop.f32.mrf.mxu0
  %723 = vmatprep.mubr.bf16.mxu0 0
  %724 = vmatmul.mubr.bf16.gmra.mxu0 %v485
  %v725 = vpop.f32.mrf.mxu0
  %v726 = vadd.f32 %v582, %v725
  %v727 = vpop.f32.mrf.mxu0
  %v728 = vpop.f32.mrf.mxu0
  %v729 = vadd.f32 %v585, %v728
  %v730 = vpop.f32.mrf.mxu0
  %731 = vmatprep.mubr.bf16.mxu0 0
  %732 = vmatmul.mubr.bf16.gmra.mxu0 %v488
  %v733 = vpop.f32.mrf.mxu0
  %v734 = vadd.f32 %v590, %v733
  %v735 = vpop.f32.mrf.mxu0
  %v736 = vpop.f32.mrf.mxu0
  %v737 = vadd.f32 %v593, %v736
  %v738 = vpop.f32.mrf.mxu0
  %739 = vmatprep.mubr.bf16.mxu0 0
  %740 = vmatmul.mubr.bf16.gmra.mxu0 %v491
  %v741 = vpop.f32.mrf.mxu0
  %v742 = vadd.f32 %v598, %v741
  %v743 = vpop.f32.mrf.mxu0
  %v744 = vpop.f32.mrf.mxu0
  %v745 = vadd.f32 %v601, %v744
  %v746 = vpop.f32.mrf.mxu0
  %747 = vmatprep.mubr.bf16.mxu0 0
  %748 = vmatmul.mubr.bf16.gmra.mxu0 %v494
  %v749 = vpop.f32.mrf.mxu0
  %v750 = vadd.f32 %v606, %v749
  %v751 = vpop.f32.mrf.mxu0
  %v752 = vpop.f32.mrf.mxu0
  %v753 = vadd.f32 %v609, %v752
  %v754 = vpop.f32.mrf.mxu0
  %755 = vmatprep.mubr.bf16.mxu0 0
  %756 = vmatmul.mubr.bf16.gmra.mxu0 %v497
  %v757 = vpop.f32.mrf.mxu0
  %v758 = vadd.f32 %v614, %v757
  %v759 = vpop.f32.mrf.mxu0
  %v760 = vpop.f32.mrf.mxu0
  %v761 = vadd.f32 %v617, %v760
  %v762 = vpop.f32.mrf.mxu0
  %763 = vmatprep.mubr.bf16.mxu0 0
  %764 = vmatmul.mubr.bf16.gmra.mxu0 %v500
  %v765 = vpop.f32.mrf.mxu0
  %v766 = vadd.f32 %v622, %v765
  %v767 = vpop.f32.mrf.mxu0
  %v768 = vpop.f32.mrf.mxu0
  %v769 = vadd.f32 %v625, %v768
  %v770 = vpop.f32.mrf.mxu0
  %771 = vmatprep.mubr.bf16.mxu0 0
  %772 = vmatmul.mubr.bf16.gmra.mxu0 %v503
  %v773 = vpop.f32.mrf.mxu0
  %v774 = vadd.f32 %v630, %v773
  %v775 = vpop.f32.mrf.mxu0
  %v776 = vpop.f32.mrf.mxu0
  %v777 = vadd.f32 %v633, %v776
  %v778 = vpop.f32.mrf.mxu0
  %779 = vmatprep.mubr.bf16.mxu0 0
  %780 = vmatmul.mubr.bf16.gmra.mxu0 %v506
  %v781 = vpop.f32.mrf.mxu0
  %v782 = vadd.f32 %v638, %v781
  %v783 = vpop.f32.mrf.mxu0
  %v784 = vpop.f32.mrf.mxu0
  %v785 = vadd.f32 %v641, %v784
  %v786 = vpop.f32.mrf.mxu0
  %787 = vmatprep.mubr.bf16.mxu0 0
  %788 = vmatmul.mubr.bf16.gmra.mxu0 %v509
  %v789 = vpop.f32.mrf.mxu0
  %v790 = vadd.f32 %v646, %v789
  %v791 = vpop.f32.mrf.mxu0
  %v792 = vpop.f32.mrf.mxu0
  %v793 = vadd.f32 %v649, %v792
  %v794 = vpop.f32.mrf.mxu0
  %795 = vmatprep.mubr.bf16.mxu0 0
  %796 = vmatmul.mubr.bf16.gmra.mxu0 %v512
  %v797 = vpop.f32.mrf.mxu0
  %v798 = vadd.f32 %v654, %v797
  %v799 = vpop.f32.mrf.mxu0
  %v800 = vpop.f32.mrf.mxu0
  %v801 = vadd.f32 %v657, %v800
  %v802 = vpop.f32.mrf.mxu0
  %803 = vmatprep.mubr.bf16.mxu0 0
  %804 = vmatmul.mubr.bf16.gmra.mxu0 %v515
  %v805 = vpop.f32.mrf.mxu0
  %v806 = vadd.f32 %v662, %v805
  %v807 = vpop.f32.mrf.mxu0
  %v808 = vpop.f32.mrf.mxu0
  %v809 = vpop.f32.mrf.mxu0
  %810 = vdwg.mxu0
  %v811 = vlaneseq
  %v812 = vshrl.u32 %v811, 7
  %v813 = vadd.s32 %v812, 8
  %v814 = vadd.s32 %v812, 16
  %v815 = vadd.s32 %v812, 24
  %v816 = vadd.s32 %v812, 32
  %v817 = vadd.s32 %v812, 40
  %v818 = vadd.s32 %v812, 48
  %v819 = vadd.s32 %v812, 56
  %v820 = vadd.s32 %v812, 64
  %v821 = vadd.s32 %v812, 72
  %v822 = vadd.s32 %v812, 80
  %v823 = vadd.s32 %v812, 88
  %v824 = vadd.s32 %v812, 96
  %v825 = vadd.s32 %v812, 104
  %v826 = vadd.s32 %v812, 112
  %v827 = vadd.s32 %v812, 120
  %v828 = vadd.s32 %v812, 128
  %v829 = vadd.s32 %v812, 136
  %v830 = vadd.s32 %v812, 144
  %v831 = vadd.s32 %v812, 152
  %v832 = vadd.s32 %v812, 160
  %v833 = vadd.s32 %v812, 168
  %v834 = vadd.s32 %v812, 176
  %v835 = vadd.s32 %v812, 184
  %v836 = vadd.s32 %v812, 192
  %v837 = vadd.s32 %v812, 200
  %v838 = vadd.s32 %v812, 208
  %v839 = vsub.f32 0.0, %v702
  %v840 = vsub.f32 0.0, %v705
  %v841 = vsub.f32 0.0, %v710
  %v842 = vsub.f32 0.0, %v713
  %v843 = vsub.f32 0.0, %v718
  %v844 = vsub.f32 0.0, %v721
  %v845 = vsub.f32 0.0, %v726
  %v846 = vsub.f32 0.0, %v729
  %v847 = vsub.f32 0.0, %v734
  %v848 = vsub.f32 0.0, %v737
  %v849 = vsub.f32 0.0, %v742
  %v850 = vsub.f32 0.0, %v745
  %v851 = vsub.f32 0.0, %v750
  %v852 = vsub.f32 0.0, %v753
  %v853 = vsub.f32 0.0, %v758
  %v854 = vsub.f32 0.0, %v761
  %v855 = vsub.f32 0.0, %v766
  %v856 = vsub.f32 0.0, %v769
  %v857 = vsub.f32 0.0, %v774
  %v858 = vsub.f32 0.0, %v777
  %v859 = vsub.f32 0.0, %v782
  %v860 = vsub.f32 0.0, %v785
  %v861 = vsub.f32 0.0, %v790
  %v862 = vsub.f32 0.0, %v793
  %v863 = vsub.f32 0.0, %v798
  %v864 = vsub.f32 0.0, %v801
  %v865 = vsub.f32 0.0, %v806
  %v866 = vmul.f32 %v839, 1.442695
  %v867 = vpow.pop %v866
  %v868 = vmul.f32 %v840, 1.442695
  %v869 = vpow.pop %v868
  %v870 = vmul.f32 %v841, 1.442695
  %v871 = vpow.pop %v870
  %v872 = vmul.f32 %v842, 1.442695
  %v873 = vpow.pop %v872
  %v874 = vmul.f32 %v843, 1.442695
  %v875 = vpow.pop %v874
  %v876 = vmul.f32 %v844, 1.442695
  %v877 = vpow.pop %v876
  %v878 = vmul.f32 %v845, 1.442695
  %v879 = vpow.pop %v878
  %v880 = vmul.f32 %v846, 1.442695
  %v881 = vpow.pop %v880
  %v882 = vmul.f32 %v847, 1.442695
  %v883 = vpow.pop %v882
  %v884 = vmul.f32 %v848, 1.442695
  %v885 = vpow.pop %v884
  %v886 = vmul.f32 %v849, 1.442695
  %v887 = vpow.pop %v886
  %v888 = vmul.f32 %v850, 1.442695
  %v889 = vpow.pop %v888
  %v890 = vmul.f32 %v851, 1.442695
  %v891 = vpow.pop %v890
  %v892 = vmul.f32 %v852, 1.442695
  %v893 = vpow.pop %v892
  %v894 = vmul.f32 %v853, 1.442695
  %v895 = vpow.pop %v894
  %v896 = vmul.f32 %v854, 1.442695
  %v897 = vpow.pop %v896
  %v898 = vmul.f32 %v855, 1.442695
  %v899 = vpow.pop %v898
  %v900 = vmul.f32 %v856, 1.442695
  %v901 = vpow.pop %v900
  %v902 = vmul.f32 %v857, 1.442695
  %v903 = vpow.pop %v902
  %v904 = vmul.f32 %v858, 1.442695
  %v905 = vpow.pop %v904
  %v906 = vmul.f32 %v859, 1.442695
  %v907 = vpow.pop %v906
  %v908 = vmul.f32 %v860, 1.442695
  %v909 = vpow.pop %v908
  %v910 = vmul.f32 %v861, 1.442695
  %v911 = vpow.pop %v910
  %v912 = vmul.f32 %v862, 1.442695
  %v913 = vpow.pop %v912
  %v914 = vmul.f32 %v863, 1.442695
  %v915 = vpow.pop %v914
  %v916 = vmul.f32 %v864, 1.442695
  %v917 = vpow.pop %v916
  %v918 = vmul.f32 %v865, 1.442695
  %v919 = vpow.pop %v918
  %v920 = vadd.f32 %v867, 1.0
  %v921 = vadd.f32 %v869, 1.0
  %v922 = vadd.f32 %v871, 1.0
  %v923 = vadd.f32 %v873, 1.0
  %v924 = vadd.f32 %v875, 1.0
  %v925 = vadd.f32 %v877, 1.0
  %v926 = vadd.f32 %v879, 1.0
  %v927 = vadd.f32 %v881, 1.0
  %v928 = vadd.f32 %v883, 1.0
  %v929 = vadd.f32 %v885, 1.0
  %v930 = vadd.f32 %v887, 1.0
  %v931 = vadd.f32 %v889, 1.0
  %v932 = vadd.f32 %v891, 1.0
  %v933 = vadd.f32 %v893, 1.0
  %v934 = vadd.f32 %v895, 1.0
  %v935 = vadd.f32 %v897, 1.0
  %v936 = vadd.f32 %v899, 1.0
  %v937 = vadd.f32 %v901, 1.0
  %v938 = vadd.f32 %v903, 1.0
  %v939 = vadd.f32 %v905, 1.0
  %v940 = vadd.f32 %v907, 1.0
  %v941 = vadd.f32 %v909, 1.0
  %v942 = vadd.f32 %v911, 1.0
  %v943 = vadd.f32 %v913, 1.0
  %v944 = vadd.f32 %v915, 1.0
  %v945 = vadd.f32 %v917, 1.0
  %v946 = vadd.f32 %v919, 1.0
  %v947 = vrcp.pop %v920
  %v948 = vmul.f32 1.0, %v947
  %v949 = vrcp.pop %v921
  %v950 = vmul.f32 1.0, %v949
  %v951 = vrcp.pop %v922
  %v952 = vmul.f32 1.0, %v951
  %v953 = vrcp.pop %v923
  %v954 = vmul.f32 1.0, %v953
  %v955 = vrcp.pop %v924
  %v956 = vmul.f32 1.0, %v955
  %v957 = vrcp.pop %v925
  %v958 = vmul.f32 1.0, %v957
  %v959 = vrcp.pop %v926
  %v960 = vmul.f32 1.0, %v959
  %v961 = vrcp.pop %v927
  %v962 = vmul.f32 1.0, %v961
  %v963 = vrcp.pop %v928
  %v964 = vmul.f32 1.0, %v963
  %v965 = vrcp.pop %v929
  %v966 = vmul.f32 1.0, %v965
  %v967 = vrcp.pop %v930
  %v968 = vmul.f32 1.0, %v967
  %v969 = vrcp.pop %v931
  %v970 = vmul.f32 1.0, %v969
  %v971 = vrcp.pop %v932
  %v972 = vmul.f32 1.0, %v971
  %v973 = vrcp.pop %v933
  %v974 = vmul.f32 1.0, %v973
  %v975 = vrcp.pop %v934
  %v976 = vmul.f32 1.0, %v975
  %v977 = vrcp.pop %v935
  %v978 = vmul.f32 1.0, %v977
  %v979 = vrcp.pop %v936
  %v980 = vmul.f32 1.0, %v979
  %v981 = vrcp.pop %v937
  %v982 = vmul.f32 1.0, %v981
  %v983 = vrcp.pop %v938
  %v984 = vmul.f32 1.0, %v983
  %v985 = vrcp.pop %v939
  %v986 = vmul.f32 1.0, %v985
  %v987 = vrcp.pop %v940
  %v988 = vmul.f32 1.0, %v987
  %v989 = vrcp.pop %v941
  %v990 = vmul.f32 1.0, %v989
  %v991 = vrcp.pop %v942
  %v992 = vmul.f32 1.0, %v991
  %v993 = vrcp.pop %v943
  %v994 = vmul.f32 1.0, %v993
  %v995 = vrcp.pop %v944
  %v996 = vmul.f32 1.0, %v995
  %v997 = vrcp.pop %v945
  %v998 = vmul.f32 1.0, %v997
  %v999 = vrcp.pop %v946
  %v1000 = vmul.f32 1.0, %v999
  %vm1001 = vcmp.ge.s32.totalorder %v812, 144
  %vm1002 = vcmp.ge.s32.totalorder %v813, 144
  %vm1003 = vcmp.ge.s32.totalorder %v814, 144
  %vm1004 = vcmp.ge.s32.totalorder %v815, 144
  %vm1005 = vcmp.ge.s32.totalorder %v816, 144
  %vm1006 = vcmp.ge.s32.totalorder %v817, 144
  %vm1007 = vcmp.ge.s32.totalorder %v818, 144
  %vm1008 = vcmp.ge.s32.totalorder %v819, 144
  %vm1009 = vcmp.ge.s32.totalorder %v820, 144
  %vm1010 = vcmp.ge.s32.totalorder %v821, 144
  %vm1011 = vcmp.ge.s32.totalorder %v822, 144
  %vm1012 = vcmp.ge.s32.totalorder %v823, 144
  %vm1013 = vcmp.ge.s32.totalorder %v824, 144
  %vm1014 = vcmp.ge.s32.totalorder %v825, 144
  %vm1015 = vcmp.ge.s32.totalorder %v826, 144
  %vm1016 = vcmp.ge.s32.totalorder %v827, 144
  %vm1017 = vcmp.ge.s32.totalorder %v828, 144
  %vm1018 = vcmp.ge.s32.totalorder %v829, 144
  %vm1019 = vcmp.ge.s32.totalorder %v830, 144
  %vm1020 = vcmp.ge.s32.totalorder %v831, 144
  %vm1021 = vcmp.ge.s32.totalorder %v832, 144
  %vm1022 = vcmp.ge.s32.totalorder %v833, 144
  %vm1023 = vcmp.ge.s32.totalorder %v834, 144
  %vm1024 = vcmp.ge.s32.totalorder %v835, 144
  %vm1025 = vcmp.ge.s32.totalorder %v836, 144
  %vm1026 = vcmp.ge.s32.totalorder %v837, 144
  %vm1027 = vcmp.ge.s32.totalorder %v838, 144
  %v1028 = vsel %vm1001, %v948, %v702
  %v1029 = vsel %vm1002, %v950, %v705
  %v1030 = vsel %vm1003, %v952, %v710
  %v1031 = vsel %vm1004, %v954, %v713
  %v1032 = vsel %vm1005, %v956, %v718
  %v1033 = vsel %vm1006, %v958, %v721
  %v1034 = vsel %vm1007, %v960, %v726
  %v1035 = vsel %vm1008, %v962, %v729
  %v1036 = vsel %vm1009, %v964, %v734
  %v1037 = vsel %vm1010, %v966, %v737
  %v1038 = vsel %vm1011, %v968, %v742
  %v1039 = vsel %vm1012, %v970, %v745
  %v1040 = vsel %vm1013, %v972, %v750
  %v1041 = vsel %vm1014, %v974, %v753
  %v1042 = vsel %vm1015, %v976, %v758
  %v1043 = vsel %vm1016, %v978, %v761
  %v1044 = vsel %vm1017, %v980, %v766
  %v1045 = vsel %vm1018, %v982, %v769
  %v1046 = vsel %vm1019, %v984, %v774
  %v1047 = vsel %vm1020, %v986, %v777
  %v1048 = vsel %vm1021, %v988, %v782
  %v1049 = vsel %vm1022, %v990, %v785
  %v1050 = vsel %vm1023, %v992, %v790
  %v1051 = vsel %vm1024, %v994, %v793
  %v1052 = vsel %vm1025, %v996, %v798
  %v1053 = vsel %vm1026, %v998, %v801
  %v1054 = vsel %vm1027, %v1000, %v806
  %1055 = vst.msk [vmem:[%s3] sm:$0xff] %vm474, %v1028
  %1056 = vst.msk [vmem:[%s3 + $0x8] sm:$0xff] %vm474, %v1029
  %1057 = vst.msk [vmem:[%s3 + $0x10] sm:$0xff] %vm474, %v1030
  %1058 = vst.msk [vmem:[%s3 + $0x18] sm:$0xff] %vm474, %v1031
  %1059 = vst.msk [vmem:[%s3 + $0x20] sm:$0xff] %vm474, %v1032
  %1060 = vst.msk [vmem:[%s3 + $0x28] sm:$0xff] %vm474, %v1033
  %1061 = vst.msk [vmem:[%s3 + $0x30] sm:$0xff] %vm474, %v1034
  %1062 = vst.msk [vmem:[%s3 + $0x38] sm:$0xff] %vm474, %v1035
  %1063 = vst.msk [vmem:[%s3 + $0x40] sm:$0xff] %vm474, %v1036
  %1064 = vst.msk [vmem:[%s3 + $0x48] sm:$0xff] %vm474, %v1037
  %1065 = vst.msk [vmem:[%s3 + $0x50] sm:$0xff] %vm474, %v1038
  %1066 = vst.msk [vmem:[%s3 + $0x58] sm:$0xff] %vm474, %v1039
  %1067 = vst.msk [vmem:[%s3 + $0x60] sm:$0xff] %vm474, %v1040
  %1068 = vst.msk [vmem:[%s3 + $0x68] sm:$0xff] %vm474, %v1041
  %1069 = vst.msk [vmem:[%s3 + $0x70] sm:$0xff] %vm474, %v1042
  %1070 = vst.msk [vmem:[%s3 + $0x78] sm:$0xff] %vm474, %v1043
  %1071 = vst.msk [vmem:[%s3 + $0x80] sm:$0xff] %vm474, %v1044
  %1072 = vst.msk [vmem:[%s3 + $0x88] sm:$0xff] %vm474, %v1045
  %1073 = vst.msk [vmem:[%s3 + $0x90] sm:$0xff] %vm474, %v1046
  %1074 = vst.msk [vmem:[%s3 + $0x98] sm:$0xff] %vm474, %v1047
  %1075 = vst.msk [vmem:[%s3 + $0xa0] sm:$0xff] %vm474, %v1048
  %1076 = vst.msk [vmem:[%s3 + $0xa8] sm:$0xff] %vm474, %v1049
  %1077 = vst.msk [vmem:[%s3 + $0xb0] sm:$0xff] %vm474, %v1050
  %1078 = vst.msk [vmem:[%s3 + $0xb8] sm:$0xff] %vm474, %v1051
  %1079 = vst.msk [vmem:[%s3 + $0xc0] sm:$0xff] %vm474, %v1052
  %1080 = vst.msk [vmem:[%s3 + $0xc8] sm:$0xff] %vm474, %v1053
  %1081 = vst.msk [vmem:[%s3 + $0xd0] sm:$0xff] %vm474, %v1054
  // Predicated region
  $region14: #{alignnet_forward.42} parent=0 // pred_check
    _
  $region15: #{alignnet_forward.42} parent=0 // pred_check_branch
    %1083 = sbr.rel (0) target = $region17
  $region16: #{alignnet_forward.42} parent=0 // pred_region
    _
  $region17: #{alignnet_forward.42} parent=0 // pred_fallthru
    _
  // Predicated region
  $region18: #{alignnet_forward.42} parent=0 // pred_check
    _
  $region19: #{alignnet_forward.42} parent=0 // pred_check_branch
    %1085 = sbr.rel (0) target = $region21
  $region20: #{alignnet_forward.42} parent=0 // pred_region
    _
  $region21: #{alignnet_forward.42} parent=0 // pred_fallthru
    _

// kernel: alignnet_forward.43
$region0: #{alignnet_forward.43}
  #allocation0 [shape = 'u32[]', space=smem, size = 0x4, offset = 0x4, fixed_abs, tag = 'smem constant byte address 0x4 - core index']
  #allocation1 [shape = 'u32[144,128]{1,0:T(1,128)}', space=vmem, size = 0x12000, scoped, tag = 'internal scratch']
  %s0 = inlined_call_operand.vmem [shape: bf16[32,288], index: 0, kind: input, shape index: {}]
  %s1 = inlined_call_operand.vmem [shape: bf16[32,288], index: 1, kind: input, shape index: {}]
  %s2 = inlined_call_operand.vmem [shape: f32[32,1], index: 2, kind: input, shape index: {}]
  %s3 = inlined_call_operand.vmem [shape: f32[32,32], index: 3, kind: output, shape index: {}]
  %s4 = sld [smem:[#allocation0]]
  $region22: #{alignnet_forward.43} parent=0
    _
  %s6 = ssub.s32 1, %s4
  %s7 = scalar_select 0, %s6, %s4
  // Predicated region
  $region2: #{alignnet_forward.43} parent=0 // pred_check
    _
  $region3: #{alignnet_forward.43} parent=0 // pred_check_branch
    %9 = sbr.rel (0) target = $region5
  $region4: #{alignnet_forward.43} parent=0 // pred_region
    _
  $region5: #{alignnet_forward.43} parent=0 // pred_fallthru
    _
  // Predicated region
  $region6: #{alignnet_forward.43} parent=0 // pred_check
    _
  $region7: #{alignnet_forward.43} parent=0 // pred_check_branch
    %11 = sbr.rel (0) target = $region9
  $region8: #{alignnet_forward.43} parent=0 // pred_region
    _
  $region9: #{alignnet_forward.43} parent=0 // pred_fallthru
    _
  // Predicated region
  $region10: #{alignnet_forward.43} parent=0 // pred_check
    _
  $region11: #{alignnet_forward.43} parent=0 // pred_check_branch
    %13 = sbr.rel (0) target = $region13
  $region12: #{alignnet_forward.43} parent=0 // pred_region
    _
  $region13: #{alignnet_forward.43} parent=0 // pred_fallthru
    _
  %v15 = vld [vmem:[%s1] sm:$0xff]
  %v16 = vld [vmem:[%s1 + $0x8] sm:$0xf]
  %v17 = vld [vmem:[%s1 + $0xc] sm:$0xff]
  %v18 = vld [vmem:[%s1 + $0x14] sm:$0xf]
  %v19 = vld [vmem:[%s1 + $0x18] sm:$0xff]
  %v20 = vld [vmem:[%s1 + $0x20] sm:$0xf]
  %v21 = vld [vmem:[%s1 + $0x24] sm:$0xff]
  %v22 = vld [vmem:[%s1 + $0x2c] sm:$0xf]
  %v23 = vld [vmem:[%s0] sm:$0xff]
  %v24 = vld [vmem:[%s0 + $0x8] sm:$0xf]
  %v25 = vld [vmem:[%s0 + $0xc] sm:$0xff]
  %v26 = vld [vmem:[%s0 + $0x14] sm:$0xf]
  %v27 = vld [vmem:[%s0 + $0x18] sm:$0xff]
  %v28 = vld [vmem:[%s0 + $0x20] sm:$0xf]
  %v29 = vld [vmem:[%s0 + $0x24] sm:$0xff]
  %v30 = vld [vmem:[%s0 + $0x2c] sm:$0xf]
  %v31 = vld [vmem:[%s2] sm:$0xff]
  %v32 = vld [vmem:[%s2 + $0x8] sm:$0xff]
  %v33 = vld [vmem:[%s2 + $0x10] sm:$0xff]
  %v34 = vld [vmem:[%s2 + $0x18] sm:$0xff]
  %36 = vset.pattern.permute.xlu0 0
  %37 = vperm.xlu0 %36, %v31
  %v38 = vpop.permute.xlu0 %37
  %41 = vset.pattern.permute.xlu0 0
  %42 = vperm.xlu0 %41, %v32
  %v43 = vpop.permute.xlu0 %42
  %46 = vset.pattern.permute.xlu0 0
  %47 = vperm.xlu0 %46, %v33
  %v48 = vpop.permute.xlu0 %47
  %51 = vset.pattern.permute.xlu0 0
  %52 = vperm.xlu0 %51, %v34
  %v53 = vpop.permute.xlu0 %52
  %v63 = vunpack.c.l.b16 %v15
  %v64 = vunpack.c.h.b16 %v15
  %v65 = vunpack.c.l.b16 %v16
  %v66 = vunpack.c.l.b16 %v17
  %v67 = vunpack.c.h.b16 %v17
  %v68 = vunpack.c.l.b16 %v18
  %v69 = vunpack.c.l.b16 %v19
  %v70 = vunpack.c.h.b16 %v19
  %v71 = vunpack.c.l.b16 %v20
  %v72 = vunpack.c.l.b16 %v21
  %v73 = vunpack.c.h.b16 %v21
  %v74 = vunpack.c.l.b16 %v22
  %v75 = vpack.c.b16 %v66, %v63
  %v76 = vpack.c.b16 %v67, %v64
  %v77 = vpack.c.b16 %v68, %v65
  %v78 = vpack.c.b16 %v72, %v69
  %v79 = vpack.c.b16 %v73, %v70
  %v80 = vpack.c.b16 %v74, %v71
  %v93 = vunpack.c.l.b16 %v23
  %v94 = vunpack.c.h.b16 %v23
  %v95 = vunpack.c.l.b16 %v24
  %v96 = vunpack.c.l.b16 %v25
  %v97 = vunpack.c.h.b16 %v25
  %v98 = vunpack.c.l.b16 %v26
  %v99 = vunpack.c.l.b16 %v27
  %v100 = vunpack.c.h.b16 %v27
  %v101 = vunpack.c.l.b16 %v28
  %v102 = vunpack.c.l.b16 %v29
  %v103 = vunpack.c.h.b16 %v29
  %v104 = vunpack.c.l.b16 %v30
  %v105 = vpack.c.b16 %v96, %v93
  %v106 = vpack.c.b16 %v97, %v94
  %v107 = vpack.c.b16 %v98, %v95
  %v108 = vpack.c.b16 %v102, %v99
  %v109 = vpack.c.b16 %v103, %v100
  %v110 = vpack.c.b16 %v104, %v101
  %vm115 = vcmask 261120
  %v117 = vsel %vm115, %v77, 0
  %v120 = vsel %vm115, %v80, 0
  %v123 = vsel %vm115, %v107, 0
  %v126 = vsel %vm115, %v110, 0
  %128 = vmatprep.subr.bf16.mxu0 0
  %129 = vmatpush1.bf16.xpose.msra.mxu0 0
  %130 = vmatprep.subr.bf16.mxu0 0
  %131 = vmatpush1.bf16.xpose.msra.mxu0 0
  %132 = vmatprep.subr.bf16.mxu0 0
  %133 = vmatpush1.bf16.xpose.msra.mxu0 0
  %134 = vmatprep.subr.bf16.mxu0 0
  %135 = vmatpush1.bf16.xpose.msra.mxu0 0
  %136 = vmatprep.subr.bf16.mxu0 0
  %137 = vmatpush1.bf16.xpose.msra.mxu0 0
  %138 = vmatprep.subr.bf16.mxu0 0
  %139 = vmatpush1.bf16.xpose.msra.mxu0 0
  %140 = vmatprep.subr.bf16.mxu0 %v109
  %141 = vmatpush1.bf16.xpose.msra.mxu0 %v108
  %142 = vmatprep.subr.bf16.mxu0 %v106
  %143 = vmatpush1.bf16.xpose.msra.mxu0 %v105
  %144 = vmatprep.subr.bf16.mxu0 0
  %145 = vmatpush2.bf16.xpose.msra.mxu0 0
  %146 = vmatprep.subr.bf16.mxu0 0
  %147 = vmatpush2.bf16.xpose.msra.mxu0 0
  %148 = vmatprep.subr.bf16.mxu0 0
  %149 = vmatpush2.bf16.xpose.msra.mxu0 0
  %150 = vmatprep.subr.bf16.mxu0 0
  %151 = vmatpush2.bf16.xpose.msra.mxu0 0
  %152 = vmatprep.subr.bf16.mxu0 0
  %153 = vmatpush2.bf16.xpose.msra.mxu0 0
  %154 = vmatprep.subr.bf16.mxu0 0
  %155 = vmatpush2.bf16.xpose.msra.mxu0 0
  %156 = vmatprep.subr.bf16.mxu0 0
  %157 = vmatpush2.bf16.xpose.msra.mxu0 0
  %158 = vmatprep.subr.bf16.mxu0 0
  %159 = vmatpush2.bf16.xpose.msra.mxu0 0
  %160 = vmatprep.mubr.bf16.mxu0 %v76
  %161 = vmatmul.mubr.bf16.gmra.mxu0 %v75
  %v162 = vpop.f32.mrf.mxu0
  %v163 = vadd.f32 %v38, %v162
  %v164 = vpop.f32.mrf.mxu0
  %v165 = vpop.f32.mrf.mxu0
  %v166 = vadd.f32 %v43, %v165
  %v167 = vpop.f32.mrf.mxu0
  %168 = vmatprep.mubr.bf16.mxu0 %v79
  %169 = vmatmul.mubr.bf16.gmra.mxu0 %v78
  %v170 = vpop.f32.mrf.mxu0
  %v171 = vadd.f32 %v48, %v170
  %v172 = vpop.f32.mrf.mxu0
  %v173 = vpop.f32.mrf.mxu0
  %v174 = vadd.f32 %v53, %v173
  %v175 = vpop.f32.mrf.mxu0
  %176 = vdwg.mxu0
  %177 = vmatprep.subr.bf16.mxu0 0
  %178 = vmatpush1.bf16.xpose.msra.mxu0 0
  %179 = vmatprep.subr.bf16.mxu0 0
  %180 = vmatpush1.bf16.xpose.msra.mxu0 0
  %181 = vmatprep.subr.bf16.mxu0 0
  %182 = vmatpush1.bf16.xpose.msra.mxu0 0
  %183 = vmatprep.subr.bf16.mxu0 0
  %184 = vmatpush1.bf16.xpose.msra.mxu0 0
  %185 = vmatprep.subr.bf16.mxu0 0
  %186 = vmatpush1.bf16.xpose.msra.mxu0 0
  %187 = vmatprep.subr.bf16.mxu0 0
  %188 = vmatpush1.bf16.xpose.msra.mxu0 0
  %189 = vmatprep.subr.bf16.mxu0 0
  %190 = vmatpush1.bf16.xpose.msra.mxu0 %v126
  %191 = vmatprep.subr.bf16.mxu0 0
  %192 = vmatpush1.bf16.xpose.msra.mxu0 %v123
  %193 = vmatprep.subr.bf16.mxu0 0
  %194 = vmatpush2.bf16.xpose.msra.mxu0 0
  %195 = vmatprep.subr.bf16.mxu0 0
  %196 = vmatpush2.bf16.xpose.msra.mxu0 0
  %197 = vmatprep.subr.bf16.mxu0 0
  %198 = vmatpush2.bf16.xpose.msra.mxu0 0
  %199 = vmatprep.subr.bf16.mxu0 0
  %200 = vmatpush2.bf16.xpose.msra.mxu0 0
  %201 = vmatprep.subr.bf16.mxu0 0
  %202 = vmatpush2.bf16.xpose.msra.mxu0 0
  %203 = vmatprep.subr.bf16.mxu0 0
  %204 = vmatpush2.bf16.xpose.msra.mxu0 0
  %205 = vmatprep.subr.bf16.mxu0 0
  %206 = vmatpush2.bf16.xpose.msra.mxu0 0
  %207 = vmatprep.subr.bf16.mxu0 0
  %208 = vmatpush2.bf16.xpose.msra.mxu0 0
  %209 = vmatprep.mubr.bf16.mxu0 0
  %210 = vmatmul.mubr.bf16.gmra.mxu0 %v117
  %v211 = vpop.f32.mrf.mxu0
  %v212 = vadd.f32 %v163, %v211
  %v213 = vpop.f32.mrf.mxu0
  %v214 = vpop.f32.mrf.mxu0
  %v215 = vadd.f32 %v166, %v214
  %v216 = vpop.f32.mrf.mxu0
  %217 = vmatprep.mubr.bf16.mxu0 0
  %218 = vmatmul.mubr.bf16.gmra.mxu0 %v120
  %v219 = vpop.f32.mrf.mxu0
  %v220 = vadd.f32 %v171, %v219
  %v221 = vpop.f32.mrf.mxu0
  %v222 = vpop.f32.mrf.mxu0
  %v223 = vadd.f32 %v174, %v222
  %v224 = vpop.f32.mrf.mxu0
  %225 = vdwg.mxu0
  %226 = vst.msk [vmem:[%s3] sm:$0xff] %vm115, %v212
  %227 = vst.msk [vmem:[%s3 + $0x8] sm:$0xff] %vm115, %v215
  %228 = vst.msk [vmem:[%s3 + $0x10] sm:$0xff] %vm115, %v220
  %229 = vst.msk [vmem:[%s3 + $0x18] sm:$0xff] %vm115, %v223
  // Predicated region
  $region14: #{alignnet_forward.43} parent=0 // pred_check
    _
  $region15: #{alignnet_forward.43} parent=0 // pred_check_branch
    %231 = sbr.rel (0) target = $region17
  $region16: #{alignnet_forward.43} parent=0 // pred_region
    _
  $region17: #{alignnet_forward.43} parent=0 // pred_fallthru
    _
  // Predicated region
  $region18: #{alignnet_forward.43} parent=0 // pred_check
    _
  $region19: #{alignnet_forward.43} parent=0 // pred_check_branch
    %233 = sbr.rel (0) target = $region21
  $region20: #{alignnet_forward.43} parent=0 // pred_region
    _
  $region21: #{alignnet_forward.43} parent=0 // pred_fallthru
    _

// kernel: alignnet_forward.44
$region0: #{alignnet_forward.44}
  #allocation0 [shape = 'u32[]', space=smem, size = 0x4, offset = 0x4, fixed_abs, tag = 'smem constant byte address 0x4 - core index']
  #allocation1 [shape = 'u32[144,128]{1,0:T(1,128)}', space=vmem, size = 0x12000, scoped, tag = 'internal scratch']
  %s0 = inlined_call_operand.vmem [shape: bf16[32,576], index: 0, kind: input, shape index: {}]
  %s1 = inlined_call_operand.vmem [shape: bf16[32,576], index: 1, kind: input, shape index: {}]
  %s2 = inlined_call_operand.vmem [shape: f32[32,1], index: 2, kind: input, shape index: {}]
  %s3 = inlined_call_operand.vmem [shape: f32[32,32], index: 3, kind: output, shape index: {}]
  %s4 = sld [smem:[#allocation0]]
  $region22: #{alignnet_forward.44} parent=0
    _
  %s6 = ssub.s32 1, %s4
  %s7 = scalar_select 0, %s6, %s4
  // Predicated region
  $region2: #{alignnet_forward.44} parent=0 // pred_check
    _
  $region3: #{alignnet_forward.44} parent=0 // pred_check_branch
    %9 = sbr.rel (0) target = $region5
  $region4: #{alignnet_forward.44} parent=0 // pred_region
    _
  $region5: #{alignnet_forward.44} parent=0 // pred_fallthru
    _
  // Predicated region
  $region6: #{alignnet_forward.44} parent=0 // pred_check
    _
  $region7: #{alignnet_forward.44} parent=0 // pred_check_branch
    %11 = sbr.rel (0) target = $region9
  $region8: #{alignnet_forward.44} parent=0 // pred_region
    _
  $region9: #{alignnet_forward.44} parent=0 // pred_fallthru
    _
  // Predicated region
  $region10: #{alignnet_forward.44} parent=0 // pred_check
    _
  $region11: #{alignnet_forward.44} parent=0 // pred_check_branch
    %13 = sbr.rel (0) target = $region13
  $region12: #{alignnet_forward.44} parent=0 // pred_region
    _
  $region13: #{alignnet_forward.44} parent=0 // pred_fallthru
    _
  %v15 = vld [vmem:[%s1] sm:$0xff]
  %v16 = vld [vmem:[%s1 + $0x8] sm:$0xff]
  %v17 = vld [vmem:[%s1 + $0x10] sm:$0xf]
  %v18 = vld [vmem:[%s1 + $0x14] sm:$0xff]
  %v19 = vld [vmem:[%s1 + $0x1c] sm:$0xff]
  %v20 = vld [vmem:[%s1 + $0x24] sm:$0xf]
  %v21 = vld [vmem:[%s1 + $0x28] sm:$0xff]
  %v22 = vld [vmem:[%s1 + $0x30] sm:$0xff]
  %v23 = vld [vmem:[%s1 + $0x38] sm:$0xf]
  %v24 = vld [vmem:[%s1 + $0x3c] sm:$0xff]
  %v25 = vld [vmem:[%s1 + $0x44] sm:$0xff]
  %v26 = vld [vmem:[%s1 + $0x4c] sm:$0xf]
  %v27 = vld [vmem:[%s0] sm:$0xff]
  %v28 = vld [vmem:[%s0 + $0x8] sm:$0xff]
  %v29 = vld [vmem:[%s0 + $0x10] sm:$0xf]
  %v30 = vld [vmem:[%s0 + $0x14] sm:$0xff]
  %v31 = vld [vmem:[%s0 + $0x1c] sm:$0xff]
  %v32 = vld [vmem:[%s0 + $0x24] sm:$0xf]
  %v33 = vld [vmem:[%s0 + $0x28] sm:$0xff]
  %v34 = vld [vmem:[%s0 + $0x30] sm:$0xff]
  %v35 = vld [vmem:[%s0 + $0x38] sm:$0xf]
  %v36 = vld [vmem:[%s0 + $0x3c] sm:$0xff]
  %v37 = vld [vmem:[%s0 + $0x44] sm:$0xff]
  %v38 = vld [vmem:[%s0 + $0x4c] sm:$0xf]
  %v39 = vld [vmem:[%s2] sm:$0xff]
  %v40 = vld [vmem:[%s2 + $0x8] sm:$0xff]
  %v41 = vld [vmem:[%s2 + $0x10] sm:$0xff]
  %v42 = vld [vmem:[%s2 + $0x18] sm:$0xff]
  %44 = vset.pattern.permute.xlu0 0
  %45 = vperm.xlu0 %44, %v39
  %v46 = vpop.permute.xlu0 %45
  %49 = vset.pattern.permute.xlu0 0
  %50 = vperm.xlu0 %49, %v40
  %v51 = vpop.permute.xlu0 %50
  %54 = vset.pattern.permute.xlu0 0
  %55 = vperm.xlu0 %54, %v41
  %v56 = vpop.permute.xlu0 %55
  %59 = vset.pattern.permute.xlu0 0
  %60 = vperm.xlu0 %59, %v42
  %v61 = vpop.permute.xlu0 %60
  %v75 = vunpack.c.l.b16 %v15
  %v76 = vunpack.c.h.b16 %v15
  %v77 = vunpack.c.l.b16 %v16
  %v78 = vunpack.c.h.b16 %v16
  %v79 = vunpack.c.l.b16 %v17
  %v80 = vunpack.c.l.b16 %v18
  %v81 = vunpack.c.h.b16 %v18
  %v82 = vunpack.c.l.b16 %v19
  %v83 = vunpack.c.h.b16 %v19
  %v84 = vunpack.c.l.b16 %v20
  %v85 = vunpack.c.l.b16 %v21
  %v86 = vunpack.c.h.b16 %v21
  %v87 = vunpack.c.l.b16 %v22
  %v88 = vunpack.c.h.b16 %v22
  %v89 = vunpack.c.l.b16 %v23
  %v90 = vunpack.c.l.b16 %v24
  %v91 = vunpack.c.h.b16 %v24
  %v92 = vunpack.c.l.b16 %v25
  %v93 = vunpack.c.h.b16 %v25
  %v94 = vunpack.c.l.b16 %v26
  %v95 = vpack.c.b16 %v80, %v75
  %v96 = vpack.c.b16 %v81, %v76
  %v97 = vpack.c.b16 %v82, %v77
  %v98 = vpack.c.b16 %v83, %v78
  %v99 = vpack.c.b16 %v84, %v79
  %v100 = vpack.c.b16 %v90, %v85
  %v101 = vpack.c.b16 %v91, %v86
  %v102 = vpack.c.b16 %v92, %v87
  %v103 = vpack.c.b16 %v93, %v88
  %v104 = vpack.c.b16 %v94, %v89
  %v125 = vunpack.c.l.b16 %v27
  %v126 = vunpack.c.h.b16 %v27
  %v127 = vunpack.c.l.b16 %v28
  %v128 = vunpack.c.h.b16 %v28
  %v129 = vunpack.c.l.b16 %v29
  %v130 = vunpack.c.l.b16 %v30
  %v131 = vunpack.c.h.b16 %v30
  %v132 = vunpack.c.l.b16 %v31
  %v133 = vunpack.c.h.b16 %v31
  %v134 = vunpack.c.l.b16 %v32
  %v135 = vunpack.c.l.b16 %v33
  %v136 = vunpack.c.h.b16 %v33
  %v137 = vunpack.c.l.b16 %v34
  %v138 = vunpack.c.h.b16 %v34
  %v139 = vunpack.c.l.b16 %v35
  %v140 = vunpack.c.l.b16 %v36
  %v141 = vunpack.c.h.b16 %v36
  %v142 = vunpack.c.l.b16 %v37
  %v143 = vunpack.c.h.b16 %v37
  %v144 = vunpack.c.l.b16 %v38
  %v145 = vpack.c.b16 %v130, %v125
  %v146 = vpack.c.b16 %v131, %v126
  %v147 = vpack.c.b16 %v132, %v127
  %v148 = vpack.c.b16 %v133, %v128
  %v149 = vpack.c.b16 %v134, %v129
  %v150 = vpack.c.b16 %v140, %v135
  %v151 = vpack.c.b16 %v141, %v136
  %v152 = vpack.c.b16 %v142, %v137
  %v153 = vpack.c.b16 %v143, %v138
  %v154 = vpack.c.b16 %v144, %v139
  %vm163 = vcmask 523264
  %v165 = vsel %vm163, %v99, 0
  %v168 = vsel %vm163, %v104, 0
  %v171 = vsel %vm163, %v149, 0
  %v174 = vsel %vm163, %v154, 0
  %176 = vmatprep.subr.bf16.mxu0 0
  %177 = vmatpush1.bf16.xpose.msra.mxu0 0
  %178 = vmatprep.subr.bf16.mxu0 0
  %179 = vmatpush1.bf16.xpose.msra.mxu0 0
  %180 = vmatprep.subr.bf16.mxu0 0
  %181 = vmatpush1.bf16.xpose.msra.mxu0 0
  %182 = vmatprep.subr.bf16.mxu0 0
  %183 = vmatpush1.bf16.xpose.msra.mxu0 0
  %184 = vmatprep.subr.bf16.mxu0 0
  %185 = vmatpush1.bf16.xpose.msra.mxu0 0
  %186 = vmatprep.subr.bf16.mxu0 0
  %187 = vmatpush1.bf16.xpose.msra.mxu0 0
  %188 = vmatprep.subr.bf16.mxu0 %v151
  %189 = vmatpush1.bf16.xpose.msra.mxu0 %v150
  %190 = vmatprep.subr.bf16.mxu0 %v146
  %191 = vmatpush1.bf16.xpose.msra.mxu0 %v145
  %192 = vmatprep.subr.bf16.mxu0 0
  %193 = vmatpush2.bf16.xpose.msra.mxu0 0
  %194 = vmatprep.subr.bf16.mxu0 0
  %195 = vmatpush2.bf16.xpose.msra.mxu0 0
  %196 = vmatprep.subr.bf16.mxu0 0
  %197 = vmatpush2.bf16.xpose.msra.mxu0 0
  %198 = vmatprep.subr.bf16.mxu0 0
  %199 = vmatpush2.bf16.xpose.msra.mxu0 0
  %200 = vmatprep.subr.bf16.mxu0 0
  %201 = vmatpush2.bf16.xpose.msra.mxu0 0
  %202 = vmatprep.subr.bf16.mxu0 0
  %203 = vmatpush2.bf16.xpose.msra.mxu0 0
  %204 = vmatprep.subr.bf16.mxu0 0
  %205 = vmatpush2.bf16.xpose.msra.mxu0 0
  %206 = vmatprep.subr.bf16.mxu0 0
  %207 = vmatpush2.bf16.xpose.msra.mxu0 0
  %208 = vmatprep.mubr.bf16.mxu0 %v96
  %209 = vmatmul.mubr.bf16.gmra.mxu0 %v95
  %v210 = vpop.f32.mrf.mxu0
  %v211 = vadd.f32 %v46, %v210
  %v212 = vpop.f32.mrf.mxu0
  %v213 = vpop.f32.mrf.mxu0
  %v214 = vadd.f32 %v51, %v213
  %v215 = vpop.f32.mrf.mxu0
  %216 = vmatprep.mubr.bf16.mxu0 %v101
  %217 = vmatmul.mubr.bf16.gmra.mxu0 %v100
  %v218 = vpop.f32.mrf.mxu0
  %v219 = vadd.f32 %v56, %v218
  %v220 = vpop.f32.mrf.mxu0
  %v221 = vpop.f32.mrf.mxu0
  %v222 = vadd.f32 %v61, %v221
  %v223 = vpop.f32.mrf.mxu0
  %224 = vdwg.mxu0
  %225 = vmatprep.subr.bf16.mxu0 0
  %226 = vmatpush1.bf16.xpose.msra.mxu0 0
  %227 = vmatprep.subr.bf16.mxu0 0
  %228 = vmatpush1.bf16.xpose.msra.mxu0 0
  %229 = vmatprep.subr.bf16.mxu0 0
  %230 = vmatpush1.bf16.xpose.msra.mxu0 0
  %231 = vmatprep.subr.bf16.mxu0 0
  %232 = vmatpush1.bf16.xpose.msra.mxu0 0
  %233 = vmatprep.subr.bf16.mxu0 0
  %234 = vmatpush1.bf16.xpose.msra.mxu0 0
  %235 = vmatprep.subr.bf16.mxu0 0
  %236 = vmatpush1.bf16.xpose.msra.mxu0 0
  %237 = vmatprep.subr.bf16.mxu0 %v153
  %238 = vmatpush1.bf16.xpose.msra.mxu0 %v152
  %239 = vmatprep.subr.bf16.mxu0 %v148
  %240 = vmatpush1.bf16.xpose.msra.mxu0 %v147
  %241 = vmatprep.subr.bf16.mxu0 0
  %242 = vmatpush2.bf16.xpose.msra.mxu0 0
  %243 = vmatprep.subr.bf16.mxu0 0
  %244 = vmatpush2.bf16.xpose.msra.mxu0 0
  %245 = vmatprep.subr.bf16.mxu0 0
  %246 = vmatpush2.bf16.xpose.msra.mxu0 0
  %247 = vmatprep.subr.bf16.mxu0 0
  %248 = vmatpush2.bf16.xpose.msra.mxu0 0
  %249 = vmatprep.subr.bf16.mxu0 0
  %250 = vmatpush2.bf16.xpose.msra.mxu0 0
  %251 = vmatprep.subr.bf16.mxu0 0
  %252 = vmatpush2.bf16.xpose.msra.mxu0 0
  %253 = vmatprep.subr.bf16.mxu0 0
  %254 = vmatpush2.bf16.xpose.msra.mxu0 0
  %255 = vmatprep.subr.bf16.mxu0 0
  %256 = vmatpush2.bf16.xpose.msra.mxu0 0
  %257 = vmatprep.mubr.bf16.mxu0 %v98
  %258 = vmatmul.mubr.bf16.gmra.mxu0 %v97
  %v259 = vpop.f32.mrf.mxu0
  %v260 = vadd.f32 %v211, %v259
  %v261 = vpop.f32.mrf.mxu0
  %v262 = vpop.f32.mrf.mxu0
  %v263 = vadd.f32 %v214, %v262
  %v264 = vpop.f32.mrf.mxu0
  %265 = vmatprep.mubr.bf16.mxu0 %v103
  %266 = vmatmul.mubr.bf16.gmra.mxu0 %v102
  %v267 = vpop.f32.mrf.mxu0
  %v268 = vadd.f32 %v219, %v267
  %v269 = vpop.f32.mrf.mxu0
  %v270 = vpop.f32.mrf.mxu0
  %v271 = vadd.f32 %v222, %v270
  %v272 = vpop.f32.mrf.mxu0
  %273 = vdwg.mxu0
  %274 = vmatprep.subr.bf16.mxu0 0
  %275 = vmatpush1.bf16.xpose.msra.mxu0 0
  %276 = vmatprep.subr.bf16.mxu0 0
  %277 = vmatpush1.bf16.xpose.msra.mxu0 0
  %278 = vmatprep.subr.bf16.mxu0 0
  %279 = vmatpush1.bf16.xpose.msra.mxu0 0
  %280 = vmatprep.subr.bf16.mxu0 0
  %281 = vmatpush1.bf16.xpose.msra.mxu0 0
  %282 = vmatprep.subr.bf16.mxu0 0
  %283 = vmatpush1.bf16.xpose.msra.mxu0 0
  %284 = vmatprep.subr.bf16.mxu0 0
  %285 = vmatpush1.bf16.xpose.msra.mxu0 0
  %286 = vmatprep.subr.bf16.mxu0 0
  %287 = vmatpush1.bf16.xpose.msra.mxu0 %v174
  %288 = vmatprep.subr.bf16.mxu0 0
  %289 = vmatpush1.bf16.xpose.msra.mxu0 %v171
  %290 = vmatprep.subr.bf16.mxu0 0
  %291 = vmatpush2.bf16.xpose.msra.mxu0 0
  %292 = vmatprep.subr.bf16.mxu0 0
  %293 = vmatpush2.bf16.xpose.msra.mxu0 0
  %294 = vmatprep.subr.bf16.mxu0 0
  %295 = vmatpush2.bf16.xpose.msra.mxu0 0
  %296 = vmatprep.subr.bf16.mxu0 0
  %297 = vmatpush2.bf16.xpose.msra.mxu0 0
  %298 = vmatprep.subr.bf16.mxu0 0
  %299 = vmatpush2.bf16.xpose.msra.mxu0 0
  %300 = vmatprep.subr.bf16.mxu0 0
  %301 = vmatpush2.bf16.xpose.msra.mxu0 0
  %302 = vmatprep.subr.bf16.mxu0 0
  %303 = vmatpush2.bf16.xpose.msra.mxu0 0
  %304 = vmatprep.subr.bf16.mxu0 0
  %305 = vmatpush2.bf16.xpose.msra.mxu0 0
  %306 = vmatprep.mubr.bf16.mxu0 0
  %307 = vmatmul.mubr.bf16.gmra.mxu0 %v165
  %v308 = vpop.f32.mrf.mxu0
  %v309 = vadd.f32 %v260, %v308
  %v310 = vpop.f32.mrf.mxu0
  %v311 = vpop.f32.mrf.mxu0
  %v312 = vadd.f32 %v263, %v311
  %v313 = vpop.f32.mrf.mxu0
  %314 = vmatprep.mubr.bf16.mxu0 0
  %315 = vmatmul.mubr.bf16.gmra.mxu0 %v168
  %v316 = vpop.f32.mrf.mxu0
  %v317 = vadd.f32 %v268, %v316
  %v318 = vpop.f32.mrf.mxu0
  %v319 = vpop.f32.mrf.mxu0
  %v320 = vadd.f32 %v271, %v319
  %v321 = vpop.f32.mrf.mxu0
  %322 = vdwg.mxu0
  %vm323 = vcmp.ge.f32.partialorder %v309, 0.0
  %vm324 = vcmp.ge.f32.partialorder %v312, 0.0
  %vm325 = vcmp.ge.f32.partialorder %v317, 0.0
  %vm326 = vcmp.ge.f32.partialorder %v320, 0.0
  %v327 = vmul.f32 %v309, 0.1
  %v328 = vmul.f32 %v312, 0.1
  %v329 = vmul.f32 %v317, 0.1
  %v330 = vmul.f32 %v320, 0.1
  %v331 = vsel %vm323, %v309, %v327
  %v332 = vsel %vm324, %v312, %v328
  %v333 = vsel %vm325, %v317, %v329
  %v334 = vsel %vm326, %v320, %v330
  %vm335 = vcmask 261120
  %336 = vst.msk [vmem:[%s3] sm:$0xff] %vm335, %v331
  %337 = vst.msk [vmem:[%s3 + $0x8] sm:$0xff] %vm335, %v332
  %338 = vst.msk [vmem:[%s3 + $0x10] sm:$0xff] %vm335, %v333
  %339 = vst.msk [vmem:[%s3 + $0x18] sm:$0xff] %vm335, %v334
  // Predicated region
  $region14: #{alignnet_forward.44} parent=0 // pred_check
    _
  $region15: #{alignnet_forward.44} parent=0 // pred_check_branch
    %341 = sbr.rel (0) target = $region17
  $region16: #{alignnet_forward.44} parent=0 // pred_region
    _
  $region17: #{alignnet_forward.44} parent=0 // pred_fallthru
    _
  // Predicated region
  $region18: #{alignnet_forward.44} parent=0 // pred_check
    _
  $region19: #{alignnet_forward.44} parent=0 // pred_check_branch
    %343 = sbr.rel (0) target = $region21
  $region20: #{alignnet_forward.44} parent=0 // pred_region
    _
  $region21: #{alignnet_forward.44} parent=0 // pred_fallthru
    _

// kernel: alignnet_forward.46
$region0: #{alignnet_forward.46}
  #allocation0 [shape = 'u32[]', space=smem, size = 0x4, offset = 0x4, fixed_abs, tag = 'smem constant byte address 0x4 - core index']
  #allocation1 [shape = 'u32[144,128]{1,0:T(1,128)}', space=vmem, size = 0x12000, scoped, tag = 'internal scratch']
  %s0 = inlined_call_operand.vmem [shape: bf16[128,288], index: 0, kind: input, shape index: {}]
  %s1 = inlined_call_operand.vmem [shape: bf16[216,288], index: 1, kind: input, shape index: {}]
  %s2 = inlined_call_operand.vmem [shape: f32[216,1], index: 2, kind: input, shape index: {}]
  %s3 = inlined_call_operand.vmem [shape: f32[216,128], index: 3, kind: output, shape index: {}]
  %s4 = sld [smem:[#allocation0]]
  $region22: #{alignnet_forward.46} parent=0
    _
  %s6 = ssub.s32 1, %s4
  %s7 = scalar_select 0, %s6, %s4
  // Predicated region
  $region2: #{alignnet_forward.46} parent=0 // pred_check
    _
  $region3: #{alignnet_forward.46} parent=0 // pred_check_branch
    %9 = sbr.rel (0) target = $region5
  $region4: #{alignnet_forward.46} parent=0 // pred_region
    _
  $region5: #{alignnet_forward.46} parent=0 // pred_fallthru
    _
  // Predicated region
  $region6: #{alignnet_forward.46} parent=0 // pred_check
    _
  $region7: #{alignnet_forward.46} parent=0 // pred_check_branch
    %11 = sbr.rel (0) target = $region9
  $region8: #{alignnet_forward.46} parent=0 // pred_region
    _
  $region9: #{alignnet_forward.46} parent=0 // pred_fallthru
    _
  // Predicated region
  $region10: #{alignnet_forward.46} parent=0 // pred_check
    _
  $region11: #{alignnet_forward.46} parent=0 // pred_check_branch
    %13 = sbr.rel (0) target = $region13
  $region12: #{alignnet_forward.46} parent=0 // pred_region
    _
  $region13: #{alignnet_forward.46} parent=0 // pred_fallthru
    _
  %v15 = vld [vmem:[%s1] sm:$0xff]
  %v16 = vld [vmem:[%s1 + $0x8] sm:$0xf]
  %v17 = vld [vmem:[%s1 + $0xc] sm:$0xff]
  %v18 = vld [vmem:[%s1 + $0x14] sm:$0xf]
  %v19 = vld [vmem:[%s1 + $0x18] sm:$0xff]
  %v20 = vld [vmem:[%s1 + $0x20] sm:$0xf]
  %v21 = vld [vmem:[%s1 + $0x24] sm:$0xff]
  %v22 = vld [vmem:[%s1 + $0x2c] sm:$0xf]
  %v23 = vld [vmem:[%s1 + $0x30] sm:$0xff]
  %v24 = vld [vmem:[%s1 + $0x38] sm:$0xf]
  %v25 = vld [vmem:[%s1 + $0x3c] sm:$0xff]
  %v26 = vld [vmem:[%s1 + $0x44] sm:$0xf]
  %v27 = vld [vmem:[%s1 + $0x48] sm:$0xff]
  %v28 = vld [vmem:[%s1 + $0x50] sm:$0xf]
  %v29 = vld [vmem:[%s1 + $0x54] sm:$0xff]
  %v30 = vld [vmem:[%s1 + $0x5c] sm:$0xf]
  %v31 = vld [vmem:[%s1 + $0x60] sm:$0xff]
  %v32 = vld [vmem:[%s1 + $0x68] sm:$0xf]
  %v33 = vld [vmem:[%s1 + $0x6c] sm:$0xff]
  %v34 = vld [vmem:[%s1 + $0x74] sm:$0xf]
  %v35 = vld [vmem:[%s1 + $0x78] sm:$0xff]
  %v36 = vld [vmem:[%s1 + $0x80] sm:$0xf]
  %v37 = vld [vmem:[%s1 + $0x84] sm:$0xff]
  %v38 = vld [vmem:[%s1 + $0x8c] sm:$0xf]
  %v39 = vld [vmem:[%s1 + $0x90] sm:$0xff]
  %v40 = vld [vmem:[%s1 + $0x98] sm:$0xf]
  %v41 = vld [vmem:[%s1 + $0x9c] sm:$0xff]
  %v42 = vld [vmem:[%s1 + $0xa4] sm:$0xf]
  %v43 = vld [vmem:[%s1 + $0xa8] sm:$0xff]
  %v44 = vld [vmem:[%s1 + $0xb0] sm:$0xf]
  %v45 = vld [vmem:[%s1 + $0xb4] sm:$0xff]
  %v46 = vld [vmem:[%s1 + $0xbc] sm:$0xf]
  %v47 = vld [vmem:[%s1 + $0xc0] sm:$0xff]
  %v48 = vld [vmem:[%s1 + $0xc8] sm:$0xf]
  %v49 = vld [vmem:[%s1 + $0xcc] sm:$0xff]
  %v50 = vld [vmem:[%s1 + $0xd4] sm:$0xf]
  %v51 = vld [vmem:[%s1 + $0xd8] sm:$0xff]
  %v52 = vld [vmem:[%s1 + $0xe0] sm:$0xf]
  %v53 = vld [vmem:[%s1 + $0xe4] sm:$0xff]
  %v54 = vld [vmem:[%s1 + $0xec] sm:$0xf]
  %v55 = vld [vmem:[%s1 + $0xf0] sm:$0xff]
  %v56 = vld [vmem:[%s1 + $0xf8] sm:$0xf]
  %v57 = vld [vmem:[%s1 + $0xfc] sm:$0xff]
  %v58 = vld [vmem:[%s1 + $0x104] sm:$0xf]
  %v59 = vld [vmem:[%s1 + $0x108] sm:$0xff]
  %v60 = vld [vmem:[%s1 + $0x110] sm:$0xf]
  %v61 = vld [vmem:[%s1 + $0x114] sm:$0xff]
  %v62 = vld [vmem:[%s1 + $0x11c] sm:$0xf]
  %v63 = vld [vmem:[%s1 + $0x120] sm:$0xff]
  %v64 = vld [vmem:[%s1 + $0x128] sm:$0xf]
  %v65 = vld [vmem:[%s1 + $0x12c] sm:$0xff]
  %v66 = vld [vmem:[%s1 + $0x134] sm:$0xf]
  %v67 = vld [vmem:[%s1 + $0x138] sm:$0xff]
  %v68 = vld [vmem:[%s1 + $0x140] sm:$0xf]
  %v69 = vld [vmem:[%s0] sm:$0xff]
  %v70 = vld [vmem:[%s0 + $0x8] sm:$0xf]
  %v71 = vld [vmem:[%s0 + $0xc] sm:$0xff]
  %v72 = vld [vmem:[%s0 + $0x14] sm:$0xf]
  %v73 = vld [vmem:[%s0 + $0x18] sm:$0xff]
  %v74 = vld [vmem:[%s0 + $0x20] sm:$0xf]
  %v75 = vld [vmem:[%s0 + $0x24] sm:$0xff]
  %v76 = vld [vmem:[%s0 + $0x2c] sm:$0xf]
  %v77 = vld [vmem:[%s0 + $0x30] sm:$0xff]
  %v78 = vld [vmem:[%s0 + $0x38] sm:$0xf]
  %v79 = vld [vmem:[%s0 + $0x3c] sm:$0xff]
  %v80 = vld [vmem:[%s0 + $0x44] sm:$0xf]
  %v81 = vld [vmem:[%s0 + $0x48] sm:$0xff]
  %v82 = vld [vmem:[%s0 + $0x50] sm:$0xf]
  %v83 = vld [vmem:[%s0 + $0x54] sm:$0xff]
  %v84 = vld [vmem:[%s0 + $0x5c] sm:$0xf]
  %v85 = vld [vmem:[%s0 + $0x60] sm:$0xff]
  %v86 = vld [vmem:[%s0 + $0x68] sm:$0xf]
  %v87 = vld [vmem:[%s0 + $0x6c] sm:$0xff]
  %v88 = vld [vmem:[%s0 + $0x74] sm:$0xf]
  %v89 = vld [vmem:[%s0 + $0x78] sm:$0xff]
  %v90 = vld [vmem:[%s0 + $0x80] sm:$0xf]
  %v91 = vld [vmem:[%s0 + $0x84] sm:$0xff]
  %v92 = vld [vmem:[%s0 + $0x8c] sm:$0xf]
  %v93 = vld [vmem:[%s0 + $0x90] sm:$0xff]
  %v94 = vld [vmem:[%s0 + $0x98] sm:$0xf]
  %v95 = vld [vmem:[%s0 + $0x9c] sm:$0xff]
  %v96 = vld [vmem:[%s0 + $0xa4] sm:$0xf]
  %v97 = vld [vmem:[%s0 + $0xa8] sm:$0xff]
  %v98 = vld [vmem:[%s0 + $0xb0] sm:$0xf]
  %v99 = vld [vmem:[%s0 + $0xb4] sm:$0xff]
  %v100 = vld [vmem:[%s0 + $0xbc] sm:$0xf]
  %v101 = vld [vmem:[%s2] sm:$0xff]
  %v102 = vld [vmem:[%s2 + $0x8] sm:$0xff]
  %v103 = vld [vmem:[%s2 + $0x10] sm:$0xff]
  %v104 = vld [vmem:[%s2 + $0x18] sm:$0xff]
  %v105 = vld [vmem:[%s2 + $0x20] sm:$0xff]
  %v106 = vld [vmem:[%s2 + $0x28] sm:$0xff]
  %v107 = vld [vmem:[%s2 + $0x30] sm:$0xff]
  %v108 = vld [vmem:[%s2 + $0x38] sm:$0xff]
  %v109 = vld [vmem:[%s2 + $0x40] sm:$0xff]
  %v110 = vld [vmem:[%s2 + $0x48] sm:$0xff]
  %v111 = vld [vmem:[%s2 + $0x50] sm:$0xff]
  %v112 = vld [vmem:[%s2 + $0x58] sm:$0xff]
  %v113 = vld [vmem:[%s2 + $0x60] sm:$0xff]
  %v114 = vld [vmem:[%s2 + $0x68] sm:$0xff]
  %v115 = vld [vmem:[%s2 + $0x70] sm:$0xff]
  %v116 = vld [vmem:[%s2 + $0x78] sm:$0xff]
  %v117 = vld [vmem:[%s2 + $0x80] sm:$0xff]
  %v118 = vld [vmem:[%s2 + $0x88] sm:$0xff]
  %v119 = vld [vmem:[%s2 + $0x90] sm:$0xff]
  %v120 = vld [vmem:[%s2 + $0x98] sm:$0xff]
  %v121 = vld [vmem:[%s2 + $0xa0] sm:$0xff]
  %v122 = vld [vmem:[%s2 + $0xa8] sm:$0xff]
  %v123 = vld [vmem:[%s2 + $0xb0] sm:$0xff]
  %v124 = vld [vmem:[%s2 + $0xb8] sm:$0xff]
  %v125 = vld [vmem:[%s2 + $0xc0] sm:$0xff]
  %v126 = vld [vmem:[%s2 + $0xc8] sm:$0xff]
  %v127 = vld [vmem:[%s2 + $0xd0] sm:$0xff]
  %129 = vset.pattern.permute.xlu0 0
  %130 = vperm.xlu0 %129, %v101
  %v131 = vpop.permute.xlu0 %130
  %134 = vset.pattern.permute.xlu0 0
  %135 = vperm.xlu0 %134, %v102
  %v136 = vpop.permute.xlu0 %135
  %139 = vset.pattern.permute.xlu0 0
  %140 = vperm.xlu0 %139, %v103
  %v141 = vpop.permute.xlu0 %140
  %144 = vset.pattern.permute.xlu0 0
  %145 = vperm.xlu0 %144, %v104
  %v146 = vpop.permute.xlu0 %145
  %149 = vset.pattern.permute.xlu0 0
  %150 = vperm.xlu0 %149, %v105
  %v151 = vpop.permute.xlu0 %150
  %154 = vset.pattern.permute.xlu0 0
  %155 = vperm.xlu0 %154, %v106
  %v156 = vpop.permute.xlu0 %155
  %159 = vset.pattern.permute.xlu0 0
  %160 = vperm.xlu0 %159, %v107
  %v161 = vpop.permute.xlu0 %160
  %164 = vset.pattern.permute.xlu0 0
  %165 = vperm.xlu0 %164, %v108
  %v166 = vpop.permute.xlu0 %165
  %169 = vset.pattern.permute.xlu0 0
  %170 = vperm.xlu0 %169, %v109
  %v171 = vpop.permute.xlu0 %170
  %174 = vset.pattern.permute.xlu0 0
  %175 = vperm.xlu0 %174, %v110
  %v176 = vpop.permute.xlu0 %175
  %179 = vset.pattern.permute.xlu0 0
  %180 = vperm.xlu0 %179, %v111
  %v181 = vpop.permute.xlu0 %180
  %184 = vset.pattern.permute.xlu0 0
  %185 = vperm.xlu0 %184, %v112
  %v186 = vpop.permute.xlu0 %185
  %189 = vset.pattern.permute.xlu0 0
  %190 = vperm.xlu0 %189, %v113
  %v191 = vpop.permute.xlu0 %190
  %194 = vset.pattern.permute.xlu0 0
  %195 = vperm.xlu0 %194, %v114
  %v196 = vpop.permute.xlu0 %195
  %199 = vset.pattern.permute.xlu0 0
  %200 = vperm.xlu0 %199, %v115
  %v201 = vpop.permute.xlu0 %200
  %204 = vset.pattern.permute.xlu0 0
  %205 = vperm.xlu0 %204, %v116
  %v206 = vpop.permute.xlu0 %205
  %209 = vset.pattern.permute.xlu0 0
  %210 = vperm.xlu0 %209, %v117
  %v211 = vpop.permute.xlu0 %210
  %214 = vset.pattern.permute.xlu0 0
  %215 = vperm.xlu0 %214, %v118
  %v216 = vpop.permute.xlu0 %215
  %219 = vset.pattern.permute.xlu0 0
  %220 = vperm.xlu0 %219, %v119
  %v221 = vpop.permute.xlu0 %220
  %224 = vset.pattern.permute.xlu0 0
  %225 = vperm.xlu0 %224, %v120
  %v226 = vpop.permute.xlu0 %225
  %229 = vset.pattern.permute.xlu0 0
  %230 = vperm.xlu0 %229, %v121
  %v231 = vpop.permute.xlu0 %230
  %234 = vset.pattern.permute.xlu0 0
  %235 = vperm.xlu0 %234, %v122
  %v236 = vpop.permute.xlu0 %235
  %239 = vset.pattern.permute.xlu0 0
  %240 = vperm.xlu0 %239, %v123
  %v241 = vpop.permute.xlu0 %240
  %244 = vset.pattern.permute.xlu0 0
  %245 = vperm.xlu0 %244, %v124
  %v246 = vpop.permute.xlu0 %245
  %249 = vset.pattern.permute.xlu0 0
  %250 = vperm.xlu0 %249, %v125
  %v251 = vpop.permute.xlu0 %250
  %254 = vset.pattern.permute.xlu0 0
  %255 = vperm.xlu0 %254, %v126
  %v256 = vpop.permute.xlu0 %255
  %259 = vset.pattern.permute.xlu0 0
  %260 = vperm.xlu0 %259, %v127
  %v261 = vpop.permute.xlu0 %260
  %v317 = vunpack.c.l.b16 %v15
  %v318 = vunpack.c.h.b16 %v15
  %v319 = vunpack.c.l.b16 %v16
  %v320 = vunpack.c.l.b16 %v17
  %v321 = vunpack.c.h.b16 %v17
  %v322 = vunpack.c.l.b16 %v18
  %v323 = vunpack.c.l.b16 %v19
  %v324 = vunpack.c.h.b16 %v19
  %v325 = vunpack.c.l.b16 %v20
  %v326 = vunpack.c.l.b16 %v21
  %v327 = vunpack.c.h.b16 %v21
  %v328 = vunpack.c.l.b16 %v22
  %v329 = vunpack.c.l.b16 %v23
  %v330 = vunpack.c.h.b16 %v23
  %v331 = vunpack.c.l.b16 %v24
  %v332 = vunpack.c.l.b16 %v25
  %v333 = vunpack.c.h.b16 %v25
  %v334 = vunpack.c.l.b16 %v26
  %v335 = vunpack.c.l.b16 %v27
  %v336 = vunpack.c.h.b16 %v27
  %v337 = vunpack.c.l.b16 %v28
  %v338 = vunpack.c.l.b16 %v29
  %v339 = vunpack.c.h.b16 %v29
  %v340 = vunpack.c.l.b16 %v30
  %v341 = vunpack.c.l.b16 %v31
  %v342 = vunpack.c.h.b16 %v31
  %v343 = vunpack.c.l.b16 %v32
  %v344 = vunpack.c.l.b16 %v33
  %v345 = vunpack.c.h.b16 %v33
  %v346 = vunpack.c.l.b16 %v34
  %v347 = vunpack.c.l.b16 %v35
  %v348 = vunpack.c.h.b16 %v35
  %v349 = vunpack.c.l.b16 %v36
  %v350 = vunpack.c.l.b16 %v37
  %v351 = vunpack.c.h.b16 %v37
  %v352 = vunpack.c.l.b16 %v38
  %v353 = vunpack.c.l.b16 %v39
  %v354 = vunpack.c.h.b16 %v39
  %v355 = vunpack.c.l.b16 %v40
  %v356 = vunpack.c.l.b16 %v41
  %v357 = vunpack.c.h.b16 %v41
  %v358 = vunpack.c.l.b16 %v42
  %v359 = vunpack.c.l.b16 %v43
  %v360 = vunpack.c.h.b16 %v43
  %v361 = vunpack.c.l.b16 %v44
  %v362 = vunpack.c.l.b16 %v45
  %v363 = vunpack.c.h.b16 %v45
  %v364 = vunpack.c.l.b16 %v46
  %v365 = vunpack.c.l.b16 %v47
  %v366 = vunpack.c.h.b16 %v47
  %v367 = vunpack.c.l.b16 %v48
  %v368 = vunpack.c.l.b16 %v49
  %v369 = vunpack.c.h.b16 %v49
  %v370 = vunpack.c.l.b16 %v50
  %v371 = vunpack.c.l.b16 %v51
  %v372 = vunpack.c.h.b16 %v51
  %v373 = vunpack.c.l.b16 %v52
  %v374 = vunpack.c.l.b16 %v53
  %v375 = vunpack.c.h.b16 %v53
  %v376 = vunpack.c.l.b16 %v54
  %v377 = vunpack.c.l.b16 %v55
  %v378 = vunpack.c.h.b16 %v55
  %v379 = vunpack.c.l.b16 %v56
  %v380 = vunpack.c.l.b16 %v57
  %v381 = vunpack.c.h.b16 %v57
  %v382 = vunpack.c.l.b16 %v58
  %v383 = vunpack.c.l.b16 %v59
  %v384 = vunpack.c.h.b16 %v59
  %v385 = vunpack.c.l.b16 %v60
  %v386 = vunpack.c.l.b16 %v61
  %v387 = vunpack.c.h.b16 %v61
  %v388 = vunpack.c.l.b16 %v62
  %v389 = vunpack.c.l.b16 %v63
  %v390 = vunpack.c.h.b16 %v63
  %v391 = vunpack.c.l.b16 %v64
  %v392 = vunpack.c.l.b16 %v65
  %v393 = vunpack.c.h.b16 %v65
  %v394 = vunpack.c.l.b16 %v66
  %v395 = vunpack.c.l.b16 %v67
  %v396 = vunpack.c.h.b16 %v67
  %v397 = vunpack.c.l.b16 %v68
  %v398 = vpack.c.b16 %v320, %v317
  %v399 = vpack.c.b16 %v321, %v318
  %v400 = vpack.c.b16 %v322, %v319
  %v401 = vpack.c.b16 %v326, %v323
  %v402 = vpack.c.b16 %v327, %v324
  %v403 = vpack.c.b16 %v328, %v325
  %v404 = vpack.c.b16 %v332, %v329
  %v405 = vpack.c.b16 %v333, %v330
  %v406 = vpack.c.b16 %v334, %v331
  %v407 = vpack.c.b16 %v338, %v335
  %v408 = vpack.c.b16 %v339, %v336
  %v409 = vpack.c.b16 %v340, %v337
  %v410 = vpack.c.b16 %v344, %v341
  %v411 = vpack.c.b16 %v345, %v342
  %v412 = vpack.c.b16 %v346, %v343
  %v413 = vpack.c.b16 %v350, %v347
  %v414 = vpack.c.b16 %v351, %v348
  %v415 = vpack.c.b16 %v352, %v349
  %v416 = vpack.c.b16 %v356, %v353
  %v417 = vpack.c.b16 %v357, %v354
  %v418 = vpack.c.b16 %v358, %v355
  %v419 = vpack.c.b16 %v362, %v359
  %v420 = vpack.c.b16 %v363, %v360
  %v421 = vpack.c.b16 %v364, %v361
  %v422 = vpack.c.b16 %v368, %v365
  %v423 = vpack.c.b16 %v369, %v366
  %v424 = vpack.c.b16 %v370, %v367
  %v425 = vpack.c.b16 %v374, %v371
  %v426 = vpack.c.b16 %v375, %v372
  %v427 = vpack.c.b16 %v376, %v373
  %v428 = vpack.c.b16 %v380, %v377
  %v429 = vpack.c.b16 %v381, %v378
  %v430 = vpack.c.b16 %v382, %v379
  %v431 = vpack.c.b16 %v386, %v383
  %v432 = vpack.c.b16 %v387, %v384
  %v433 = vpack.c.b16 %v388, %v385
  %v434 = vpack.c.b16 %v392, %v389
  %v435 = vpack.c.b16 %v393, %v390
  %v436 = vpack.c.b16 %v394, %v391
  %v437 = vpack.c.b16 %v395, %v395
  %v438 = vpack.c.b16 %v396, %v396
  %v439 = vpack.c.b16 %v397, %v397
  %v500 = vunpack.c.l.b16 %v69
  %v501 = vunpack.c.h.b16 %v69
  %v502 = vunpack.c.l.b16 %v70
  %v503 = vunpack.c.l.b16 %v71
  %v504 = vunpack.c.h.b16 %v71
  %v505 = vunpack.c.l.b16 %v72
  %v506 = vunpack.c.l.b16 %v73
  %v507 = vunpack.c.h.b16 %v73
  %v508 = vunpack.c.l.b16 %v74
  %v509 = vunpack.c.l.b16 %v75
  %v510 = vunpack.c.h.b16 %v75
  %v511 = vunpack.c.l.b16 %v76
  %v512 = vunpack.c.l.b16 %v77
  %v513 = vunpack.c.h.b16 %v77
  %v514 = vunpack.c.l.b16 %v78
  %v515 = vunpack.c.l.b16 %v79
  %v516 = vunpack.c.h.b16 %v79
  %v517 = vunpack.c.l.b16 %v80
  %v518 = vunpack.c.l.b16 %v81
  %v519 = vunpack.c.h.b16 %v81
  %v520 = vunpack.c.l.b16 %v82
  %v521 = vunpack.c.l.b16 %v83
  %v522 = vunpack.c.h.b16 %v83
  %v523 = vunpack.c.l.b16 %v84
  %v524 = vunpack.c.l.b16 %v85
  %v525 = vunpack.c.h.b16 %v85
  %v526 = vunpack.c.l.b16 %v86
  %v527 = vunpack.c.l.b16 %v87
  %v528 = vunpack.c.h.b16 %v87
  %v529 = vunpack.c.l.b16 %v88
  %v530 = vunpack.c.l.b16 %v89
  %v531 = vunpack.c.h.b16 %v89
  %v532 = vunpack.c.l.b16 %v90
  %v533 = vunpack.c.l.b16 %v91
  %v534 = vunpack.c.h.b16 %v91
  %v535 = vunpack.c.l.b16 %v92
  %v536 = vunpack.c.l.b16 %v93
  %v537 = vunpack.c.h.b16 %v93
  %v538 = vunpack.c.l.b16 %v94
  %v539 = vunpack.c.l.b16 %v95
  %v540 = vunpack.c.h.b16 %v95
  %v541 = vunpack.c.l.b16 %v96
  %v542 = vunpack.c.l.b16 %v97
  %v543 = vunpack.c.h.b16 %v97
  %v544 = vunpack.c.l.b16 %v98
  %v545 = vunpack.c.l.b16 %v99
  %v546 = vunpack.c.h.b16 %v99
  %v547 = vunpack.c.l.b16 %v100
  %v548 = vpack.c.b16 %v503, %v500
  %v549 = vpack.c.b16 %v504, %v501
  %v550 = vpack.c.b16 %v505, %v502
  %v551 = vpack.c.b16 %v509, %v506
  %v552 = vpack.c.b16 %v510, %v507
  %v553 = vpack.c.b16 %v511, %v508
  %v554 = vpack.c.b16 %v515, %v512
  %v555 = vpack.c.b16 %v516, %v513
  %v556 = vpack.c.b16 %v517, %v514
  %v557 = vpack.c.b16 %v521, %v518
  %v558 = vpack.c.b16 %v522, %v519
  %v559 = vpack.c.b16 %v523, %v520
  %v560 = vpack.c.b16 %v527, %v524
  %v561 = vpack.c.b16 %v528, %v525
  %v562 = vpack.c.b16 %v529, %v526
  %v563 = vpack.c.b16 %v533, %v530
  %v564 = vpack.c.b16 %v534, %v531
  %v565 = vpack.c.b16 %v535, %v532
  %v566 = vpack.c.b16 %v539, %v536
  %v567 = vpack.c.b16 %v540, %v537
  %v568 = vpack.c.b16 %v541, %v538
  %v569 = vpack.c.b16 %v545, %v542
  %v570 = vpack.c.b16 %v546, %v543
  %v571 = vpack.c.b16 %v547, %v544
  %vm588 = vcmask 261120
  %v590 = vsel %vm588, %v400, 0
  %v593 = vsel %vm588, %v403, 0
  %v596 = vsel %vm588, %v406, 0
  %v599 = vsel %vm588, %v409, 0
  %v602 = vsel %vm588, %v412, 0
  %v605 = vsel %vm588, %v415, 0
  %v608 = vsel %vm588, %v418, 0
  %v611 = vsel %vm588, %v421, 0
  %v614 = vsel %vm588, %v424, 0
  %v617 = vsel %vm588, %v427, 0
  %v620 = vsel %vm588, %v430, 0
  %v623 = vsel %vm588, %v433, 0
  %v626 = vsel %vm588, %v436, 0
  %v629 = vsel %vm588, %v439, 0
  %v632 = vsel %vm588, %v550, 0
  %v635 = vsel %vm588, %v553, 0
  %v638 = vsel %vm588, %v556, 0
  %v641 = vsel %vm588, %v559, 0
  %v644 = vsel %vm588, %v562, 0
  %v647 = vsel %vm588, %v565, 0
  %v650 = vsel %vm588, %v568, 0
  %v653 = vsel %vm588, %v571, 0
  %655 = vmatprep.subr.bf16.mxu0 %v570
  %656 = vmatpush1.bf16.xpose.msra.mxu0 %v569
  %657 = vmatprep.subr.bf16.mxu0 %v567
  %658 = vmatpush1.bf16.xpose.msra.mxu0 %v566
  %659 = vmatprep.subr.bf16.mxu0 %v564
  %660 = vmatpush1.bf16.xpose.msra.mxu0 %v563
  %661 = vmatprep.subr.bf16.mxu0 %v561
  %662 = vmatpush1.bf16.xpose.msra.mxu0 %v560
  %663 = vmatprep.subr.bf16.mxu0 %v558
  %664 = vmatpush1.bf16.xpose.msra.mxu0 %v557
  %665 = vmatprep.subr.bf16.mxu0 %v555
  %666 = vmatpush1.bf16.xpose.msra.mxu0 %v554
  %667 = vmatprep.subr.bf16.mxu0 %v552
  %668 = vmatpush1.bf16.xpose.msra.mxu0 %v551
  %669 = vmatprep.subr.bf16.mxu0 %v549
  %670 = vmatpush1.bf16.xpose.msra.mxu0 %v548
  %671 = vmatprep.subr.bf16.mxu0 0
  %672 = vmatpush2.bf16.xpose.msra.mxu0 0
  %673 = vmatprep.subr.bf16.mxu0 0
  %674 = vmatpush2.bf16.xpose.msra.mxu0 0
  %675 = vmatprep.subr.bf16.mxu0 0
  %676 = vmatpush2.bf16.xpose.msra.mxu0 0
  %677 = vmatprep.subr.bf16.mxu0 0
  %678 = vmatpush2.bf16.xpose.msra.mxu0 0
  %679 = vmatprep.subr.bf16.mxu0 0
  %680 = vmatpush2.bf16.xpose.msra.mxu0 0
  %681 = vmatprep.subr.bf16.mxu0 0
  %682 = vmatpush2.bf16.xpose.msra.mxu0 0
  %683 = vmatprep.subr.bf16.mxu0 0
  %684 = vmatpush2.bf16.xpose.msra.mxu0 0
  %685 = vmatprep.subr.bf16.mxu0 0
  %686 = vmatpush2.bf16.xpose.msra.mxu0 0
  %687 = vmatprep.mubr.bf16.mxu0 %v399
  %688 = vmatmul.mubr.bf16.gmra.mxu0 %v398
  %v689 = vpop.f32.mrf.mxu0
  %v690 = vadd.f32 %v131, %v689
  %v691 = vpop.f32.mrf.mxu0
  %v692 = vpop.f32.mrf.mxu0
  %v693 = vadd.f32 %v136, %v692
  %v694 = vpop.f32.mrf.mxu0
  %695 = vmatprep.mubr.bf16.mxu0 %v402
  %696 = vmatmul.mubr.bf16.gmra.mxu0 %v401
  %v697 = vpop.f32.mrf.mxu0
  %v698 = vadd.f32 %v141, %v697
  %v699 = vpop.f32.mrf.mxu0
  %v700 = vpop.f32.mrf.mxu0
  %v701 = vadd.f32 %v146, %v700
  %v702 = vpop.f32.mrf.mxu0
  %703 = vmatprep.mubr.bf16.mxu0 %v405
  %704 = vmatmul.mubr.bf16.gmra.mxu0 %v404
  %v705 = vpop.f32.mrf.mxu0
  %v706 = vadd.f32 %v151, %v705
  %v707 = vpop.f32.mrf.mxu0
  %v708 = vpop.f32.mrf.mxu0
  %v709 = vadd.f32 %v156, %v708
  %v710 = vpop.f32.mrf.mxu0
  %711 = vmatprep.mubr.bf16.mxu0 %v408
  %712 = vmatmul.mubr.bf16.gmra.mxu0 %v407
  %v713 = vpop.f32.mrf.mxu0
  %v714 = vadd.f32 %v161, %v713
  %v715 = vpop.f32.mrf.mxu0
  %v716 = vpop.f32.mrf.mxu0
  %v717 = vadd.f32 %v166, %v716
  %v718 = vpop.f32.mrf.mxu0
  %719 = vmatprep.mubr.bf16.mxu0 %v411
  %720 = vmatmul.mubr.bf16.gmra.mxu0 %v410
  %v721 = vpop.f32.mrf.mxu0
  %v722 = vadd.f32 %v171, %v721
  %v723 = vpop.f32.mrf.mxu0
  %v724 = vpop.f32.mrf.mxu0
  %v725 = vadd.f32 %v176, %v724
  %v726 = vpop.f32.mrf.mxu0
  %727 = vmatprep.mubr.bf16.mxu0 %v414
  %728 = vmatmul.mubr.bf16.gmra.mxu0 %v413
  %v729 = vpop.f32.mrf.mxu0
  %v730 = vadd.f32 %v181, %v729
  %v731 = vpop.f32.mrf.mxu0
  %v732 = vpop.f32.mrf.mxu0
  %v733 = vadd.f32 %v186, %v732
  %v734 = vpop.f32.mrf.mxu0
  %735 = vmatprep.mubr.bf16.mxu0 %v417
  %736 = vmatmul.mubr.bf16.gmra.mxu0 %v416
  %v737 = vpop.f32.mrf.mxu0
  %v738 = vadd.f32 %v191, %v737
  %v739 = vpop.f32.mrf.mxu0
  %v740 = vpop.f32.mrf.mxu0
  %v741 = vadd.f32 %v196, %v740
  %v742 = vpop.f32.mrf.mxu0
  %743 = vmatprep.mubr.bf16.mxu0 %v420
  %744 = vmatmul.mubr.bf16.gmra.mxu0 %v419
  %v745 = vpop.f32.mrf.mxu0
  %v746 = vadd.f32 %v201, %v745
  %v747 = vpop.f32.mrf.mxu0
  %v748 = vpop.f32.mrf.mxu0
  %v749 = vadd.f32 %v206, %v748
  %v750 = vpop.f32.mrf.mxu0
  %751 = vmatprep.mubr.bf16.mxu0 %v423
  %752 = vmatmul.mubr.bf16.gmra.mxu0 %v422
  %v753 = vpop.f32.mrf.mxu0
  %v754 = vadd.f32 %v211, %v753
  %v755 = vpop.f32.mrf.mxu0
  %v756 = vpop.f32.mrf.mxu0
  %v757 = vadd.f32 %v216, %v756
  %v758 = vpop.f32.mrf.mxu0
  %759 = vmatprep.mubr.bf16.mxu0 %v426
  %760 = vmatmul.mubr.bf16.gmra.mxu0 %v425
  %v761 = vpop.f32.mrf.mxu0
  %v762 = vadd.f32 %v221, %v761
  %v763 = vpop.f32.mrf.mxu0
  %v764 = vpop.f32.mrf.mxu0
  %v765 = vadd.f32 %v226, %v764
  %v766 = vpop.f32.mrf.mxu0
  %767 = vmatprep.mubr.bf16.mxu0 %v429
  %768 = vmatmul.mubr.bf16.gmra.mxu0 %v428
  %v769 = vpop.f32.mrf.mxu0
  %v770 = vadd.f32 %v231, %v769
  %v771 = vpop.f32.mrf.mxu0
  %v772 = vpop.f32.mrf.mxu0
  %v773 = vadd.f32 %v236, %v772
  %v774 = vpop.f32.mrf.mxu0
  %775 = vmatprep.mubr.bf16.mxu0 %v432
  %776 = vmatmul.mubr.bf16.gmra.mxu0 %v431
  %v777 = vpop.f32.mrf.mxu0
  %v778 = vadd.f32 %v241, %v777
  %v779 = vpop.f32.mrf.mxu0
  %v780 = vpop.f32.mrf.mxu0
  %v781 = vadd.f32 %v246, %v780
  %v782 = vpop.f32.mrf.mxu0
  %783 = vmatprep.mubr.bf16.mxu0 %v435
  %784 = vmatmul.mubr.bf16.gmra.mxu0 %v434
  %v785 = vpop.f32.mrf.mxu0
  %v786 = vadd.f32 %v251, %v785
  %v787 = vpop.f32.mrf.mxu0
  %v788 = vpop.f32.mrf.mxu0
  %v789 = vadd.f32 %v256, %v788
  %v790 = vpop.f32.mrf.mxu0
  %791 = vmatprep.mubr.bf16.mxu0 %v438
  %792 = vmatmul.mubr.bf16.gmra.mxu0 %v437
  %v793 = vpop.f32.mrf.mxu0
  %v794 = vadd.f32 %v261, %v793
  %v795 = vpop.f32.mrf.mxu0
  %v796 = vpop.f32.mrf.mxu0
  %v797 = vpop.f32.mrf.mxu0
  %798 = vdwg.mxu0
  %799 = vmatprep.subr.bf16.mxu0 0
  %800 = vmatpush1.bf16.xpose.msra.mxu0 %v653
  %801 = vmatprep.subr.bf16.mxu0 0
  %802 = vmatpush1.bf16.xpose.msra.mxu0 %v650
  %803 = vmatprep.subr.bf16.mxu0 0
  %804 = vmatpush1.bf16.xpose.msra.mxu0 %v647
  %805 = vmatprep.subr.bf16.mxu0 0
  %806 = vmatpush1.bf16.xpose.msra.mxu0 %v644
  %807 = vmatprep.subr.bf16.mxu0 0
  %808 = vmatpush1.bf16.xpose.msra.mxu0 %v641
  %809 = vmatprep.subr.bf16.mxu0 0
  %810 = vmatpush1.bf16.xpose.msra.mxu0 %v638
  %811 = vmatprep.subr.bf16.mxu0 0
  %812 = vmatpush1.bf16.xpose.msra.mxu0 %v635
  %813 = vmatprep.subr.bf16.mxu0 0
  %814 = vmatpush1.bf16.xpose.msra.mxu0 %v632
  %815 = vmatprep.subr.bf16.mxu0 0
  %816 = vmatpush2.bf16.xpose.msra.mxu0 0
  %817 = vmatprep.subr.bf16.mxu0 0
  %818 = vmatpush2.bf16.xpose.msra.mxu0 0
  %819 = vmatprep.subr.bf16.mxu0 0
  %820 = vmatpush2.bf16.xpose.msra.mxu0 0
  %821 = vmatprep.subr.bf16.mxu0 0
  %822 = vmatpush2.bf16.xpose.msra.mxu0 0
  %823 = vmatprep.subr.bf16.mxu0 0
  %824 = vmatpush2.bf16.xpose.msra.mxu0 0
  %825 = vmatprep.subr.bf16.mxu0 0
  %826 = vmatpush2.bf16.xpose.msra.mxu0 0
  %827 = vmatprep.subr.bf16.mxu0 0
  %828 = vmatpush2.bf16.xpose.msra.mxu0 0
  %829 = vmatprep.subr.bf16.mxu0 0
  %830 = vmatpush2.bf16.xpose.msra.mxu0 0
  %831 = vmatprep.mubr.bf16.mxu0 0
  %832 = vmatmul.mubr.bf16.gmra.mxu0 %v590
  %v833 = vpop.f32.mrf.mxu0
  %v834 = vadd.f32 %v690, %v833
  %v835 = vpop.f32.mrf.mxu0
  %v836 = vpop.f32.mrf.mxu0
  %v837 = vadd.f32 %v693, %v836
  %v838 = vpop.f32.mrf.mxu0
  %839 = vmatprep.mubr.bf16.mxu0 0
  %840 = vmatmul.mubr.bf16.gmra.mxu0 %v593
  %v841 = vpop.f32.mrf.mxu0
  %v842 = vadd.f32 %v698, %v841
  %v843 = vpop.f32.mrf.mxu0
  %v844 = vpop.f32.mrf.mxu0
  %v845 = vadd.f32 %v701, %v844
  %v846 = vpop.f32.mrf.mxu0
  %847 = vmatprep.mubr.bf16.mxu0 0
  %848 = vmatmul.mubr.bf16.gmra.mxu0 %v596
  %v849 = vpop.f32.mrf.mxu0
  %v850 = vadd.f32 %v706, %v849
  %v851 = vpop.f32.mrf.mxu0
  %v852 = vpop.f32.mrf.mxu0
  %v853 = vadd.f32 %v709, %v852
  %v854 = vpop.f32.mrf.mxu0
  %855 = vmatprep.mubr.bf16.mxu0 0
  %856 = vmatmul.mubr.bf16.gmra.mxu0 %v599
  %v857 = vpop.f32.mrf.mxu0
  %v858 = vadd.f32 %v714, %v857
  %v859 = vpop.f32.mrf.mxu0
  %v860 = vpop.f32.mrf.mxu0
  %v861 = vadd.f32 %v717, %v860
  %v862 = vpop.f32.mrf.mxu0
  %863 = vmatprep.mubr.bf16.mxu0 0
  %864 = vmatmul.mubr.bf16.gmra.mxu0 %v602
  %v865 = vpop.f32.mrf.mxu0
  %v866 = vadd.f32 %v722, %v865
  %v867 = vpop.f32.mrf.mxu0
  %v868 = vpop.f32.mrf.mxu0
  %v869 = vadd.f32 %v725, %v868
  %v870 = vpop.f32.mrf.mxu0
  %871 = vmatprep.mubr.bf16.mxu0 0
  %872 = vmatmul.mubr.bf16.gmra.mxu0 %v605
  %v873 = vpop.f32.mrf.mxu0
  %v874 = vadd.f32 %v730, %v873
  %v875 = vpop.f32.mrf.mxu0
  %v876 = vpop.f32.mrf.mxu0
  %v877 = vadd.f32 %v733, %v876
  %v878 = vpop.f32.mrf.mxu0
  %879 = vmatprep.mubr.bf16.mxu0 0
  %880 = vmatmul.mubr.bf16.gmra.mxu0 %v608
  %v881 = vpop.f32.mrf.mxu0
  %v882 = vadd.f32 %v738, %v881
  %v883 = vpop.f32.mrf.mxu0
  %v884 = vpop.f32.mrf.mxu0
  %v885 = vadd.f32 %v741, %v884
  %v886 = vpop.f32.mrf.mxu0
  %887 = vmatprep.mubr.bf16.mxu0 0
  %888 = vmatmul.mubr.bf16.gmra.mxu0 %v611
  %v889 = vpop.f32.mrf.mxu0
  %v890 = vadd.f32 %v746, %v889
  %v891 = vpop.f32.mrf.mxu0
  %v892 = vpop.f32.mrf.mxu0
  %v893 = vadd.f32 %v749, %v892
  %v894 = vpop.f32.mrf.mxu0
  %895 = vmatprep.mubr.bf16.mxu0 0
  %896 = vmatmul.mubr.bf16.gmra.mxu0 %v614
  %v897 = vpop.f32.mrf.mxu0
  %v898 = vadd.f32 %v754, %v897
  %v899 = vpop.f32.mrf.mxu0
  %v900 = vpop.f32.mrf.mxu0
  %v901 = vadd.f32 %v757, %v900
  %v902 = vpop.f32.mrf.mxu0
  %903 = vmatprep.mubr.bf16.mxu0 0
  %904 = vmatmul.mubr.bf16.gmra.mxu0 %v617
  %v905 = vpop.f32.mrf.mxu0
  %v906 = vadd.f32 %v762, %v905
  %v907 = vpop.f32.mrf.mxu0
  %v908 = vpop.f32.mrf.mxu0
  %v909 = vadd.f32 %v765, %v908
  %v910 = vpop.f32.mrf.mxu0
  %911 = vmatprep.mubr.bf16.mxu0 0
  %912 = vmatmul.mubr.bf16.gmra.mxu0 %v620
  %v913 = vpop.f32.mrf.mxu0
  %v914 = vadd.f32 %v770, %v913
  %v915 = vpop.f32.mrf.mxu0
  %v916 = vpop.f32.mrf.mxu0
  %v917 = vadd.f32 %v773, %v916
  %v918 = vpop.f32.mrf.mxu0
  %919 = vmatprep.mubr.bf16.mxu0 0
  %920 = vmatmul.mubr.bf16.gmra.mxu0 %v623
  %v921 = vpop.f32.mrf.mxu0
  %v922 = vadd.f32 %v778, %v921
  %v923 = vpop.f32.mrf.mxu0
  %v924 = vpop.f32.mrf.mxu0
  %v925 = vadd.f32 %v781, %v924
  %v926 = vpop.f32.mrf.mxu0
  %927 = vmatprep.mubr.bf16.mxu0 0
  %928 = vmatmul.mubr.bf16.gmra.mxu0 %v626
  %v929 = vpop.f32.mrf.mxu0
  %v930 = vadd.f32 %v786, %v929
  %v931 = vpop.f32.mrf.mxu0
  %v932 = vpop.f32.mrf.mxu0
  %v933 = vadd.f32 %v789, %v932
  %v934 = vpop.f32.mrf.mxu0
  %935 = vmatprep.mubr.bf16.mxu0 0
  %936 = vmatmul.mubr.bf16.gmra.mxu0 %v629
  %v937 = vpop.f32.mrf.mxu0
  %v938 = vadd.f32 %v794, %v937
  %v939 = vpop.f32.mrf.mxu0
  %v940 = vpop.f32.mrf.mxu0
  %v941 = vpop.f32.mrf.mxu0
  %942 = vdwg.mxu0
  %v943 = vlaneseq
  %v944 = vshrl.u32 %v943, 7
  %v945 = vadd.s32 %v944, 8
  %v946 = vadd.s32 %v944, 16
  %v947 = vadd.s32 %v944, 24
  %v948 = vadd.s32 %v944, 32
  %v949 = vadd.s32 %v944, 40
  %v950 = vadd.s32 %v944, 48
  %v951 = vadd.s32 %v944, 56
  %v952 = vadd.s32 %v944, 64
  %v953 = vadd.s32 %v944, 72
  %v954 = vadd.s32 %v944, 80
  %v955 = vadd.s32 %v944, 88
  %v956 = vadd.s32 %v944, 96
  %v957 = vadd.s32 %v944, 104
  %v958 = vadd.s32 %v944, 112
  %v959 = vadd.s32 %v944, 120
  %v960 = vadd.s32 %v944, 128
  %v961 = vadd.s32 %v944, 136
  %v962 = vadd.s32 %v944, 144
  %v963 = vadd.s32 %v944, 152
  %v964 = vadd.s32 %v944, 160
  %v965 = vadd.s32 %v944, 168
  %v966 = vadd.s32 %v944, 176
  %v967 = vadd.s32 %v944, 184
  %v968 = vadd.s32 %v944, 192
  %v969 = vadd.s32 %v944, 200
  %v970 = vadd.s32 %v944, 208
  %v971 = vsub.f32 0.0, %v834
  %v972 = vsub.f32 0.0, %v837
  %v973 = vsub.f32 0.0, %v842
  %v974 = vsub.f32 0.0, %v845
  %v975 = vsub.f32 0.0, %v850
  %v976 = vsub.f32 0.0, %v853
  %v977 = vsub.f32 0.0, %v858
  %v978 = vsub.f32 0.0, %v861
  %v979 = vsub.f32 0.0, %v866
  %v980 = vsub.f32 0.0, %v869
  %v981 = vsub.f32 0.0, %v874
  %v982 = vsub.f32 0.0, %v877
  %v983 = vsub.f32 0.0, %v882
  %v984 = vsub.f32 0.0, %v885
  %v985 = vsub.f32 0.0, %v890
  %v986 = vsub.f32 0.0, %v893
  %v987 = vsub.f32 0.0, %v898
  %v988 = vsub.f32 0.0, %v901
  %v989 = vsub.f32 0.0, %v906
  %v990 = vsub.f32 0.0, %v909
  %v991 = vsub.f32 0.0, %v914
  %v992 = vsub.f32 0.0, %v917
  %v993 = vsub.f32 0.0, %v922
  %v994 = vsub.f32 0.0, %v925
  %v995 = vsub.f32 0.0, %v930
  %v996 = vsub.f32 0.0, %v933
  %v997 = vsub.f32 0.0, %v938
  %v998 = vmul.f32 %v971, 1.442695
  %v999 = vpow.pop %v998
  %v1000 = vmul.f32 %v972, 1.442695
  %v1001 = vpow.pop %v1000
  %v1002 = vmul.f32 %v973, 1.442695
  %v1003 = vpow.pop %v1002
  %v1004 = vmul.f32 %v974, 1.442695
  %v1005 = vpow.pop %v1004
  %v1006 = vmul.f32 %v975, 1.442695
  %v1007 = vpow.pop %v1006
  %v1008 = vmul.f32 %v976, 1.442695
  %v1009 = vpow.pop %v1008
  %v1010 = vmul.f32 %v977, 1.442695
  %v1011 = vpow.pop %v1010
  %v1012 = vmul.f32 %v978, 1.442695
  %v1013 = vpow.pop %v1012
  %v1014 = vmul.f32 %v979, 1.442695
  %v1015 = vpow.pop %v1014
  %v1016 = vmul.f32 %v980, 1.442695
  %v1017 = vpow.pop %v1016
  %v1018 = vmul.f32 %v981, 1.442695
  %v1019 = vpow.pop %v1018
  %v1020 = vmul.f32 %v982, 1.442695
  %v1021 = vpow.pop %v1020
  %v1022 = vmul.f32 %v983, 1.442695
  %v1023 = vpow.pop %v1022
  %v1024 = vmul.f32 %v984, 1.442695
  %v1025 = vpow.pop %v1024
  %v1026 = vmul.f32 %v985, 1.442695
  %v1027 = vpow.pop %v1026
  %v1028 = vmul.f32 %v986, 1.442695
  %v1029 = vpow.pop %v1028
  %v1030 = vmul.f32 %v987, 1.442695
  %v1031 = vpow.pop %v1030
  %v1032 = vmul.f32 %v988, 1.442695
  %v1033 = vpow.pop %v1032
  %v1034 = vmul.f32 %v989, 1.442695
  %v1035 = vpow.pop %v1034
  %v1036 = vmul.f32 %v990, 1.442695
  %v1037 = vpow.pop %v1036
  %v1038 = vmul.f32 %v991, 1.442695
  %v1039 = vpow.pop %v1038
  %v1040 = vmul.f32 %v992, 1.442695
  %v1041 = vpow.pop %v1040
  %v1042 = vmul.f32 %v993, 1.442695
  %v1043 = vpow.pop %v1042
  %v1044 = vmul.f32 %v994, 1.442695
  %v1045 = vpow.pop %v1044
  %v1046 = vmul.f32 %v995, 1.442695
  %v1047 = vpow.pop %v1046
  %v1048 = vmul.f32 %v996, 1.442695
  %v1049 = vpow.pop %v1048
  %v1050 = vmul.f32 %v997, 1.442695
  %v1051 = vpow.pop %v1050
  %v1052 = vadd.f32 %v999, 1.0
  %v1053 = vadd.f32 %v1001, 1.0
  %v1054 = vadd.f32 %v1003, 1.0
  %v1055 = vadd.f32 %v1005, 1.0
  %v1056 = vadd.f32 %v1007, 1.0
  %v1057 = vadd.f32 %v1009, 1.0
  %v1058 = vadd.f32 %v1011, 1.0
  %v1059 = vadd.f32 %v1013, 1.0
  %v1060 = vadd.f32 %v1015, 1.0
  %v1061 = vadd.f32 %v1017, 1.0
  %v1062 = vadd.f32 %v1019, 1.0
  %v1063 = vadd.f32 %v1021, 1.0
  %v1064 = vadd.f32 %v1023, 1.0
  %v1065 = vadd.f32 %v1025, 1.0
  %v1066 = vadd.f32 %v1027, 1.0
  %v1067 = vadd.f32 %v1029, 1.0
  %v1068 = vadd.f32 %v1031, 1.0
  %v1069 = vadd.f32 %v1033, 1.0
  %v1070 = vadd.f32 %v1035, 1.0
  %v1071 = vadd.f32 %v1037, 1.0
  %v1072 = vadd.f32 %v1039, 1.0
  %v1073 = vadd.f32 %v1041, 1.0
  %v1074 = vadd.f32 %v1043, 1.0
  %v1075 = vadd.f32 %v1045, 1.0
  %v1076 = vadd.f32 %v1047, 1.0
  %v1077 = vadd.f32 %v1049, 1.0
  %v1078 = vadd.f32 %v1051, 1.0
  %v1079 = vrcp.pop %v1052
  %v1080 = vmul.f32 1.0, %v1079
  %v1081 = vrcp.pop %v1053
  %v1082 = vmul.f32 1.0, %v1081
  %v1083 = vrcp.pop %v1054
  %v1084 = vmul.f32 1.0, %v1083
  %v1085 = vrcp.pop %v1055
  %v1086 = vmul.f32 1.0, %v1085
  %v1087 = vrcp.pop %v1056
  %v1088 = vmul.f32 1.0, %v1087
  %v1089 = vrcp.pop %v1057
  %v1090 = vmul.f32 1.0, %v1089
  %v1091 = vrcp.pop %v1058
  %v1092 = vmul.f32 1.0, %v1091
  %v1093 = vrcp.pop %v1059
  %v1094 = vmul.f32 1.0, %v1093
  %v1095 = vrcp.pop %v1060
  %v1096 = vmul.f32 1.0, %v1095
  %v1097 = vrcp.pop %v1061
  %v1098 = vmul.f32 1.0, %v1097
  %v1099 = vrcp.pop %v1062
  %v1100 = vmul.f32 1.0, %v1099
  %v1101 = vrcp.pop %v1063
  %v1102 = vmul.f32 1.0, %v1101
  %v1103 = vrcp.pop %v1064
  %v1104 = vmul.f32 1.0, %v1103
  %v1105 = vrcp.pop %v1065
  %v1106 = vmul.f32 1.0, %v1105
  %v1107 = vrcp.pop %v1066
  %v1108 = vmul.f32 1.0, %v1107
  %v1109 = vrcp.pop %v1067
  %v1110 = vmul.f32 1.0, %v1109
  %v1111 = vrcp.pop %v1068
  %v1112 = vmul.f32 1.0, %v1111
  %v1113 = vrcp.pop %v1069
  %v1114 = vmul.f32 1.0, %v1113
  %v1115 = vrcp.pop %v1070
  %v1116 = vmul.f32 1.0, %v1115
  %v1117 = vrcp.pop %v1071
  %v1118 = vmul.f32 1.0, %v1117
  %v1119 = vrcp.pop %v1072
  %v1120 = vmul.f32 1.0, %v1119
  %v1121 = vrcp.pop %v1073
  %v1122 = vmul.f32 1.0, %v1121
  %v1123 = vrcp.pop %v1074
  %v1124 = vmul.f32 1.0, %v1123
  %v1125 = vrcp.pop %v1075
  %v1126 = vmul.f32 1.0, %v1125
  %v1127 = vrcp.pop %v1076
  %v1128 = vmul.f32 1.0, %v1127
  %v1129 = vrcp.pop %v1077
  %v1130 = vmul.f32 1.0, %v1129
  %v1131 = vrcp.pop %v1078
  %v1132 = vmul.f32 1.0, %v1131
  %vm1133 = vcmp.ge.s32.totalorder %v944, 144
  %vm1134 = vcmp.ge.s32.totalorder %v945, 144
  %vm1135 = vcmp.ge.s32.totalorder %v946, 144
  %vm1136 = vcmp.ge.s32.totalorder %v947, 144
  %vm1137 = vcmp.ge.s32.totalorder %v948, 144
  %vm1138 = vcmp.ge.s32.totalorder %v949, 144
  %vm1139 = vcmp.ge.s32.totalorder %v950, 144
  %vm1140 = vcmp.ge.s32.totalorder %v951, 144
  %vm1141 = vcmp.ge.s32.totalorder %v952, 144
  %vm1142 = vcmp.ge.s32.totalorder %v953, 144
  %vm1143 = vcmp.ge.s32.totalorder %v954, 144
  %vm1144 = vcmp.ge.s32.totalorder %v955, 144
  %vm1145 = vcmp.ge.s32.totalorder %v956, 144
  %vm1146 = vcmp.ge.s32.totalorder %v957, 144
  %vm1147 = vcmp.ge.s32.totalorder %v958, 144
  %vm1148 = vcmp.ge.s32.totalorder %v959, 144
  %vm1149 = vcmp.ge.s32.totalorder %v960, 144
  %vm1150 = vcmp.ge.s32.totalorder %v961, 144
  %vm1151 = vcmp.ge.s32.totalorder %v962, 144
  %vm1152 = vcmp.ge.s32.totalorder %v963, 144
  %vm1153 = vcmp.ge.s32.totalorder %v964, 144
  %vm1154 = vcmp.ge.s32.totalorder %v965, 144
  %vm1155 = vcmp.ge.s32.totalorder %v966, 144
  %vm1156 = vcmp.ge.s32.totalorder %v967, 144
  %vm1157 = vcmp.ge.s32.totalorder %v968, 144
  %vm1158 = vcmp.ge.s32.totalorder %v969, 144
  %vm1159 = vcmp.ge.s32.totalorder %v970, 144
  %v1160 = vsel %vm1133, %v1080, %v834
  %v1161 = vsel %vm1134, %v1082, %v837
  %v1162 = vsel %vm1135, %v1084, %v842
  %v1163 = vsel %vm1136, %v1086, %v845
  %v1164 = vsel %vm1137, %v1088, %v850
  %v1165 = vsel %vm1138, %v1090, %v853
  %v1166 = vsel %vm1139, %v1092, %v858
  %v1167 = vsel %vm1140, %v1094, %v861
  %v1168 = vsel %vm1141, %v1096, %v866
  %v1169 = vsel %vm1142, %v1098, %v869
  %v1170 = vsel %vm1143, %v1100, %v874
  %v1171 = vsel %vm1144, %v1102, %v877
  %v1172 = vsel %vm1145, %v1104, %v882
  %v1173 = vsel %vm1146, %v1106, %v885
  %v1174 = vsel %vm1147, %v1108, %v890
  %v1175 = vsel %vm1148, %v1110, %v893
  %v1176 = vsel %vm1149, %v1112, %v898
  %v1177 = vsel %vm1150, %v1114, %v901
  %v1178 = vsel %vm1151, %v1116, %v906
  %v1179 = vsel %vm1152, %v1118, %v909
  %v1180 = vsel %vm1153, %v1120, %v914
  %v1181 = vsel %vm1154, %v1122, %v917
  %v1182 = vsel %vm1155, %v1124, %v922
  %v1183 = vsel %vm1156, %v1126, %v925
  %v1184 = vsel %vm1157, %v1128, %v930
  %v1185 = vsel %vm1158, %v1130, %v933
  %v1186 = vsel %vm1159, %v1132, %v938
  %1187 = vst [vmem:[%s3] sm:$0xff] %v1160
  %1188 = vst [vmem:[%s3 + $0x8] sm:$0xff] %v1161
  %1189 = vst [vmem:[%s3 + $0x10] sm:$0xff] %v1162
  %1190 = vst [vmem:[%s3 + $0x18] sm:$0xff] %v1163
  %1191 = vst [vmem:[%s3 + $0x20] sm:$0xff] %v1164
  %1192 = vst [vmem:[%s3 + $0x28] sm:$0xff] %v1165
  %1193 = vst [vmem:[%s3 + $0x30] sm:$0xff] %v1166
  %1194 = vst [vmem:[%s3 + $0x38] sm:$0xff] %v1167
  %1195 = vst [vmem:[%s3 + $0x40] sm:$0xff] %v1168
  %1196 = vst [vmem:[%s3 + $0x48] sm:$0xff] %v1169
  %1197 = vst [vmem:[%s3 + $0x50] sm:$0xff] %v1170
  %1198 = vst [vmem:[%s3 + $0x58] sm:$0xff] %v1171
  %1199 = vst [vmem:[%s3 + $0x60] sm:$0xff] %v1172
  %1200 = vst [vmem:[%s3 + $0x68] sm:$0xff] %v1173
  %1201 = vst [vmem:[%s3 + $0x70] sm:$0xff] %v1174
  %1202 = vst [vmem:[%s3 + $0x78] sm:$0xff] %v1175
  %1203 = vst [vmem:[%s3 + $0x80] sm:$0xff] %v1176
  %1204 = vst [vmem:[%s3 + $0x88] sm:$0xff] %v1177
  %1205 = vst [vmem:[%s3 + $0x90] sm:$0xff] %v1178
  %1206 = vst [vmem:[%s3 + $0x98] sm:$0xff] %v1179
  %1207 = vst [vmem:[%s3 + $0xa0] sm:$0xff] %v1180
  %1208 = vst [vmem:[%s3 + $0xa8] sm:$0xff] %v1181
  %1209 = vst [vmem:[%s3 + $0xb0] sm:$0xff] %v1182
  %1210 = vst [vmem:[%s3 + $0xb8] sm:$0xff] %v1183
  %1211 = vst [vmem:[%s3 + $0xc0] sm:$0xff] %v1184
  %1212 = vst [vmem:[%s3 + $0xc8] sm:$0xff] %v1185
  %1213 = vst [vmem:[%s3 + $0xd0] sm:$0xff] %v1186
  // Predicated region
  $region14: #{alignnet_forward.46} parent=0 // pred_check
    _
  $region15: #{alignnet_forward.46} parent=0 // pred_check_branch
    %1215 = sbr.rel (0) target = $region17
  $region16: #{alignnet_forward.46} parent=0 // pred_region
    _
  $region17: #{alignnet_forward.46} parent=0 // pred_fallthru
    _
  // Predicated region
  $region18: #{alignnet_forward.46} parent=0 // pred_check
    _
  $region19: #{alignnet_forward.46} parent=0 // pred_check_branch
    %1217 = sbr.rel (0) target = $region21
  $region20: #{alignnet_forward.46} parent=0 // pred_region
    _
  $region21: #{alignnet_forward.46} parent=0 // pred_fallthru
    _

// kernel: alignnet_forward.47
$region0: #{alignnet_forward.47}
  #allocation0 [shape = 'u32[]', space=smem, size = 0x4, offset = 0x4, fixed_abs, tag = 'smem constant byte address 0x4 - core index']
  #allocation1 [shape = 'u32[144,128]{1,0:T(1,128)}', space=vmem, size = 0x12000, scoped, tag = 'internal scratch']
  %s0 = inlined_call_operand.vmem [shape: bf16[128,288], index: 0, kind: input, shape index: {}]
  %s1 = inlined_call_operand.vmem [shape: bf16[32,288], index: 1, kind: input, shape index: {}]
  %s2 = inlined_call_operand.vmem [shape: f32[32,1], index: 2, kind: input, shape index: {}]
  %s3 = inlined_call_operand.vmem [shape: f32[32,128], index: 3, kind: output, shape index: {}]
  %s4 = sld [smem:[#allocation0]]
  $region22: #{alignnet_forward.47} parent=0
    _
  %s6 = ssub.s32 1, %s4
  %s7 = scalar_select 0, %s6, %s4
  // Predicated region
  $region2: #{alignnet_forward.47} parent=0 // pred_check
    _
  $region3: #{alignnet_forward.47} parent=0 // pred_check_branch
    %9 = sbr.rel (0) target = $region5
  $region4: #{alignnet_forward.47} parent=0 // pred_region
    _
  $region5: #{alignnet_forward.47} parent=0 // pred_fallthru
    _
  // Predicated region
  $region6: #{alignnet_forward.47} parent=0 // pred_check
    _
  $region7: #{alignnet_forward.47} parent=0 // pred_check_branch
    %11 = sbr.rel (0) target = $region9
  $region8: #{alignnet_forward.47} parent=0 // pred_region
    _
  $region9: #{alignnet_forward.47} parent=0 // pred_fallthru
    _
  // Predicated region
  $region10: #{alignnet_forward.47} parent=0 // pred_check
    _
  $region11: #{alignnet_forward.47} parent=0 // pred_check_branch
    %13 = sbr.rel (0) target = $region13
  $region12: #{alignnet_forward.47} parent=0 // pred_region
    _
  $region13: #{alignnet_forward.47} parent=0 // pred_fallthru
    _
  %v15 = vld [vmem:[%s1] sm:$0xff]
  %v16 = vld [vmem:[%s1 + $0x8] sm:$0xf]
  %v17 = vld [vmem:[%s1 + $0xc] sm:$0xff]
  %v18 = vld [vmem:[%s1 + $0x14] sm:$0xf]
  %v19 = vld [vmem:[%s1 + $0x18] sm:$0xff]
  %v20 = vld [vmem:[%s1 + $0x20] sm:$0xf]
  %v21 = vld [vmem:[%s1 + $0x24] sm:$0xff]
  %v22 = vld [vmem:[%s1 + $0x2c] sm:$0xf]
  %v23 = vld [vmem:[%s0] sm:$0xff]
  %v24 = vld [vmem:[%s0 + $0x8] sm:$0xf]
  %v25 = vld [vmem:[%s0 + $0xc] sm:$0xff]
  %v26 = vld [vmem:[%s0 + $0x14] sm:$0xf]
  %v27 = vld [vmem:[%s0 + $0x18] sm:$0xff]
  %v28 = vld [vmem:[%s0 + $0x20] sm:$0xf]
  %v29 = vld [vmem:[%s0 + $0x24] sm:$0xff]
  %v30 = vld [vmem:[%s0 + $0x2c] sm:$0xf]
  %v31 = vld [vmem:[%s0 + $0x30] sm:$0xff]
  %v32 = vld [vmem:[%s0 + $0x38] sm:$0xf]
  %v33 = vld [vmem:[%s0 + $0x3c] sm:$0xff]
  %v34 = vld [vmem:[%s0 + $0x44] sm:$0xf]
  %v35 = vld [vmem:[%s0 + $0x48] sm:$0xff]
  %v36 = vld [vmem:[%s0 + $0x50] sm:$0xf]
  %v37 = vld [vmem:[%s0 + $0x54] sm:$0xff]
  %v38 = vld [vmem:[%s0 + $0x5c] sm:$0xf]
  %v39 = vld [vmem:[%s0 + $0x60] sm:$0xff]
  %v40 = vld [vmem:[%s0 + $0x68] sm:$0xf]
  %v41 = vld [vmem:[%s0 + $0x6c] sm:$0xff]
  %v42 = vld [vmem:[%s0 + $0x74] sm:$0xf]
  %v43 = vld [vmem:[%s0 + $0x78] sm:$0xff]
  %v44 = vld [vmem:[%s0 + $0x80] sm:$0xf]
  %v45 = vld [vmem:[%s0 + $0x84] sm:$0xff]
  %v46 = vld [vmem:[%s0 + $0x8c] sm:$0xf]
  %v47 = vld [vmem:[%s0 + $0x90] sm:$0xff]
  %v48 = vld [vmem:[%s0 + $0x98] sm:$0xf]
  %v49 = vld [vmem:[%s0 + $0x9c] sm:$0xff]
  %v50 = vld [vmem:[%s0 + $0xa4] sm:$0xf]
  %v51 = vld [vmem:[%s0 + $0xa8] sm:$0xff]
  %v52 = vld [vmem:[%s0 + $0xb0] sm:$0xf]
  %v53 = vld [vmem:[%s0 + $0xb4] sm:$0xff]
  %v54 = vld [vmem:[%s0 + $0xbc] sm:$0xf]
  %v55 = vld [vmem:[%s2] sm:$0xff]
  %v56 = vld [vmem:[%s2 + $0x8] sm:$0xff]
  %v57 = vld [vmem:[%s2 + $0x10] sm:$0xff]
  %v58 = vld [vmem:[%s2 + $0x18] sm:$0xff]
  %60 = vset.pattern.permute.xlu0 0
  %61 = vperm.xlu0 %60, %v55
  %v62 = vpop.permute.xlu0 %61
  %65 = vset.pattern.permute.xlu0 0
  %66 = vperm.xlu0 %65, %v56
  %v67 = vpop.permute.xlu0 %66
  %70 = vset.pattern.permute.xlu0 0
  %71 = vperm.xlu0 %70, %v57
  %v72 = vpop.permute.xlu0 %71
  %75 = vset.pattern.permute.xlu0 0
  %76 = vperm.xlu0 %75, %v58
  %v77 = vpop.permute.xlu0 %76
  %v87 = vunpack.c.l.b16 %v15
  %v88 = vunpack.c.h.b16 %v15
  %v89 = vunpack.c.l.b16 %v16
  %v90 = vunpack.c.l.b16 %v17
  %v91 = vunpack.c.h.b16 %v17
  %v92 = vunpack.c.l.b16 %v18
  %v93 = vunpack.c.l.b16 %v19
  %v94 = vunpack.c.h.b16 %v19
  %v95 = vunpack.c.l.b16 %v20
  %v96 = vunpack.c.l.b16 %v21
  %v97 = vunpack.c.h.b16 %v21
  %v98 = vunpack.c.l.b16 %v22
  %v99 = vpack.c.b16 %v90, %v87
  %v100 = vpack.c.b16 %v91, %v88
  %v101 = vpack.c.b16 %v92, %v89
  %v102 = vpack.c.b16 %v96, %v93
  %v103 = vpack.c.b16 %v97, %v94
  %v104 = vpack.c.b16 %v98, %v95
  %v141 = vunpack.c.l.b16 %v23
  %v142 = vunpack.c.h.b16 %v23
  %v143 = vunpack.c.l.b16 %v24
  %v144 = vunpack.c.l.b16 %v25
  %v145 = vunpack.c.h.b16 %v25
  %v146 = vunpack.c.l.b16 %v26
  %v147 = vunpack.c.l.b16 %v27
  %v148 = vunpack.c.h.b16 %v27
  %v149 = vunpack.c.l.b16 %v28
  %v150 = vunpack.c.l.b16 %v29
  %v151 = vunpack.c.h.b16 %v29
  %v152 = vunpack.c.l.b16 %v30
  %v153 = vunpack.c.l.b16 %v31
  %v154 = vunpack.c.h.b16 %v31
  %v155 = vunpack.c.l.b16 %v32
  %v156 = vunpack.c.l.b16 %v33
  %v157 = vunpack.c.h.b16 %v33
  %v158 = vunpack.c.l.b16 %v34
  %v159 = vunpack.c.l.b16 %v35
  %v160 = vunpack.c.h.b16 %v35
  %v161 = vunpack.c.l.b16 %v36
  %v162 = vunpack.c.l.b16 %v37
  %v163 = vunpack.c.h.b16 %v37
  %v164 = vunpack.c.l.b16 %v38
  %v165 = vunpack.c.l.b16 %v39
  %v166 = vunpack.c.h.b16 %v39
  %v167 = vunpack.c.l.b16 %v40
  %v168 = vunpack.c.l.b16 %v41
  %v169 = vunpack.c.h.b16 %v41
  %v170 = vunpack.c.l.b16 %v42
  %v171 = vunpack.c.l.b16 %v43
  %v172 = vunpack.c.h.b16 %v43
  %v173 = vunpack.c.l.b16 %v44
  %v174 = vunpack.c.l.b16 %v45
  %v175 = vunpack.c.h.b16 %v45
  %v176 = vunpack.c.l.b16 %v46
  %v177 = vunpack.c.l.b16 %v47
  %v178 = vunpack.c.h.b16 %v47
  %v179 = vunpack.c.l.b16 %v48
  %v180 = vunpack.c.l.b16 %v49
  %v181 = vunpack.c.h.b16 %v49
  %v182 = vunpack.c.l.b16 %v50
  %v183 = vunpack.c.l.b16 %v51
  %v184 = vunpack.c.h.b16 %v51
  %v185 = vunpack.c.l.b16 %v52
  %v186 = vunpack.c.l.b16 %v53
  %v187 = vunpack.c.h.b16 %v53
  %v188 = vunpack.c.l.b16 %v54
  %v189 = vpack.c.b16 %v144, %v141
  %v190 = vpack.c.b16 %v145, %v142
  %v191 = vpack.c.b16 %v146, %v143
  %v192 = vpack.c.b16 %v150, %v147
  %v193 = vpack.c.b16 %v151, %v148
  %v194 = vpack.c.b16 %v152, %v149
  %v195 = vpack.c.b16 %v156, %v153
  %v196 = vpack.c.b16 %v157, %v154
  %v197 = vpack.c.b16 %v158, %v155
  %v198 = vpack.c.b16 %v162, %v159
  %v199 = vpack.c.b16 %v163, %v160
  %v200 = vpack.c.b16 %v164, %v161
  %v201 = vpack.c.b16 %v168, %v165
  %v202 = vpack.c.b16 %v169, %v166
  %v203 = vpack.c.b16 %v170, %v167
  %v204 = vpack.c.b16 %v174, %v171
  %v205 = vpack.c.b16 %v175, %v172
  %v206 = vpack.c.b16 %v176, %v173
  %v207 = vpack.c.b16 %v180, %v177
  %v208 = vpack.c.b16 %v181, %v178
  %v209 = vpack.c.b16 %v182, %v179
  %v210 = vpack.c.b16 %v186, %v183
  %v211 = vpack.c.b16 %v187, %v184
  %v212 = vpack.c.b16 %v188, %v185
  %vm229 = vcmask 261120
  %v231 = vsel %vm229, %v101, 0
  %v234 = vsel %vm229, %v104, 0
  %v237 = vsel %vm229, %v191, 0
  %v240 = vsel %vm229, %v194, 0
  %v243 = vsel %vm229, %v197, 0
  %v246 = vsel %vm229, %v200, 0
  %v249 = vsel %vm229, %v203, 0
  %v252 = vsel %vm229, %v206, 0
  %v255 = vsel %vm229, %v209, 0
  %v258 = vsel %vm229, %v212, 0
  %260 = vmatprep.subr.bf16.mxu0 %v211
  %261 = vmatpush1.bf16.xpose.msra.mxu0 %v210
  %262 = vmatprep.subr.bf16.mxu0 %v208
  %263 = vmatpush1.bf16.xpose.msra.mxu0 %v207
  %264 = vmatprep.subr.bf16.mxu0 %v205
  %265 = vmatpush1.bf16.xpose.msra.mxu0 %v204
  %266 = vmatprep.subr.bf16.mxu0 %v202
  %267 = vmatpush1.bf16.xpose.msra.mxu0 %v201
  %268 = vmatprep.subr.bf16.mxu0 %v199
  %269 = vmatpush1.bf16.xpose.msra.mxu0 %v198
  %270 = vmatprep.subr.bf16.mxu0 %v196
  %271 = vmatpush1.bf16.xpose.msra.mxu0 %v195
  %272 = vmatprep.subr.bf16.mxu0 %v193
  %273 = vmatpush1.bf16.xpose.msra.mxu0 %v192
  %274 = vmatprep.subr.bf16.mxu0 %v190
  %275 = vmatpush1.bf16.xpose.msra.mxu0 %v189
  %276 = vmatprep.subr.bf16.mxu0 0
  %277 = vmatpush2.bf16.xpose.msra.mxu0 0
  %278 = vmatprep.subr.bf16.mxu0 0
  %279 = vmatpush2.bf16.xpose.msra.mxu0 0
  %280 = vmatprep.subr.bf16.mxu0 0
  %281 = vmatpush2.bf16.xpose.msra.mxu0 0
  %282 = vmatprep.subr.bf16.mxu0 0
  %283 = vmatpush2.bf16.xpose.msra.mxu0 0
  %284 = vmatprep.subr.bf16.mxu0 0
  %285 = vmatpush2.bf16.xpose.msra.mxu0 0
  %286 = vmatprep.subr.bf16.mxu0 0
  %287 = vmatpush2.bf16.xpose.msra.mxu0 0
  %288 = vmatprep.subr.bf16.mxu0 0
  %289 = vmatpush2.bf16.xpose.msra.mxu0 0
  %290 = vmatprep.subr.bf16.mxu0 0
  %291 = vmatpush2.bf16.xpose.msra.mxu0 0
  %292 = vmatprep.mubr.bf16.mxu0 %v100
  %293 = vmatmul.mubr.bf16.gmra.mxu0 %v99
  %v294 = vpop.f32.mrf.mxu0
  %v295 = vadd.f32 %v62, %v294
  %v296 = vpop.f32.mrf.mxu0
  %v297 = vpop.f32.mrf.mxu0
  %v298 = vadd.f32 %v67, %v297
  %v299 = vpop.f32.mrf.mxu0
  %300 = vmatprep.mubr.bf16.mxu0 %v103
  %301 = vmatmul.mubr.bf16.gmra.mxu0 %v102
  %v302 = vpop.f32.mrf.mxu0
  %v303 = vadd.f32 %v72, %v302
  %v304 = vpop.f32.mrf.mxu0
  %v305 = vpop.f32.mrf.mxu0
  %v306 = vadd.f32 %v77, %v305
  %v307 = vpop.f32.mrf.mxu0
  %308 = vdwg.mxu0
  %309 = vmatprep.subr.bf16.mxu0 0
  %310 = vmatpush1.bf16.xpose.msra.mxu0 %v258
  %311 = vmatprep.subr.bf16.mxu0 0
  %312 = vmatpush1.bf16.xpose.msra.mxu0 %v255
  %313 = vmatprep.subr.bf16.mxu0 0
  %314 = vmatpush1.bf16.xpose.msra.mxu0 %v252
  %315 = vmatprep.subr.bf16.mxu0 0
  %316 = vmatpush1.bf16.xpose.msra.mxu0 %v249
  %317 = vmatprep.subr.bf16.mxu0 0
  %318 = vmatpush1.bf16.xpose.msra.mxu0 %v246
  %319 = vmatprep.subr.bf16.mxu0 0
  %320 = vmatpush1.bf16.xpose.msra.mxu0 %v243
  %321 = vmatprep.subr.bf16.mxu0 0
  %322 = vmatpush1.bf16.xpose.msra.mxu0 %v240
  %323 = vmatprep.subr.bf16.mxu0 0
  %324 = vmatpush1.bf16.xpose.msra.mxu0 %v237
  %325 = vmatprep.subr.bf16.mxu0 0
  %326 = vmatpush2.bf16.xpose.msra.mxu0 0
  %327 = vmatprep.subr.bf16.mxu0 0
  %328 = vmatpush2.bf16.xpose.msra.mxu0 0
  %329 = vmatprep.subr.bf16.mxu0 0
  %330 = vmatpush2.bf16.xpose.msra.mxu0 0
  %331 = vmatprep.subr.bf16.mxu0 0
  %332 = vmatpush2.bf16.xpose.msra.mxu0 0
  %333 = vmatprep.subr.bf16.mxu0 0
  %334 = vmatpush2.bf16.xpose.msra.mxu0 0
  %335 = vmatprep.subr.bf16.mxu0 0
  %336 = vmatpush2.bf16.xpose.msra.mxu0 0
  %337 = vmatprep.subr.bf16.mxu0 0
  %338 = vmatpush2.bf16.xpose.msra.mxu0 0
  %339 = vmatprep.subr.bf16.mxu0 0
  %340 = vmatpush2.bf16.xpose.msra.mxu0 0
  %341 = vmatprep.mubr.bf16.mxu0 0
  %342 = vmatmul.mubr.bf16.gmra.mxu0 %v231
  %v343 = vpop.f32.mrf.mxu0
  %v344 = vadd.f32 %v295, %v343
  %v345 = vpop.f32.mrf.mxu0
  %v346 = vpop.f32.mrf.mxu0
  %v347 = vadd.f32 %v298, %v346
  %v348 = vpop.f32.mrf.mxu0
  %349 = vmatprep.mubr.bf16.mxu0 0
  %350 = vmatmul.mubr.bf16.gmra.mxu0 %v234
  %v351 = vpop.f32.mrf.mxu0
  %v352 = vadd.f32 %v303, %v351
  %v353 = vpop.f32.mrf.mxu0
  %v354 = vpop.f32.mrf.mxu0
  %v355 = vadd.f32 %v306, %v354
  %v356 = vpop.f32.mrf.mxu0
  %357 = vdwg.mxu0
  %358 = vst [vmem:[%s3] sm:$0xff] %v344
  %359 = vst [vmem:[%s3 + $0x8] sm:$0xff] %v347
  %360 = vst [vmem:[%s3 + $0x10] sm:$0xff] %v352
  %361 = vst [vmem:[%s3 + $0x18] sm:$0xff] %v355
  // Predicated region
  $region14: #{alignnet_forward.47} parent=0 // pred_check
    _
  $region15: #{alignnet_forward.47} parent=0 // pred_check_branch
    %363 = sbr.rel (0) target = $region17
  $region16: #{alignnet_forward.47} parent=0 // pred_region
    _
  $region17: #{alignnet_forward.47} parent=0 // pred_fallthru
    _
  // Predicated region
  $region18: #{alignnet_forward.47} parent=0 // pred_check
    _
  $region19: #{alignnet_forward.47} parent=0 // pred_check_branch
    %365 = sbr.rel (0) target = $region21
  $region20: #{alignnet_forward.47} parent=0 // pred_region
    _
  $region21: #{alignnet_forward.47} parent=0 // pred_fallthru
    _

// kernel: alignnet_forward.48
$region0: #{alignnet_forward.48}
  #allocation0 [shape = 'u32[]', space=smem, size = 0x4, offset = 0x4, fixed_abs, tag = 'smem constant byte address 0x4 - core index']
  #allocation1 [shape = 'u32[144,128]{1,0:T(1,128)}', space=vmem, size = 0x12000, scoped, tag = 'internal scratch']
  %s0 = inlined_call_operand.vmem [shape: bf16[128,576], index: 0, kind: input, shape index: {}]
  %s1 = inlined_call_operand.vmem [shape: bf16[32,576], index: 1, kind: input, shape index: {}]
  %s2 = inlined_call_operand.vmem [shape: f32[32,1], index: 2, kind: input, shape index: {}]
  %s3 = inlined_call_operand.vmem [shape: f32[32,128], index: 3, kind: output, shape index: {}]
  %s4 = sld [smem:[#allocation0]]
  $region22: #{alignnet_forward.48} parent=0
    _
  %s6 = ssub.s32 1, %s4
  %s7 = scalar_select 0, %s6, %s4
  // Predicated region
  $region2: #{alignnet_forward.48} parent=0 // pred_check
    _
  $region3: #{alignnet_forward.48} parent=0 // pred_check_branch
    %9 = sbr.rel (0) target = $region5
  $region4: #{alignnet_forward.48} parent=0 // pred_region
    _
  $region5: #{alignnet_forward.48} parent=0 // pred_fallthru
    _
  // Predicated region
  $region6: #{alignnet_forward.48} parent=0 // pred_check
    _
  $region7: #{alignnet_forward.48} parent=0 // pred_check_branch
    %11 = sbr.rel (0) target = $region9
  $region8: #{alignnet_forward.48} parent=0 // pred_region
    _
  $region9: #{alignnet_forward.48} parent=0 // pred_fallthru
    _
  // Predicated region
  $region10: #{alignnet_forward.48} parent=0 // pred_check
    _
  $region11: #{alignnet_forward.48} parent=0 // pred_check_branch
    %13 = sbr.rel (0) target = $region13
  $region12: #{alignnet_forward.48} parent=0 // pred_region
    _
  $region13: #{alignnet_forward.48} parent=0 // pred_fallthru
    _
  %v15 = vld [vmem:[%s1] sm:$0xff]
  %v16 = vld [vmem:[%s1 + $0x8] sm:$0xff]
  %v17 = vld [vmem:[%s1 + $0x10] sm:$0xf]
  %v18 = vld [vmem:[%s1 + $0x14] sm:$0xff]
  %v19 = vld [vmem:[%s1 + $0x1c] sm:$0xff]
  %v20 = vld [vmem:[%s1 + $0x24] sm:$0xf]
  %v21 = vld [vmem:[%s1 + $0x28] sm:$0xff]
  %v22 = vld [vmem:[%s1 + $0x30] sm:$0xff]
  %v23 = vld [vmem:[%s1 + $0x38] sm:$0xf]
  %v24 = vld [vmem:[%s1 + $0x3c] sm:$0xff]
  %v25 = vld [vmem:[%s1 + $0x44] sm:$0xff]
  %v26 = vld [vmem:[%s1 + $0x4c] sm:$0xf]
  %v27 = vld [vmem:[%s0] sm:$0xff]
  %v28 = vld [vmem:[%s0 + $0x8] sm:$0xff]
  %v29 = vld [vmem:[%s0 + $0x10] sm:$0xf]
  %v30 = vld [vmem:[%s0 + $0x14] sm:$0xff]
  %v31 = vld [vmem:[%s0 + $0x1c] sm:$0xff]
  %v32 = vld [vmem:[%s0 + $0x24] sm:$0xf]
  %v33 = vld [vmem:[%s0 + $0x28] sm:$0xff]
  %v34 = vld [vmem:[%s0 + $0x30] sm:$0xff]
  %v35 = vld [vmem:[%s0 + $0x38] sm:$0xf]
  %v36 = vld [vmem:[%s0 + $0x3c] sm:$0xff]
  %v37 = vld [vmem:[%s0 + $0x44] sm:$0xff]
  %v38 = vld [vmem:[%s0 + $0x4c] sm:$0xf]
  %v39 = vld [vmem:[%s0 + $0x50] sm:$0xff]
  %v40 = vld [vmem:[%s0 + $0x58] sm:$0xff]
  %v41 = vld [vmem:[%s0 + $0x60] sm:$0xf]
  %v42 = vld [vmem:[%s0 + $0x64] sm:$0xff]
  %v43 = vld [vmem:[%s0 + $0x6c] sm:$0xff]
  %v44 = vld [vmem:[%s0 + $0x74] sm:$0xf]
  %v45 = vld [vmem:[%s0 + $0x78] sm:$0xff]
  %v46 = vld [vmem:[%s0 + $0x80] sm:$0xff]
  %v47 = vld [vmem:[%s0 + $0x88] sm:$0xf]
  %v48 = vld [vmem:[%s0 + $0x8c] sm:$0xff]
  %v49 = vld [vmem:[%s0 + $0x94] sm:$0xff]
  %v50 = vld [vmem:[%s0 + $0x9c] sm:$0xf]
  %v51 = vld [vmem:[%s0 + $0xa0] sm:$0xff]
  %v52 = vld [vmem:[%s0 + $0xa8] sm:$0xff]
  %v53 = vld [vmem:[%s0 + $0xb0] sm:$0xf]
  %v54 = vld [vmem:[%s0 + $0xb4] sm:$0xff]
  %v55 = vld [vmem:[%s0 + $0xbc] sm:$0xff]
  %v56 = vld [vmem:[%s0 + $0xc4] sm:$0xf]
  %v57 = vld [vmem:[%s0 + $0xc8] sm:$0xff]
  %v58 = vld [vmem:[%s0 + $0xd0] sm:$0xff]
  %v59 = vld [vmem:[%s0 + $0xd8] sm:$0xf]
  %v60 = vld [vmem:[%s0 + $0xdc] sm:$0xff]
  %v61 = vld [vmem:[%s0 + $0xe4] sm:$0xff]
  %v62 = vld [vmem:[%s0 + $0xec] sm:$0xf]
  %v63 = vld [vmem:[%s0 + $0xf0] sm:$0xff]
  %v64 = vld [vmem:[%s0 + $0xf8] sm:$0xff]
  %v65 = vld [vmem:[%s0 + $0x100] sm:$0xf]
  %v66 = vld [vmem:[%s0 + $0x104] sm:$0xff]
  %v67 = vld [vmem:[%s0 + $0x10c] sm:$0xff]
  %v68 = vld [vmem:[%s0 + $0x114] sm:$0xf]
  %v69 = vld [vmem:[%s0 + $0x118] sm:$0xff]
  %v70 = vld [vmem:[%s0 + $0x120] sm:$0xff]
  %v71 = vld [vmem:[%s0 + $0x128] sm:$0xf]
  %v72 = vld [vmem:[%s0 + $0x12c] sm:$0xff]
  %v73 = vld [vmem:[%s0 + $0x134] sm:$0xff]
  %v74 = vld [vmem:[%s0 + $0x13c] sm:$0xf]
  %v75 = vld [vmem:[%s2] sm:$0xff]
  %v76 = vld [vmem:[%s2 + $0x8] sm:$0xff]
  %v77 = vld [vmem:[%s2 + $0x10] sm:$0xff]
  %v78 = vld [vmem:[%s2 + $0x18] sm:$0xff]
  %80 = vset.pattern.permute.xlu0 0
  %81 = vperm.xlu0 %80, %v75
  %v82 = vpop.permute.xlu0 %81
  %85 = vset.pattern.permute.xlu0 0
  %86 = vperm.xlu0 %85, %v76
  %v87 = vpop.permute.xlu0 %86
  %90 = vset.pattern.permute.xlu0 0
  %91 = vperm.xlu0 %90, %v77
  %v92 = vpop.permute.xlu0 %91
  %95 = vset.pattern.permute.xlu0 0
  %96 = vperm.xlu0 %95, %v78
  %v97 = vpop.permute.xlu0 %96
  %v111 = vunpack.c.l.b16 %v15
  %v112 = vunpack.c.h.b16 %v15
  %v113 = vunpack.c.l.b16 %v16
  %v114 = vunpack.c.h.b16 %v16
  %v115 = vunpack.c.l.b16 %v17
  %v116 = vunpack.c.l.b16 %v18
  %v117 = vunpack.c.h.b16 %v18
  %v118 = vunpack.c.l.b16 %v19
  %v119 = vunpack.c.h.b16 %v19
  %v120 = vunpack.c.l.b16 %v20
  %v121 = vunpack.c.l.b16 %v21
  %v122 = vunpack.c.h.b16 %v21
  %v123 = vunpack.c.l.b16 %v22
  %v124 = vunpack.c.h.b16 %v22
  %v125 = vunpack.c.l.b16 %v23
  %v126 = vunpack.c.l.b16 %v24
  %v127 = vunpack.c.h.b16 %v24
  %v128 = vunpack.c.l.b16 %v25
  %v129 = vunpack.c.h.b16 %v25
  %v130 = vunpack.c.l.b16 %v26
  %v131 = vpack.c.b16 %v116, %v111
  %v132 = vpack.c.b16 %v117, %v112
  %v133 = vpack.c.b16 %v118, %v113
  %v134 = vpack.c.b16 %v119, %v114
  %v135 = vpack.c.b16 %v120, %v115
  %v136 = vpack.c.b16 %v126, %v121
  %v137 = vpack.c.b16 %v127, %v122
  %v138 = vpack.c.b16 %v128, %v123
  %v139 = vpack.c.b16 %v129, %v124
  %v140 = vpack.c.b16 %v130, %v125
  %v197 = vunpack.c.l.b16 %v27
  %v198 = vunpack.c.h.b16 %v27
  %v199 = vunpack.c.l.b16 %v28
  %v200 = vunpack.c.h.b16 %v28
  %v201 = vunpack.c.l.b16 %v29
  %v202 = vunpack.c.l.b16 %v30
  %v203 = vunpack.c.h.b16 %v30
  %v204 = vunpack.c.l.b16 %v31
  %v205 = vunpack.c.h.b16 %v31
  %v206 = vunpack.c.l.b16 %v32
  %v207 = vunpack.c.l.b16 %v33
  %v208 = vunpack.c.h.b16 %v33
  %v209 = vunpack.c.l.b16 %v34
  %v210 = vunpack.c.h.b16 %v34
  %v211 = vunpack.c.l.b16 %v35
  %v212 = vunpack.c.l.b16 %v36
  %v213 = vunpack.c.h.b16 %v36
  %v214 = vunpack.c.l.b16 %v37
  %v215 = vunpack.c.h.b16 %v37
  %v216 = vunpack.c.l.b16 %v38
  %v217 = vunpack.c.l.b16 %v39
  %v218 = vunpack.c.h.b16 %v39
  %v219 = vunpack.c.l.b16 %v40
  %v220 = vunpack.c.h.b16 %v40
  %v221 = vunpack.c.l.b16 %v41
  %v222 = vunpack.c.l.b16 %v42
  %v223 = vunpack.c.h.b16 %v42
  %v224 = vunpack.c.l.b16 %v43
  %v225 = vunpack.c.h.b16 %v43
  %v226 = vunpack.c.l.b16 %v44
  %v227 = vunpack.c.l.b16 %v45
  %v228 = vunpack.c.h.b16 %v45
  %v229 = vunpack.c.l.b16 %v46
  %v230 = vunpack.c.h.b16 %v46
  %v231 = vunpack.c.l.b16 %v47
  %v232 = vunpack.c.l.b16 %v48
  %v233 = vunpack.c.h.b16 %v48
  %v234 = vunpack.c.l.b16 %v49
  %v235 = vunpack.c.h.b16 %v49
  %v236 = vunpack.c.l.b16 %v50
  %v237 = vunpack.c.l.b16 %v51
  %v238 = vunpack.c.h.b16 %v51
  %v239 = vunpack.c.l.b16 %v52
  %v240 = vunpack.c.h.b16 %v52
  %v241 = vunpack.c.l.b16 %v53
  %v242 = vunpack.c.l.b16 %v54
  %v243 = vunpack.c.h.b16 %v54
  %v244 = vunpack.c.l.b16 %v55
  %v245 = vunpack.c.h.b16 %v55
  %v246 = vunpack.c.l.b16 %v56
  %v247 = vunpack.c.l.b16 %v57
  %v248 = vunpack.c.h.b16 %v57
  %v249 = vunpack.c.l.b16 %v58
  %v250 = vunpack.c.h.b16 %v58
  %v251 = vunpack.c.l.b16 %v59
  %v252 = vunpack.c.l.b16 %v60
  %v253 = vunpack.c.h.b16 %v60
  %v254 = vunpack.c.l.b16 %v61
  %v255 = vunpack.c.h.b16 %v61
  %v256 = vunpack.c.l.b16 %v62
  %v257 = vunpack.c.l.b16 %v63
  %v258 = vunpack.c.h.b16 %v63
  %v259 = vunpack.c.l.b16 %v64
  %v260 = vunpack.c.h.b16 %v64
  %v261 = vunpack.c.l.b16 %v65
  %v262 = vunpack.c.l.b16 %v66
  %v263 = vunpack.c.h.b16 %v66
  %v264 = vunpack.c.l.b16 %v67
  %v265 = vunpack.c.h.b16 %v67
  %v266 = vunpack.c.l.b16 %v68
  %v267 = vunpack.c.l.b16 %v69
  %v268 = vunpack.c.h.b16 %v69
  %v269 = vunpack.c.l.b16 %v70
  %v270 = vunpack.c.h.b16 %v70
  %v271 = vunpack.c.l.b16 %v71
  %v272 = vunpack.c.l.b16 %v72
  %v273 = vunpack.c.h.b16 %v72
  %v274 = vunpack.c.l.b16 %v73
  %v275 = vunpack.c.h.b16 %v73
  %v276 = vunpack.c.l.b16 %v74
  %v277 = vpack.c.b16 %v202, %v197
  %v278 = vpack.c.b16 %v203, %v198
  %v279 = vpack.c.b16 %v204, %v199
  %v280 = vpack.c.b16 %v205, %v200
  %v281 = vpack.c.b16 %v206, %v201
  %v282 = vpack.c.b16 %v212, %v207
  %v283 = vpack.c.b16 %v213, %v208
  %v284 = vpack.c.b16 %v214, %v209
  %v285 = vpack.c.b16 %v215, %v210
  %v286 = vpack.c.b16 %v216, %v211
  %v287 = vpack.c.b16 %v222, %v217
  %v288 = vpack.c.b16 %v223, %v218
  %v289 = vpack.c.b16 %v224, %v219
  %v290 = vpack.c.b16 %v225, %v220
  %v291 = vpack.c.b16 %v226, %v221
  %v292 = vpack.c.b16 %v232, %v227
  %v293 = vpack.c.b16 %v233, %v228
  %v294 = vpack.c.b16 %v234, %v229
  %v295 = vpack.c.b16 %v235, %v230
  %v296 = vpack.c.b16 %v236, %v231
  %v297 = vpack.c.b16 %v242, %v237
  %v298 = vpack.c.b16 %v243, %v238
  %v299 = vpack.c.b16 %v244, %v239
  %v300 = vpack.c.b16 %v245, %v240
  %v301 = vpack.c.b16 %v246, %v241
  %v302 = vpack.c.b16 %v252, %v247
  %v303 = vpack.c.b16 %v253, %v248
  %v304 = vpack.c.b16 %v254, %v249
  %v305 = vpack.c.b16 %v255, %v250
  %v306 = vpack.c.b16 %v256, %v251
  %v307 = vpack.c.b16 %v262, %v257
  %v308 = vpack.c.b16 %v263, %v258
  %v309 = vpack.c.b16 %v264, %v259
  %v310 = vpack.c.b16 %v265, %v260
  %v311 = vpack.c.b16 %v266, %v261
  %v312 = vpack.c.b16 %v272, %v267
  %v313 = vpack.c.b16 %v273, %v268
  %v314 = vpack.c.b16 %v274, %v269
  %v315 = vpack.c.b16 %v275, %v270
  %v316 = vpack.c.b16 %v276, %v271
  %vm349 = vcmask 523264
  %v351 = vsel %vm349, %v135, 0
  %v354 = vsel %vm349, %v140, 0
  %v357 = vsel %vm349, %v281, 0
  %v360 = vsel %vm349, %v286, 0
  %v363 = vsel %vm349, %v291, 0
  %v366 = vsel %vm349, %v296, 0
  %v369 = vsel %vm349, %v301, 0
  %v372 = vsel %vm349, %v306, 0
  %v375 = vsel %vm349, %v311, 0
  %v378 = vsel %vm349, %v316, 0
  %380 = vmatprep.subr.bf16.mxu0 %v313
  %381 = vmatpush1.bf16.xpose.msra.mxu0 %v312
  %382 = vmatprep.subr.bf16.mxu0 %v308
  %383 = vmatpush1.bf16.xpose.msra.mxu0 %v307
  %384 = vmatprep.subr.bf16.mxu0 %v303
  %385 = vmatpush1.bf16.xpose.msra.mxu0 %v302
  %386 = vmatprep.subr.bf16.mxu0 %v298
  %387 = vmatpush1.bf16.xpose.msra.mxu0 %v297
  %388 = vmatprep.subr.bf16.mxu0 %v293
  %389 = vmatpush1.bf16.xpose.msra.mxu0 %v292
  %390 = vmatprep.subr.bf16.mxu0 %v288
  %391 = vmatpush1.bf16.xpose.msra.mxu0 %v287
  %392 = vmatprep.subr.bf16.mxu0 %v283
  %393 = vmatpush1.bf16.xpose.msra.mxu0 %v282
  %394 = vmatprep.subr.bf16.mxu0 %v278
  %395 = vmatpush1.bf16.xpose.msra.mxu0 %v277
  %396 = vmatprep.subr.bf16.mxu0 0
  %397 = vmatpush2.bf16.xpose.msra.mxu0 0
  %398 = vmatprep.subr.bf16.mxu0 0
  %399 = vmatpush2.bf16.xpose.msra.mxu0 0
  %400 = vmatprep.subr.bf16.mxu0 0
  %401 = vmatpush2.bf16.xpose.msra.mxu0 0
  %402 = vmatprep.subr.bf16.mxu0 0
  %403 = vmatpush2.bf16.xpose.msra.mxu0 0
  %404 = vmatprep.subr.bf16.mxu0 0
  %405 = vmatpush2.bf16.xpose.msra.mxu0 0
  %406 = vmatprep.subr.bf16.mxu0 0
  %407 = vmatpush2.bf16.xpose.msra.mxu0 0
  %408 = vmatprep.subr.bf16.mxu0 0
  %409 = vmatpush2.bf16.xpose.msra.mxu0 0
  %410 = vmatprep.subr.bf16.mxu0 0
  %411 = vmatpush2.bf16.xpose.msra.mxu0 0
  %412 = vmatprep.mubr.bf16.mxu0 %v132
  %413 = vmatmul.mubr.bf16.gmra.mxu0 %v131
  %v414 = vpop.f32.mrf.mxu0
  %v415 = vadd.f32 %v82, %v414
  %v416 = vpop.f32.mrf.mxu0
  %v417 = vpop.f32.mrf.mxu0
  %v418 = vadd.f32 %v87, %v417
  %v419 = vpop.f32.mrf.mxu0
  %420 = vmatprep.mubr.bf16.mxu0 %v137
  %421 = vmatmul.mubr.bf16.gmra.mxu0 %v136
  %v422 = vpop.f32.mrf.mxu0
  %v423 = vadd.f32 %v92, %v422
  %v424 = vpop.f32.mrf.mxu0
  %v425 = vpop.f32.mrf.mxu0
  %v426 = vadd.f32 %v97, %v425
  %v427 = vpop.f32.mrf.mxu0
  %428 = vdwg.mxu0
  %429 = vmatprep.subr.bf16.mxu0 %v315
  %430 = vmatpush1.bf16.xpose.msra.mxu0 %v314
  %431 = vmatprep.subr.bf16.mxu0 %v310
  %432 = vmatpush1.bf16.xpose.msra.mxu0 %v309
  %433 = vmatprep.subr.bf16.mxu0 %v305
  %434 = vmatpush1.bf16.xpose.msra.mxu0 %v304
  %435 = vmatprep.subr.bf16.mxu0 %v300
  %436 = vmatpush1.bf16.xpose.msra.mxu0 %v299
  %437 = vmatprep.subr.bf16.mxu0 %v295
  %438 = vmatpush1.bf16.xpose.msra.mxu0 %v294
  %439 = vmatprep.subr.bf16.mxu0 %v290
  %440 = vmatpush1.bf16.xpose.msra.mxu0 %v289
  %441 = vmatprep.subr.bf16.mxu0 %v285
  %442 = vmatpush1.bf16.xpose.msra.mxu0 %v284
  %443 = vmatprep.subr.bf16.mxu0 %v280
  %444 = vmatpush1.bf16.xpose.msra.mxu0 %v279
  %445 = vmatprep.subr.bf16.mxu0 0
  %446 = vmatpush2.bf16.xpose.msra.mxu0 0
  %447 = vmatprep.subr.bf16.mxu0 0
  %448 = vmatpush2.bf16.xpose.msra.mxu0 0
  %449 = vmatprep.subr.bf16.mxu0 0
  %450 = vmatpush2.bf16.xpose.msra.mxu0 0
  %451 = vmatprep.subr.bf16.mxu0 0
  %452 = vmatpush2.bf16.xpose.msra.mxu0 0
  %453 = vmatprep.subr.bf16.mxu0 0
  %454 = vmatpush2.bf16.xpose.msra.mxu0 0
  %455 = vmatprep.subr.bf16.mxu0 0
  %456 = vmatpush2.bf16.xpose.msra.mxu0 0
  %457 = vmatprep.subr.bf16.mxu0 0
  %458 = vmatpush2.bf16.xpose.msra.mxu0 0
  %459 = vmatprep.subr.bf16.mxu0 0
  %460 = vmatpush2.bf16.xpose.msra.mxu0 0
  %461 = vmatprep.mubr.bf16.mxu0 %v134
  %462 = vmatmul.mubr.bf16.gmra.mxu0 %v133
  %v463 = vpop.f32.mrf.mxu0
  %v464 = vadd.f32 %v415, %v463
  %v465 = vpop.f32.mrf.mxu0
  %v466 = vpop.f32.mrf.mxu0
  %v467 = vadd.f32 %v418, %v466
  %v468 = vpop.f32.mrf.mxu0
  %469 = vmatprep.mubr.bf16.mxu0 %v139
  %470 = vmatmul.mubr.bf16.gmra.mxu0 %v138
  %v471 = vpop.f32.mrf.mxu0
  %v472 = vadd.f32 %v423, %v471
  %v473 = vpop.f32.mrf.mxu0
  %v474 = vpop.f32.mrf.mxu0
  %v475 = vadd.f32 %v426, %v474
  %v476 = vpop.f32.mrf.mxu0
  %477 = vdwg.mxu0
  %478 = vmatprep.subr.bf16.mxu0 0
  %479 = vmatpush1.bf16.xpose.msra.mxu0 %v378
  %480 = vmatprep.subr.bf16.mxu0 0
  %481 = vmatpush1.bf16.xpose.msra.mxu0 %v375
  %482 = vmatprep.subr.bf16.mxu0 0
  %483 = vmatpush1.bf16.xpose.msra.mxu0 %v372
  %484 = vmatprep.subr.bf16.mxu0 0
  %485 = vmatpush1.bf16.xpose.msra.mxu0 %v369
  %486 = vmatprep.subr.bf16.mxu0 0
  %487 = vmatpush1.bf16.xpose.msra.mxu0 %v366
  %488 = vmatprep.subr.bf16.mxu0 0
  %489 = vmatpush1.bf16.xpose.msra.mxu0 %v363
  %490 = vmatprep.subr.bf16.mxu0 0
  %491 = vmatpush1.bf16.xpose.msra.mxu0 %v360
  %492 = vmatprep.subr.bf16.mxu0 0
  %493 = vmatpush1.bf16.xpose.msra.mxu0 %v357
  %494 = vmatprep.subr.bf16.mxu0 0
  %495 = vmatpush2.bf16.xpose.msra.mxu0 0
  %496 = vmatprep.subr.bf16.mxu0 0
  %497 = vmatpush2.bf16.xpose.msra.mxu0 0
  %498 = vmatprep.subr.bf16.mxu0 0
  %499 = vmatpush2.bf16.xpose.msra.mxu0 0
  %500 = vmatprep.subr.bf16.mxu0 0
  %501 = vmatpush2.bf16.xpose.msra.mxu0 0
  %502 = vmatprep.subr.bf16.mxu0 0
  %503 = vmatpush2.bf16.xpose.msra.mxu0 0
  %504 = vmatprep.subr.bf16.mxu0 0
  %505 = vmatpush2.bf16.xpose.msra.mxu0 0
  %506 = vmatprep.subr.bf16.mxu0 0
  %507 = vmatpush2.bf16.xpose.msra.mxu0 0
  %508 = vmatprep.subr.bf16.mxu0 0
  %509 = vmatpush2.bf16.xpose.msra.mxu0 0
  %510 = vmatprep.mubr.bf16.mxu0 0
  %511 = vmatmul.mubr.bf16.gmra.mxu0 %v351
  %v512 = vpop.f32.mrf.mxu0
  %v513 = vadd.f32 %v464, %v512
  %v514 = vpop.f32.mrf.mxu0
  %v515 = vpop.f32.mrf.mxu0
  %v516 = vadd.f32 %v467, %v515
  %v517 = vpop.f32.mrf.mxu0
  %518 = vmatprep.mubr.bf16.mxu0 0
  %519 = vmatmul.mubr.bf16.gmra.mxu0 %v354
  %v520 = vpop.f32.mrf.mxu0
  %v521 = vadd.f32 %v472, %v520
  %v522 = vpop.f32.mrf.mxu0
  %v523 = vpop.f32.mrf.mxu0
  %v524 = vadd.f32 %v475, %v523
  %v525 = vpop.f32.mrf.mxu0
  %526 = vdwg.mxu0
  %vm527 = vcmp.ge.f32.partialorder %v513, 0.0
  %vm528 = vcmp.ge.f32.partialorder %v516, 0.0
  %vm529 = vcmp.ge.f32.partialorder %v521, 0.0
  %vm530 = vcmp.ge.f32.partialorder %v524, 0.0
  %v531 = vmul.f32 %v513, 0.1
  %v532 = vmul.f32 %v516, 0.1
  %v533 = vmul.f32 %v521, 0.1
  %v534 = vmul.f32 %v524, 0.1
  %v535 = vsel %vm527, %v513, %v531
  %v536 = vsel %vm528, %v516, %v532
  %v537 = vsel %vm529, %v521, %v533
  %v538 = vsel %vm530, %v524, %v534
  %539 = vst [vmem:[%s3] sm:$0xff] %v535
  %540 = vst [vmem:[%s3 + $0x8] sm:$0xff] %v536
  %541 = vst [vmem:[%s3 + $0x10] sm:$0xff] %v537
  %542 = vst [vmem:[%s3 + $0x18] sm:$0xff] %v538
  // Predicated region
  $region14: #{alignnet_forward.48} parent=0 // pred_check
    _
  $region15: #{alignnet_forward.48} parent=0 // pred_check_branch
    %544 = sbr.rel (0) target = $region17
  $region16: #{alignnet_forward.48} parent=0 // pred_region
    _
  $region17: #{alignnet_forward.48} parent=0 // pred_fallthru
    _
  // Predicated region
  $region18: #{alignnet_forward.48} parent=0 // pred_check
    _
  $region19: #{alignnet_forward.48} parent=0 // pred_check_branch
    %546 = sbr.rel (0) target = $region21
  $region20: #{alignnet_forward.48} parent=0 // pred_region
    _
  $region21: #{alignnet_forward.48} parent=0 // pred_fallthru
    _

// kernel: alignnet_forward.50
$region0: #{alignnet_forward.50}
  #allocation0 [shape = 'u32[]', space=smem, size = 0x4, offset = 0x4, fixed_abs, tag = 'smem constant byte address 0x4 - core index']
  #allocation1 [shape = 'u32[144,128]{1,0:T(1,128)}', space=vmem, size = 0x12000, scoped, tag = 'internal scratch']
  %s0 = inlined_call_operand.vmem [shape: bf16[512,288], index: 0, kind: input, shape index: {}]
  %s1 = inlined_call_operand.vmem [shape: bf16[216,288], index: 1, kind: input, shape index: {}]
  %s2 = inlined_call_operand.vmem [shape: f32[216,1], index: 2, kind: input, shape index: {}]
  %s3 = inlined_call_operand.vmem [shape: f32[216,512], index: 3, kind: output, shape index: {}]
  %s4 = sld [smem:[#allocation0]]
  $region22: #{alignnet_forward.50} parent=0
    _
  %s6 = ssub.s32 1, %s4
  %s7 = scalar_select 0, %s6, %s4
  // Predicated region
  $region2: #{alignnet_forward.50} parent=0 // pred_check
    _
  $region3: #{alignnet_forward.50} parent=0 // pred_check_branch
    %9 = sbr.rel (0) target = $region5
  $region4: #{alignnet_forward.50} parent=0 // pred_region
    _
  $region5: #{alignnet_forward.50} parent=0 // pred_fallthru
    _
  // Predicated region
  $region6: #{alignnet_forward.50} parent=0 // pred_check
    _
  $region7: #{alignnet_forward.50} parent=0 // pred_check_branch
    %11 = sbr.rel (0) target = $region9
  $region8: #{alignnet_forward.50} parent=0 // pred_region
    _
  $region9: #{alignnet_forward.50} parent=0 // pred_fallthru
    _
  // Predicated region
  $region10: #{alignnet_forward.50} parent=0 // pred_check
    _
  $region11: #{alignnet_forward.50} parent=0 // pred_check_branch
    %13 = sbr.rel (0) target = $region13
  $region12: #{alignnet_forward.50} parent=0 // pred_region
    _
  $region13: #{alignnet_forward.50} parent=0 // pred_fallthru
    _
  %v15 = vld [vmem:[%s1] sm:$0xff]
  %v16 = vld [vmem:[%s1 + $0x8] sm:$0xf]
  %v17 = vld [vmem:[%s1 + $0xc] sm:$0xff]
  %v18 = vld [vmem:[%s1 + $0x14] sm:$0xf]
  %v19 = vld [vmem:[%s1 + $0x18] sm:$0xff]
  %v20 = vld [vmem:[%s1 + $0x20] sm:$0xf]
  %v21 = vld [vmem:[%s1 + $0x24] sm:$0xff]
  %v22 = vld [vmem:[%s1 + $0x2c] sm:$0xf]
  %v23 = vld [vmem:[%s1 + $0x30] sm:$0xff]
  %v24 = vld [vmem:[%s1 + $0x38] sm:$0xf]
  %v25 = vld [vmem:[%s1 + $0x3c] sm:$0xff]
  %v26 = vld [vmem:[%s1 + $0x44] sm:$0xf]
  %v27 = vld [vmem:[%s1 + $0x48] sm:$0xff]
  %v28 = vld [vmem:[%s1 + $0x50] sm:$0xf]
  %v29 = vld [vmem:[%s1 + $0x54] sm:$0xff]
  %v30 = vld [vmem:[%s1 + $0x5c] sm:$0xf]
  %v31 = vld [vmem:[%s1 + $0x60] sm:$0xff]
  %v32 = vld [vmem:[%s1 + $0x68] sm:$0xf]
  %v33 = vld [vmem:[%s1 + $0x6c] sm:$0xff]
  %v34 = vld [vmem:[%s1 + $0x74] sm:$0xf]
  %v35 = vld [vmem:[%s1 + $0x78] sm:$0xff]
  %v36 = vld [vmem:[%s1 + $0x80] sm:$0xf]
  %v37 = vld [vmem:[%s1 + $0x84] sm:$0xff]
  %v38 = vld [vmem:[%s1 + $0x8c] sm:$0xf]
  %v39 = vld [vmem:[%s1 + $0x90] sm:$0xff]
  %v40 = vld [vmem:[%s1 + $0x98] sm:$0xf]
  %v41 = vld [vmem:[%s1 + $0x9c] sm:$0xff]
  %v42 = vld [vmem:[%s1 + $0xa4] sm:$0xf]
  %v43 = vld [vmem:[%s1 + $0xa8] sm:$0xff]
  %v44 = vld [vmem:[%s1 + $0xb0] sm:$0xf]
  %v45 = vld [vmem:[%s1 + $0xb4] sm:$0xff]
  %v46 = vld [vmem:[%s1 + $0xbc] sm:$0xf]
  %v47 = vld [vmem:[%s1 + $0xc0] sm:$0xff]
  %v48 = vld [vmem:[%s1 + $0xc8] sm:$0xf]
  %v49 = vld [vmem:[%s1 + $0xcc] sm:$0xff]
  %v50 = vld [vmem:[%s1 + $0xd4] sm:$0xf]
  %v51 = vld [vmem:[%s1 + $0xd8] sm:$0xff]
  %v52 = vld [vmem:[%s1 + $0xe0] sm:$0xf]
  %v53 = vld [vmem:[%s1 + $0xe4] sm:$0xff]
  %v54 = vld [vmem:[%s1 + $0xec] sm:$0xf]
  %v55 = vld [vmem:[%s1 + $0xf0] sm:$0xff]
  %v56 = vld [vmem:[%s1 + $0xf8] sm:$0xf]
  %v57 = vld [vmem:[%s1 + $0xfc] sm:$0xff]
  %v58 = vld [vmem:[%s1 + $0x104] sm:$0xf]
  %v59 = vld [vmem:[%s1 + $0x108] sm:$0xff]
  %v60 = vld [vmem:[%s1 + $0x110] sm:$0xf]
  %v61 = vld [vmem:[%s1 + $0x114] sm:$0xff]
  %v62 = vld [vmem:[%s1 + $0x11c] sm:$0xf]
  %v63 = vld [vmem:[%s1 + $0x120] sm:$0xff]
  %v64 = vld [vmem:[%s1 + $0x128] sm:$0xf]
  %v65 = vld [vmem:[%s1 + $0x12c] sm:$0xff]
  %v66 = vld [vmem:[%s1 + $0x134] sm:$0xf]
  %v67 = vld [vmem:[%s1 + $0x138] sm:$0xff]
  %v68 = vld [vmem:[%s1 + $0x140] sm:$0xf]
  %v69 = vld [vmem:[%s0] sm:$0xff]
  %v70 = vld [vmem:[%s0 + $0x8] sm:$0xf]
  %v71 = vld [vmem:[%s0 + $0xc] sm:$0xff]
  %v72 = vld [vmem:[%s0 + $0x14] sm:$0xf]
  %v73 = vld [vmem:[%s0 + $0x18] sm:$0xff]
  %v74 = vld [vmem:[%s0 + $0x20] sm:$0xf]
  %v75 = vld [vmem:[%s0 + $0x24] sm:$0xff]
  %v76 = vld [vmem:[%s0 + $0x2c] sm:$0xf]
  %v77 = vld [vmem:[%s0 + $0x30] sm:$0xff]
  %v78 = vld [vmem:[%s0 + $0x38] sm:$0xf]
  %v79 = vld [vmem:[%s0 + $0x3c] sm:$0xff]
  %v80 = vld [vmem:[%s0 + $0x44] sm:$0xf]
  %v81 = vld [vmem:[%s0 + $0x48] sm:$0xff]
  %v82 = vld [vmem:[%s0 + $0x50] sm:$0xf]
  %v83 = vld [vmem:[%s0 + $0x54] sm:$0xff]
  %v84 = vld [vmem:[%s0 + $0x5c] sm:$0xf]
  %v85 = vld [vmem:[%s0 + $0x60] sm:$0xff]
  %v86 = vld [vmem:[%s0 + $0x68] sm:$0xf]
  %v87 = vld [vmem:[%s0 + $0x6c] sm:$0xff]
  %v88 = vld [vmem:[%s0 + $0x74] sm:$0xf]
  %v89 = vld [vmem:[%s0 + $0x78] sm:$0xff]
  %v90 = vld [vmem:[%s0 + $0x80] sm:$0xf]
  %v91 = vld [vmem:[%s0 + $0x84] sm:$0xff]
  %v92 = vld [vmem:[%s0 + $0x8c] sm:$0xf]
  %v93 = vld [vmem:[%s0 + $0x90] sm:$0xff]
  %v94 = vld [vmem:[%s0 + $0x98] sm:$0xf]
  %v95 = vld [vmem:[%s0 + $0x9c] sm:$0xff]
  %v96 = vld [vmem:[%s0 + $0xa4] sm:$0xf]
  %v97 = vld [vmem:[%s0 + $0xa8] sm:$0xff]
  %v98 = vld [vmem:[%s0 + $0xb0] sm:$0xf]
  %v99 = vld [vmem:[%s0 + $0xb4] sm:$0xff]
  %v100 = vld [vmem:[%s0 + $0xbc] sm:$0xf]
  %v101 = vld [vmem:[%s0 + $0xc0] sm:$0xff]
  %v102 = vld [vmem:[%s0 + $0xc8] sm:$0xf]
  %v103 = vld [vmem:[%s0 + $0xcc] sm:$0xff]
  %v104 = vld [vmem:[%s0 + $0xd4] sm:$0xf]
  %v105 = vld [vmem:[%s0 + $0xd8] sm:$0xff]
  %v106 = vld [vmem:[%s0 + $0xe0] sm:$0xf]
  %v107 = vld [vmem:[%s0 + $0xe4] sm:$0xff]
  %v108 = vld [vmem:[%s0 + $0xec] sm:$0xf]
  %v109 = vld [vmem:[%s0 + $0xf0] sm:$0xff]
  %v110 = vld [vmem:[%s0 + $0xf8] sm:$0xf]
  %v111 = vld [vmem:[%s0 + $0xfc] sm:$0xff]
  %v112 = vld [vmem:[%s0 + $0x104] sm:$0xf]
  %v113 = vld [vmem:[%s0 + $0x108] sm:$0xff]
  %v114 = vld [vmem:[%s0 + $0x110] sm:$0xf]
  %v115 = vld [vmem:[%s0 + $0x114] sm:$0xff]
  %v116 = vld [vmem:[%s0 + $0x11c] sm:$0xf]
  %v117 = vld [vmem:[%s0 + $0x120] sm:$0xff]
  %v118 = vld [vmem:[%s0 + $0x128] sm:$0xf]
  %v119 = vld [vmem:[%s0 + $0x12c] sm:$0xff]
  %v120 = vld [vmem:[%s0 + $0x134] sm:$0xf]
  %v121 = vld [vmem:[%s0 + $0x138] sm:$0xff]
  %v122 = vld [vmem:[%s0 + $0x140] sm:$0xf]
  %v123 = vld [vmem:[%s0 + $0x144] sm:$0xff]
  %v124 = vld [vmem:[%s0 + $0x14c] sm:$0xf]
  %v125 = vld [vmem:[%s0 + $0x150] sm:$0xff]
  %v126 = vld [vmem:[%s0 + $0x158] sm:$0xf]
  %v127 = vld [vmem:[%s0 + $0x15c] sm:$0xff]
  %v128 = vld [vmem:[%s0 + $0x164] sm:$0xf]
  %v129 = vld [vmem:[%s0 + $0x168] sm:$0xff]
  %v130 = vld [vmem:[%s0 + $0x170] sm:$0xf]
  %v131 = vld [vmem:[%s0 + $0x174] sm:$0xff]
  %v132 = vld [vmem:[%s0 + $0x17c] sm:$0xf]
  %v133 = vld [vmem:[%s0 + $0x180] sm:$0xff]
  %v134 = vld [vmem:[%s0 + $0x188] sm:$0xf]
  %v135 = vld [vmem:[%s0 + $0x18c] sm:$0xff]
  %v136 = vld [vmem:[%s0 + $0x194] sm:$0xf]
  %v137 = vld [vmem:[%s0 + $0x198] sm:$0xff]
  %v138 = vld [vmem:[%s0 + $0x1a0] sm:$0xf]
  %v139 = vld [vmem:[%s0 + $0x1a4] sm:$0xff]
  %v140 = vld [vmem:[%s0 + $0x1ac] sm:$0xf]
  %v141 = vld [vmem:[%s0 + $0x1b0] sm:$0xff]
  %v142 = vld [vmem:[%s0 + $0x1b8] sm:$0xf]
  %v143 = vld [vmem:[%s0 + $0x1bc] sm:$0xff]
  %v144 = vld [vmem:[%s0 + $0x1c4] sm:$0xf]
  %v145 = vld [vmem:[%s0 + $0x1c8] sm:$0xff]
  %v146 = vld [vmem:[%s0 + $0x1d0] sm:$0xf]
  %v147 = vld [vmem:[%s0 + $0x1d4] sm:$0xff]
  %v148 = vld [vmem:[%s0 + $0x1dc] sm:$0xf]
  %v149 = vld [vmem:[%s0 + $0x1e0] sm:$0xff]
  %v150 = vld [vmem:[%s0 + $0x1e8] sm:$0xf]
  %v151 = vld [vmem:[%s0 + $0x1ec] sm:$0xff]
  %v152 = vld [vmem:[%s0 + $0x1f4] sm:$0xf]
  %v153 = vld [vmem:[%s0 + $0x1f8] sm:$0xff]
  %v154 = vld [vmem:[%s0 + $0x200] sm:$0xf]
  %v155 = vld [vmem:[%s0 + $0x204] sm:$0xff]
  %v156 = vld [vmem:[%s0 + $0x20c] sm:$0xf]
  %v157 = vld [vmem:[%s0 + $0x210] sm:$0xff]
  %v158 = vld [vmem:[%s0 + $0x218] sm:$0xf]
  %v159 = vld [vmem:[%s0 + $0x21c] sm:$0xff]
  %v160 = vld [vmem:[%s0 + $0x224] sm:$0xf]
  %v161 = vld [vmem:[%s0 + $0x228] sm:$0xff]
  %v162 = vld [vmem:[%s0 + $0x230] sm:$0xf]
  %v163 = vld [vmem:[%s0 + $0x234] sm:$0xff]
  %v164 = vld [vmem:[%s0 + $0x23c] sm:$0xf]
  %v165 = vld [vmem:[%s0 + $0x240] sm:$0xff]
  %v166 = vld [vmem:[%s0 + $0x248] sm:$0xf]
  %v167 = vld [vmem:[%s0 + $0x24c] sm:$0xff]
  %v168 = vld [vmem:[%s0 + $0x254] sm:$0xf]
  %v169 = vld [vmem:[%s0 + $0x258] sm:$0xff]
  %v170 = vld [vmem:[%s0 + $0x260] sm:$0xf]
  %v171 = vld [vmem:[%s0 + $0x264] sm:$0xff]
  %v172 = vld [vmem:[%s0 + $0x26c] sm:$0xf]
  %v173 = vld [vmem:[%s0 + $0x270] sm:$0xff]
  %v174 = vld [vmem:[%s0 + $0x278] sm:$0xf]
  %v175 = vld [vmem:[%s0 + $0x27c] sm:$0xff]
  %v176 = vld [vmem:[%s0 + $0x284] sm:$0xf]
  %v177 = vld [vmem:[%s0 + $0x288] sm:$0xff]
  %v178 = vld [vmem:[%s0 + $0x290] sm:$0xf]
  %v179 = vld [vmem:[%s0 + $0x294] sm:$0xff]
  %v180 = vld [vmem:[%s0 + $0x29c] sm:$0xf]
  %v181 = vld [vmem:[%s0 + $0x2a0] sm:$0xff]
  %v182 = vld [vmem:[%s0 + $0x2a8] sm:$0xf]
  %v183 = vld [vmem:[%s0 + $0x2ac] sm:$0xff]
  %v184 = vld [vmem:[%s0 + $0x2b4] sm:$0xf]
  %v185 = vld [vmem:[%s0 + $0x2b8] sm:$0xff]
  %v186 = vld [vmem:[%s0 + $0x2c0] sm:$0xf]
  %v187 = vld [vmem:[%s0 + $0x2c4] sm:$0xff]
  %v188 = vld [vmem:[%s0 + $0x2cc] sm:$0xf]
  %v189 = vld [vmem:[%s0 + $0x2d0] sm:$0xff]
  %v190 = vld [vmem:[%s0 + $0x2d8] sm:$0xf]
  %v191 = vld [vmem:[%s0 + $0x2dc] sm:$0xff]
  %v192 = vld [vmem:[%s0 + $0x2e4] sm:$0xf]
  %v193 = vld [vmem:[%s0 + $0x2e8] sm:$0xff]
  %v194 = vld [vmem:[%s0 + $0x2f0] sm:$0xf]
  %v195 = vld [vmem:[%s0 + $0x2f4] sm:$0xff]
  %v196 = vld [vmem:[%s0 + $0x2fc] sm:$0xf]
  %v197 = vld [vmem:[%s2] sm:$0xff]
  %v198 = vld [vmem:[%s2 + $0x8] sm:$0xff]
  %v199 = vld [vmem:[%s2 + $0x10] sm:$0xff]
  %v200 = vld [vmem:[%s2 + $0x18] sm:$0xff]
  %v201 = vld [vmem:[%s2 + $0x20] sm:$0xff]
  %v202 = vld [vmem:[%s2 + $0x28] sm:$0xff]
  %v203 = vld [vmem:[%s2 + $0x30] sm:$0xff]
  %v204 = vld [vmem:[%s2 + $0x38] sm:$0xff]
  %v205 = vld [vmem:[%s2 + $0x40] sm:$0xff]
  %v206 = vld [vmem:[%s2 + $0x48] sm:$0xff]
  %v207 = vld [vmem:[%s2 + $0x50] sm:$0xff]
  %v208 = vld [vmem:[%s2 + $0x58] sm:$0xff]
  %v209 = vld [vmem:[%s2 + $0x60] sm:$0xff]
  %v210 = vld [vmem:[%s2 + $0x68] sm:$0xff]
  %v211 = vld [vmem:[%s2 + $0x70] sm:$0xff]
  %v212 = vld [vmem:[%s2 + $0x78] sm:$0xff]
  %v213 = vld [vmem:[%s2 + $0x80] sm:$0xff]
  %v214 = vld [vmem:[%s2 + $0x88] sm:$0xff]
  %v215 = vld [vmem:[%s2 + $0x90] sm:$0xff]
  %v216 = vld [vmem:[%s2 + $0x98] sm:$0xff]
  %v217 = vld [vmem:[%s2 + $0xa0] sm:$0xff]
  %v218 = vld [vmem:[%s2 + $0xa8] sm:$0xff]
  %v219 = vld [vmem:[%s2 + $0xb0] sm:$0xff]
  %v220 = vld [vmem:[%s2 + $0xb8] sm:$0xff]
  %v221 = vld [vmem:[%s2 + $0xc0] sm:$0xff]
  %v222 = vld [vmem:[%s2 + $0xc8] sm:$0xff]
  %v223 = vld [vmem:[%s2 + $0xd0] sm:$0xff]
  %225 = vset.pattern.permute.xlu0 0
  %226 = vperm.xlu0 %225, %v197
  %v227 = vpop.permute.xlu0 %226
  %230 = vset.pattern.permute.xlu0 0
  %231 = vperm.xlu0 %230, %v198
  %v232 = vpop.permute.xlu0 %231
  %235 = vset.pattern.permute.xlu0 0
  %236 = vperm.xlu0 %235, %v199
  %v237 = vpop.permute.xlu0 %236
  %240 = vset.pattern.permute.xlu0 0
  %241 = vperm.xlu0 %240, %v200
  %v242 = vpop.permute.xlu0 %241
  %245 = vset.pattern.permute.xlu0 0
  %246 = vperm.xlu0 %245, %v201
  %v247 = vpop.permute.xlu0 %246
  %250 = vset.pattern.permute.xlu0 0
  %251 = vperm.xlu0 %250, %v202
  %v252 = vpop.permute.xlu0 %251
  %255 = vset.pattern.permute.xlu0 0
  %256 = vperm.xlu0 %255, %v203
  %v257 = vpop.permute.xlu0 %256
  %260 = vset.pattern.permute.xlu0 0
  %261 = vperm.xlu0 %260, %v204
  %v262 = vpop.permute.xlu0 %261
  %265 = vset.pattern.permute.xlu0 0
  %266 = vperm.xlu0 %265, %v205
  %v267 = vpop.permute.xlu0 %266
  %270 = vset.pattern.permute.xlu0 0
  %271 = vperm.xlu0 %270, %v206
  %v272 = vpop.permute.xlu0 %271
  %275 = vset.pattern.permute.xlu0 0
  %276 = vperm.xlu0 %275, %v207
  %v277 = vpop.permute.xlu0 %276
  %280 = vset.pattern.permute.xlu0 0
  %281 = vperm.xlu0 %280, %v208
  %v282 = vpop.permute.xlu0 %281
  %285 = vset.pattern.permute.xlu0 0
  %286 = vperm.xlu0 %285, %v209
  %v287 = vpop.permute.xlu0 %286
  %290 = vset.pattern.permute.xlu0 0
  %291 = vperm.xlu0 %290, %v210
  %v292 = vpop.permute.xlu0 %291
  %295 = vset.pattern.permute.xlu0 0
  %296 = vperm.xlu0 %295, %v211
  %v297 = vpop.permute.xlu0 %296
  %300 = vset.pattern.permute.xlu0 0
  %301 = vperm.xlu0 %300, %v212
  %v302 = vpop.permute.xlu0 %301
  %305 = vset.pattern.permute.xlu0 0
  %306 = vperm.xlu0 %305, %v213
  %v307 = vpop.permute.xlu0 %306
  %310 = vset.pattern.permute.xlu0 0
  %311 = vperm.xlu0 %310, %v214
  %v312 = vpop.permute.xlu0 %311
  %315 = vset.pattern.permute.xlu0 0
  %316 = vperm.xlu0 %315, %v215
  %v317 = vpop.permute.xlu0 %316
  %320 = vset.pattern.permute.xlu0 0
  %321 = vperm.xlu0 %320, %v216
  %v322 = vpop.permute.xlu0 %321
  %325 = vset.pattern.permute.xlu0 0
  %326 = vperm.xlu0 %325, %v217
  %v327 = vpop.permute.xlu0 %326
  %330 = vset.pattern.permute.xlu0 0
  %331 = vperm.xlu0 %330, %v218
  %v332 = vpop.permute.xlu0 %331
  %335 = vset.pattern.permute.xlu0 0
  %336 = vperm.xlu0 %335, %v219
  %v337 = vpop.permute.xlu0 %336
  %340 = vset.pattern.permute.xlu0 0
  %341 = vperm.xlu0 %340, %v220
  %v342 = vpop.permute.xlu0 %341
  %345 = vset.pattern.permute.xlu0 0
  %346 = vperm.xlu0 %345, %v221
  %v347 = vpop.permute.xlu0 %346
  %350 = vset.pattern.permute.xlu0 0
  %351 = vperm.xlu0 %350, %v222
  %v352 = vpop.permute.xlu0 %351
  %355 = vset.pattern.permute.xlu0 0
  %356 = vperm.xlu0 %355, %v223
  %v357 = vpop.permute.xlu0 %356
  %v413 = vunpack.c.l.b16 %v15
  %v414 = vunpack.c.h.b16 %v15
  %v415 = vunpack.c.l.b16 %v16
  %v416 = vunpack.c.l.b16 %v17
  %v417 = vunpack.c.h.b16 %v17
  %v418 = vunpack.c.l.b16 %v18
  %v419 = vunpack.c.l.b16 %v19
  %v420 = vunpack.c.h.b16 %v19
  %v421 = vunpack.c.l.b16 %v20
  %v422 = vunpack.c.l.b16 %v21
  %v423 = vunpack.c.h.b16 %v21
  %v424 = vunpack.c.l.b16 %v22
  %v425 = vunpack.c.l.b16 %v23
  %v426 = vunpack.c.h.b16 %v23
  %v427 = vunpack.c.l.b16 %v24
  %v428 = vunpack.c.l.b16 %v25
  %v429 = vunpack.c.h.b16 %v25
  %v430 = vunpack.c.l.b16 %v26
  %v431 = vunpack.c.l.b16 %v27
  %v432 = vunpack.c.h.b16 %v27
  %v433 = vunpack.c.l.b16 %v28
  %v434 = vunpack.c.l.b16 %v29
  %v435 = vunpack.c.h.b16 %v29
  %v436 = vunpack.c.l.b16 %v30
  %v437 = vunpack.c.l.b16 %v31
  %v438 = vunpack.c.h.b16 %v31
  %v439 = vunpack.c.l.b16 %v32
  %v440 = vunpack.c.l.b16 %v33
  %v441 = vunpack.c.h.b16 %v33
  %v442 = vunpack.c.l.b16 %v34
  %v443 = vunpack.c.l.b16 %v35
  %v444 = vunpack.c.h.b16 %v35
  %v445 = vunpack.c.l.b16 %v36
  %v446 = vunpack.c.l.b16 %v37
  %v447 = vunpack.c.h.b16 %v37
  %v448 = vunpack.c.l.b16 %v38
  %v449 = vunpack.c.l.b16 %v39
  %v450 = vunpack.c.h.b16 %v39
  %v451 = vunpack.c.l.b16 %v40
  %v452 = vunpack.c.l.b16 %v41
  %v453 = vunpack.c.h.b16 %v41
  %v454 = vunpack.c.l.b16 %v42
  %v455 = vunpack.c.l.b16 %v43
  %v456 = vunpack.c.h.b16 %v43
  %v457 = vunpack.c.l.b16 %v44
  %v458 = vunpack.c.l.b16 %v45
  %v459 = vunpack.c.h.b16 %v45
  %v460 = vunpack.c.l.b16 %v46
  %v461 = vunpack.c.l.b16 %v47
  %v462 = vunpack.c.h.b16 %v47
  %v463 = vunpack.c.l.b16 %v48
  %v464 = vunpack.c.l.b16 %v49
  %v465 = vunpack.c.h.b16 %v49
  %v466 = vunpack.c.l.b16 %v50
  %v467 = vunpack.c.l.b16 %v51
  %v468 = vunpack.c.h.b16 %v51
  %v469 = vunpack.c.l.b16 %v52
  %v470 = vunpack.c.l.b16 %v53
  %v471 = vunpack.c.h.b16 %v53
  %v472 = vunpack.c.l.b16 %v54
  %v473 = vunpack.c.l.b16 %v55
  %v474 = vunpack.c.h.b16 %v55
  %v475 = vunpack.c.l.b16 %v56
  %v476 = vunpack.c.l.b16 %v57
  %v477 = vunpack.c.h.b16 %v57
  %v478 = vunpack.c.l.b16 %v58
  %v479 = vunpack.c.l.b16 %v59
  %v480 = vunpack.c.h.b16 %v59
  %v481 = vunpack.c.l.b16 %v60
  %v482 = vunpack.c.l.b16 %v61
  %v483 = vunpack.c.h.b16 %v61
  %v484 = vunpack.c.l.b16 %v62
  %v485 = vunpack.c.l.b16 %v63
  %v486 = vunpack.c.h.b16 %v63
  %v487 = vunpack.c.l.b16 %v64
  %v488 = vunpack.c.l.b16 %v65
  %v489 = vunpack.c.h.b16 %v65
  %v490 = vunpack.c.l.b16 %v66
  %v491 = vunpack.c.l.b16 %v67
  %v492 = vunpack.c.h.b16 %v67
  %v493 = vunpack.c.l.b16 %v68
  %v494 = vpack.c.b16 %v416, %v413
  %v495 = vpack.c.b16 %v417, %v414
  %v496 = vpack.c.b16 %v418, %v415
  %v497 = vpack.c.b16 %v422, %v419
  %v498 = vpack.c.b16 %v423, %v420
  %v499 = vpack.c.b16 %v424, %v421
  %v500 = vpack.c.b16 %v428, %v425
  %v501 = vpack.c.b16 %v429, %v426
  %v502 = vpack.c.b16 %v430, %v427
  %v503 = vpack.c.b16 %v434, %v431
  %v504 = vpack.c.b16 %v435, %v432
  %v505 = vpack.c.b16 %v436, %v433
  %v506 = vpack.c.b16 %v440, %v437
  %v507 = vpack.c.b16 %v441, %v438
  %v508 = vpack.c.b16 %v442, %v439
  %v509 = vpack.c.b16 %v446, %v443
  %v510 = vpack.c.b16 %v447, %v444
  %v511 = vpack.c.b16 %v448, %v445
  %v512 = vpack.c.b16 %v452, %v449
  %v513 = vpack.c.b16 %v453, %v450
  %v514 = vpack.c.b16 %v454, %v451
  %v515 = vpack.c.b16 %v458, %v455
  %v516 = vpack.c.b16 %v459, %v456
  %v517 = vpack.c.b16 %v460, %v457
  %v518 = vpack.c.b16 %v464, %v461
  %v519 = vpack.c.b16 %v465, %v462
  %v520 = vpack.c.b16 %v466, %v463
  %v521 = vpack.c.b16 %v470, %v467
  %v522 = vpack.c.b16 %v471, %v468
  %v523 = vpack.c.b16 %v472, %v469
  %v524 = vpack.c.b16 %v476, %v473
  %v525 = vpack.c.b16 %v477, %v474
  %v526 = vpack.c.b16 %v478, %v475
  %v527 = vpack.c.b16 %v482, %v479
  %v528 = vpack.c.b16 %v483, %v480
  %v529 = vpack.c.b16 %v484, %v481
  %v530 = vpack.c.b16 %v488, %v485
  %v531 = vpack.c.b16 %v489, %v486
  %v532 = vpack.c.b16 %v490, %v487
  %v533 = vpack.c.b16 %v491, %v491
  %v534 = vpack.c.b16 %v492, %v492
  %v535 = vpack.c.b16 %v493, %v493
  %v692 = vunpack.c.l.b16 %v69
  %v693 = vunpack.c.h.b16 %v69
  %v694 = vunpack.c.l.b16 %v70
  %v695 = vunpack.c.l.b16 %v71
  %v696 = vunpack.c.h.b16 %v71
  %v697 = vunpack.c.l.b16 %v72
  %v698 = vunpack.c.l.b16 %v73
  %v699 = vunpack.c.h.b16 %v73
  %v700 = vunpack.c.l.b16 %v74
  %v701 = vunpack.c.l.b16 %v75
  %v702 = vunpack.c.h.b16 %v75
  %v703 = vunpack.c.l.b16 %v76
  %v704 = vunpack.c.l.b16 %v77
  %v705 = vunpack.c.h.b16 %v77
  %v706 = vunpack.c.l.b16 %v78
  %v707 = vunpack.c.l.b16 %v79
  %v708 = vunpack.c.h.b16 %v79
  %v709 = vunpack.c.l.b16 %v80
  %v710 = vunpack.c.l.b16 %v81
  %v711 = vunpack.c.h.b16 %v81
  %v712 = vunpack.c.l.b16 %v82
  %v713 = vunpack.c.l.b16 %v83
  %v714 = vunpack.c.h.b16 %v83
  %v715 = vunpack.c.l.b16 %v84
  %v716 = vunpack.c.l.b16 %v85
  %v717 = vunpack.c.h.b16 %v85
  %v718 = vunpack.c.l.b16 %v86
  %v719 = vunpack.c.l.b16 %v87
  %v720 = vunpack.c.h.b16 %v87
  %v721 = vunpack.c.l.b16 %v88
  %v722 = vunpack.c.l.b16 %v89
  %v723 = vunpack.c.h.b16 %v89
  %v724 = vunpack.c.l.b16 %v90
  %v725 = vunpack.c.l.b16 %v91
  %v726 = vunpack.c.h.b16 %v91
  %v727 = vunpack.c.l.b16 %v92
  %v728 = vunpack.c.l.b16 %v93
  %v729 = vunpack.c.h.b16 %v93
  %v730 = vunpack.c.l.b16 %v94
  %v731 = vunpack.c.l.b16 %v95
  %v732 = vunpack.c.h.b16 %v95
  %v733 = vunpack.c.l.b16 %v96
  %v734 = vunpack.c.l.b16 %v97
  %v735 = vunpack.c.h.b16 %v97
  %v736 = vunpack.c.l.b16 %v98
  %v737 = vunpack.c.l.b16 %v99
  %v738 = vunpack.c.h.b16 %v99
  %v739 = vunpack.c.l.b16 %v100
  %v740 = vunpack.c.l.b16 %v101
  %v741 = vunpack.c.h.b16 %v101
  %v742 = vunpack.c.l.b16 %v102
  %v743 = vunpack.c.l.b16 %v103
  %v744 = vunpack.c.h.b16 %v103
  %v745 = vunpack.c.l.b16 %v104
  %v746 = vunpack.c.l.b16 %v105
  %v747 = vunpack.c.h.b16 %v105
  %v748 = vunpack.c.l.b16 %v106
  %v749 = vunpack.c.l.b16 %v107
  %v750 = vunpack.c.h.b16 %v107
  %v751 = vunpack.c.l.b16 %v108
  %v752 = vunpack.c.l.b16 %v109
  %v753 = vunpack.c.h.b16 %v109
  %v754 = vunpack.c.l.b16 %v110
  %v755 = vunpack.c.l.b16 %v111
  %v756 = vunpack.c.h.b16 %v111
  %v757 = vunpack.c.l.b16 %v112
  %v758 = vunpack.c.l.b16 %v113
  %v759 = vunpack.c.h.b16 %v113
  %v760 = vunpack.c.l.b16 %v114
  %v761 = vunpack.c.l.b16 %v115
  %v762 = vunpack.c.h.b16 %v115
  %v763 = vunpack.c.l.b16 %v116
  %v764 = vunpack.c.l.b16 %v117
  %v765 = vunpack.c.h.b16 %v117
  %v766 = vunpack.c.l.b16 %v118
  %v767 = vunpack.c.l.b16 %v119
  %v768 = vunpack.c.h.b16 %v119
  %v769 = vunpack.c.l.b16 %v120
  %v770 = vunpack.c.l.b16 %v121
  %v771 = vunpack.c.h.b16 %v121
  %v772 = vunpack.c.l.b16 %v122
  %v773 = vunpack.c.l.b16 %v123
  %v774 = vunpack.c.h.b16 %v123
  %v775 = vunpack.c.l.b16 %v124
  %v776 = vunpack.c.l.b16 %v125
  %v777 = vunpack.c.h.b16 %v125
  %v778 = vunpack.c.l.b16 %v126
  %v779 = vunpack.c.l.b16 %v127
  %v780 = vunpack.c.h.b16 %v127
  %v781 = vunpack.c.l.b16 %v128
  %v782 = vunpack.c.l.b16 %v129
  %v783 = vunpack.c.h.b16 %v129
  %v784 = vunpack.c.l.b16 %v130
  %v785 = vunpack.c.l.b16 %v131
  %v786 = vunpack.c.h.b16 %v131
  %v787 = vunpack.c.l.b16 %v132
  %v788 = vunpack.c.l.b16 %v133
  %v789 = vunpack.c.h.b16 %v133
  %v790 = vunpack.c.l.b16 %v134
  %v791 = vunpack.c.l.b16 %v135
  %v792 = vunpack.c.h.b16 %v135
  %v793 = vunpack.c.l.b16 %v136
  %v794 = vunpack.c.l.b16 %v137
  %v795 = vunpack.c.h.b16 %v137
  %v796 = vunpack.c.l.b16 %v138
  %v797 = vunpack.c.l.b16 %v139
  %v798 = vunpack.c.h.b16 %v139
  %v799 = vunpack.c.l.b16 %v140
  %v800 = vunpack.c.l.b16 %v141
  %v801 = vunpack.c.h.b16 %v141
  %v802 = vunpack.c.l.b16 %v142
  %v803 = vunpack.c.l.b16 %v143
  %v804 = vunpack.c.h.b16 %v143
  %v805 = vunpack.c.l.b16 %v144
  %v806 = vunpack.c.l.b16 %v145
  %v807 = vunpack.c.h.b16 %v145
  %v808 = vunpack.c.l.b16 %v146
  %v809 = vunpack.c.l.b16 %v147
  %v810 = vunpack.c.h.b16 %v147
  %v811 = vunpack.c.l.b16 %v148
  %v812 = vunpack.c.l.b16 %v149
  %v813 = vunpack.c.h.b16 %v149
  %v814 = vunpack.c.l.b16 %v150
  %v815 = vunpack.c.l.b16 %v151
  %v816 = vunpack.c.h.b16 %v151
  %v817 = vunpack.c.l.b16 %v152
  %v818 = vunpack.c.l.b16 %v153
  %v819 = vunpack.c.h.b16 %v153
  %v820 = vunpack.c.l.b16 %v154
  %v821 = vunpack.c.l.b16 %v155
  %v822 = vunpack.c.h.b16 %v155
  %v823 = vunpack.c.l.b16 %v156
  %v824 = vunpack.c.l.b16 %v157
  %v825 = vunpack.c.h.b16 %v157
  %v826 = vunpack.c.l.b16 %v158
  %v827 = vunpack.c.l.b16 %v159
  %v828 = vunpack.c.h.b16 %v159
  %v829 = vunpack.c.l.b16 %v160
  %v830 = vunpack.c.l.b16 %v161
  %v831 = vunpack.c.h.b16 %v161
  %v832 = vunpack.c.l.b16 %v162
  %v833 = vunpack.c.l.b16 %v163
  %v834 = vunpack.c.h.b16 %v163
  %v835 = vunpack.c.l.b16 %v164
  %v836 = vunpack.c.l.b16 %v165
  %v837 = vunpack.c.h.b16 %v165
  %v838 = vunpack.c.l.b16 %v166
  %v839 = vunpack.c.l.b16 %v167
  %v840 = vunpack.c.h.b16 %v167
  %v841 = vunpack.c.l.b16 %v168
  %v842 = vunpack.c.l.b16 %v169
  %v843 = vunpack.c.h.b16 %v169
  %v844 = vunpack.c.l.b16 %v170
  %v845 = vunpack.c.l.b16 %v171
  %v846 = vunpack.c.h.b16 %v171
  %v847 = vunpack.c.l.b16 %v172
  %v848 = vunpack.c.l.b16 %v173
  %v849 = vunpack.c.h.b16 %v173
  %v850 = vunpack.c.l.b16 %v174
  %v851 = vunpack.c.l.b16 %v175
  %v852 = vunpack.c.h.b16 %v175
  %v853 = vunpack.c.l.b16 %v176
  %v854 = vunpack.c.l.b16 %v177
  %v855 = vunpack.c.h.b16 %v177
  %v856 = vunpack.c.l.b16 %v178
  %v857 = vunpack.c.l.b16 %v179
  %v858 = vunpack.c.h.b16 %v179
  %v859 = vunpack.c.l.b16 %v180
  %v860 = vunpack.c.l.b16 %v181
  %v861 = vunpack.c.h.b16 %v181
  %v862 = vunpack.c.l.b16 %v182
  %v863 = vunpack.c.l.b16 %v183
  %v864 = vunpack.c.h.b16 %v183
  %v865 = vunpack.c.l.b16 %v184
  %v866 = vunpack.c.l.b16 %v185
  %v867 = vunpack.c.h.b16 %v185
  %v868 = vunpack.c.l.b16 %v186
  %v869 = vunpack.c.l.b16 %v187
  %v870 = vunpack.c.h.b16 %v187
  %v871 = vunpack.c.l.b16 %v188
  %v872 = vunpack.c.l.b16 %v189
  %v873 = vunpack.c.h.b16 %v189
  %v874 = vunpack.c.l.b16 %v190
  %v875 = vunpack.c.l.b16 %v191
  %v876 = vunpack.c.h.b16 %v191
  %v877 = vunpack.c.l.b16 %v192
  %v878 = vunpack.c.l.b16 %v193
  %v879 = vunpack.c.h.b16 %v193
  %v880 = vunpack.c.l.b16 %v194
  %v881 = vunpack.c.l.b16 %v195
  %v882 = vunpack.c.h.b16 %v195
  %v883 = vunpack.c.l.b16 %v196
  %v884 = vpack.c.b16 %v695, %v692
  %v885 = vpack.c.b16 %v696, %v693
  %v886 = vpack.c.b16 %v697, %v694
  %v887 = vpack.c.b16 %v701, %v698
  %v888 = vpack.c.b16 %v702, %v699
  %v889 = vpack.c.b16 %v703, %v700
  %v890 = vpack.c.b16 %v707, %v704
  %v891 = vpack.c.b16 %v708, %v705
  %v892 = vpack.c.b16 %v709, %v706
  %v893 = vpack.c.b16 %v713, %v710
  %v894 = vpack.c.b16 %v714, %v711
  %v895 = vpack.c.b16 %v715, %v712
  %v896 = vpack.c.b16 %v719, %v716
  %v897 = vpack.c.b16 %v720, %v717
  %v898 = vpack.c.b16 %v721, %v718
  %v899 = vpack.c.b16 %v725, %v722
  %v900 = vpack.c.b16 %v726, %v723
  %v901 = vpack.c.b16 %v727, %v724
  %v902 = vpack.c.b16 %v731, %v728
  %v903 = vpack.c.b16 %v732, %v729
  %v904 = vpack.c.b16 %v733, %v730
  %v905 = vpack.c.b16 %v737, %v734
  %v906 = vpack.c.b16 %v738, %v735
  %v907 = vpack.c.b16 %v739, %v736
  %v908 = vpack.c.b16 %v743, %v740
  %v909 = vpack.c.b16 %v744, %v741
  %v910 = vpack.c.b16 %v745, %v742
  %v911 = vpack.c.b16 %v749, %v746
  %v912 = vpack.c.b16 %v750, %v747
  %v913 = vpack.c.b16 %v751, %v748
  %v914 = vpack.c.b16 %v755, %v752
  %v915 = vpack.c.b16 %v756, %v753
  %v916 = vpack.c.b16 %v757, %v754
  %v917 = vpack.c.b16 %v761, %v758
  %v918 = vpack.c.b16 %v762, %v759
  %v919 = vpack.c.b16 %v763, %v760
  %v920 = vpack.c.b16 %v767, %v764
  %v921 = vpack.c.b16 %v768, %v765
  %v922 = vpack.c.b16 %v769, %v766
  %v923 = vpack.c.b16 %v773, %v770
  %v924 = vpack.c.b16 %v774, %v771
  %v925 = vpack.c.b16 %v775, %v772
  %v926 = vpack.c.b16 %v779, %v776
  %v927 = vpack.c.b16 %v780, %v777
  %v928 = vpack.c.b16 %v781, %v778
  %v929 = vpack.c.b16 %v785, %v782
  %v930 = vpack.c.b16 %v786, %v783
  %v931 = vpack.c.b16 %v787, %v784
  %v932 = vpack.c.b16 %v791, %v788
  %v933 = vpack.c.b16 %v792, %v789
  %v934 = vpack.c.b16 %v793, %v790
  %v935 = vpack.c.b16 %v797, %v794
  %v936 = vpack.c.b16 %v798, %v795
  %v937 = vpack.c.b16 %v799, %v796
  %v938 = vpack.c.b16 %v803, %v800
  %v939 = vpack.c.b16 %v804, %v801
  %v940 = vpack.c.b16 %v805, %v802
  %v941 = vpack.c.b16 %v809, %v806
  %v942 = vpack.c.b16 %v810, %v807
  %v943 = vpack.c.b16 %v811, %v808
  %v944 = vpack.c.b16 %v815, %v812
  %v945 = vpack.c.b16 %v816, %v813
  %v946 = vpack.c.b16 %v817, %v814
  %v947 = vpack.c.b16 %v821, %v818
  %v948 = vpack.c.b16 %v822, %v819
  %v949 = vpack.c.b16 %v823, %v820
  %v950 = vpack.c.b16 %v827, %v824
  %v951 = vpack.c.b16 %v828, %v825
  %v952 = vpack.c.b16 %v829, %v826
  %v953 = vpack.c.b16 %v833, %v830
  %v954 = vpack.c.b16 %v834, %v831
  %v955 = vpack.c.b16 %v835, %v832
  %v956 = vpack.c.b16 %v839, %v836
  %v957 = vpack.c.b16 %v840, %v837
  %v958 = vpack.c.b16 %v841, %v838
  %v959 = vpack.c.b16 %v845, %v842
  %v960 = vpack.c.b16 %v846, %v843
  %v961 = vpack.c.b16 %v847, %v844
  %v962 = vpack.c.b16 %v851, %v848
  %v963 = vpack.c.b16 %v852, %v849
  %v964 = vpack.c.b16 %v853, %v850
  %v965 = vpack.c.b16 %v857, %v854
  %v966 = vpack.c.b16 %v858, %v855
  %v967 = vpack.c.b16 %v859, %v856
  %v968 = vpack.c.b16 %v863, %v860
  %v969 = vpack.c.b16 %v864, %v861
  %v970 = vpack.c.b16 %v865, %v862
  %v971 = vpack.c.b16 %v869, %v866
  %v972 = vpack.c.b16 %v870, %v867
  %v973 = vpack.c.b16 %v871, %v868
  %v974 = vpack.c.b16 %v875, %v872
  %v975 = vpack.c.b16 %v876, %v873
  %v976 = vpack.c.b16 %v877, %v874
  %v977 = vpack.c.b16 %v881, %v878
  %v978 = vpack.c.b16 %v882, %v879
  %v979 = vpack.c.b16 %v883, %v880
  %vm1044 = vcmask 261120
  %v1046 = vsel %vm1044, %v496, 0
  %v1049 = vsel %vm1044, %v499, 0
  %v1052 = vsel %vm1044, %v502, 0
  %v1055 = vsel %vm1044, %v505, 0
  %v1058 = vsel %vm1044, %v508, 0
  %v1061 = vsel %vm1044, %v511, 0
  %v1064 = vsel %vm1044, %v514, 0
  %v1067 = vsel %vm1044, %v517, 0
  %v1070 = vsel %vm1044, %v520, 0
  %v1073 = vsel %vm1044, %v523, 0
  %v1076 = vsel %vm1044, %v526, 0
  %v1079 = vsel %vm1044, %v529, 0
  %v1082 = vsel %vm1044, %v532, 0
  %v1085 = vsel %vm1044, %v535, 0
  %v1088 = vsel %vm1044, %v886, 0
  %v1091 = vsel %vm1044, %v889, 0
  %v1094 = vsel %vm1044, %v892, 0
  %v1097 = vsel %vm1044, %v895, 0
  %v1100 = vsel %vm1044, %v898, 0
  %v1103 = vsel %vm1044, %v901, 0
  %v1106 = vsel %vm1044, %v904, 0
  %v1109 = vsel %vm1044, %v907, 0
  %v1112 = vsel %vm1044, %v910, 0
  %v1115 = vsel %vm1044, %v913, 0
  %v1118 = vsel %vm1044, %v916, 0
  %v1121 = vsel %vm1044, %v919, 0
  %v1124 = vsel %vm1044, %v922, 0
  %v1127 = vsel %vm1044, %v925, 0
  %v1130 = vsel %vm1044, %v928, 0
  %v1133 = vsel %vm1044, %v931, 0
  %v1136 = vsel %vm1044, %v934, 0
  %v1139 = vsel %vm1044, %v937, 0
  %v1142 = vsel %vm1044, %v940, 0
  %v1145 = vsel %vm1044, %v943, 0
  %v1148 = vsel %vm1044, %v946, 0
  %v1151 = vsel %vm1044, %v949, 0
  %v1154 = vsel %vm1044, %v952, 0
  %v1157 = vsel %vm1044, %v955, 0
  %v1160 = vsel %vm1044, %v958, 0
  %v1163 = vsel %vm1044, %v961, 0
  %v1166 = vsel %vm1044, %v964, 0
  %v1169 = vsel %vm1044, %v967, 0
  %v1172 = vsel %vm1044, %v970, 0
  %v1175 = vsel %vm1044, %v973, 0
  %v1178 = vsel %vm1044, %v976, 0
  %v1181 = vsel %vm1044, %v979, 0
  %1183 = vmatprep.subr.bf16.mxu0 %v906
  %1184 = vmatpush1.bf16.xpose.msra.mxu0 %v905
  %1185 = vmatprep.subr.bf16.mxu0 %v903
  %1186 = vmatpush1.bf16.xpose.msra.mxu0 %v902
  %1187 = vmatprep.subr.bf16.mxu0 %v900
  %1188 = vmatpush1.bf16.xpose.msra.mxu0 %v899
  %1189 = vmatprep.subr.bf16.mxu0 %v897
  %1190 = vmatpush1.bf16.xpose.msra.mxu0 %v896
  %1191 = vmatprep.subr.bf16.mxu0 %v894
  %1192 = vmatpush1.bf16.xpose.msra.mxu0 %v893
  %1193 = vmatprep.subr.bf16.mxu0 %v891
  %1194 = vmatpush1.bf16.xpose.msra.mxu0 %v890
  %1195 = vmatprep.subr.bf16.mxu0 %v888
  %1196 = vmatpush1.bf16.xpose.msra.mxu0 %v887
  %1197 = vmatprep.subr.bf16.mxu0 %v885
  %1198 = vmatpush1.bf16.xpose.msra.mxu0 %v884
  %1199 = vmatprep.subr.bf16.mxu0 %v930
  %1200 = vmatpush2.bf16.xpose.msra.mxu0 %v929
  %1201 = vmatprep.subr.bf16.mxu0 %v927
  %1202 = vmatpush2.bf16.xpose.msra.mxu0 %v926
  %1203 = vmatprep.subr.bf16.mxu0 %v924
  %1204 = vmatpush2.bf16.xpose.msra.mxu0 %v923
  %1205 = vmatprep.subr.bf16.mxu0 %v921
  %1206 = vmatpush2.bf16.xpose.msra.mxu0 %v920
  %1207 = vmatprep.subr.bf16.mxu0 %v918
  %1208 = vmatpush2.bf16.xpose.msra.mxu0 %v917
  %1209 = vmatprep.subr.bf16.mxu0 %v915
  %1210 = vmatpush2.bf16.xpose.msra.mxu0 %v914
  %1211 = vmatprep.subr.bf16.mxu0 %v912
  %1212 = vmatpush2.bf16.xpose.msra.mxu0 %v911
  %1213 = vmatprep.subr.bf16.mxu0 %v909
  %1214 = vmatpush2.bf16.xpose.msra.mxu0 %v908
  %1215 = vmatprep.mubr.bf16.mxu0 %v495
  %1216 = vmatmul.mubr.bf16.gmra.mxu0 %v494
  %v1217 = vpop.f32.mrf.mxu0
  %v1218 = vadd.f32 %v227, %v1217
  %v1219 = vpop.f32.mrf.mxu0
  %v1220 = vadd.f32 %v227, %v1219
  %v1221 = vpop.f32.mrf.mxu0
  %v1222 = vadd.f32 %v232, %v1221
  %v1223 = vpop.f32.mrf.mxu0
  %v1224 = vadd.f32 %v232, %v1223
  %1225 = vmatprep.mubr.bf16.mxu0 %v498
  %1226 = vmatmul.mubr.bf16.gmra.mxu0 %v497
  %v1227 = vpop.f32.mrf.mxu0
  %v1228 = vadd.f32 %v237, %v1227
  %v1229 = vpop.f32.mrf.mxu0
  %v1230 = vadd.f32 %v237, %v1229
  %v1231 = vpop.f32.mrf.mxu0
  %v1232 = vadd.f32 %v242, %v1231
  %v1233 = vpop.f32.mrf.mxu0
  %v1234 = vadd.f32 %v242, %v1233
  %1235 = vmatprep.mubr.bf16.mxu0 %v501
  %1236 = vmatmul.mubr.bf16.gmra.mxu0 %v500
  %v1237 = vpop.f32.mrf.mxu0
  %v1238 = vadd.f32 %v247, %v1237
  %v1239 = vpop.f32.mrf.mxu0
  %v1240 = vadd.f32 %v247, %v1239
  %v1241 = vpop.f32.mrf.mxu0
  %v1242 = vadd.f32 %v252, %v1241
  %v1243 = vpop.f32.mrf.mxu0
  %v1244 = vadd.f32 %v252, %v1243
  %1245 = vmatprep.mubr.bf16.mxu0 %v504
  %1246 = vmatmul.mubr.bf16.gmra.mxu0 %v503
  %v1247 = vpop.f32.mrf.mxu0
  %v1248 = vadd.f32 %v257, %v1247
  %v1249 = vpop.f32.mrf.mxu0
  %v1250 = vadd.f32 %v257, %v1249
  %v1251 = vpop.f32.mrf.mxu0
  %v1252 = vadd.f32 %v262, %v1251
  %v1253 = vpop.f32.mrf.mxu0
  %v1254 = vadd.f32 %v262, %v1253
  %1255 = vmatprep.mubr.bf16.mxu0 %v507
  %1256 = vmatmul.mubr.bf16.gmra.mxu0 %v506
  %v1257 = vpop.f32.mrf.mxu0
  %v1258 = vadd.f32 %v267, %v1257
  %v1259 = vpop.f32.mrf.mxu0
  %v1260 = vadd.f32 %v267, %v1259
  %v1261 = vpop.f32.mrf.mxu0
  %v1262 = vadd.f32 %v272, %v1261
  %v1263 = vpop.f32.mrf.mxu0
  %v1264 = vadd.f32 %v272, %v1263
  %1265 = vmatprep.mubr.bf16.mxu0 %v510
  %1266 = vmatmul.mubr.bf16.gmra.mxu0 %v509
  %v1267 = vpop.f32.mrf.mxu0
  %v1268 = vadd.f32 %v277, %v1267
  %v1269 = vpop.f32.mrf.mxu0
  %v1270 = vadd.f32 %v277, %v1269
  %v1271 = vpop.f32.mrf.mxu0
  %v1272 = vadd.f32 %v282, %v1271
  %v1273 = vpop.f32.mrf.mxu0
  %v1274 = vadd.f32 %v282, %v1273
  %1275 = vmatprep.mubr.bf16.mxu0 %v513
  %1276 = vmatmul.mubr.bf16.gmra.mxu0 %v512
  %v1277 = vpop.f32.mrf.mxu0
  %v1278 = vadd.f32 %v287, %v1277
  %v1279 = vpop.f32.mrf.mxu0
  %v1280 = vadd.f32 %v287, %v1279
  %v1281 = vpop.f32.mrf.mxu0
  %v1282 = vadd.f32 %v292, %v1281
  %v1283 = vpop.f32.mrf.mxu0
  %v1284 = vadd.f32 %v292, %v1283
  %1285 = vmatprep.mubr.bf16.mxu0 %v516
  %1286 = vmatmul.mubr.bf16.gmra.mxu0 %v515
  %v1287 = vpop.f32.mrf.mxu0
  %v1288 = vadd.f32 %v297, %v1287
  %v1289 = vpop.f32.mrf.mxu0
  %v1290 = vadd.f32 %v297, %v1289
  %v1291 = vpop.f32.mrf.mxu0
  %v1292 = vadd.f32 %v302, %v1291
  %v1293 = vpop.f32.mrf.mxu0
  %v1294 = vadd.f32 %v302, %v1293
  %1295 = vmatprep.mubr.bf16.mxu0 %v519
  %1296 = vmatmul.mubr.bf16.gmra.mxu0 %v518
  %v1297 = vpop.f32.mrf.mxu0
  %v1298 = vadd.f32 %v307, %v1297
  %v1299 = vpop.f32.mrf.mxu0
  %v1300 = vadd.f32 %v307, %v1299
  %v1301 = vpop.f32.mrf.mxu0
  %v1302 = vadd.f32 %v312, %v1301
  %v1303 = vpop.f32.mrf.mxu0
  %v1304 = vadd.f32 %v312, %v1303
  %1305 = vmatprep.mubr.bf16.mxu0 %v522
  %1306 = vmatmul.mubr.bf16.gmra.mxu0 %v521
  %v1307 = vpop.f32.mrf.mxu0
  %v1308 = vadd.f32 %v317, %v1307
  %v1309 = vpop.f32.mrf.mxu0
  %v1310 = vadd.f32 %v317, %v1309
  %v1311 = vpop.f32.mrf.mxu0
  %v1312 = vadd.f32 %v322, %v1311
  %v1313 = vpop.f32.mrf.mxu0
  %v1314 = vadd.f32 %v322, %v1313
  %1315 = vmatprep.mubr.bf16.mxu0 %v525
  %1316 = vmatmul.mubr.bf16.gmra.mxu0 %v524
  %v1317 = vpop.f32.mrf.mxu0
  %v1318 = vadd.f32 %v327, %v1317
  %v1319 = vpop.f32.mrf.mxu0
  %v1320 = vadd.f32 %v327, %v1319
  %v1321 = vpop.f32.mrf.mxu0
  %v1322 = vadd.f32 %v332, %v1321
  %v1323 = vpop.f32.mrf.mxu0
  %v1324 = vadd.f32 %v332, %v1323
  %1325 = vmatprep.mubr.bf16.mxu0 %v528
  %1326 = vmatmul.mubr.bf16.gmra.mxu0 %v527
  %v1327 = vpop.f32.mrf.mxu0
  %v1328 = vadd.f32 %v337, %v1327
  %v1329 = vpop.f32.mrf.mxu0
  %v1330 = vadd.f32 %v337, %v1329
  %v1331 = vpop.f32.mrf.mxu0
  %v1332 = vadd.f32 %v342, %v1331
  %v1333 = vpop.f32.mrf.mxu0
  %v1334 = vadd.f32 %v342, %v1333
  %1335 = vmatprep.mubr.bf16.mxu0 %v531
  %1336 = vmatmul.mubr.bf16.gmra.mxu0 %v530
  %v1337 = vpop.f32.mrf.mxu0
  %v1338 = vadd.f32 %v347, %v1337
  %v1339 = vpop.f32.mrf.mxu0
  %v1340 = vadd.f32 %v347, %v1339
  %v1341 = vpop.f32.mrf.mxu0
  %v1342 = vadd.f32 %v352, %v1341
  %v1343 = vpop.f32.mrf.mxu0
  %v1344 = vadd.f32 %v352, %v1343
  %1345 = vmatprep.mubr.bf16.mxu0 %v534
  %1346 = vmatmul.mubr.bf16.gmra.mxu0 %v533
  %v1347 = vpop.f32.mrf.mxu0
  %v1348 = vadd.f32 %v357, %v1347
  %v1349 = vpop.f32.mrf.mxu0
  %v1350 = vadd.f32 %v357, %v1349
  %v1351 = vpop.f32.mrf.mxu0
  %v1352 = vpop.f32.mrf.mxu0
  %1353 = vdwg.mxu0
  %1354 = vmatprep.subr.bf16.mxu0 0
  %1355 = vmatpush1.bf16.xpose.msra.mxu0 %v1109
  %1356 = vmatprep.subr.bf16.mxu0 0
  %1357 = vmatpush1.bf16.xpose.msra.mxu0 %v1106
  %1358 = vmatprep.subr.bf16.mxu0 0
  %1359 = vmatpush1.bf16.xpose.msra.mxu0 %v1103
  %1360 = vmatprep.subr.bf16.mxu0 0
  %1361 = vmatpush1.bf16.xpose.msra.mxu0 %v1100
  %1362 = vmatprep.subr.bf16.mxu0 0
  %1363 = vmatpush1.bf16.xpose.msra.mxu0 %v1097
  %1364 = vmatprep.subr.bf16.mxu0 0
  %1365 = vmatpush1.bf16.xpose.msra.mxu0 %v1094
  %1366 = vmatprep.subr.bf16.mxu0 0
  %1367 = vmatpush1.bf16.xpose.msra.mxu0 %v1091
  %1368 = vmatprep.subr.bf16.mxu0 0
  %1369 = vmatpush1.bf16.xpose.msra.mxu0 %v1088
  %1370 = vmatprep.subr.bf16.mxu0 0
  %1371 = vmatpush2.bf16.xpose.msra.mxu0 %v1133
  %1372 = vmatprep.subr.bf16.mxu0 0
  %1373 = vmatpush2.bf16.xpose.msra.mxu0 %v1130
  %1374 = vmatprep.subr.bf16.mxu0 0
  %1375 = vmatpush2.bf16.xpose.msra.mxu0 %v1127
  %1376 = vmatprep.subr.bf16.mxu0 0
  %1377 = vmatpush2.bf16.xpose.msra.mxu0 %v1124
  %1378 = vmatprep.subr.bf16.mxu0 0
  %1379 = vmatpush2.bf16.xpose.msra.mxu0 %v1121
  %1380 = vmatprep.subr.bf16.mxu0 0
  %1381 = vmatpush2.bf16.xpose.msra.mxu0 %v1118
  %1382 = vmatprep.subr.bf16.mxu0 0
  %1383 = vmatpush2.bf16.xpose.msra.mxu0 %v1115
  %1384 = vmatprep.subr.bf16.mxu0 0
  %1385 = vmatpush2.bf16.xpose.msra.mxu0 %v1112
  %1386 = vmatprep.mubr.bf16.mxu0 0
  %1387 = vmatmul.mubr.bf16.gmra.mxu0 %v1046
  %v1388 = vpop.f32.mrf.mxu0
  %v1389 = vadd.f32 %v1218, %v1388
  %v1390 = vpop.f32.mrf.mxu0
  %v1391 = vadd.f32 %v1220, %v1390
  %v1392 = vpop.f32.mrf.mxu0
  %v1393 = vadd.f32 %v1222, %v1392
  %v1394 = vpop.f32.mrf.mxu0
  %v1395 = vadd.f32 %v1224, %v1394
  %1396 = vmatprep.mubr.bf16.mxu0 0
  %1397 = vmatmul.mubr.bf16.gmra.mxu0 %v1049
  %v1398 = vpop.f32.mrf.mxu0
  %v1399 = vadd.f32 %v1228, %v1398
  %v1400 = vpop.f32.mrf.mxu0
  %v1401 = vadd.f32 %v1230, %v1400
  %v1402 = vpop.f32.mrf.mxu0
  %v1403 = vadd.f32 %v1232, %v1402
  %v1404 = vpop.f32.mrf.mxu0
  %v1405 = vadd.f32 %v1234, %v1404
  %1406 = vmatprep.mubr.bf16.mxu0 0
  %1407 = vmatmul.mubr.bf16.gmra.mxu0 %v1052
  %v1408 = vpop.f32.mrf.mxu0
  %v1409 = vadd.f32 %v1238, %v1408
  %v1410 = vpop.f32.mrf.mxu0
  %v1411 = vadd.f32 %v1240, %v1410
  %v1412 = vpop.f32.mrf.mxu0
  %v1413 = vadd.f32 %v1242, %v1412
  %v1414 = vpop.f32.mrf.mxu0
  %v1415 = vadd.f32 %v1244, %v1414
  %1416 = vmatprep.mubr.bf16.mxu0 0
  %1417 = vmatmul.mubr.bf16.gmra.mxu0 %v1055
  %v1418 = vpop.f32.mrf.mxu0
  %v1419 = vadd.f32 %v1248, %v1418
  %v1420 = vpop.f32.mrf.mxu0
  %v1421 = vadd.f32 %v1250, %v1420
  %v1422 = vpop.f32.mrf.mxu0
  %v1423 = vadd.f32 %v1252, %v1422
  %v1424 = vpop.f32.mrf.mxu0
  %v1425 = vadd.f32 %v1254, %v1424
  %1426 = vmatprep.mubr.bf16.mxu0 0
  %1427 = vmatmul.mubr.bf16.gmra.mxu0 %v1058
  %v1428 = vpop.f32.mrf.mxu0
  %v1429 = vadd.f32 %v1258, %v1428
  %v1430 = vpop.f32.mrf.mxu0
  %v1431 = vadd.f32 %v1260, %v1430
  %v1432 = vpop.f32.mrf.mxu0
  %v1433 = vadd.f32 %v1262, %v1432
  %v1434 = vpop.f32.mrf.mxu0
  %v1435 = vadd.f32 %v1264, %v1434
  %1436 = vmatprep.mubr.bf16.mxu0 0
  %1437 = vmatmul.mubr.bf16.gmra.mxu0 %v1061
  %v1438 = vpop.f32.mrf.mxu0
  %v1439 = vadd.f32 %v1268, %v1438
  %v1440 = vpop.f32.mrf.mxu0
  %v1441 = vadd.f32 %v1270, %v1440
  %v1442 = vpop.f32.mrf.mxu0
  %v1443 = vadd.f32 %v1272, %v1442
  %v1444 = vpop.f32.mrf.mxu0
  %v1445 = vadd.f32 %v1274, %v1444
  %1446 = vmatprep.mubr.bf16.mxu0 0
  %1447 = vmatmul.mubr.bf16.gmra.mxu0 %v1064
  %v1448 = vpop.f32.mrf.mxu0
  %v1449 = vadd.f32 %v1278, %v1448
  %v1450 = vpop.f32.mrf.mxu0
  %v1451 = vadd.f32 %v1280, %v1450
  %v1452 = vpop.f32.mrf.mxu0
  %v1453 = vadd.f32 %v1282, %v1452
  %v1454 = vpop.f32.mrf.mxu0
  %v1455 = vadd.f32 %v1284, %v1454
  %1456 = vmatprep.mubr.bf16.mxu0 0
  %1457 = vmatmul.mubr.bf16.gmra.mxu0 %v1067
  %v1458 = vpop.f32.mrf.mxu0
  %v1459 = vadd.f32 %v1288, %v1458
  %v1460 = vpop.f32.mrf.mxu0
  %v1461 = vadd.f32 %v1290, %v1460
  %v1462 = vpop.f32.mrf.mxu0
  %v1463 = vadd.f32 %v1292, %v1462
  %v1464 = vpop.f32.mrf.mxu0
  %v1465 = vadd.f32 %v1294, %v1464
  %1466 = vmatprep.mubr.bf16.mxu0 0
  %1467 = vmatmul.mubr.bf16.gmra.mxu0 %v1070
  %v1468 = vpop.f32.mrf.mxu0
  %v1469 = vadd.f32 %v1298, %v1468
  %v1470 = vpop.f32.mrf.mxu0
  %v1471 = vadd.f32 %v1300, %v1470
  %v1472 = vpop.f32.mrf.mxu0
  %v1473 = vadd.f32 %v1302, %v1472
  %v1474 = vpop.f32.mrf.mxu0
  %v1475 = vadd.f32 %v1304, %v1474
  %1476 = vmatprep.mubr.bf16.mxu0 0
  %1477 = vmatmul.mubr.bf16.gmra.mxu0 %v1073
  %v1478 = vpop.f32.mrf.mxu0
  %v1479 = vadd.f32 %v1308, %v1478
  %v1480 = vpop.f32.mrf.mxu0
  %v1481 = vadd.f32 %v1310, %v1480
  %v1482 = vpop.f32.mrf.mxu0
  %v1483 = vadd.f32 %v1312, %v1482
  %v1484 = vpop.f32.mrf.mxu0
  %v1485 = vadd.f32 %v1314, %v1484
  %1486 = vmatprep.mubr.bf16.mxu0 0
  %1487 = vmatmul.mubr.bf16.gmra.mxu0 %v1076
  %v1488 = vpop.f32.mrf.mxu0
  %v1489 = vadd.f32 %v1318, %v1488
  %v1490 = vpop.f32.mrf.mxu0
  %v1491 = vadd.f32 %v1320, %v1490
  %v1492 = vpop.f32.mrf.mxu0
  %v1493 = vadd.f32 %v1322, %v1492
  %v1494 = vpop.f32.mrf.mxu0
  %v1495 = vadd.f32 %v1324, %v1494
  %1496 = vmatprep.mubr.bf16.mxu0 0
  %1497 = vmatmul.mubr.bf16.gmra.mxu0 %v1079
  %v1498 = vpop.f32.mrf.mxu0
  %v1499 = vadd.f32 %v1328, %v1498
  %v1500 = vpop.f32.mrf.mxu0
  %v1501 = vadd.f32 %v1330, %v1500
  %v1502 = vpop.f32.mrf.mxu0
  %v1503 = vadd.f32 %v1332, %v1502
  %v1504 = vpop.f32.mrf.mxu0
  %v1505 = vadd.f32 %v1334, %v1504
  %1506 = vmatprep.mubr.bf16.mxu0 0
  %1507 = vmatmul.mubr.bf16.gmra.mxu0 %v1082
  %v1508 = vpop.f32.mrf.mxu0
  %v1509 = vadd.f32 %v1338, %v1508
  %v1510 = vpop.f32.mrf.mxu0
  %v1511 = vadd.f32 %v1340, %v1510
  %v1512 = vpop.f32.mrf.mxu0
  %v1513 = vadd.f32 %v1342, %v1512
  %v1514 = vpop.f32.mrf.mxu0
  %v1515 = vadd.f32 %v1344, %v1514
  %1516 = vmatprep.mubr.bf16.mxu0 0
  %1517 = vmatmul.mubr.bf16.gmra.mxu0 %v1085
  %v1518 = vpop.f32.mrf.mxu0
  %v1519 = vadd.f32 %v1348, %v1518
  %v1520 = vpop.f32.mrf.mxu0
  %v1521 = vadd.f32 %v1350, %v1520
  %v1522 = vpop.f32.mrf.mxu0
  %v1523 = vpop.f32.mrf.mxu0
  %1524 = vdwg.mxu0
  %1525 = vmatprep.subr.bf16.mxu0 %v954
  %1526 = vmatpush1.bf16.xpose.msra.mxu0 %v953
  %1527 = vmatprep.subr.bf16.mxu0 %v951
  %1528 = vmatpush1.bf16.xpose.msra.mxu0 %v950
  %1529 = vmatprep.subr.bf16.mxu0 %v948
  %1530 = vmatpush1.bf16.xpose.msra.mxu0 %v947
  %1531 = vmatprep.subr.bf16.mxu0 %v945
  %1532 = vmatpush1.bf16.xpose.msra.mxu0 %v944
  %1533 = vmatprep.subr.bf16.mxu0 %v942
  %1534 = vmatpush1.bf16.xpose.msra.mxu0 %v941
  %1535 = vmatprep.subr.bf16.mxu0 %v939
  %1536 = vmatpush1.bf16.xpose.msra.mxu0 %v938
  %1537 = vmatprep.subr.bf16.mxu0 %v936
  %1538 = vmatpush1.bf16.xpose.msra.mxu0 %v935
  %1539 = vmatprep.subr.bf16.mxu0 %v933
  %1540 = vmatpush1.bf16.xpose.msra.mxu0 %v932
  %1541 = vmatprep.subr.bf16.mxu0 %v978
  %1542 = vmatpush2.bf16.xpose.msra.mxu0 %v977
  %1543 = vmatprep.subr.bf16.mxu0 %v975
  %1544 = vmatpush2.bf16.xpose.msra.mxu0 %v974
  %1545 = vmatprep.subr.bf16.mxu0 %v972
  %1546 = vmatpush2.bf16.xpose.msra.mxu0 %v971
  %1547 = vmatprep.subr.bf16.mxu0 %v969
  %1548 = vmatpush2.bf16.xpose.msra.mxu0 %v968
  %1549 = vmatprep.subr.bf16.mxu0 %v966
  %1550 = vmatpush2.bf16.xpose.msra.mxu0 %v965
  %1551 = vmatprep.subr.bf16.mxu0 %v963
  %1552 = vmatpush2.bf16.xpose.msra.mxu0 %v962
  %1553 = vmatprep.subr.bf16.mxu0 %v960
  %1554 = vmatpush2.bf16.xpose.msra.mxu0 %v959
  %1555 = vmatprep.subr.bf16.mxu0 %v957
  %1556 = vmatpush2.bf16.xpose.msra.mxu0 %v956
  %1557 = vmatprep.mubr.bf16.mxu0 %v495
  %1558 = vmatmul.mubr.bf16.gmra.mxu0 %v494
  %v1559 = vpop.f32.mrf.mxu0
  %v1560 = vadd.f32 %v227, %v1559
  %v1561 = vpop.f32.mrf.mxu0
  %v1562 = vadd.f32 %v227, %v1561
  %v1563 = vpop.f32.mrf.mxu0
  %v1564 = vadd.f32 %v232, %v1563
  %v1565 = vpop.f32.mrf.mxu0
  %v1566 = vadd.f32 %v232, %v1565
  %1567 = vmatprep.mubr.bf16.mxu0 %v498
  %1568 = vmatmul.mubr.bf16.gmra.mxu0 %v497
  %v1569 = vpop.f32.mrf.mxu0
  %v1570 = vadd.f32 %v237, %v1569
  %v1571 = vpop.f32.mrf.mxu0
  %v1572 = vadd.f32 %v237, %v1571
  %v1573 = vpop.f32.mrf.mxu0
  %v1574 = vadd.f32 %v242, %v1573
  %v1575 = vpop.f32.mrf.mxu0
  %v1576 = vadd.f32 %v242, %v1575
  %1577 = vmatprep.mubr.bf16.mxu0 %v501
  %1578 = vmatmul.mubr.bf16.gmra.mxu0 %v500
  %v1579 = vpop.f32.mrf.mxu0
  %v1580 = vadd.f32 %v247, %v1579
  %v1581 = vpop.f32.mrf.mxu0
  %v1582 = vadd.f32 %v247, %v1581
  %v1583 = vpop.f32.mrf.mxu0
  %v1584 = vadd.f32 %v252, %v1583
  %v1585 = vpop.f32.mrf.mxu0
  %v1586 = vadd.f32 %v252, %v1585
  %1587 = vmatprep.mubr.bf16.mxu0 %v504
  %1588 = vmatmul.mubr.bf16.gmra.mxu0 %v503
  %v1589 = vpop.f32.mrf.mxu0
  %v1590 = vadd.f32 %v257, %v1589
  %v1591 = vpop.f32.mrf.mxu0
  %v1592 = vadd.f32 %v257, %v1591
  %v1593 = vpop.f32.mrf.mxu0
  %v1594 = vadd.f32 %v262, %v1593
  %v1595 = vpop.f32.mrf.mxu0
  %v1596 = vadd.f32 %v262, %v1595
  %1597 = vmatprep.mubr.bf16.mxu0 %v507
  %1598 = vmatmul.mubr.bf16.gmra.mxu0 %v506
  %v1599 = vpop.f32.mrf.mxu0
  %v1600 = vadd.f32 %v267, %v1599
  %v1601 = vpop.f32.mrf.mxu0
  %v1602 = vadd.f32 %v267, %v1601
  %v1603 = vpop.f32.mrf.mxu0
  %v1604 = vadd.f32 %v272, %v1603
  %v1605 = vpop.f32.mrf.mxu0
  %v1606 = vadd.f32 %v272, %v1605
  %1607 = vmatprep.mubr.bf16.mxu0 %v510
  %1608 = vmatmul.mubr.bf16.gmra.mxu0 %v509
  %v1609 = vpop.f32.mrf.mxu0
  %v1610 = vadd.f32 %v277, %v1609
  %v1611 = vpop.f32.mrf.mxu0
  %v1612 = vadd.f32 %v277, %v1611
  %v1613 = vpop.f32.mrf.mxu0
  %v1614 = vadd.f32 %v282, %v1613
  %v1615 = vpop.f32.mrf.mxu0
  %v1616 = vadd.f32 %v282, %v1615
  %1617 = vmatprep.mubr.bf16.mxu0 %v513
  %1618 = vmatmul.mubr.bf16.gmra.mxu0 %v512
  %v1619 = vpop.f32.mrf.mxu0
  %v1620 = vadd.f32 %v287, %v1619
  %v1621 = vpop.f32.mrf.mxu0
  %v1622 = vadd.f32 %v287, %v1621
  %v1623 = vpop.f32.mrf.mxu0
  %v1624 = vadd.f32 %v292, %v1623
  %v1625 = vpop.f32.mrf.mxu0
  %v1626 = vadd.f32 %v292, %v1625
  %1627 = vmatprep.mubr.bf16.mxu0 %v516
  %1628 = vmatmul.mubr.bf16.gmra.mxu0 %v515
  %v1629 = vpop.f32.mrf.mxu0
  %v1630 = vadd.f32 %v297, %v1629
  %v1631 = vpop.f32.mrf.mxu0
  %v1632 = vadd.f32 %v297, %v1631
  %v1633 = vpop.f32.mrf.mxu0
  %v1634 = vadd.f32 %v302, %v1633
  %v1635 = vpop.f32.mrf.mxu0
  %v1636 = vadd.f32 %v302, %v1635
  %1637 = vmatprep.mubr.bf16.mxu0 %v519
  %1638 = vmatmul.mubr.bf16.gmra.mxu0 %v518
  %v1639 = vpop.f32.mrf.mxu0
  %v1640 = vadd.f32 %v307, %v1639
  %v1641 = vpop.f32.mrf.mxu0
  %v1642 = vadd.f32 %v307, %v1641
  %v1643 = vpop.f32.mrf.mxu0
  %v1644 = vadd.f32 %v312, %v1643
  %v1645 = vpop.f32.mrf.mxu0
  %v1646 = vadd.f32 %v312, %v1645
  %1647 = vmatprep.mubr.bf16.mxu0 %v522
  %1648 = vmatmul.mubr.bf16.gmra.mxu0 %v521
  %v1649 = vpop.f32.mrf.mxu0
  %v1650 = vadd.f32 %v317, %v1649
  %v1651 = vpop.f32.mrf.mxu0
  %v1652 = vadd.f32 %v317, %v1651
  %v1653 = vpop.f32.mrf.mxu0
  %v1654 = vadd.f32 %v322, %v1653
  %v1655 = vpop.f32.mrf.mxu0
  %v1656 = vadd.f32 %v322, %v1655
  %1657 = vmatprep.mubr.bf16.mxu0 %v525
  %1658 = vmatmul.mubr.bf16.gmra.mxu0 %v524
  %v1659 = vpop.f32.mrf.mxu0
  %v1660 = vadd.f32 %v327, %v1659
  %v1661 = vpop.f32.mrf.mxu0
  %v1662 = vadd.f32 %v327, %v1661
  %v1663 = vpop.f32.mrf.mxu0
  %v1664 = vadd.f32 %v332, %v1663
  %v1665 = vpop.f32.mrf.mxu0
  %v1666 = vadd.f32 %v332, %v1665
  %1667 = vmatprep.mubr.bf16.mxu0 %v528
  %1668 = vmatmul.mubr.bf16.gmra.mxu0 %v527
  %v1669 = vpop.f32.mrf.mxu0
  %v1670 = vadd.f32 %v337, %v1669
  %v1671 = vpop.f32.mrf.mxu0
  %v1672 = vadd.f32 %v337, %v1671
  %v1673 = vpop.f32.mrf.mxu0
  %v1674 = vadd.f32 %v342, %v1673
  %v1675 = vpop.f32.mrf.mxu0
  %v1676 = vadd.f32 %v342, %v1675
  %1677 = vmatprep.mubr.bf16.mxu0 %v531
  %1678 = vmatmul.mubr.bf16.gmra.mxu0 %v530
  %v1679 = vpop.f32.mrf.mxu0
  %v1680 = vadd.f32 %v347, %v1679
  %v1681 = vpop.f32.mrf.mxu0
  %v1682 = vadd.f32 %v347, %v1681
  %v1683 = vpop.f32.mrf.mxu0
  %v1684 = vadd.f32 %v352, %v1683
  %v1685 = vpop.f32.mrf.mxu0
  %v1686 = vadd.f32 %v352, %v1685
  %1687 = vmatprep.mubr.bf16.mxu0 %v534
  %1688 = vmatmul.mubr.bf16.gmra.mxu0 %v533
  %v1689 = vpop.f32.mrf.mxu0
  %v1690 = vadd.f32 %v357, %v1689
  %v1691 = vpop.f32.mrf.mxu0
  %v1692 = vadd.f32 %v357, %v1691
  %v1693 = vpop.f32.mrf.mxu0
  %v1694 = vpop.f32.mrf.mxu0
  %1695 = vdwg.mxu0
  %1696 = vmatprep.subr.bf16.mxu0 0
  %1697 = vmatpush1.bf16.xpose.msra.mxu0 %v1157
  %1698 = vmatprep.subr.bf16.mxu0 0
  %1699 = vmatpush1.bf16.xpose.msra.mxu0 %v1154
  %1700 = vmatprep.subr.bf16.mxu0 0
  %1701 = vmatpush1.bf16.xpose.msra.mxu0 %v1151
  %1702 = vmatprep.subr.bf16.mxu0 0
  %1703 = vmatpush1.bf16.xpose.msra.mxu0 %v1148
  %1704 = vmatprep.subr.bf16.mxu0 0
  %1705 = vmatpush1.bf16.xpose.msra.mxu0 %v1145
  %1706 = vmatprep.subr.bf16.mxu0 0
  %1707 = vmatpush1.bf16.xpose.msra.mxu0 %v1142
  %1708 = vmatprep.subr.bf16.mxu0 0
  %1709 = vmatpush1.bf16.xpose.msra.mxu0 %v1139
  %1710 = vmatprep.subr.bf16.mxu0 0
  %1711 = vmatpush1.bf16.xpose.msra.mxu0 %v1136
  %1712 = vmatprep.subr.bf16.mxu0 0
  %1713 = vmatpush2.bf16.xpose.msra.mxu0 %v1181
  %1714 = vmatprep.subr.bf16.mxu0 0
  %1715 = vmatpush2.bf16.xpose.msra.mxu0 %v1178
  %1716 = vmatprep.subr.bf16.mxu0 0
  %1717 = vmatpush2.bf16.xpose.msra.mxu0 %v1175
  %1718 = vmatprep.subr.bf16.mxu0 0
  %1719 = vmatpush2.bf16.xpose.msra.mxu0 %v1172
  %1720 = vmatprep.subr.bf16.mxu0 0
  %1721 = vmatpush2.bf16.xpose.msra.mxu0 %v1169
  %1722 = vmatprep.subr.bf16.mxu0 0
  %1723 = vmatpush2.bf16.xpose.msra.mxu0 %v1166
  %1724 = vmatprep.subr.bf16.mxu0 0
  %1725 = vmatpush2.bf16.xpose.msra.mxu0 %v1163
  %1726 = vmatprep.subr.bf16.mxu0 0
  %1727 = vmatpush2.bf16.xpose.msra.mxu0 %v1160
  %1728 = vmatprep.mubr.bf16.mxu0 0
  %1729 = vmatmul.mubr.bf16.gmra.mxu0 %v1046
  %v1730 = vpop.f32.mrf.mxu0
  %v1731 = vadd.f32 %v1560, %v1730
  %v1732 = vpop.f32.mrf.mxu0
  %v1733 = vadd.f32 %v1562, %v1732
  %v1734 = vpop.f32.mrf.mxu0
  %v1735 = vadd.f32 %v1564, %v1734
  %v1736 = vpop.f32.mrf.mxu0
  %v1737 = vadd.f32 %v1566, %v1736
  %1738 = vmatprep.mubr.bf16.mxu0 0
  %1739 = vmatmul.mubr.bf16.gmra.mxu0 %v1049
  %v1740 = vpop.f32.mrf.mxu0
  %v1741 = vadd.f32 %v1570, %v1740
  %v1742 = vpop.f32.mrf.mxu0
  %v1743 = vadd.f32 %v1572, %v1742
  %v1744 = vpop.f32.mrf.mxu0
  %v1745 = vadd.f32 %v1574, %v1744
  %v1746 = vpop.f32.mrf.mxu0
  %v1747 = vadd.f32 %v1576, %v1746
  %1748 = vmatprep.mubr.bf16.mxu0 0
  %1749 = vmatmul.mubr.bf16.gmra.mxu0 %v1052
  %v1750 = vpop.f32.mrf.mxu0
  %v1751 = vadd.f32 %v1580, %v1750
  %v1752 = vpop.f32.mrf.mxu0
  %v1753 = vadd.f32 %v1582, %v1752
  %v1754 = vpop.f32.mrf.mxu0
  %v1755 = vadd.f32 %v1584, %v1754
  %v1756 = vpop.f32.mrf.mxu0
  %v1757 = vadd.f32 %v1586, %v1756
  %1758 = vmatprep.mubr.bf16.mxu0 0
  %1759 = vmatmul.mubr.bf16.gmra.mxu0 %v1055
  %v1760 = vpop.f32.mrf.mxu0
  %v1761 = vadd.f32 %v1590, %v1760
  %v1762 = vpop.f32.mrf.mxu0
  %v1763 = vadd.f32 %v1592, %v1762
  %v1764 = vpop.f32.mrf.mxu0
  %v1765 = vadd.f32 %v1594, %v1764
  %v1766 = vpop.f32.mrf.mxu0
  %v1767 = vadd.f32 %v1596, %v1766
  %1768 = vmatprep.mubr.bf16.mxu0 0
  %1769 = vmatmul.mubr.bf16.gmra.mxu0 %v1058
  %v1770 = vpop.f32.mrf.mxu0
  %v1771 = vadd.f32 %v1600, %v1770
  %v1772 = vpop.f32.mrf.mxu0
  %v1773 = vadd.f32 %v1602, %v1772
  %v1774 = vpop.f32.mrf.mxu0
  %v1775 = vadd.f32 %v1604, %v1774
  %v1776 = vpop.f32.mrf.mxu0
  %v1777 = vadd.f32 %v1606, %v1776
  %1778 = vmatprep.mubr.bf16.mxu0 0
  %1779 = vmatmul.mubr.bf16.gmra.mxu0 %v1061
  %v1780 = vpop.f32.mrf.mxu0
  %v1781 = vadd.f32 %v1610, %v1780
  %v1782 = vpop.f32.mrf.mxu0
  %v1783 = vadd.f32 %v1612, %v1782
  %v1784 = vpop.f32.mrf.mxu0
  %v1785 = vadd.f32 %v1614, %v1784
  %v1786 = vpop.f32.mrf.mxu0
  %v1787 = vadd.f32 %v1616, %v1786
  %1788 = vmatprep.mubr.bf16.mxu0 0
  %1789 = vmatmul.mubr.bf16.gmra.mxu0 %v1064
  %v1790 = vpop.f32.mrf.mxu0
  %v1791 = vadd.f32 %v1620, %v1790
  %v1792 = vpop.f32.mrf.mxu0
  %v1793 = vadd.f32 %v1622, %v1792
  %v1794 = vpop.f32.mrf.mxu0
  %v1795 = vadd.f32 %v1624, %v1794
  %v1796 = vpop.f32.mrf.mxu0
  %v1797 = vadd.f32 %v1626, %v1796
  %1798 = vmatprep.mubr.bf16.mxu0 0
  %1799 = vmatmul.mubr.bf16.gmra.mxu0 %v1067
  %v1800 = vpop.f32.mrf.mxu0
  %v1801 = vadd.f32 %v1630, %v1800
  %v1802 = vpop.f32.mrf.mxu0
  %v1803 = vadd.f32 %v1632, %v1802
  %v1804 = vpop.f32.mrf.mxu0
  %v1805 = vadd.f32 %v1634, %v1804
  %v1806 = vpop.f32.mrf.mxu0
  %v1807 = vadd.f32 %v1636, %v1806
  %1808 = vmatprep.mubr.bf16.mxu0 0
  %1809 = vmatmul.mubr.bf16.gmra.mxu0 %v1070
  %v1810 = vpop.f32.mrf.mxu0
  %v1811 = vadd.f32 %v1640, %v1810
  %v1812 = vpop.f32.mrf.mxu0
  %v1813 = vadd.f32 %v1642, %v1812
  %v1814 = vpop.f32.mrf.mxu0
  %v1815 = vadd.f32 %v1644, %v1814
  %v1816 = vpop.f32.mrf.mxu0
  %v1817 = vadd.f32 %v1646, %v1816
  %1818 = vmatprep.mubr.bf16.mxu0 0
  %1819 = vmatmul.mubr.bf16.gmra.mxu0 %v1073
  %v1820 = vpop.f32.mrf.mxu0
  %v1821 = vadd.f32 %v1650, %v1820
  %v1822 = vpop.f32.mrf.mxu0
  %v1823 = vadd.f32 %v1652, %v1822
  %v1824 = vpop.f32.mrf.mxu0
  %v1825 = vadd.f32 %v1654, %v1824
  %v1826 = vpop.f32.mrf.mxu0
  %v1827 = vadd.f32 %v1656, %v1826
  %1828 = vmatprep.mubr.bf16.mxu0 0
  %1829 = vmatmul.mubr.bf16.gmra.mxu0 %v1076
  %v1830 = vpop.f32.mrf.mxu0
  %v1831 = vadd.f32 %v1660, %v1830
  %v1832 = vpop.f32.mrf.mxu0
  %v1833 = vadd.f32 %v1662, %v1832
  %v1834 = vpop.f32.mrf.mxu0
  %v1835 = vadd.f32 %v1664, %v1834
  %v1836 = vpop.f32.mrf.mxu0
  %v1837 = vadd.f32 %v1666, %v1836
  %1838 = vmatprep.mubr.bf16.mxu0 0
  %1839 = vmatmul.mubr.bf16.gmra.mxu0 %v1079
  %v1840 = vpop.f32.mrf.mxu0
  %v1841 = vadd.f32 %v1670, %v1840
  %v1842 = vpop.f32.mrf.mxu0
  %v1843 = vadd.f32 %v1672, %v1842
  %v1844 = vpop.f32.mrf.mxu0
  %v1845 = vadd.f32 %v1674, %v1844
  %v1846 = vpop.f32.mrf.mxu0
  %v1847 = vadd.f32 %v1676, %v1846
  %1848 = vmatprep.mubr.bf16.mxu0 0
  %1849 = vmatmul.mubr.bf16.gmra.mxu0 %v1082
  %v1850 = vpop.f32.mrf.mxu0
  %v1851 = vadd.f32 %v1680, %v1850
  %v1852 = vpop.f32.mrf.mxu0
  %v1853 = vadd.f32 %v1682, %v1852
  %v1854 = vpop.f32.mrf.mxu0
  %v1855 = vadd.f32 %v1684, %v1854
  %v1856 = vpop.f32.mrf.mxu0
  %v1857 = vadd.f32 %v1686, %v1856
  %1858 = vmatprep.mubr.bf16.mxu0 0
  %1859 = vmatmul.mubr.bf16.gmra.mxu0 %v1085
  %v1860 = vpop.f32.mrf.mxu0
  %v1861 = vadd.f32 %v1690, %v1860
  %v1862 = vpop.f32.mrf.mxu0
  %v1863 = vadd.f32 %v1692, %v1862
  %v1864 = vpop.f32.mrf.mxu0
  %v1865 = vpop.f32.mrf.mxu0
  %1866 = vdwg.mxu0
  %v1867 = vlaneseq
  %v1868 = vshrl.u32 %v1867, 7
  %v1869 = vadd.s32 %v1868, 8
  %v1870 = vadd.s32 %v1868, 16
  %v1871 = vadd.s32 %v1868, 24
  %v1872 = vadd.s32 %v1868, 32
  %v1873 = vadd.s32 %v1868, 40
  %v1874 = vadd.s32 %v1868, 48
  %v1875 = vadd.s32 %v1868, 56
  %v1876 = vadd.s32 %v1868, 64
  %v1877 = vadd.s32 %v1868, 72
  %v1878 = vadd.s32 %v1868, 80
  %v1879 = vadd.s32 %v1868, 88
  %v1880 = vadd.s32 %v1868, 96
  %v1881 = vadd.s32 %v1868, 104
  %v1882 = vadd.s32 %v1868, 112
  %v1883 = vadd.s32 %v1868, 120
  %v1884 = vadd.s32 %v1868, 128
  %v1885 = vadd.s32 %v1868, 136
  %v1886 = vadd.s32 %v1868, 144
  %v1887 = vadd.s32 %v1868, 152
  %v1888 = vadd.s32 %v1868, 160
  %v1889 = vadd.s32 %v1868, 168
  %v1890 = vadd.s32 %v1868, 176
  %v1891 = vadd.s32 %v1868, 184
  %v1892 = vadd.s32 %v1868, 192
  %v1893 = vadd.s32 %v1868, 200
  %v1894 = vadd.s32 %v1868, 208
  %v1895 = vsub.f32 0.0, %v1389
  %v1896 = vsub.f32 0.0, %v1391
  %v1897 = vsub.f32 0.0, %v1731
  %v1898 = vsub.f32 0.0, %v1733
  %v1899 = vsub.f32 0.0, %v1393
  %v1900 = vsub.f32 0.0, %v1395
  %v1901 = vsub.f32 0.0, %v1735
  %v1902 = vsub.f32 0.0, %v1737
  %v1903 = vsub.f32 0.0, %v1399
  %v1904 = vsub.f32 0.0, %v1401
  %v1905 = vsub.f32 0.0, %v1741
  %v1906 = vsub.f32 0.0, %v1743
  %v1907 = vsub.f32 0.0, %v1403
  %v1908 = vsub.f32 0.0, %v1405
  %v1909 = vsub.f32 0.0, %v1745
  %v1910 = vsub.f32 0.0, %v1747
  %v1911 = vsub.f32 0.0, %v1409
  %v1912 = vsub.f32 0.0, %v1411
  %v1913 = vsub.f32 0.0, %v1751
  %v1914 = vsub.f32 0.0, %v1753
  %v1915 = vsub.f32 0.0, %v1413
  %v1916 = vsub.f32 0.0, %v1415
  %v1917 = vsub.f32 0.0, %v1755
  %v1918 = vsub.f32 0.0, %v1757
  %v1919 = vsub.f32 0.0, %v1419
  %v1920 = vsub.f32 0.0, %v1421
  %v1921 = vsub.f32 0.0, %v1761
  %v1922 = vsub.f32 0.0, %v1763
  %v1923 = vsub.f32 0.0, %v1423
  %v1924 = vsub.f32 0.0, %v1425
  %v1925 = vsub.f32 0.0, %v1765
  %v1926 = vsub.f32 0.0, %v1767
  %v1927 = vsub.f32 0.0, %v1429
  %v1928 = vsub.f32 0.0, %v1431
  %v1929 = vsub.f32 0.0, %v1771
  %v1930 = vsub.f32 0.0, %v1773
  %v1931 = vsub.f32 0.0, %v1433
  %v1932 = vsub.f32 0.0, %v1435
  %v1933 = vsub.f32 0.0, %v1775
  %v1934 = vsub.f32 0.0, %v1777
  %v1935 = vsub.f32 0.0, %v1439
  %v1936 = vsub.f32 0.0, %v1441
  %v1937 = vsub.f32 0.0, %v1781
  %v1938 = vsub.f32 0.0, %v1783
  %v1939 = vsub.f32 0.0, %v1443
  %v1940 = vsub.f32 0.0, %v1445
  %v1941 = vsub.f32 0.0, %v1785
  %v1942 = vsub.f32 0.0, %v1787
  %v1943 = vsub.f32 0.0, %v1449
  %v1944 = vsub.f32 0.0, %v1451
  %v1945 = vsub.f32 0.0, %v1791
  %v1946 = vsub.f32 0.0, %v1793
  %v1947 = vsub.f32 0.0, %v1453
  %v1948 = vsub.f32 0.0, %v1455
  %v1949 = vsub.f32 0.0, %v1795
  %v1950 = vsub.f32 0.0, %v1797
  %v1951 = vsub.f32 0.0, %v1459
  %v1952 = vsub.f32 0.0, %v1461
  %v1953 = vsub.f32 0.0, %v1801
  %v1954 = vsub.f32 0.0, %v1803
  %v1955 = vsub.f32 0.0, %v1463
  %v1956 = vsub.f32 0.0, %v1465
  %v1957 = vsub.f32 0.0, %v1805
  %v1958 = vsub.f32 0.0, %v1807
  %v1959 = vsub.f32 0.0, %v1469
  %v1960 = vsub.f32 0.0, %v1471
  %v1961 = vsub.f32 0.0, %v1811
  %v1962 = vsub.f32 0.0, %v1813
  %v1963 = vsub.f32 0.0, %v1473
  %v1964 = vsub.f32 0.0, %v1475
  %v1965 = vsub.f32 0.0, %v1815
  %v1966 = vsub.f32 0.0, %v1817
  %v1967 = vsub.f32 0.0, %v1479
  %v1968 = vsub.f32 0.0, %v1481
  %v1969 = vsub.f32 0.0, %v1821
  %v1970 = vsub.f32 0.0, %v1823
  %v1971 = vsub.f32 0.0, %v1483
  %v1972 = vsub.f32 0.0, %v1485
  %v1973 = vsub.f32 0.0, %v1825
  %v1974 = vsub.f32 0.0, %v1827
  %v1975 = vsub.f32 0.0, %v1489
  %v1976 = vsub.f32 0.0, %v1491
  %v1977 = vsub.f32 0.0, %v1831
  %v1978 = vsub.f32 0.0, %v1833
  %v1979 = vsub.f32 0.0, %v1493
  %v1980 = vsub.f32 0.0, %v1495
  %v1981 = vsub.f32 0.0, %v1835
  %v1982 = vsub.f32 0.0, %v1837
  %v1983 = vsub.f32 0.0, %v1499
  %v1984 = vsub.f32 0.0, %v1501
  %v1985 = vsub.f32 0.0, %v1841
  %v1986 = vsub.f32 0.0, %v1843
  %v1987 = vsub.f32 0.0, %v1503
  %v1988 = vsub.f32 0.0, %v1505
  %v1989 = vsub.f32 0.0, %v1845
  %v1990 = vsub.f32 0.0, %v1847
  %v1991 = vsub.f32 0.0, %v1509
  %v1992 = vsub.f32 0.0, %v1511
  %v1993 = vsub.f32 0.0, %v1851
  %v1994 = vsub.f32 0.0, %v1853
  %v1995 = vsub.f32 0.0, %v1513
  %v1996 = vsub.f32 0.0, %v1515
  %v1997 = vsub.f32 0.0, %v1855
  %v1998 = vsub.f32 0.0, %v1857
  %v1999 = vsub.f32 0.0, %v1519
  %v2000 = vsub.f32 0.0, %v1521
  %v2001 = vsub.f32 0.0, %v1861
  %v2002 = vsub.f32 0.0, %v1863
  %v2003 = vmul.f32 %v1895, 1.442695
  %v2004 = vpow.pop %v2003
  %v2005 = vmul.f32 %v1896, 1.442695
  %v2006 = vpow.pop %v2005
  %v2007 = vmul.f32 %v1897, 1.442695
  %v2008 = vpow.pop %v2007
  %v2009 = vmul.f32 %v1898, 1.442695
  %v2010 = vpow.pop %v2009
  %v2011 = vmul.f32 %v1899, 1.442695
  %v2012 = vpow.pop %v2011
  %v2013 = vmul.f32 %v1900, 1.442695
  %v2014 = vpow.pop %v2013
  %v2015 = vmul.f32 %v1901, 1.442695
  %v2016 = vpow.pop %v2015
  %v2017 = vmul.f32 %v1902, 1.442695
  %v2018 = vpow.pop %v2017
  %v2019 = vmul.f32 %v1903, 1.442695
  %v2020 = vpow.pop %v2019
  %v2021 = vmul.f32 %v1904, 1.442695
  %v2022 = vpow.pop %v2021
  %v2023 = vmul.f32 %v1905, 1.442695
  %v2024 = vpow.pop %v2023
  %v2025 = vmul.f32 %v1906, 1.442695
  %v2026 = vpow.pop %v2025
  %v2027 = vmul.f32 %v1907, 1.442695
  %v2028 = vpow.pop %v2027
  %v2029 = vmul.f32 %v1908, 1.442695
  %v2030 = vpow.pop %v2029
  %v2031 = vmul.f32 %v1909, 1.442695
  %v2032 = vpow.pop %v2031
  %v2033 = vmul.f32 %v1910, 1.442695
  %v2034 = vpow.pop %v2033
  %v2035 = vmul.f32 %v1911, 1.442695
  %v2036 = vpow.pop %v2035
  %v2037 = vmul.f32 %v1912, 1.442695
  %v2038 = vpow.pop %v2037
  %v2039 = vmul.f32 %v1913, 1.442695
  %v2040 = vpow.pop %v2039
  %v2041 = vmul.f32 %v1914, 1.442695
  %v2042 = vpow.pop %v2041
  %v2043 = vmul.f32 %v1915, 1.442695
  %v2044 = vpow.pop %v2043
  %v2045 = vmul.f32 %v1916, 1.442695
  %v2046 = vpow.pop %v2045
  %v2047 = vmul.f32 %v1917, 1.442695
  %v2048 = vpow.pop %v2047
  %v2049 = vmul.f32 %v1918, 1.442695
  %v2050 = vpow.pop %v2049
  %v2051 = vmul.f32 %v1919, 1.442695
  %v2052 = vpow.pop %v2051
  %v2053 = vmul.f32 %v1920, 1.442695
  %v2054 = vpow.pop %v2053
  %v2055 = vmul.f32 %v1921, 1.442695
  %v2056 = vpow.pop %v2055
  %v2057 = vmul.f32 %v1922, 1.442695
  %v2058 = vpow.pop %v2057
  %v2059 = vmul.f32 %v1923, 1.442695
  %v2060 = vpow.pop %v2059
  %v2061 = vmul.f32 %v1924, 1.442695
  %v2062 = vpow.pop %v2061
  %v2063 = vmul.f32 %v1925, 1.442695
  %v2064 = vpow.pop %v2063
  %v2065 = vmul.f32 %v1926, 1.442695
  %v2066 = vpow.pop %v2065
  %v2067 = vmul.f32 %v1927, 1.442695
  %v2068 = vpow.pop %v2067
  %v2069 = vmul.f32 %v1928, 1.442695
  %v2070 = vpow.pop %v2069
  %v2071 = vmul.f32 %v1929, 1.442695
  %v2072 = vpow.pop %v2071
  %v2073 = vmul.f32 %v1930, 1.442695
  %v2074 = vpow.pop %v2073
  %v2075 = vmul.f32 %v1931, 1.442695
  %v2076 = vpow.pop %v2075
  %v2077 = vmul.f32 %v1932, 1.442695
  %v2078 = vpow.pop %v2077
  %v2079 = vmul.f32 %v1933, 1.442695
  %v2080 = vpow.pop %v2079
  %v2081 = vmul.f32 %v1934, 1.442695
  %v2082 = vpow.pop %v2081
  %v2083 = vmul.f32 %v1935, 1.442695
  %v2084 = vpow.pop %v2083
  %v2085 = vmul.f32 %v1936, 1.442695
  %v2086 = vpow.pop %v2085
  %v2087 = vmul.f32 %v1937, 1.442695
  %v2088 = vpow.pop %v2087
  %v2089 = vmul.f32 %v1938, 1.442695
  %v2090 = vpow.pop %v2089
  %v2091 = vmul.f32 %v1939, 1.442695
  %v2092 = vpow.pop %v2091
  %v2093 = vmul.f32 %v1940, 1.442695
  %v2094 = vpow.pop %v2093
  %v2095 = vmul.f32 %v1941, 1.442695
  %v2096 = vpow.pop %v2095
  %v2097 = vmul.f32 %v1942, 1.442695
  %v2098 = vpow.pop %v2097
  %v2099 = vmul.f32 %v1943, 1.442695
  %v2100 = vpow.pop %v2099
  %v2101 = vmul.f32 %v1944, 1.442695
  %v2102 = vpow.pop %v2101
  %v2103 = vmul.f32 %v1945, 1.442695
  %v2104 = vpow.pop %v2103
  %v2105 = vmul.f32 %v1946, 1.442695
  %v2106 = vpow.pop %v2105
  %v2107 = vmul.f32 %v1947, 1.442695
  %v2108 = vpow.pop %v2107
  %v2109 = vmul.f32 %v1948, 1.442695
  %v2110 = vpow.pop %v2109
  %v2111 = vmul.f32 %v1949, 1.442695
  %v2112 = vpow.pop %v2111
  %v2113 = vmul.f32 %v1950, 1.442695
  %v2114 = vpow.pop %v2113
  %v2115 = vmul.f32 %v1951, 1.442695
  %v2116 = vpow.pop %v2115
  %v2117 = vmul.f32 %v1952, 1.442695
  %v2118 = vpow.pop %v2117
  %v2119 = vmul.f32 %v1953, 1.442695
  %v2120 = vpow.pop %v2119
  %v2121 = vmul.f32 %v1954, 1.442695
  %v2122 = vpow.pop %v2121
  %v2123 = vmul.f32 %v1955, 1.442695
  %v2124 = vpow.pop %v2123
  %v2125 = vmul.f32 %v1956, 1.442695
  %v2126 = vpow.pop %v2125
  %v2127 = vmul.f32 %v1957, 1.442695
  %v2128 = vpow.pop %v2127
  %v2129 = vmul.f32 %v1958, 1.442695
  %v2130 = vpow.pop %v2129
  %v2131 = vmul.f32 %v1959, 1.442695
  %v2132 = vpow.pop %v2131
  %v2133 = vmul.f32 %v1960, 1.442695
  %v2134 = vpow.pop %v2133
  %v2135 = vmul.f32 %v1961, 1.442695
  %v2136 = vpow.pop %v2135
  %v2137 = vmul.f32 %v1962, 1.442695
  %v2138 = vpow.pop %v2137
  %v2139 = vmul.f32 %v1963, 1.442695
  %v2140 = vpow.pop %v2139
  %v2141 = vmul.f32 %v1964, 1.442695
  %v2142 = vpow.pop %v2141
  %v2143 = vmul.f32 %v1965, 1.442695
  %v2144 = vpow.pop %v2143
  %v2145 = vmul.f32 %v1966, 1.442695
  %v2146 = vpow.pop %v2145
  %v2147 = vmul.f32 %v1967, 1.442695
  %v2148 = vpow.pop %v2147
  %v2149 = vmul.f32 %v1968, 1.442695
  %v2150 = vpow.pop %v2149
  %v2151 = vmul.f32 %v1969, 1.442695
  %v2152 = vpow.pop %v2151
  %v2153 = vmul.f32 %v1970, 1.442695
  %v2154 = vpow.pop %v2153
  %v2155 = vmul.f32 %v1971, 1.442695
  %v2156 = vpow.pop %v2155
  %v2157 = vmul.f32 %v1972, 1.442695
  %v2158 = vpow.pop %v2157
  %v2159 = vmul.f32 %v1973, 1.442695
  %v2160 = vpow.pop %v2159
  %v2161 = vmul.f32 %v1974, 1.442695
  %v2162 = vpow.pop %v2161
  %v2163 = vmul.f32 %v1975, 1.442695
  %v2164 = vpow.pop %v2163
  %v2165 = vmul.f32 %v1976, 1.442695
  %v2166 = vpow.pop %v2165
  %v2167 = vmul.f32 %v1977, 1.442695
  %v2168 = vpow.pop %v2167
  %v2169 = vmul.f32 %v1978, 1.442695
  %v2170 = vpow.pop %v2169
  %v2171 = vmul.f32 %v1979, 1.442695
  %v2172 = vpow.pop %v2171
  %v2173 = vmul.f32 %v1980, 1.442695
  %v2174 = vpow.pop %v2173
  %v2175 = vmul.f32 %v1981, 1.442695
  %v2176 = vpow.pop %v2175
  %v2177 = vmul.f32 %v1982, 1.442695
  %v2178 = vpow.pop %v2177
  %v2179 = vmul.f32 %v1983, 1.442695
  %v2180 = vpow.pop %v2179
  %v2181 = vmul.f32 %v1984, 1.442695
  %v2182 = vpow.pop %v2181
  %v2183 = vmul.f32 %v1985, 1.442695
  %v2184 = vpow.pop %v2183
  %v2185 = vmul.f32 %v1986, 1.442695
  %v2186 = vpow.pop %v2185
  %v2187 = vmul.f32 %v1987, 1.442695
  %v2188 = vpow.pop %v2187
  %v2189 = vmul.f32 %v1988, 1.442695
  %v2190 = vpow.pop %v2189
  %v2191 = vmul.f32 %v1989, 1.442695
  %v2192 = vpow.pop %v2191
  %v2193 = vmul.f32 %v1990, 1.442695
  %v2194 = vpow.pop %v2193
  %v2195 = vmul.f32 %v1991, 1.442695
  %v2196 = vpow.pop %v2195
  %v2197 = vmul.f32 %v1992, 1.442695
  %v2198 = vpow.pop %v2197
  %v2199 = vmul.f32 %v1993, 1.442695
  %v2200 = vpow.pop %v2199
  %v2201 = vmul.f32 %v1994, 1.442695
  %v2202 = vpow.pop %v2201
  %v2203 = vmul.f32 %v1995, 1.442695
  %v2204 = vpow.pop %v2203
  %v2205 = vmul.f32 %v1996, 1.442695
  %v2206 = vpow.pop %v2205
  %v2207 = vmul.f32 %v1997, 1.442695
  %v2208 = vpow.pop %v2207
  %v2209 = vmul.f32 %v1998, 1.442695
  %v2210 = vpow.pop %v2209
  %v2211 = vmul.f32 %v1999, 1.442695
  %v2212 = vpow.pop %v2211
  %v2213 = vmul.f32 %v2000, 1.442695
  %v2214 = vpow.pop %v2213
  %v2215 = vmul.f32 %v2001, 1.442695
  %v2216 = vpow.pop %v2215
  %v2217 = vmul.f32 %v2002, 1.442695
  %v2218 = vpow.pop %v2217
  %v2219 = vadd.f32 %v2004, 1.0
  %v2220 = vadd.f32 %v2006, 1.0
  %v2221 = vadd.f32 %v2008, 1.0
  %v2222 = vadd.f32 %v2010, 1.0
  %v2223 = vadd.f32 %v2012, 1.0
  %v2224 = vadd.f32 %v2014, 1.0
  %v2225 = vadd.f32 %v2016, 1.0
  %v2226 = vadd.f32 %v2018, 1.0
  %v2227 = vadd.f32 %v2020, 1.0
  %v2228 = vadd.f32 %v2022, 1.0
  %v2229 = vadd.f32 %v2024, 1.0
  %v2230 = vadd.f32 %v2026, 1.0
  %v2231 = vadd.f32 %v2028, 1.0
  %v2232 = vadd.f32 %v2030, 1.0
  %v2233 = vadd.f32 %v2032, 1.0
  %v2234 = vadd.f32 %v2034, 1.0
  %v2235 = vadd.f32 %v2036, 1.0
  %v2236 = vadd.f32 %v2038, 1.0
  %v2237 = vadd.f32 %v2040, 1.0
  %v2238 = vadd.f32 %v2042, 1.0
  %v2239 = vadd.f32 %v2044, 1.0
  %v2240 = vadd.f32 %v2046, 1.0
  %v2241 = vadd.f32 %v2048, 1.0
  %v2242 = vadd.f32 %v2050, 1.0
  %v2243 = vadd.f32 %v2052, 1.0
  %v2244 = vadd.f32 %v2054, 1.0
  %v2245 = vadd.f32 %v2056, 1.0
  %v2246 = vadd.f32 %v2058, 1.0
  %v2247 = vadd.f32 %v2060, 1.0
  %v2248 = vadd.f32 %v2062, 1.0
  %v2249 = vadd.f32 %v2064, 1.0
  %v2250 = vadd.f32 %v2066, 1.0
  %v2251 = vadd.f32 %v2068, 1.0
  %v2252 = vadd.f32 %v2070, 1.0
  %v2253 = vadd.f32 %v2072, 1.0
  %v2254 = vadd.f32 %v2074, 1.0
  %v2255 = vadd.f32 %v2076, 1.0
  %v2256 = vadd.f32 %v2078, 1.0
  %v2257 = vadd.f32 %v2080, 1.0
  %v2258 = vadd.f32 %v2082, 1.0
  %v2259 = vadd.f32 %v2084, 1.0
  %v2260 = vadd.f32 %v2086, 1.0
  %v2261 = vadd.f32 %v2088, 1.0
  %v2262 = vadd.f32 %v2090, 1.0
  %v2263 = vadd.f32 %v2092, 1.0
  %v2264 = vadd.f32 %v2094, 1.0
  %v2265 = vadd.f32 %v2096, 1.0
  %v2266 = vadd.f32 %v2098, 1.0
  %v2267 = vadd.f32 %v2100, 1.0
  %v2268 = vadd.f32 %v2102, 1.0
  %v2269 = vadd.f32 %v2104, 1.0
  %v2270 = vadd.f32 %v2106, 1.0
  %v2271 = vadd.f32 %v2108, 1.0
  %v2272 = vadd.f32 %v2110, 1.0
  %v2273 = vadd.f32 %v2112, 1.0
  %v2274 = vadd.f32 %v2114, 1.0
  %v2275 = vadd.f32 %v2116, 1.0
  %v2276 = vadd.f32 %v2118, 1.0
  %v2277 = vadd.f32 %v2120, 1.0
  %v2278 = vadd.f32 %v2122, 1.0
  %v2279 = vadd.f32 %v2124, 1.0
  %v2280 = vadd.f32 %v2126, 1.0
  %v2281 = vadd.f32 %v2128, 1.0
  %v2282 = vadd.f32 %v2130, 1.0
  %v2283 = vadd.f32 %v2132, 1.0
  %v2284 = vadd.f32 %v2134, 1.0
  %v2285 = vadd.f32 %v2136, 1.0
  %v2286 = vadd.f32 %v2138, 1.0
  %v2287 = vadd.f32 %v2140, 1.0
  %v2288 = vadd.f32 %v2142, 1.0
  %v2289 = vadd.f32 %v2144, 1.0
  %v2290 = vadd.f32 %v2146, 1.0
  %v2291 = vadd.f32 %v2148, 1.0
  %v2292 = vadd.f32 %v2150, 1.0
  %v2293 = vadd.f32 %v2152, 1.0
  %v2294 = vadd.f32 %v2154, 1.0
  %v2295 = vadd.f32 %v2156, 1.0
  %v2296 = vadd.f32 %v2158, 1.0
  %v2297 = vadd.f32 %v2160, 1.0
  %v2298 = vadd.f32 %v2162, 1.0
  %v2299 = vadd.f32 %v2164, 1.0
  %v2300 = vadd.f32 %v2166, 1.0
  %v2301 = vadd.f32 %v2168, 1.0
  %v2302 = vadd.f32 %v2170, 1.0
  %v2303 = vadd.f32 %v2172, 1.0
  %v2304 = vadd.f32 %v2174, 1.0
  %v2305 = vadd.f32 %v2176, 1.0
  %v2306 = vadd.f32 %v2178, 1.0
  %v2307 = vadd.f32 %v2180, 1.0
  %v2308 = vadd.f32 %v2182, 1.0
  %v2309 = vadd.f32 %v2184, 1.0
  %v2310 = vadd.f32 %v2186, 1.0
  %v2311 = vadd.f32 %v2188, 1.0
  %v2312 = vadd.f32 %v2190, 1.0
  %v2313 = vadd.f32 %v2192, 1.0
  %v2314 = vadd.f32 %v2194, 1.0
  %v2315 = vadd.f32 %v2196, 1.0
  %v2316 = vadd.f32 %v2198, 1.0
  %v2317 = vadd.f32 %v2200, 1.0
  %v2318 = vadd.f32 %v2202, 1.0
  %v2319 = vadd.f32 %v2204, 1.0
  %v2320 = vadd.f32 %v2206, 1.0
  %v2321 = vadd.f32 %v2208, 1.0
  %v2322 = vadd.f32 %v2210, 1.0
  %v2323 = vadd.f32 %v2212, 1.0
  %v2324 = vadd.f32 %v2214, 1.0
  %v2325 = vadd.f32 %v2216, 1.0
  %v2326 = vadd.f32 %v2218, 1.0
  %v2327 = vrcp.pop %v2219
  %v2328 = vmul.f32 1.0, %v2327
  %v2329 = vrcp.pop %v2220
  %v2330 = vmul.f32 1.0, %v2329
  %v2331 = vrcp.pop %v2221
  %v2332 = vmul.f32 1.0, %v2331
  %v2333 = vrcp.pop %v2222
  %v2334 = vmul.f32 1.0, %v2333
  %v2335 = vrcp.pop %v2223
  %v2336 = vmul.f32 1.0, %v2335
  %v2337 = vrcp.pop %v2224
  %v2338 = vmul.f32 1.0, %v2337
  %v2339 = vrcp.pop %v2225
  %v2340 = vmul.f32 1.0, %v2339
  %v2341 = vrcp.pop %v2226
  %v2342 = vmul.f32 1.0, %v2341
  %v2343 = vrcp.pop %v2227
  %v2344 = vmul.f32 1.0, %v2343
  %v2345 = vrcp.pop %v2228
  %v2346 = vmul.f32 1.0, %v2345
  %v2347 = vrcp.pop %v2229
  %v2348 = vmul.f32 1.0, %v2347
  %v2349 = vrcp.pop %v2230
  %v2350 = vmul.f32 1.0, %v2349
  %v2351 = vrcp.pop %v2231
  %v2352 = vmul.f32 1.0, %v2351
  %v2353 = vrcp.pop %v2232
  %v2354 = vmul.f32 1.0, %v2353
  %v2355 = vrcp.pop %v2233
  %v2356 = vmul.f32 1.0, %v2355
  %v2357 = vrcp.pop %v2234
  %v2358 = vmul.f32 1.0, %v2357
  %v2359 = vrcp.pop %v2235
  %v2360 = vmul.f32 1.0, %v2359
  %v2361 = vrcp.pop %v2236
  %v2362 = vmul.f32 1.0, %v2361
  %v2363 = vrcp.pop %v2237
  %v2364 = vmul.f32 1.0, %v2363
  %v2365 = vrcp.pop %v2238
  %v2366 = vmul.f32 1.0, %v2365
  %v2367 = vrcp.pop %v2239
  %v2368 = vmul.f32 1.0, %v2367
  %v2369 = vrcp.pop %v2240
  %v2370 = vmul.f32 1.0, %v2369
  %v2371 = vrcp.pop %v2241
  %v2372 = vmul.f32 1.0, %v2371
  %v2373 = vrcp.pop %v2242
  %v2374 = vmul.f32 1.0, %v2373
  %v2375 = vrcp.pop %v2243
  %v2376 = vmul.f32 1.0, %v2375
  %v2377 = vrcp.pop %v2244
  %v2378 = vmul.f32 1.0, %v2377
  %v2379 = vrcp.pop %v2245
  %v2380 = vmul.f32 1.0, %v2379
  %v2381 = vrcp.pop %v2246
  %v2382 = vmul.f32 1.0, %v2381
  %v2383 = vrcp.pop %v2247
  %v2384 = vmul.f32 1.0, %v2383
  %v2385 = vrcp.pop %v2248
  %v2386 = vmul.f32 1.0, %v2385
  %v2387 = vrcp.pop %v2249
  %v2388 = vmul.f32 1.0, %v2387
  %v2389 = vrcp.pop %v2250
  %v2390 = vmul.f32 1.0, %v2389
  %v2391 = vrcp.pop %v2251
  %v2392 = vmul.f32 1.0, %v2391
  %v2393 = vrcp.pop %v2252
  %v2394 = vmul.f32 1.0, %v2393
  %v2395 = vrcp.pop %v2253
  %v2396 = vmul.f32 1.0, %v2395
  %v2397 = vrcp.pop %v2254
  %v2398 = vmul.f32 1.0, %v2397
  %v2399 = vrcp.pop %v2255
  %v2400 = vmul.f32 1.0, %v2399
  %v2401 = vrcp.pop %v2256
  %v2402 = vmul.f32 1.0, %v2401
  %v2403 = vrcp.pop %v2257
  %v2404 = vmul.f32 1.0, %v2403
  %v2405 = vrcp.pop %v2258
  %v2406 = vmul.f32 1.0, %v2405
  %v2407 = vrcp.pop %v2259
  %v2408 = vmul.f32 1.0, %v2407
  %v2409 = vrcp.pop %v2260
  %v2410 = vmul.f32 1.0, %v2409
  %v2411 = vrcp.pop %v2261
  %v2412 = vmul.f32 1.0, %v2411
  %v2413 = vrcp.pop %v2262
  %v2414 = vmul.f32 1.0, %v2413
  %v2415 = vrcp.pop %v2263
  %v2416 = vmul.f32 1.0, %v2415
  %v2417 = vrcp.pop %v2264
  %v2418 = vmul.f32 1.0, %v2417
  %v2419 = vrcp.pop %v2265
  %v2420 = vmul.f32 1.0, %v2419
  %v2421 = vrcp.pop %v2266
  %v2422 = vmul.f32 1.0, %v2421
  %v2423 = vrcp.pop %v2267
  %v2424 = vmul.f32 1.0, %v2423
  %v2425 = vrcp.pop %v2268
  %v2426 = vmul.f32 1.0, %v2425
  %v2427 = vrcp.pop %v2269
  %v2428 = vmul.f32 1.0, %v2427
  %v2429 = vrcp.pop %v2270
  %v2430 = vmul.f32 1.0, %v2429
  %v2431 = vrcp.pop %v2271
  %v2432 = vmul.f32 1.0, %v2431
  %v2433 = vrcp.pop %v2272
  %v2434 = vmul.f32 1.0, %v2433
  %v2435 = vrcp.pop %v2273
  %v2436 = vmul.f32 1.0, %v2435
  %v2437 = vrcp.pop %v2274
  %v2438 = vmul.f32 1.0, %v2437
  %v2439 = vrcp.pop %v2275
  %v2440 = vmul.f32 1.0, %v2439
  %v2441 = vrcp.pop %v2276
  %v2442 = vmul.f32 1.0, %v2441
  %v2443 = vrcp.pop %v2277
  %v2444 = vmul.f32 1.0, %v2443
  %v2445 = vrcp.pop %v2278
  %v2446 = vmul.f32 1.0, %v2445
  %v2447 = vrcp.pop %v2279
  %v2448 = vmul.f32 1.0, %v2447
  %v2449 = vrcp.pop %v2280
  %v2450 = vmul.f32 1.0, %v2449
  %v2451 = vrcp.pop %v2281
  %v2452 = vmul.f32 1.0, %v2451
  %v2453 = vrcp.pop %v2282
  %v2454 = vmul.f32 1.0, %v2453
  %v2455 = vrcp.pop %v2283
  %v2456 = vmul.f32 1.0, %v2455
  %v2457 = vrcp.pop %v2284
  %v2458 = vmul.f32 1.0, %v2457
  %v2459 = vrcp.pop %v2285
  %v2460 = vmul.f32 1.0, %v2459
  %v2461 = vrcp.pop %v2286
  %v2462 = vmul.f32 1.0, %v2461
  %v2463 = vrcp.pop %v2287
  %v2464 = vmul.f32 1.0, %v2463
  %v2465 = vrcp.pop %v2288
  %v2466 = vmul.f32 1.0, %v2465
  %v2467 = vrcp.pop %v2289
  %v2468 = vmul.f32 1.0, %v2467
  %v2469 = vrcp.pop %v2290
  %v2470 = vmul.f32 1.0, %v2469
  %v2471 = vrcp.pop %v2291
  %v2472 = vmul.f32 1.0, %v2471
  %v2473 = vrcp.pop %v2292
  %v2474 = vmul.f32 1.0, %v2473
  %v2475 = vrcp.pop %v2293
  %v2476 = vmul.f32 1.0, %v2475
  %v2477 = vrcp.pop %v2294
  %v2478 = vmul.f32 1.0, %v2477
  %v2479 = vrcp.pop %v2295
  %v2480 = vmul.f32 1.0, %v2479
  %v2481 = vrcp.pop %v2296
  %v2482 = vmul.f32 1.0, %v2481
  %v2483 = vrcp.pop %v2297
  %v2484 = vmul.f32 1.0, %v2483
  %v2485 = vrcp.pop %v2298
  %v2486 = vmul.f32 1.0, %v2485
  %v2487 = vrcp.pop %v2299
  %v2488 = vmul.f32 1.0, %v2487
  %v2489 = vrcp.pop %v2300
  %v2490 = vmul.f32 1.0, %v2489
  %v2491 = vrcp.pop %v2301
  %v2492 = vmul.f32 1.0, %v2491
  %v2493 = vrcp.pop %v2302
  %v2494 = vmul.f32 1.0, %v2493
  %v2495 = vrcp.pop %v2303
  %v2496 = vmul.f32 1.0, %v2495
  %v2497 = vrcp.pop %v2304
  %v2498 = vmul.f32 1.0, %v2497
  %v2499 = vrcp.pop %v2305
  %v2500 = vmul.f32 1.0, %v2499
  %v2501 = vrcp.pop %v2306
  %v2502 = vmul.f32 1.0, %v2501
  %v2503 = vrcp.pop %v2307
  %v2504 = vmul.f32 1.0, %v2503
  %v2505 = vrcp.pop %v2308
  %v2506 = vmul.f32 1.0, %v2505
  %v2507 = vrcp.pop %v2309
  %v2508 = vmul.f32 1.0, %v2507
  %v2509 = vrcp.pop %v2310
  %v2510 = vmul.f32 1.0, %v2509
  %v2511 = vrcp.pop %v2311
  %v2512 = vmul.f32 1.0, %v2511
  %v2513 = vrcp.pop %v2312
  %v2514 = vmul.f32 1.0, %v2513
  %v2515 = vrcp.pop %v2313
  %v2516 = vmul.f32 1.0, %v2515
  %v2517 = vrcp.pop %v2314
  %v2518 = vmul.f32 1.0, %v2517
  %v2519 = vrcp.pop %v2315
  %v2520 = vmul.f32 1.0, %v2519
  %v2521 = vrcp.pop %v2316
  %v2522 = vmul.f32 1.0, %v2521
  %v2523 = vrcp.pop %v2317
  %v2524 = vmul.f32 1.0, %v2523
  %v2525 = vrcp.pop %v2318
  %v2526 = vmul.f32 1.0, %v2525
  %v2527 = vrcp.pop %v2319
  %v2528 = vmul.f32 1.0, %v2527
  %v2529 = vrcp.pop %v2320
  %v2530 = vmul.f32 1.0, %v2529
  %v2531 = vrcp.pop %v2321
  %v2532 = vmul.f32 1.0, %v2531
  %v2533 = vrcp.pop %v2322
  %v2534 = vmul.f32 1.0, %v2533
  %v2535 = vrcp.pop %v2323
  %v2536 = vmul.f32 1.0, %v2535
  %v2537 = vrcp.pop %v2324
  %v2538 = vmul.f32 1.0, %v2537
  %v2539 = vrcp.pop %v2325
  %v2540 = vmul.f32 1.0, %v2539
  %v2541 = vrcp.pop %v2326
  %v2542 = vmul.f32 1.0, %v2541
  %vm2543 = vcmp.ge.s32.totalorder %v1868, 144
  %vm2544 = vcmp.ge.s32.totalorder %v1869, 144
  %vm2545 = vcmp.ge.s32.totalorder %v1870, 144
  %vm2546 = vcmp.ge.s32.totalorder %v1871, 144
  %vm2547 = vcmp.ge.s32.totalorder %v1872, 144
  %vm2548 = vcmp.ge.s32.totalorder %v1873, 144
  %vm2549 = vcmp.ge.s32.totalorder %v1874, 144
  %vm2550 = vcmp.ge.s32.totalorder %v1875, 144
  %vm2551 = vcmp.ge.s32.totalorder %v1876, 144
  %vm2552 = vcmp.ge.s32.totalorder %v1877, 144
  %vm2553 = vcmp.ge.s32.totalorder %v1878, 144
  %vm2554 = vcmp.ge.s32.totalorder %v1879, 144
  %vm2555 = vcmp.ge.s32.totalorder %v1880, 144
  %vm2556 = vcmp.ge.s32.totalorder %v1881, 144
  %vm2557 = vcmp.ge.s32.totalorder %v1882, 144
  %vm2558 = vcmp.ge.s32.totalorder %v1883, 144
  %vm2559 = vcmp.ge.s32.totalorder %v1884, 144
  %vm2560 = vcmp.ge.s32.totalorder %v1885, 144
  %vm2561 = vcmp.ge.s32.totalorder %v1886, 144
  %vm2562 = vcmp.ge.s32.totalorder %v1887, 144
  %vm2563 = vcmp.ge.s32.totalorder %v1888, 144
  %vm2564 = vcmp.ge.s32.totalorder %v1889, 144
  %vm2565 = vcmp.ge.s32.totalorder %v1890, 144
  %vm2566 = vcmp.ge.s32.totalorder %v1891, 144
  %vm2567 = vcmp.ge.s32.totalorder %v1892, 144
  %vm2568 = vcmp.ge.s32.totalorder %v1893, 144
  %vm2569 = vcmp.ge.s32.totalorder %v1894, 144
  %v2570 = vsel %vm2543, %v2328, %v1389
  %v2571 = vsel %vm2543, %v2330, %v1391
  %v2572 = vsel %vm2543, %v2332, %v1731
  %v2573 = vsel %vm2543, %v2334, %v1733
  %v2574 = vsel %vm2544, %v2336, %v1393
  %v2575 = vsel %vm2544, %v2338, %v1395
  %v2576 = vsel %vm2544, %v2340, %v1735
  %v2577 = vsel %vm2544, %v2342, %v1737
  %v2578 = vsel %vm2545, %v2344, %v1399
  %v2579 = vsel %vm2545, %v2346, %v1401
  %v2580 = vsel %vm2545, %v2348, %v1741
  %v2581 = vsel %vm2545, %v2350, %v1743
  %v2582 = vsel %vm2546, %v2352, %v1403
  %v2583 = vsel %vm2546, %v2354, %v1405
  %v2584 = vsel %vm2546, %v2356, %v1745
  %v2585 = vsel %vm2546, %v2358, %v1747
  %v2586 = vsel %vm2547, %v2360, %v1409
  %v2587 = vsel %vm2547, %v2362, %v1411
  %v2588 = vsel %vm2547, %v2364, %v1751
  %v2589 = vsel %vm2547, %v2366, %v1753
  %v2590 = vsel %vm2548, %v2368, %v1413
  %v2591 = vsel %vm2548, %v2370, %v1415
  %v2592 = vsel %vm2548, %v2372, %v1755
  %v2593 = vsel %vm2548, %v2374, %v1757
  %v2594 = vsel %vm2549, %v2376, %v1419
  %v2595 = vsel %vm2549, %v2378, %v1421
  %v2596 = vsel %vm2549, %v2380, %v1761
  %v2597 = vsel %vm2549, %v2382, %v1763
  %v2598 = vsel %vm2550, %v2384, %v1423
  %v2599 = vsel %vm2550, %v2386, %v1425
  %v2600 = vsel %vm2550, %v2388, %v1765
  %v2601 = vsel %vm2550, %v2390, %v1767
  %v2602 = vsel %vm2551, %v2392, %v1429
  %v2603 = vsel %vm2551, %v2394, %v1431
  %v2604 = vsel %vm2551, %v2396, %v1771
  %v2605 = vsel %vm2551, %v2398, %v1773
  %v2606 = vsel %vm2552, %v2400, %v1433
  %v2607 = vsel %vm2552, %v2402, %v1435
  %v2608 = vsel %vm2552, %v2404, %v1775
  %v2609 = vsel %vm2552, %v2406, %v1777
  %v2610 = vsel %vm2553, %v2408, %v1439
  %v2611 = vsel %vm2553, %v2410, %v1441
  %v2612 = vsel %vm2553, %v2412, %v1781
  %v2613 = vsel %vm2553, %v2414, %v1783
  %v2614 = vsel %vm2554, %v2416, %v1443
  %v2615 = vsel %vm2554, %v2418, %v1445
  %v2616 = vsel %vm2554, %v2420, %v1785
  %v2617 = vsel %vm2554, %v2422, %v1787
  %v2618 = vsel %vm2555, %v2424, %v1449
  %v2619 = vsel %vm2555, %v2426, %v1451
  %v2620 = vsel %vm2555, %v2428, %v1791
  %v2621 = vsel %vm2555, %v2430, %v1793
  %v2622 = vsel %vm2556, %v2432, %v1453
  %v2623 = vsel %vm2556, %v2434, %v1455
  %v2624 = vsel %vm2556, %v2436, %v1795
  %v2625 = vsel %vm2556, %v2438, %v1797
  %v2626 = vsel %vm2557, %v2440, %v1459
  %v2627 = vsel %vm2557, %v2442, %v1461
  %v2628 = vsel %vm2557, %v2444, %v1801
  %v2629 = vsel %vm2557, %v2446, %v1803
  %v2630 = vsel %vm2558, %v2448, %v1463
  %v2631 = vsel %vm2558, %v2450, %v1465
  %v2632 = vsel %vm2558, %v2452, %v1805
  %v2633 = vsel %vm2558, %v2454, %v1807
  %v2634 = vsel %vm2559, %v2456, %v1469
  %v2635 = vsel %vm2559, %v2458, %v1471
  %v2636 = vsel %vm2559, %v2460, %v1811
  %v2637 = vsel %vm2559, %v2462, %v1813
  %v2638 = vsel %vm2560, %v2464, %v1473
  %v2639 = vsel %vm2560, %v2466, %v1475
  %v2640 = vsel %vm2560, %v2468, %v1815
  %v2641 = vsel %vm2560, %v2470, %v1817
  %v2642 = vsel %vm2561, %v2472, %v1479
  %v2643 = vsel %vm2561, %v2474, %v1481
  %v2644 = vsel %vm2561, %v2476, %v1821
  %v2645 = vsel %vm2561, %v2478, %v1823
  %v2646 = vsel %vm2562, %v2480, %v1483
  %v2647 = vsel %vm2562, %v2482, %v1485
  %v2648 = vsel %vm2562, %v2484, %v1825
  %v2649 = vsel %vm2562, %v2486, %v1827
  %v2650 = vsel %vm2563, %v2488, %v1489
  %v2651 = vsel %vm2563, %v2490, %v1491
  %v2652 = vsel %vm2563, %v2492, %v1831
  %v2653 = vsel %vm2563, %v2494, %v1833
  %v2654 = vsel %vm2564, %v2496, %v1493
  %v2655 = vsel %vm2564, %v2498, %v1495
  %v2656 = vsel %vm2564, %v2500, %v1835
  %v2657 = vsel %vm2564, %v2502, %v1837
  %v2658 = vsel %vm2565, %v2504, %v1499
  %v2659 = vsel %vm2565, %v2506, %v1501
  %v2660 = vsel %vm2565, %v2508, %v1841
  %v2661 = vsel %vm2565, %v2510, %v1843
  %v2662 = vsel %vm2566, %v2512, %v1503
  %v2663 = vsel %vm2566, %v2514, %v1505
  %v2664 = vsel %vm2566, %v2516, %v1845
  %v2665 = vsel %vm2566, %v2518, %v1847
  %v2666 = vsel %vm2567, %v2520, %v1509
  %v2667 = vsel %vm2567, %v2522, %v1511
  %v2668 = vsel %vm2567, %v2524, %v1851
  %v2669 = vsel %vm2567, %v2526, %v1853
  %v2670 = vsel %vm2568, %v2528, %v1513
  %v2671 = vsel %vm2568, %v2530, %v1515
  %v2672 = vsel %vm2568, %v2532, %v1855
  %v2673 = vsel %vm2568, %v2534, %v1857
  %v2674 = vsel %vm2569, %v2536, %v1519
  %v2675 = vsel %vm2569, %v2538, %v1521
  %v2676 = vsel %vm2569, %v2540, %v1861
  %v2677 = vsel %vm2569, %v2542, %v1863
  %2678 = vst [vmem:[%s3] sm:$0xff] %v2570
  %2679 = vst [vmem:[%s3 + $0x8] sm:$0xff] %v2571
  %2680 = vst [vmem:[%s3 + $0x10] sm:$0xff] %v2572
  %2681 = vst [vmem:[%s3 + $0x18] sm:$0xff] %v2573
  %2682 = vst [vmem:[%s3 + $0x20] sm:$0xff] %v2574
  %2683 = vst [vmem:[%s3 + $0x28] sm:$0xff] %v2575
  %2684 = vst [vmem:[%s3 + $0x30] sm:$0xff] %v2576
  %2685 = vst [vmem:[%s3 + $0x38] sm:$0xff] %v2577
  %2686 = vst [vmem:[%s3 + $0x40] sm:$0xff] %v2578
  %2687 = vst [vmem:[%s3 + $0x48] sm:$0xff] %v2579
  %2688 = vst [vmem:[%s3 + $0x50] sm:$0xff] %v2580
  %2689 = vst [vmem:[%s3 + $0x58] sm:$0xff] %v2581
  %2690 = vst [vmem:[%s3 + $0x60] sm:$0xff] %v2582
  %2691 = vst [vmem:[%s3 + $0x68] sm:$0xff] %v2583
  %2692 = vst [vmem:[%s3 + $0x70] sm:$0xff] %v2584
  %2693 = vst [vmem:[%s3 + $0x78] sm:$0xff] %v2585
  %2694 = vst [vmem:[%s3 + $0x80] sm:$0xff] %v2586
  %2695 = vst [vmem:[%s3 + $0x88] sm:$0xff] %v2587
  %2696 = vst [vmem:[%s3 + $0x90] sm:$0xff] %v2588
  %2697 = vst [vmem:[%s3 + $0x98] sm:$0xff] %v2589
  %2698 = vst [vmem:[%s3 + $0xa0] sm:$0xff] %v2590
  %2699 = vst [vmem:[%s3 + $0xa8] sm:$0xff] %v2591
  %2700 = vst [vmem:[%s3 + $0xb0] sm:$0xff] %v2592
  %2701 = vst [vmem:[%s3 + $0xb8] sm:$0xff] %v2593
  %2702 = vst [vmem:[%s3 + $0xc0] sm:$0xff] %v2594
  %2703 = vst [vmem:[%s3 + $0xc8] sm:$0xff] %v2595
  %2704 = vst [vmem:[%s3 + $0xd0] sm:$0xff] %v2596
  %2705 = vst [vmem:[%s3 + $0xd8] sm:$0xff] %v2597
  %2706 = vst [vmem:[%s3 + $0xe0] sm:$0xff] %v2598
  %2707 = vst [vmem:[%s3 + $0xe8] sm:$0xff] %v2599
  %2708 = vst [vmem:[%s3 + $0xf0] sm:$0xff] %v2600
  %2709 = vst [vmem:[%s3 + $0xf8] sm:$0xff] %v2601
  %2710 = vst [vmem:[%s3 + $0x100] sm:$0xff] %v2602
  %2711 = vst [vmem:[%s3 + $0x108] sm:$0xff] %v2603
  %2712 = vst [vmem:[%s3 + $0x110] sm:$0xff] %v2604
  %2713 = vst [vmem:[%s3 + $0x118] sm:$0xff] %v2605
  %2714 = vst [vmem:[%s3 + $0x120] sm:$0xff] %v2606
  %2715 = vst [vmem:[%s3 + $0x128] sm:$0xff] %v2607
  %2716 = vst [vmem:[%s3 + $0x130] sm:$0xff] %v2608
  %2717 = vst [vmem:[%s3 + $0x138] sm:$0xff] %v2609
  %2718 = vst [vmem:[%s3 + $0x140] sm:$0xff] %v2610
  %2719 = vst [vmem:[%s3 + $0x148] sm:$0xff] %v2611
  %2720 = vst [vmem:[%s3 + $0x150] sm:$0xff] %v2612
  %2721 = vst [vmem:[%s3 + $0x158] sm:$0xff] %v2613
  %2722 = vst [vmem:[%s3 + $0x160] sm:$0xff] %v2614
  %2723 = vst [vmem:[%s3 + $0x168] sm:$0xff] %v2615
  %2724 = vst [vmem:[%s3 + $0x170] sm:$0xff] %v2616
  %2725 = vst [vmem:[%s3 + $0x178] sm:$0xff] %v2617
  %2726 = vst [vmem:[%s3 + $0x180] sm:$0xff] %v2618
  %2727 = vst [vmem:[%s3 + $0x188] sm:$0xff] %v2619
  %2728 = vst [vmem:[%s3 + $0x190] sm:$0xff] %v2620
  %2729 = vst [vmem:[%s3 + $0x198] sm:$0xff] %v2621
  %2730 = vst [vmem:[%s3 + $0x1a0] sm:$0xff] %v2622
  %2731 = vst [vmem:[%s3 + $0x1a8] sm:$0xff] %v2623
  %2732 = vst [vmem:[%s3 + $0x1b0] sm:$0xff] %v2624
  %2733 = vst [vmem:[%s3 + $0x1b8] sm:$0xff] %v2625
  %2734 = vst [vmem:[%s3 + $0x1c0] sm:$0xff] %v2626
  %2735 = vst [vmem:[%s3 + $0x1c8] sm:$0xff] %v2627
  %2736 = vst [vmem:[%s3 + $0x1d0] sm:$0xff] %v2628
  %2737 = vst [vmem:[%s3 + $0x1d8] sm:$0xff] %v2629
  %2738 = vst [vmem:[%s3 + $0x1e0] sm:$0xff] %v2630
  %2739 = vst [vmem:[%s3 + $0x1e8] sm:$0xff] %v2631
  %2740 = vst [vmem:[%s3 + $0x1f0] sm:$0xff] %v2632
  %2741 = vst [vmem:[%s3 + $0x1f8] sm:$0xff] %v2633
  %2742 = vst [vmem:[%s3 + $0x200] sm:$0xff] %v2634
  %2743 = vst [vmem:[%s3 + $0x208] sm:$0xff] %v2635
  %2744 = vst [vmem:[%s3 + $0x210] sm:$0xff] %v2636
  %2745 = vst [vmem:[%s3 + $0x218] sm:$0xff] %v2637
  %2746 = vst [vmem:[%s3 + $0x220] sm:$0xff] %v2638
  %2747 = vst [vmem:[%s3 + $0x228] sm:$0xff] %v2639
  %2748 = vst [vmem:[%s3 + $0x230] sm:$0xff] %v2640
  %2749 = vst [vmem:[%s3 + $0x238] sm:$0xff] %v2641
  %2750 = vst [vmem:[%s3 + $0x240] sm:$0xff] %v2642
  %2751 = vst [vmem:[%s3 + $0x248] sm:$0xff] %v2643
  %2752 = vst [vmem:[%s3 + $0x250] sm:$0xff] %v2644
  %2753 = vst [vmem:[%s3 + $0x258] sm:$0xff] %v2645
  %2754 = vst [vmem:[%s3 + $0x260] sm:$0xff] %v2646
  %2755 = vst [vmem:[%s3 + $0x268] sm:$0xff] %v2647
  %2756 = vst [vmem:[%s3 + $0x270] sm:$0xff] %v2648
  %2757 = vst [vmem:[%s3 + $0x278] sm:$0xff] %v2649
  %2758 = vst [vmem:[%s3 + $0x280] sm:$0xff] %v2650
  %2759 = vst [vmem:[%s3 + $0x288] sm:$0xff] %v2651
  %2760 = vst [vmem:[%s3 + $0x290] sm:$0xff] %v2652
  %2761 = vst [vmem:[%s3 + $0x298] sm:$0xff] %v2653
  %2762 = vst [vmem:[%s3 + $0x2a0] sm:$0xff] %v2654
  %2763 = vst [vmem:[%s3 + $0x2a8] sm:$0xff] %v2655
  %2764 = vst [vmem:[%s3 + $0x2b0] sm:$0xff] %v2656
  %2765 = vst [vmem:[%s3 + $0x2b8] sm:$0xff] %v2657
  %2766 = vst [vmem:[%s3 + $0x2c0] sm:$0xff] %v2658
  %2767 = vst [vmem:[%s3 + $0x2c8] sm:$0xff] %v2659
  %2768 = vst [vmem:[%s3 + $0x2d0] sm:$0xff] %v2660
  %2769 = vst [vmem:[%s3 + $0x2d8] sm:$0xff] %v2661
  %2770 = vst [vmem:[%s3 + $0x2e0] sm:$0xff] %v2662
  %2771 = vst [vmem:[%s3 + $0x2e8] sm:$0xff] %v2663
  %2772 = vst [vmem:[%s3 + $0x2f0] sm:$0xff] %v2664
  %2773 = vst [vmem:[%s3 + $0x2f8] sm:$0xff] %v2665
  %2774 = vst [vmem:[%s3 + $0x300] sm:$0xff] %v2666
  %2775 = vst [vmem:[%s3 + $0x308] sm:$0xff] %v2667
  %2776 = vst [vmem:[%s3 + $0x310] sm:$0xff] %v2668
  %2777 = vst [vmem:[%s3 + $0x318] sm:$0xff] %v2669
  %2778 = vst [vmem:[%s3 + $0x320] sm:$0xff] %v2670
  %2779 = vst [vmem:[%s3 + $0x328] sm:$0xff] %v2671
  %2780 = vst [vmem:[%s3 + $0x330] sm:$0xff] %v2672
  %2781 = vst [vmem:[%s3 + $0x338] sm:$0xff] %v2673
  %2782 = vst [vmem:[%s3 + $0x340] sm:$0xff] %v2674
  %2783 = vst [vmem:[%s3 + $0x348] sm:$0xff] %v2675
  %2784 = vst [vmem:[%s3 + $0x350] sm:$0xff] %v2676
  %2785 = vst [vmem:[%s3 + $0x358] sm:$0xff] %v2677
  // Predicated region
  $region14: #{alignnet_forward.50} parent=0 // pred_check
    _
  $region15: #{alignnet_forward.50} parent=0 // pred_check_branch
    %2787 = sbr.rel (0) target = $region17
  $region16: #{alignnet_forward.50} parent=0 // pred_region
    _
  $region17: #{alignnet_forward.50} parent=0 // pred_fallthru
    _
  // Predicated region
  $region18: #{alignnet_forward.50} parent=0 // pred_check
    _
  $region19: #{alignnet_forward.50} parent=0 // pred_check_branch
    %2789 = sbr.rel (0) target = $region21
  $region20: #{alignnet_forward.50} parent=0 // pred_region
    _
  $region21: #{alignnet_forward.50} parent=0 // pred_fallthru
    _

// kernel: alignnet_forward.51
$region0: #{alignnet_forward.51}
  #allocation0 [shape = 'u32[]', space=smem, size = 0x4, offset = 0x4, fixed_abs, tag = 'smem constant byte address 0x4 - core index']
  #allocation1 [shape = 'u32[144,128]{1,0:T(1,128)}', space=vmem, size = 0x12000, scoped, tag = 'internal scratch']
  %s0 = inlined_call_operand.vmem [shape: bf16[512,288], index: 0, kind: input, shape index: {}]
  %s1 = inlined_call_operand.vmem [shape: bf16[32,288], index: 1, kind: input, shape index: {}]
  %s2 = inlined_call_operand.vmem [shape: f32[32,1], index: 2, kind: input, shape index: {}]
  %s3 = inlined_call_operand.vmem [shape: f32[32,512], index: 3, kind: output, shape index: {}]
  %s4 = sld [smem:[#allocation0]]
  $region22: #{alignnet_forward.51} parent=0
    _
  %s6 = ssub.s32 1, %s4
  %s7 = scalar_select 0, %s6, %s4
  // Predicated region
  $region2: #{alignnet_forward.51} parent=0 // pred_check
    _
  $region3: #{alignnet_forward.51} parent=0 // pred_check_branch
    %9 = sbr.rel (0) target = $region5
  $region4: #{alignnet_forward.51} parent=0 // pred_region
    _
  $region5: #{alignnet_forward.51} parent=0 // pred_fallthru
    _
  // Predicated region
  $region6: #{alignnet_forward.51} parent=0 // pred_check
    _
  $region7: #{alignnet_forward.51} parent=0 // pred_check_branch
    %11 = sbr.rel (0) target = $region9
  $region8: #{alignnet_forward.51} parent=0 // pred_region
    _
  $region9: #{alignnet_forward.51} parent=0 // pred_fallthru
    _
  // Predicated region
  $region10: #{alignnet_forward.51} parent=0 // pred_check
    _
  $region11: #{alignnet_forward.51} parent=0 // pred_check_branch
    %13 = sbr.rel (0) target = $region13
  $region12: #{alignnet_forward.51} parent=0 // pred_region
    _
  $region13: #{alignnet_forward.51} parent=0 // pred_fallthru
    _
  %v15 = vld [vmem:[%s1] sm:$0xff]
  %v16 = vld [vmem:[%s1 + $0x8] sm:$0xf]
  %v17 = vld [vmem:[%s1 + $0xc] sm:$0xff]
  %v18 = vld [vmem:[%s1 + $0x14] sm:$0xf]
  %v19 = vld [vmem:[%s1 + $0x18] sm:$0xff]
  %v20 = vld [vmem:[%s1 + $0x20] sm:$0xf]
  %v21 = vld [vmem:[%s1 + $0x24] sm:$0xff]
  %v22 = vld [vmem:[%s1 + $0x2c] sm:$0xf]
  %v23 = vld [vmem:[%s0] sm:$0xff]
  %v24 = vld [vmem:[%s0 + $0x8] sm:$0xf]
  %v25 = vld [vmem:[%s0 + $0xc] sm:$0xff]
  %v26 = vld [vmem:[%s0 + $0x14] sm:$0xf]
  %v27 = vld [vmem:[%s0 + $0x18] sm:$0xff]
  %v28 = vld [vmem:[%s0 + $0x20] sm:$0xf]
  %v29 = vld [vmem:[%s0 + $0x24] sm:$0xff]
  %v30 = vld [vmem:[%s0 + $0x2c] sm:$0xf]
  %v31 = vld [vmem:[%s0 + $0x30] sm:$0xff]
  %v32 = vld [vmem:[%s0 + $0x38] sm:$0xf]
  %v33 = vld [vmem:[%s0 + $0x3c] sm:$0xff]
  %v34 = vld [vmem:[%s0 + $0x44] sm:$0xf]
  %v35 = vld [vmem:[%s0 + $0x48] sm:$0xff]
  %v36 = vld [vmem:[%s0 + $0x50] sm:$0xf]
  %v37 = vld [vmem:[%s0 + $0x54] sm:$0xff]
  %v38 = vld [vmem:[%s0 + $0x5c] sm:$0xf]
  %v39 = vld [vmem:[%s0 + $0x60] sm:$0xff]
  %v40 = vld [vmem:[%s0 + $0x68] sm:$0xf]
  %v41 = vld [vmem:[%s0 + $0x6c] sm:$0xff]
  %v42 = vld [vmem:[%s0 + $0x74] sm:$0xf]
  %v43 = vld [vmem:[%s0 + $0x78] sm:$0xff]
  %v44 = vld [vmem:[%s0 + $0x80] sm:$0xf]
  %v45 = vld [vmem:[%s0 + $0x84] sm:$0xff]
  %v46 = vld [vmem:[%s0 + $0x8c] sm:$0xf]
  %v47 = vld [vmem:[%s0 + $0x90] sm:$0xff]
  %v48 = vld [vmem:[%s0 + $0x98] sm:$0xf]
  %v49 = vld [vmem:[%s0 + $0x9c] sm:$0xff]
  %v50 = vld [vmem:[%s0 + $0xa4] sm:$0xf]
  %v51 = vld [vmem:[%s0 + $0xa8] sm:$0xff]
  %v52 = vld [vmem:[%s0 + $0xb0] sm:$0xf]
  %v53 = vld [vmem:[%s0 + $0xb4] sm:$0xff]
  %v54 = vld [vmem:[%s0 + $0xbc] sm:$0xf]
  %v55 = vld [vmem:[%s0 + $0xc0] sm:$0xff]
  %v56 = vld [vmem:[%s0 + $0xc8] sm:$0xf]
  %v57 = vld [vmem:[%s0 + $0xcc] sm:$0xff]
  %v58 = vld [vmem:[%s0 + $0xd4] sm:$0xf]
  %v59 = vld [vmem:[%s0 + $0xd8] sm:$0xff]
  %v60 = vld [vmem:[%s0 + $0xe0] sm:$0xf]
  %v61 = vld [vmem:[%s0 + $0xe4] sm:$0xff]
  %v62 = vld [vmem:[%s0 + $0xec] sm:$0xf]
  %v63 = vld [vmem:[%s0 + $0xf0] sm:$0xff]
  %v64 = vld [vmem:[%s0 + $0xf8] sm:$0xf]
  %v65 = vld [vmem:[%s0 + $0xfc] sm:$0xff]
  %v66 = vld [vmem:[%s0 + $0x104] sm:$0xf]
  %v67 = vld [vmem:[%s0 + $0x108] sm:$0xff]
  %v68 = vld [vmem:[%s0 + $0x110] sm:$0xf]
  %v69 = vld [vmem:[%s0 + $0x114] sm:$0xff]
  %v70 = vld [vmem:[%s0 + $0x11c] sm:$0xf]
  %v71 = vld [vmem:[%s0 + $0x120] sm:$0xff]
  %v72 = vld [vmem:[%s0 + $0x128] sm:$0xf]
  %v73 = vld [vmem:[%s0 + $0x12c] sm:$0xff]
  %v74 = vld [vmem:[%s0 + $0x134] sm:$0xf]
  %v75 = vld [vmem:[%s0 + $0x138] sm:$0xff]
  %v76 = vld [vmem:[%s0 + $0x140] sm:$0xf]
  %v77 = vld [vmem:[%s0 + $0x144] sm:$0xff]
  %v78 = vld [vmem:[%s0 + $0x14c] sm:$0xf]
  %v79 = vld [vmem:[%s0 + $0x150] sm:$0xff]
  %v80 = vld [vmem:[%s0 + $0x158] sm:$0xf]
  %v81 = vld [vmem:[%s0 + $0x15c] sm:$0xff]
  %v82 = vld [vmem:[%s0 + $0x164] sm:$0xf]
  %v83 = vld [vmem:[%s0 + $0x168] sm:$0xff]
  %v84 = vld [vmem:[%s0 + $0x170] sm:$0xf]
  %v85 = vld [vmem:[%s0 + $0x174] sm:$0xff]
  %v86 = vld [vmem:[%s0 + $0x17c] sm:$0xf]
  %v87 = vld [vmem:[%s0 + $0x180] sm:$0xff]
  %v88 = vld [vmem:[%s0 + $0x188] sm:$0xf]
  %v89 = vld [vmem:[%s0 + $0x18c] sm:$0xff]
  %v90 = vld [vmem:[%s0 + $0x194] sm:$0xf]
  %v91 = vld [vmem:[%s0 + $0x198] sm:$0xff]
  %v92 = vld [vmem:[%s0 + $0x1a0] sm:$0xf]
  %v93 = vld [vmem:[%s0 + $0x1a4] sm:$0xff]
  %v94 = vld [vmem:[%s0 + $0x1ac] sm:$0xf]
  %v95 = vld [vmem:[%s0 + $0x1b0] sm:$0xff]
  %v96 = vld [vmem:[%s0 + $0x1b8] sm:$0xf]
  %v97 = vld [vmem:[%s0 + $0x1bc] sm:$0xff]
  %v98 = vld [vmem:[%s0 + $0x1c4] sm:$0xf]
  %v99 = vld [vmem:[%s0 + $0x1c8] sm:$0xff]
  %v100 = vld [vmem:[%s0 + $0x1d0] sm:$0xf]
  %v101 = vld [vmem:[%s0 + $0x1d4] sm:$0xff]
  %v102 = vld [vmem:[%s0 + $0x1dc] sm:$0xf]
  %v103 = vld [vmem:[%s0 + $0x1e0] sm:$0xff]
  %v104 = vld [vmem:[%s0 + $0x1e8] sm:$0xf]
  %v105 = vld [vmem:[%s0 + $0x1ec] sm:$0xff]
  %v106 = vld [vmem:[%s0 + $0x1f4] sm:$0xf]
  %v107 = vld [vmem:[%s0 + $0x1f8] sm:$0xff]
  %v108 = vld [vmem:[%s0 + $0x200] sm:$0xf]
  %v109 = vld [vmem:[%s0 + $0x204] sm:$0xff]
  %v110 = vld [vmem:[%s0 + $0x20c] sm:$0xf]
  %v111 = vld [vmem:[%s0 + $0x210] sm:$0xff]
  %v112 = vld [vmem:[%s0 + $0x218] sm:$0xf]
  %v113 = vld [vmem:[%s0 + $0x21c] sm:$0xff]
  %v114 = vld [vmem:[%s0 + $0x224] sm:$0xf]
  %v115 = vld [vmem:[%s0 + $0x228] sm:$0xff]
  %v116 = vld [vmem:[%s0 + $0x230] sm:$0xf]
  %v117 = vld [vmem:[%s0 + $0x234] sm:$0xff]
  %v118 = vld [vmem:[%s0 + $0x23c] sm:$0xf]
  %v119 = vld [vmem:[%s0 + $0x240] sm:$0xff]
  %v120 = vld [vmem:[%s0 + $0x248] sm:$0xf]
  %v121 = vld [vmem:[%s0 + $0x24c] sm:$0xff]
  %v122 = vld [vmem:[%s0 + $0x254] sm:$0xf]
  %v123 = vld [vmem:[%s0 + $0x258] sm:$0xff]
  %v124 = vld [vmem:[%s0 + $0x260] sm:$0xf]
  %v125 = vld [vmem:[%s0 + $0x264] sm:$0xff]
  %v126 = vld [vmem:[%s0 + $0x26c] sm:$0xf]
  %v127 = vld [vmem:[%s0 + $0x270] sm:$0xff]
  %v128 = vld [vmem:[%s0 + $0x278] sm:$0xf]
  %v129 = vld [vmem:[%s0 + $0x27c] sm:$0xff]
  %v130 = vld [vmem:[%s0 + $0x284] sm:$0xf]
  %v131 = vld [vmem:[%s0 + $0x288] sm:$0xff]
  %v132 = vld [vmem:[%s0 + $0x290] sm:$0xf]
  %v133 = vld [vmem:[%s0 + $0x294] sm:$0xff]
  %v134 = vld [vmem:[%s0 + $0x29c] sm:$0xf]
  %v135 = vld [vmem:[%s0 + $0x2a0] sm:$0xff]
  %v136 = vld [vmem:[%s0 + $0x2a8] sm:$0xf]
  %v137 = vld [vmem:[%s0 + $0x2ac] sm:$0xff]
  %v138 = vld [vmem:[%s0 + $0x2b4] sm:$0xf]
  %v139 = vld [vmem:[%s0 + $0x2b8] sm:$0xff]
  %v140 = vld [vmem:[%s0 + $0x2c0] sm:$0xf]
  %v141 = vld [vmem:[%s0 + $0x2c4] sm:$0xff]
  %v142 = vld [vmem:[%s0 + $0x2cc] sm:$0xf]
  %v143 = vld [vmem:[%s0 + $0x2d0] sm:$0xff]
  %v144 = vld [vmem:[%s0 + $0x2d8] sm:$0xf]
  %v145 = vld [vmem:[%s0 + $0x2dc] sm:$0xff]
  %v146 = vld [vmem:[%s0 + $0x2e4] sm:$0xf]
  %v147 = vld [vmem:[%s0 + $0x2e8] sm:$0xff]
  %v148 = vld [vmem:[%s0 + $0x2f0] sm:$0xf]
  %v149 = vld [vmem:[%s0 + $0x2f4] sm:$0xff]
  %v150 = vld [vmem:[%s0 + $0x2fc] sm:$0xf]
  %v151 = vld [vmem:[%s2] sm:$0xff]
  %v152 = vld [vmem:[%s2 + $0x8] sm:$0xff]
  %v153 = vld [vmem:[%s2 + $0x10] sm:$0xff]
  %v154 = vld [vmem:[%s2 + $0x18] sm:$0xff]
  %156 = vset.pattern.permute.xlu0 0
  %157 = vperm.xlu0 %156, %v151
  %v158 = vpop.permute.xlu0 %157
  %161 = vset.pattern.permute.xlu0 0
  %162 = vperm.xlu0 %161, %v152
  %v163 = vpop.permute.xlu0 %162
  %166 = vset.pattern.permute.xlu0 0
  %167 = vperm.xlu0 %166, %v153
  %v168 = vpop.permute.xlu0 %167
  %171 = vset.pattern.permute.xlu0 0
  %172 = vperm.xlu0 %171, %v154
  %v173 = vpop.permute.xlu0 %172
  %v183 = vunpack.c.l.b16 %v15
  %v184 = vunpack.c.h.b16 %v15
  %v185 = vunpack.c.l.b16 %v16
  %v186 = vunpack.c.l.b16 %v17
  %v187 = vunpack.c.h.b16 %v17
  %v188 = vunpack.c.l.b16 %v18
  %v189 = vunpack.c.l.b16 %v19
  %v190 = vunpack.c.h.b16 %v19
  %v191 = vunpack.c.l.b16 %v20
  %v192 = vunpack.c.l.b16 %v21
  %v193 = vunpack.c.h.b16 %v21
  %v194 = vunpack.c.l.b16 %v22
  %v195 = vpack.c.b16 %v186, %v183
  %v196 = vpack.c.b16 %v187, %v184
  %v197 = vpack.c.b16 %v188, %v185
  %v198 = vpack.c.b16 %v192, %v189
  %v199 = vpack.c.b16 %v193, %v190
  %v200 = vpack.c.b16 %v194, %v191
  %v333 = vunpack.c.l.b16 %v23
  %v334 = vunpack.c.h.b16 %v23
  %v335 = vunpack.c.l.b16 %v24
  %v336 = vunpack.c.l.b16 %v25
  %v337 = vunpack.c.h.b16 %v25
  %v338 = vunpack.c.l.b16 %v26
  %v339 = vunpack.c.l.b16 %v27
  %v340 = vunpack.c.h.b16 %v27
  %v341 = vunpack.c.l.b16 %v28
  %v342 = vunpack.c.l.b16 %v29
  %v343 = vunpack.c.h.b16 %v29
  %v344 = vunpack.c.l.b16 %v30
  %v345 = vunpack.c.l.b16 %v31
  %v346 = vunpack.c.h.b16 %v31
  %v347 = vunpack.c.l.b16 %v32
  %v348 = vunpack.c.l.b16 %v33
  %v349 = vunpack.c.h.b16 %v33
  %v350 = vunpack.c.l.b16 %v34
  %v351 = vunpack.c.l.b16 %v35
  %v352 = vunpack.c.h.b16 %v35
  %v353 = vunpack.c.l.b16 %v36
  %v354 = vunpack.c.l.b16 %v37
  %v355 = vunpack.c.h.b16 %v37
  %v356 = vunpack.c.l.b16 %v38
  %v357 = vunpack.c.l.b16 %v39
  %v358 = vunpack.c.h.b16 %v39
  %v359 = vunpack.c.l.b16 %v40
  %v360 = vunpack.c.l.b16 %v41
  %v361 = vunpack.c.h.b16 %v41
  %v362 = vunpack.c.l.b16 %v42
  %v363 = vunpack.c.l.b16 %v43
  %v364 = vunpack.c.h.b16 %v43
  %v365 = vunpack.c.l.b16 %v44
  %v366 = vunpack.c.l.b16 %v45
  %v367 = vunpack.c.h.b16 %v45
  %v368 = vunpack.c.l.b16 %v46
  %v369 = vunpack.c.l.b16 %v47
  %v370 = vunpack.c.h.b16 %v47
  %v371 = vunpack.c.l.b16 %v48
  %v372 = vunpack.c.l.b16 %v49
  %v373 = vunpack.c.h.b16 %v49
  %v374 = vunpack.c.l.b16 %v50
  %v375 = vunpack.c.l.b16 %v51
  %v376 = vunpack.c.h.b16 %v51
  %v377 = vunpack.c.l.b16 %v52
  %v378 = vunpack.c.l.b16 %v53
  %v379 = vunpack.c.h.b16 %v53
  %v380 = vunpack.c.l.b16 %v54
  %v381 = vunpack.c.l.b16 %v55
  %v382 = vunpack.c.h.b16 %v55
  %v383 = vunpack.c.l.b16 %v56
  %v384 = vunpack.c.l.b16 %v57
  %v385 = vunpack.c.h.b16 %v57
  %v386 = vunpack.c.l.b16 %v58
  %v387 = vunpack.c.l.b16 %v59
  %v388 = vunpack.c.h.b16 %v59
  %v389 = vunpack.c.l.b16 %v60
  %v390 = vunpack.c.l.b16 %v61
  %v391 = vunpack.c.h.b16 %v61
  %v392 = vunpack.c.l.b16 %v62
  %v393 = vunpack.c.l.b16 %v63
  %v394 = vunpack.c.h.b16 %v63
  %v395 = vunpack.c.l.b16 %v64
  %v396 = vunpack.c.l.b16 %v65
  %v397 = vunpack.c.h.b16 %v65
  %v398 = vunpack.c.l.b16 %v66
  %v399 = vunpack.c.l.b16 %v67
  %v400 = vunpack.c.h.b16 %v67
  %v401 = vunpack.c.l.b16 %v68
  %v402 = vunpack.c.l.b16 %v69
  %v403 = vunpack.c.h.b16 %v69
  %v404 = vunpack.c.l.b16 %v70
  %v405 = vunpack.c.l.b16 %v71
  %v406 = vunpack.c.h.b16 %v71
  %v407 = vunpack.c.l.b16 %v72
  %v408 = vunpack.c.l.b16 %v73
  %v409 = vunpack.c.h.b16 %v73
  %v410 = vunpack.c.l.b16 %v74
  %v411 = vunpack.c.l.b16 %v75
  %v412 = vunpack.c.h.b16 %v75
  %v413 = vunpack.c.l.b16 %v76
  %v414 = vunpack.c.l.b16 %v77
  %v415 = vunpack.c.h.b16 %v77
  %v416 = vunpack.c.l.b16 %v78
  %v417 = vunpack.c.l.b16 %v79
  %v418 = vunpack.c.h.b16 %v79
  %v419 = vunpack.c.l.b16 %v80
  %v420 = vunpack.c.l.b16 %v81
  %v421 = vunpack.c.h.b16 %v81
  %v422 = vunpack.c.l.b16 %v82
  %v423 = vunpack.c.l.b16 %v83
  %v424 = vunpack.c.h.b16 %v83
  %v425 = vunpack.c.l.b16 %v84
  %v426 = vunpack.c.l.b16 %v85
  %v427 = vunpack.c.h.b16 %v85
  %v428 = vunpack.c.l.b16 %v86
  %v429 = vunpack.c.l.b16 %v87
  %v430 = vunpack.c.h.b16 %v87
  %v431 = vunpack.c.l.b16 %v88
  %v432 = vunpack.c.l.b16 %v89
  %v433 = vunpack.c.h.b16 %v89
  %v434 = vunpack.c.l.b16 %v90
  %v435 = vunpack.c.l.b16 %v91
  %v436 = vunpack.c.h.b16 %v91
  %v437 = vunpack.c.l.b16 %v92
  %v438 = vunpack.c.l.b16 %v93
  %v439 = vunpack.c.h.b16 %v93
  %v440 = vunpack.c.l.b16 %v94
  %v441 = vunpack.c.l.b16 %v95
  %v442 = vunpack.c.h.b16 %v95
  %v443 = vunpack.c.l.b16 %v96
  %v444 = vunpack.c.l.b16 %v97
  %v445 = vunpack.c.h.b16 %v97
  %v446 = vunpack.c.l.b16 %v98
  %v447 = vunpack.c.l.b16 %v99
  %v448 = vunpack.c.h.b16 %v99
  %v449 = vunpack.c.l.b16 %v100
  %v450 = vunpack.c.l.b16 %v101
  %v451 = vunpack.c.h.b16 %v101
  %v452 = vunpack.c.l.b16 %v102
  %v453 = vunpack.c.l.b16 %v103
  %v454 = vunpack.c.h.b16 %v103
  %v455 = vunpack.c.l.b16 %v104
  %v456 = vunpack.c.l.b16 %v105
  %v457 = vunpack.c.h.b16 %v105
  %v458 = vunpack.c.l.b16 %v106
  %v459 = vunpack.c.l.b16 %v107
  %v460 = vunpack.c.h.b16 %v107
  %v461 = vunpack.c.l.b16 %v108
  %v462 = vunpack.c.l.b16 %v109
  %v463 = vunpack.c.h.b16 %v109
  %v464 = vunpack.c.l.b16 %v110
  %v465 = vunpack.c.l.b16 %v111
  %v466 = vunpack.c.h.b16 %v111
  %v467 = vunpack.c.l.b16 %v112
  %v468 = vunpack.c.l.b16 %v113
  %v469 = vunpack.c.h.b16 %v113
  %v470 = vunpack.c.l.b16 %v114
  %v471 = vunpack.c.l.b16 %v115
  %v472 = vunpack.c.h.b16 %v115
  %v473 = vunpack.c.l.b16 %v116
  %v474 = vunpack.c.l.b16 %v117
  %v475 = vunpack.c.h.b16 %v117
  %v476 = vunpack.c.l.b16 %v118
  %v477 = vunpack.c.l.b16 %v119
  %v478 = vunpack.c.h.b16 %v119
  %v479 = vunpack.c.l.b16 %v120
  %v480 = vunpack.c.l.b16 %v121
  %v481 = vunpack.c.h.b16 %v121
  %v482 = vunpack.c.l.b16 %v122
  %v483 = vunpack.c.l.b16 %v123
  %v484 = vunpack.c.h.b16 %v123
  %v485 = vunpack.c.l.b16 %v124
  %v486 = vunpack.c.l.b16 %v125
  %v487 = vunpack.c.h.b16 %v125
  %v488 = vunpack.c.l.b16 %v126
  %v489 = vunpack.c.l.b16 %v127
  %v490 = vunpack.c.h.b16 %v127
  %v491 = vunpack.c.l.b16 %v128
  %v492 = vunpack.c.l.b16 %v129
  %v493 = vunpack.c.h.b16 %v129
  %v494 = vunpack.c.l.b16 %v130
  %v495 = vunpack.c.l.b16 %v131
  %v496 = vunpack.c.h.b16 %v131
  %v497 = vunpack.c.l.b16 %v132
  %v498 = vunpack.c.l.b16 %v133
  %v499 = vunpack.c.h.b16 %v133
  %v500 = vunpack.c.l.b16 %v134
  %v501 = vunpack.c.l.b16 %v135
  %v502 = vunpack.c.h.b16 %v135
  %v503 = vunpack.c.l.b16 %v136
  %v504 = vunpack.c.l.b16 %v137
  %v505 = vunpack.c.h.b16 %v137
  %v506 = vunpack.c.l.b16 %v138
  %v507 = vunpack.c.l.b16 %v139
  %v508 = vunpack.c.h.b16 %v139
  %v509 = vunpack.c.l.b16 %v140
  %v510 = vunpack.c.l.b16 %v141
  %v511 = vunpack.c.h.b16 %v141
  %v512 = vunpack.c.l.b16 %v142
  %v513 = vunpack.c.l.b16 %v143
  %v514 = vunpack.c.h.b16 %v143
  %v515 = vunpack.c.l.b16 %v144
  %v516 = vunpack.c.l.b16 %v145
  %v517 = vunpack.c.h.b16 %v145
  %v518 = vunpack.c.l.b16 %v146
  %v519 = vunpack.c.l.b16 %v147
  %v520 = vunpack.c.h.b16 %v147
  %v521 = vunpack.c.l.b16 %v148
  %v522 = vunpack.c.l.b16 %v149
  %v523 = vunpack.c.h.b16 %v149
  %v524 = vunpack.c.l.b16 %v150
  %v525 = vpack.c.b16 %v336, %v333
  %v526 = vpack.c.b16 %v337, %v334
  %v527 = vpack.c.b16 %v338, %v335
  %v528 = vpack.c.b16 %v342, %v339
  %v529 = vpack.c.b16 %v343, %v340
  %v530 = vpack.c.b16 %v344, %v341
  %v531 = vpack.c.b16 %v348, %v345
  %v532 = vpack.c.b16 %v349, %v346
  %v533 = vpack.c.b16 %v350, %v347
  %v534 = vpack.c.b16 %v354, %v351
  %v535 = vpack.c.b16 %v355, %v352
  %v536 = vpack.c.b16 %v356, %v353
  %v537 = vpack.c.b16 %v360, %v357
  %v538 = vpack.c.b16 %v361, %v358
  %v539 = vpack.c.b16 %v362, %v359
  %v540 = vpack.c.b16 %v366, %v363
  %v541 = vpack.c.b16 %v367, %v364
  %v542 = vpack.c.b16 %v368, %v365
  %v543 = vpack.c.b16 %v372, %v369
  %v544 = vpack.c.b16 %v373, %v370
  %v545 = vpack.c.b16 %v374, %v371
  %v546 = vpack.c.b16 %v378, %v375
  %v547 = vpack.c.b16 %v379, %v376
  %v548 = vpack.c.b16 %v380, %v377
  %v549 = vpack.c.b16 %v384, %v381
  %v550 = vpack.c.b16 %v385, %v382
  %v551 = vpack.c.b16 %v386, %v383
  %v552 = vpack.c.b16 %v390, %v387
  %v553 = vpack.c.b16 %v391, %v388
  %v554 = vpack.c.b16 %v392, %v389
  %v555 = vpack.c.b16 %v396, %v393
  %v556 = vpack.c.b16 %v397, %v394
  %v557 = vpack.c.b16 %v398, %v395
  %v558 = vpack.c.b16 %v402, %v399
  %v559 = vpack.c.b16 %v403, %v400
  %v560 = vpack.c.b16 %v404, %v401
  %v561 = vpack.c.b16 %v408, %v405
  %v562 = vpack.c.b16 %v409, %v406
  %v563 = vpack.c.b16 %v410, %v407
  %v564 = vpack.c.b16 %v414, %v411
  %v565 = vpack.c.b16 %v415, %v412
  %v566 = vpack.c.b16 %v416, %v413
  %v567 = vpack.c.b16 %v420, %v417
  %v568 = vpack.c.b16 %v421, %v418
  %v569 = vpack.c.b16 %v422, %v419
  %v570 = vpack.c.b16 %v426, %v423
  %v571 = vpack.c.b16 %v427, %v424
  %v572 = vpack.c.b16 %v428, %v425
  %v573 = vpack.c.b16 %v432, %v429
  %v574 = vpack.c.b16 %v433, %v430
  %v575 = vpack.c.b16 %v434, %v431
  %v576 = vpack.c.b16 %v438, %v435
  %v577 = vpack.c.b16 %v439, %v436
  %v578 = vpack.c.b16 %v440, %v437
  %v579 = vpack.c.b16 %v444, %v441
  %v580 = vpack.c.b16 %v445, %v442
  %v581 = vpack.c.b16 %v446, %v443
  %v582 = vpack.c.b16 %v450, %v447
  %v583 = vpack.c.b16 %v451, %v448
  %v584 = vpack.c.b16 %v452, %v449
  %v585 = vpack.c.b16 %v456, %v453
  %v586 = vpack.c.b16 %v457, %v454
  %v587 = vpack.c.b16 %v458, %v455
  %v588 = vpack.c.b16 %v462, %v459
  %v589 = vpack.c.b16 %v463, %v460
  %v590 = vpack.c.b16 %v464, %v461
  %v591 = vpack.c.b16 %v468, %v465
  %v592 = vpack.c.b16 %v469, %v466
  %v593 = vpack.c.b16 %v470, %v467
  %v594 = vpack.c.b16 %v474, %v471
  %v595 = vpack.c.b16 %v475, %v472
  %v596 = vpack.c.b16 %v476, %v473
  %v597 = vpack.c.b16 %v480, %v477
  %v598 = vpack.c.b16 %v481, %v478
  %v599 = vpack.c.b16 %v482, %v479
  %v600 = vpack.c.b16 %v486, %v483
  %v601 = vpack.c.b16 %v487, %v484
  %v602 = vpack.c.b16 %v488, %v485
  %v603 = vpack.c.b16 %v492, %v489
  %v604 = vpack.c.b16 %v493, %v490
  %v605 = vpack.c.b16 %v494, %v491
  %v606 = vpack.c.b16 %v498, %v495
  %v607 = vpack.c.b16 %v499, %v496
  %v608 = vpack.c.b16 %v500, %v497
  %v609 = vpack.c.b16 %v504, %v501
  %v610 = vpack.c.b16 %v505, %v502
  %v611 = vpack.c.b16 %v506, %v503
  %v612 = vpack.c.b16 %v510, %v507
  %v613 = vpack.c.b16 %v511, %v508
  %v614 = vpack.c.b16 %v512, %v509
  %v615 = vpack.c.b16 %v516, %v513
  %v616 = vpack.c.b16 %v517, %v514
  %v617 = vpack.c.b16 %v518, %v515
  %v618 = vpack.c.b16 %v522, %v519
  %v619 = vpack.c.b16 %v523, %v520
  %v620 = vpack.c.b16 %v524, %v521
  %vm685 = vcmask 261120
  %v687 = vsel %vm685, %v197, 0
  %v690 = vsel %vm685, %v200, 0
  %v693 = vsel %vm685, %v527, 0
  %v696 = vsel %vm685, %v530, 0
  %v699 = vsel %vm685, %v533, 0
  %v702 = vsel %vm685, %v536, 0
  %v705 = vsel %vm685, %v539, 0
  %v708 = vsel %vm685, %v542, 0
  %v711 = vsel %vm685, %v545, 0
  %v714 = vsel %vm685, %v548, 0
  %v717 = vsel %vm685, %v551, 0
  %v720 = vsel %vm685, %v554, 0
  %v723 = vsel %vm685, %v557, 0
  %v726 = vsel %vm685, %v560, 0
  %v729 = vsel %vm685, %v563, 0
  %v732 = vsel %vm685, %v566, 0
  %v735 = vsel %vm685, %v569, 0
  %v738 = vsel %vm685, %v572, 0
  %v741 = vsel %vm685, %v575, 0
  %v744 = vsel %vm685, %v578, 0
  %v747 = vsel %vm685, %v581, 0
  %v750 = vsel %vm685, %v584, 0
  %v753 = vsel %vm685, %v587, 0
  %v756 = vsel %vm685, %v590, 0
  %v759 = vsel %vm685, %v593, 0
  %v762 = vsel %vm685, %v596, 0
  %v765 = vsel %vm685, %v599, 0
  %v768 = vsel %vm685, %v602, 0
  %v771 = vsel %vm685, %v605, 0
  %v774 = vsel %vm685, %v608, 0
  %v777 = vsel %vm685, %v611, 0
  %v780 = vsel %vm685, %v614, 0
  %v783 = vsel %vm685, %v617, 0
  %v786 = vsel %vm685, %v620, 0
  %788 = vmatprep.subr.bf16.mxu0 %v547
  %789 = vmatpush1.bf16.xpose.msra.mxu0 %v546
  %790 = vmatprep.subr.bf16.mxu0 %v544
  %791 = vmatpush1.bf16.xpose.msra.mxu0 %v543
  %792 = vmatprep.subr.bf16.mxu0 %v541
  %793 = vmatpush1.bf16.xpose.msra.mxu0 %v540
  %794 = vmatprep.subr.bf16.mxu0 %v538
  %795 = vmatpush1.bf16.xpose.msra.mxu0 %v537
  %796 = vmatprep.subr.bf16.mxu0 %v535
  %797 = vmatpush1.bf16.xpose.msra.mxu0 %v534
  %798 = vmatprep.subr.bf16.mxu0 %v532
  %799 = vmatpush1.bf16.xpose.msra.mxu0 %v531
  %800 = vmatprep.subr.bf16.mxu0 %v529
  %801 = vmatpush1.bf16.xpose.msra.mxu0 %v528
  %802 = vmatprep.subr.bf16.mxu0 %v526
  %803 = vmatpush1.bf16.xpose.msra.mxu0 %v525
  %804 = vmatprep.subr.bf16.mxu0 %v571
  %805 = vmatpush2.bf16.xpose.msra.mxu0 %v570
  %806 = vmatprep.subr.bf16.mxu0 %v568
  %807 = vmatpush2.bf16.xpose.msra.mxu0 %v567
  %808 = vmatprep.subr.bf16.mxu0 %v565
  %809 = vmatpush2.bf16.xpose.msra.mxu0 %v564
  %810 = vmatprep.subr.bf16.mxu0 %v562
  %811 = vmatpush2.bf16.xpose.msra.mxu0 %v561
  %812 = vmatprep.subr.bf16.mxu0 %v559
  %813 = vmatpush2.bf16.xpose.msra.mxu0 %v558
  %814 = vmatprep.subr.bf16.mxu0 %v556
  %815 = vmatpush2.bf16.xpose.msra.mxu0 %v555
  %816 = vmatprep.subr.bf16.mxu0 %v553
  %817 = vmatpush2.bf16.xpose.msra.mxu0 %v552
  %818 = vmatprep.subr.bf16.mxu0 %v550
  %819 = vmatpush2.bf16.xpose.msra.mxu0 %v549
  %820 = vmatprep.mubr.bf16.mxu0 %v196
  %821 = vmatmul.mubr.bf16.gmra.mxu0 %v195
  %v822 = vpop.f32.mrf.mxu0
  %v823 = vadd.f32 %v158, %v822
  %v824 = vpop.f32.mrf.mxu0
  %v825 = vadd.f32 %v158, %v824
  %v826 = vpop.f32.mrf.mxu0
  %v827 = vadd.f32 %v163, %v826
  %v828 = vpop.f32.mrf.mxu0
  %v829 = vadd.f32 %v163, %v828
  %830 = vmatprep.mubr.bf16.mxu0 %v199
  %831 = vmatmul.mubr.bf16.gmra.mxu0 %v198
  %v832 = vpop.f32.mrf.mxu0
  %v833 = vadd.f32 %v168, %v832
  %v834 = vpop.f32.mrf.mxu0
  %v835 = vadd.f32 %v168, %v834
  %v836 = vpop.f32.mrf.mxu0
  %v837 = vadd.f32 %v173, %v836
  %v838 = vpop.f32.mrf.mxu0
  %v839 = vadd.f32 %v173, %v838
  %840 = vdwg.mxu0
  %841 = vmatprep.subr.bf16.mxu0 0
  %842 = vmatpush1.bf16.xpose.msra.mxu0 %v714
  %843 = vmatprep.subr.bf16.mxu0 0
  %844 = vmatpush1.bf16.xpose.msra.mxu0 %v711
  %845 = vmatprep.subr.bf16.mxu0 0
  %846 = vmatpush1.bf16.xpose.msra.mxu0 %v708
  %847 = vmatprep.subr.bf16.mxu0 0
  %848 = vmatpush1.bf16.xpose.msra.mxu0 %v705
  %849 = vmatprep.subr.bf16.mxu0 0
  %850 = vmatpush1.bf16.xpose.msra.mxu0 %v702
  %851 = vmatprep.subr.bf16.mxu0 0
  %852 = vmatpush1.bf16.xpose.msra.mxu0 %v699
  %853 = vmatprep.subr.bf16.mxu0 0
  %854 = vmatpush1.bf16.xpose.msra.mxu0 %v696
  %855 = vmatprep.subr.bf16.mxu0 0
  %856 = vmatpush1.bf16.xpose.msra.mxu0 %v693
  %857 = vmatprep.subr.bf16.mxu0 0
  %858 = vmatpush2.bf16.xpose.msra.mxu0 %v738
  %859 = vmatprep.subr.bf16.mxu0 0
  %860 = vmatpush2.bf16.xpose.msra.mxu0 %v735
  %861 = vmatprep.subr.bf16.mxu0 0
  %862 = vmatpush2.bf16.xpose.msra.mxu0 %v732
  %863 = vmatprep.subr.bf16.mxu0 0
  %864 = vmatpush2.bf16.xpose.msra.mxu0 %v729
  %865 = vmatprep.subr.bf16.mxu0 0
  %866 = vmatpush2.bf16.xpose.msra.mxu0 %v726
  %867 = vmatprep.subr.bf16.mxu0 0
  %868 = vmatpush2.bf16.xpose.msra.mxu0 %v723
  %869 = vmatprep.subr.bf16.mxu0 0
  %870 = vmatpush2.bf16.xpose.msra.mxu0 %v720
  %871 = vmatprep.subr.bf16.mxu0 0
  %872 = vmatpush2.bf16.xpose.msra.mxu0 %v717
  %873 = vmatprep.mubr.bf16.mxu0 0
  %874 = vmatmul.mubr.bf16.gmra.mxu0 %v687
  %v875 = vpop.f32.mrf.mxu0
  %v876 = vadd.f32 %v823, %v875
  %v877 = vpop.f32.mrf.mxu0
  %v878 = vadd.f32 %v825, %v877
  %v879 = vpop.f32.mrf.mxu0
  %v880 = vadd.f32 %v827, %v879
  %v881 = vpop.f32.mrf.mxu0
  %v882 = vadd.f32 %v829, %v881
  %883 = vmatprep.mubr.bf16.mxu0 0
  %884 = vmatmul.mubr.bf16.gmra.mxu0 %v690
  %v885 = vpop.f32.mrf.mxu0
  %v886 = vadd.f32 %v833, %v885
  %v887 = vpop.f32.mrf.mxu0
  %v888 = vadd.f32 %v835, %v887
  %v889 = vpop.f32.mrf.mxu0
  %v890 = vadd.f32 %v837, %v889
  %v891 = vpop.f32.mrf.mxu0
  %v892 = vadd.f32 %v839, %v891
  %893 = vdwg.mxu0
  %894 = vmatprep.subr.bf16.mxu0 %v595
  %895 = vmatpush1.bf16.xpose.msra.mxu0 %v594
  %896 = vmatprep.subr.bf16.mxu0 %v592
  %897 = vmatpush1.bf16.xpose.msra.mxu0 %v591
  %898 = vmatprep.subr.bf16.mxu0 %v589
  %899 = vmatpush1.bf16.xpose.msra.mxu0 %v588
  %900 = vmatprep.subr.bf16.mxu0 %v586
  %901 = vmatpush1.bf16.xpose.msra.mxu0 %v585
  %902 = vmatprep.subr.bf16.mxu0 %v583
  %903 = vmatpush1.bf16.xpose.msra.mxu0 %v582
  %904 = vmatprep.subr.bf16.mxu0 %v580
  %905 = vmatpush1.bf16.xpose.msra.mxu0 %v579
  %906 = vmatprep.subr.bf16.mxu0 %v577
  %907 = vmatpush1.bf16.xpose.msra.mxu0 %v576
  %908 = vmatprep.subr.bf16.mxu0 %v574
  %909 = vmatpush1.bf16.xpose.msra.mxu0 %v573
  %910 = vmatprep.subr.bf16.mxu0 %v619
  %911 = vmatpush2.bf16.xpose.msra.mxu0 %v618
  %912 = vmatprep.subr.bf16.mxu0 %v616
  %913 = vmatpush2.bf16.xpose.msra.mxu0 %v615
  %914 = vmatprep.subr.bf16.mxu0 %v613
  %915 = vmatpush2.bf16.xpose.msra.mxu0 %v612
  %916 = vmatprep.subr.bf16.mxu0 %v610
  %917 = vmatpush2.bf16.xpose.msra.mxu0 %v609
  %918 = vmatprep.subr.bf16.mxu0 %v607
  %919 = vmatpush2.bf16.xpose.msra.mxu0 %v606
  %920 = vmatprep.subr.bf16.mxu0 %v604
  %921 = vmatpush2.bf16.xpose.msra.mxu0 %v603
  %922 = vmatprep.subr.bf16.mxu0 %v601
  %923 = vmatpush2.bf16.xpose.msra.mxu0 %v600
  %924 = vmatprep.subr.bf16.mxu0 %v598
  %925 = vmatpush2.bf16.xpose.msra.mxu0 %v597
  %926 = vmatprep.mubr.bf16.mxu0 %v196
  %927 = vmatmul.mubr.bf16.gmra.mxu0 %v195
  %v928 = vpop.f32.mrf.mxu0
  %v929 = vadd.f32 %v158, %v928
  %v930 = vpop.f32.mrf.mxu0
  %v931 = vadd.f32 %v158, %v930
  %v932 = vpop.f32.mrf.mxu0
  %v933 = vadd.f32 %v163, %v932
  %v934 = vpop.f32.mrf.mxu0
  %v935 = vadd.f32 %v163, %v934
  %936 = vmatprep.mubr.bf16.mxu0 %v199
  %937 = vmatmul.mubr.bf16.gmra.mxu0 %v198
  %v938 = vpop.f32.mrf.mxu0
  %v939 = vadd.f32 %v168, %v938
  %v940 = vpop.f32.mrf.mxu0
  %v941 = vadd.f32 %v168, %v940
  %v942 = vpop.f32.mrf.mxu0
  %v943 = vadd.f32 %v173, %v942
  %v944 = vpop.f32.mrf.mxu0
  %v945 = vadd.f32 %v173, %v944
  %946 = vdwg.mxu0
  %947 = vmatprep.subr.bf16.mxu0 0
  %948 = vmatpush1.bf16.xpose.msra.mxu0 %v762
  %949 = vmatprep.subr.bf16.mxu0 0
  %950 = vmatpush1.bf16.xpose.msra.mxu0 %v759
  %951 = vmatprep.subr.bf16.mxu0 0
  %952 = vmatpush1.bf16.xpose.msra.mxu0 %v756
  %953 = vmatprep.subr.bf16.mxu0 0
  %954 = vmatpush1.bf16.xpose.msra.mxu0 %v753
  %955 = vmatprep.subr.bf16.mxu0 0
  %956 = vmatpush1.bf16.xpose.msra.mxu0 %v750
  %957 = vmatprep.subr.bf16.mxu0 0
  %958 = vmatpush1.bf16.xpose.msra.mxu0 %v747
  %959 = vmatprep.subr.bf16.mxu0 0
  %960 = vmatpush1.bf16.xpose.msra.mxu0 %v744
  %961 = vmatprep.subr.bf16.mxu0 0
  %962 = vmatpush1.bf16.xpose.msra.mxu0 %v741
  %963 = vmatprep.subr.bf16.mxu0 0
  %964 = vmatpush2.bf16.xpose.msra.mxu0 %v786
  %965 = vmatprep.subr.bf16.mxu0 0
  %966 = vmatpush2.bf16.xpose.msra.mxu0 %v783
  %967 = vmatprep.subr.bf16.mxu0 0
  %968 = vmatpush2.bf16.xpose.msra.mxu0 %v780
  %969 = vmatprep.subr.bf16.mxu0 0
  %970 = vmatpush2.bf16.xpose.msra.mxu0 %v777
  %971 = vmatprep.subr.bf16.mxu0 0
  %972 = vmatpush2.bf16.xpose.msra.mxu0 %v774
  %973 = vmatprep.subr.bf16.mxu0 0
  %974 = vmatpush2.bf16.xpose.msra.mxu0 %v771
  %975 = vmatprep.subr.bf16.mxu0 0
  %976 = vmatpush2.bf16.xpose.msra.mxu0 %v768
  %977 = vmatprep.subr.bf16.mxu0 0
  %978 = vmatpush2.bf16.xpose.msra.mxu0 %v765
  %979 = vmatprep.mubr.bf16.mxu0 0
  %980 = vmatmul.mubr.bf16.gmra.mxu0 %v687
  %v981 = vpop.f32.mrf.mxu0
  %v982 = vadd.f32 %v929, %v981
  %v983 = vpop.f32.mrf.mxu0
  %v984 = vadd.f32 %v931, %v983
  %v985 = vpop.f32.mrf.mxu0
  %v986 = vadd.f32 %v933, %v985
  %v987 = vpop.f32.mrf.mxu0
  %v988 = vadd.f32 %v935, %v987
  %989 = vmatprep.mubr.bf16.mxu0 0
  %990 = vmatmul.mubr.bf16.gmra.mxu0 %v690
  %v991 = vpop.f32.mrf.mxu0
  %v992 = vadd.f32 %v939, %v991
  %v993 = vpop.f32.mrf.mxu0
  %v994 = vadd.f32 %v941, %v993
  %v995 = vpop.f32.mrf.mxu0
  %v996 = vadd.f32 %v943, %v995
  %v997 = vpop.f32.mrf.mxu0
  %v998 = vadd.f32 %v945, %v997
  %999 = vdwg.mxu0
  %1000 = vst [vmem:[%s3] sm:$0xff] %v876
  %1001 = vst [vmem:[%s3 + $0x8] sm:$0xff] %v878
  %1002 = vst [vmem:[%s3 + $0x10] sm:$0xff] %v982
  %1003 = vst [vmem:[%s3 + $0x18] sm:$0xff] %v984
  %1004 = vst [vmem:[%s3 + $0x20] sm:$0xff] %v880
  %1005 = vst [vmem:[%s3 + $0x28] sm:$0xff] %v882
  %1006 = vst [vmem:[%s3 + $0x30] sm:$0xff] %v986
  %1007 = vst [vmem:[%s3 + $0x38] sm:$0xff] %v988
  %1008 = vst [vmem:[%s3 + $0x40] sm:$0xff] %v886
  %1009 = vst [vmem:[%s3 + $0x48] sm:$0xff] %v888
  %1010 = vst [vmem:[%s3 + $0x50] sm:$0xff] %v992
  %1011 = vst [vmem:[%s3 + $0x58] sm:$0xff] %v994
  %1012 = vst [vmem:[%s3 + $0x60] sm:$0xff] %v890
  %1013 = vst [vmem:[%s3 + $0x68] sm:$0xff] %v892
  %1014 = vst [vmem:[%s3 + $0x70] sm:$0xff] %v996
  %1015 = vst [vmem:[%s3 + $0x78] sm:$0xff] %v998
  // Predicated region
  $region14: #{alignnet_forward.51} parent=0 // pred_check
    _
  $region15: #{alignnet_forward.51} parent=0 // pred_check_branch
    %1017 = sbr.rel (0) target = $region17
  $region16: #{alignnet_forward.51} parent=0 // pred_region
    _
  $region17: #{alignnet_forward.51} parent=0 // pred_fallthru
    _
  // Predicated region
  $region18: #{alignnet_forward.51} parent=0 // pred_check
    _
  $region19: #{alignnet_forward.51} parent=0 // pred_check_branch
    %1019 = sbr.rel (0) target = $region21
  $region20: #{alignnet_forward.51} parent=0 // pred_region
    _
  $region21: #{alignnet_forward.51} parent=0 // pred_fallthru
    _

// kernel: alignnet_forward.52
$region0: #{alignnet_forward.52}
  #allocation0 [shape = 'u32[]', space=smem, size = 0x4, offset = 0x4, fixed_abs, tag = 'smem constant byte address 0x4 - core index']
  #allocation1 [shape = 'u32[144,128]{1,0:T(1,128)}', space=vmem, size = 0x12000, scoped, tag = 'internal scratch']
  %s0 = inlined_call_operand.vmem [shape: bf16[512,576], index: 0, kind: input, shape index: {}]
  %s1 = inlined_call_operand.vmem [shape: bf16[32,576], index: 1, kind: input, shape index: {}]
  %s2 = inlined_call_operand.vmem [shape: f32[32,1], index: 2, kind: input, shape index: {}]
  %s3 = inlined_call_operand.vmem [shape: f32[32,512], index: 3, kind: output, shape index: {}]
  %s4 = sld [smem:[#allocation0]]
  $region22: #{alignnet_forward.52} parent=0
    _
  %s6 = ssub.s32 1, %s4
  %s7 = scalar_select 0, %s6, %s4
  // Predicated region
  $region2: #{alignnet_forward.52} parent=0 // pred_check
    _
  $region3: #{alignnet_forward.52} parent=0 // pred_check_branch
    %9 = sbr.rel (0) target = $region5
  $region4: #{alignnet_forward.52} parent=0 // pred_region
    _
  $region5: #{alignnet_forward.52} parent=0 // pred_fallthru
    _
  // Predicated region
  $region6: #{alignnet_forward.52} parent=0 // pred_check
    _
  $region7: #{alignnet_forward.52} parent=0 // pred_check_branch
    %11 = sbr.rel (0) target = $region9
  $region8: #{alignnet_forward.52} parent=0 // pred_region
    _
  $region9: #{alignnet_forward.52} parent=0 // pred_fallthru
    _
  // Predicated region
  $region10: #{alignnet_forward.52} parent=0 // pred_check
    _
  $region11: #{alignnet_forward.52} parent=0 // pred_check_branch
    %13 = sbr.rel (0) target = $region13
  $region12: #{alignnet_forward.52} parent=0 // pred_region
    _
  $region13: #{alignnet_forward.52} parent=0 // pred_fallthru
    _
  %v15 = vld [vmem:[%s1] sm:$0xff]
  %v16 = vld [vmem:[%s1 + $0x8] sm:$0xff]
  %v17 = vld [vmem:[%s1 + $0x10] sm:$0xf]
  %v18 = vld [vmem:[%s1 + $0x14] sm:$0xff]
  %v19 = vld [vmem:[%s1 + $0x1c] sm:$0xff]
  %v20 = vld [vmem:[%s1 + $0x24] sm:$0xf]
  %v21 = vld [vmem:[%s1 + $0x28] sm:$0xff]
  %v22 = vld [vmem:[%s1 + $0x30] sm:$0xff]
  %v23 = vld [vmem:[%s1 + $0x38] sm:$0xf]
  %v24 = vld [vmem:[%s1 + $0x3c] sm:$0xff]
  %v25 = vld [vmem:[%s1 + $0x44] sm:$0xff]
  %v26 = vld [vmem:[%s1 + $0x4c] sm:$0xf]
  %v27 = vld [vmem:[%s0] sm:$0xff]
  %v28 = vld [vmem:[%s0 + $0x8] sm:$0xff]
  %v29 = vld [vmem:[%s0 + $0x10] sm:$0xf]
  %v30 = vld [vmem:[%s0 + $0x14] sm:$0xff]
  %v31 = vld [vmem:[%s0 + $0x1c] sm:$0xff]
  %v32 = vld [vmem:[%s0 + $0x24] sm:$0xf]
  %v33 = vld [vmem:[%s0 + $0x28] sm:$0xff]
  %v34 = vld [vmem:[%s0 + $0x30] sm:$0xff]
  %v35 = vld [vmem:[%s0 + $0x38] sm:$0xf]
  %v36 = vld [vmem:[%s0 + $0x3c] sm:$0xff]
  %v37 = vld [vmem:[%s0 + $0x44] sm:$0xff]
  %v38 = vld [vmem:[%s0 + $0x4c] sm:$0xf]
  %v39 = vld [vmem:[%s0 + $0x50] sm:$0xff]
  %v40 = vld [vmem:[%s0 + $0x58] sm:$0xff]
  %v41 = vld [vmem:[%s0 + $0x60] sm:$0xf]
  %v42 = vld [vmem:[%s0 + $0x64] sm:$0xff]
  %v43 = vld [vmem:[%s0 + $0x6c] sm:$0xff]
  %v44 = vld [vmem:[%s0 + $0x74] sm:$0xf]
  %v45 = vld [vmem:[%s0 + $0x78] sm:$0xff]
  %v46 = vld [vmem:[%s0 + $0x80] sm:$0xff]
  %v47 = vld [vmem:[%s0 + $0x88] sm:$0xf]
  %v48 = vld [vmem:[%s0 + $0x8c] sm:$0xff]
  %v49 = vld [vmem:[%s0 + $0x94] sm:$0xff]
  %v50 = vld [vmem:[%s0 + $0x9c] sm:$0xf]
  %v51 = vld [vmem:[%s0 + $0xa0] sm:$0xff]
  %v52 = vld [vmem:[%s0 + $0xa8] sm:$0xff]
  %v53 = vld [vmem:[%s0 + $0xb0] sm:$0xf]
  %v54 = vld [vmem:[%s0 + $0xb4] sm:$0xff]
  %v55 = vld [vmem:[%s0 + $0xbc] sm:$0xff]
  %v56 = vld [vmem:[%s0 + $0xc4] sm:$0xf]
  %v57 = vld [vmem:[%s0 + $0xc8] sm:$0xff]
  %v58 = vld [vmem:[%s0 + $0xd0] sm:$0xff]
  %v59 = vld [vmem:[%s0 + $0xd8] sm:$0xf]
  %v60 = vld [vmem:[%s0 + $0xdc] sm:$0xff]
  %v61 = vld [vmem:[%s0 + $0xe4] sm:$0xff]
  %v62 = vld [vmem:[%s0 + $0xec] sm:$0xf]
  %v63 = vld [vmem:[%s0 + $0xf0] sm:$0xff]
  %v64 = vld [vmem:[%s0 + $0xf8] sm:$0xff]
  %v65 = vld [vmem:[%s0 + $0x100] sm:$0xf]
  %v66 = vld [vmem:[%s0 + $0x104] sm:$0xff]
  %v67 = vld [vmem:[%s0 + $0x10c] sm:$0xff]
  %v68 = vld [vmem:[%s0 + $0x114] sm:$0xf]
  %v69 = vld [vmem:[%s0 + $0x118] sm:$0xff]
  %v70 = vld [vmem:[%s0 + $0x120] sm:$0xff]
  %v71 = vld [vmem:[%s0 + $0x128] sm:$0xf]
  %v72 = vld [vmem:[%s0 + $0x12c] sm:$0xff]
  %v73 = vld [vmem:[%s0 + $0x134] sm:$0xff]
  %v74 = vld [vmem:[%s0 + $0x13c] sm:$0xf]
  %v75 = vld [vmem:[%s0 + $0x140] sm:$0xff]
  %v76 = vld [vmem:[%s0 + $0x148] sm:$0xff]
  %v77 = vld [vmem:[%s0 + $0x150] sm:$0xf]
  %v78 = vld [vmem:[%s0 + $0x154] sm:$0xff]
  %v79 = vld [vmem:[%s0 + $0x15c] sm:$0xff]
  %v80 = vld [vmem:[%s0 + $0x164] sm:$0xf]
  %v81 = vld [vmem:[%s0 + $0x168] sm:$0xff]
  %v82 = vld [vmem:[%s0 + $0x170] sm:$0xff]
  %v83 = vld [vmem:[%s0 + $0x178] sm:$0xf]
  %v84 = vld [vmem:[%s0 + $0x17c] sm:$0xff]
  %v85 = vld [vmem:[%s0 + $0x184] sm:$0xff]
  %v86 = vld [vmem:[%s0 + $0x18c] sm:$0xf]
  %v87 = vld [vmem:[%s0 + $0x190] sm:$0xff]
  %v88 = vld [vmem:[%s0 + $0x198] sm:$0xff]
  %v89 = vld [vmem:[%s0 + $0x1a0] sm:$0xf]
  %v90 = vld [vmem:[%s0 + $0x1a4] sm:$0xff]
  %v91 = vld [vmem:[%s0 + $0x1ac] sm:$0xff]
  %v92 = vld [vmem:[%s0 + $0x1b4] sm:$0xf]
  %v93 = vld [vmem:[%s0 + $0x1b8] sm:$0xff]
  %v94 = vld [vmem:[%s0 + $0x1c0] sm:$0xff]
  %v95 = vld [vmem:[%s0 + $0x1c8] sm:$0xf]
  %v96 = vld [vmem:[%s0 + $0x1cc] sm:$0xff]
  %v97 = vld [vmem:[%s0 + $0x1d4] sm:$0xff]
  %v98 = vld [vmem:[%s0 + $0x1dc] sm:$0xf]
  %v99 = vld [vmem:[%s0 + $0x1e0] sm:$0xff]
  %v100 = vld [vmem:[%s0 + $0x1e8] sm:$0xff]
  %v101 = vld [vmem:[%s0 + $0x1f0] sm:$0xf]
  %v102 = vld [vmem:[%s0 + $0x1f4] sm:$0xff]
  %v103 = vld [vmem:[%s0 + $0x1fc] sm:$0xff]
  %v104 = vld [vmem:[%s0 + $0x204] sm:$0xf]
  %v105 = vld [vmem:[%s0 + $0x208] sm:$0xff]
  %v106 = vld [vmem:[%s0 + $0x210] sm:$0xff]
  %v107 = vld [vmem:[%s0 + $0x218] sm:$0xf]
  %v108 = vld [vmem:[%s0 + $0x21c] sm:$0xff]
  %v109 = vld [vmem:[%s0 + $0x224] sm:$0xff]
  %v110 = vld [vmem:[%s0 + $0x22c] sm:$0xf]
  %v111 = vld [vmem:[%s0 + $0x230] sm:$0xff]
  %v112 = vld [vmem:[%s0 + $0x238] sm:$0xff]
  %v113 = vld [vmem:[%s0 + $0x240] sm:$0xf]
  %v114 = vld [vmem:[%s0 + $0x244] sm:$0xff]
  %v115 = vld [vmem:[%s0 + $0x24c] sm:$0xff]
  %v116 = vld [vmem:[%s0 + $0x254] sm:$0xf]
  %v117 = vld [vmem:[%s0 + $0x258] sm:$0xff]
  %v118 = vld [vmem:[%s0 + $0x260] sm:$0xff]
  %v119 = vld [vmem:[%s0 + $0x268] sm:$0xf]
  %v120 = vld [vmem:[%s0 + $0x26c] sm:$0xff]
  %v121 = vld [vmem:[%s0 + $0x274] sm:$0xff]
  %v122 = vld [vmem:[%s0 + $0x27c] sm:$0xf]
  %v123 = vld [vmem:[%s0 + $0x280] sm:$0xff]
  %v124 = vld [vmem:[%s0 + $0x288] sm:$0xff]
  %v125 = vld [vmem:[%s0 + $0x290] sm:$0xf]
  %v126 = vld [vmem:[%s0 + $0x294] sm:$0xff]
  %v127 = vld [vmem:[%s0 + $0x29c] sm:$0xff]
  %v128 = vld [vmem:[%s0 + $0x2a4] sm:$0xf]
  %v129 = vld [vmem:[%s0 + $0x2a8] sm:$0xff]
  %v130 = vld [vmem:[%s0 + $0x2b0] sm:$0xff]
  %v131 = vld [vmem:[%s0 + $0x2b8] sm:$0xf]
  %v132 = vld [vmem:[%s0 + $0x2bc] sm:$0xff]
  %v133 = vld [vmem:[%s0 + $0x2c4] sm:$0xff]
  %v134 = vld [vmem:[%s0 + $0x2cc] sm:$0xf]
  %v135 = vld [vmem:[%s0 + $0x2d0] sm:$0xff]
  %v136 = vld [vmem:[%s0 + $0x2d8] sm:$0xff]
  %v137 = vld [vmem:[%s0 + $0x2e0] sm:$0xf]
  %v138 = vld [vmem:[%s0 + $0x2e4] sm:$0xff]
  %v139 = vld [vmem:[%s0 + $0x2ec] sm:$0xff]
  %v140 = vld [vmem:[%s0 + $0x2f4] sm:$0xf]
  %v141 = vld [vmem:[%s0 + $0x2f8] sm:$0xff]
  %v142 = vld [vmem:[%s0 + $0x300] sm:$0xff]
  %v143 = vld [vmem:[%s0 + $0x308] sm:$0xf]
  %v144 = vld [vmem:[%s0 + $0x30c] sm:$0xff]
  %v145 = vld [vmem:[%s0 + $0x314] sm:$0xff]
  %v146 = vld [vmem:[%s0 + $0x31c] sm:$0xf]
  %v147 = vld [vmem:[%s0 + $0x320] sm:$0xff]
  %v148 = vld [vmem:[%s0 + $0x328] sm:$0xff]
  %v149 = vld [vmem:[%s0 + $0x330] sm:$0xf]
  %v150 = vld [vmem:[%s0 + $0x334] sm:$0xff]
  %v151 = vld [vmem:[%s0 + $0x33c] sm:$0xff]
  %v152 = vld [vmem:[%s0 + $0x344] sm:$0xf]
  %v153 = vld [vmem:[%s0 + $0x348] sm:$0xff]
  %v154 = vld [vmem:[%s0 + $0x350] sm:$0xff]
  %v155 = vld [vmem:[%s0 + $0x358] sm:$0xf]
  %v156 = vld [vmem:[%s0 + $0x35c] sm:$0xff]
  %v157 = vld [vmem:[%s0 + $0x364] sm:$0xff]
  %v158 = vld [vmem:[%s0 + $0x36c] sm:$0xf]
  %v159 = vld [vmem:[%s0 + $0x370] sm:$0xff]
  %v160 = vld [vmem:[%s0 + $0x378] sm:$0xff]
  %v161 = vld [vmem:[%s0 + $0x380] sm:$0xf]
  %v162 = vld [vmem:[%s0 + $0x384] sm:$0xff]
  %v163 = vld [vmem:[%s0 + $0x38c] sm:$0xff]
  %v164 = vld [vmem:[%s0 + $0x394] sm:$0xf]
  %v165 = vld [vmem:[%s0 + $0x398] sm:$0xff]
  %v166 = vld [vmem:[%s0 + $0x3a0] sm:$0xff]
  %v167 = vld [vmem:[%s0 + $0x3a8] sm:$0xf]
  %v168 = vld [vmem:[%s0 + $0x3ac] sm:$0xff]
  %v169 = vld [vmem:[%s0 + $0x3b4] sm:$0xff]
  %v170 = vld [vmem:[%s0 + $0x3bc] sm:$0xf]
  %v171 = vld [vmem:[%s0 + $0x3c0] sm:$0xff]
  %v172 = vld [vmem:[%s0 + $0x3c8] sm:$0xff]
  %v173 = vld [vmem:[%s0 + $0x3d0] sm:$0xf]
  %v174 = vld [vmem:[%s0 + $0x3d4] sm:$0xff]
  %v175 = vld [vmem:[%s0 + $0x3dc] sm:$0xff]
  %v176 = vld [vmem:[%s0 + $0x3e4] sm:$0xf]
  %v177 = vld [vmem:[%s0 + $0x3e8] sm:$0xff]
  %v178 = vld [vmem:[%s0 + $0x3f0] sm:$0xff]
  %v179 = vld [vmem:[%s0 + $0x3f8] sm:$0xf]
  %v180 = vld [vmem:[%s0 + $0x3fc] sm:$0xff]
  %v181 = vld [vmem:[%s0 + $0x404] sm:$0xff]
  %v182 = vld [vmem:[%s0 + $0x40c] sm:$0xf]
  %v183 = vld [vmem:[%s0 + $0x410] sm:$0xff]
  %v184 = vld [vmem:[%s0 + $0x418] sm:$0xff]
  %v185 = vld [vmem:[%s0 + $0x420] sm:$0xf]
  %v186 = vld [vmem:[%s0 + $0x424] sm:$0xff]
  %v187 = vld [vmem:[%s0 + $0x42c] sm:$0xff]
  %v188 = vld [vmem:[%s0 + $0x434] sm:$0xf]
  %v189 = vld [vmem:[%s0 + $0x438] sm:$0xff]
  %v190 = vld [vmem:[%s0 + $0x440] sm:$0xff]
  %v191 = vld [vmem:[%s0 + $0x448] sm:$0xf]
  %v192 = vld [vmem:[%s0 + $0x44c] sm:$0xff]
  %v193 = vld [vmem:[%s0 + $0x454] sm:$0xff]
  %v194 = vld [vmem:[%s0 + $0x45c] sm:$0xf]
  %v195 = vld [vmem:[%s0 + $0x460] sm:$0xff]
  %v196 = vld [vmem:[%s0 + $0x468] sm:$0xff]
  %v197 = vld [vmem:[%s0 + $0x470] sm:$0xf]
  %v198 = vld [vmem:[%s0 + $0x474] sm:$0xff]
  %v199 = vld [vmem:[%s0 + $0x47c] sm:$0xff]
  %v200 = vld [vmem:[%s0 + $0x484] sm:$0xf]
  %v201 = vld [vmem:[%s0 + $0x488] sm:$0xff]
  %v202 = vld [vmem:[%s0 + $0x490] sm:$0xff]
  %v203 = vld [vmem:[%s0 + $0x498] sm:$0xf]
  %v204 = vld [vmem:[%s0 + $0x49c] sm:$0xff]
  %v205 = vld [vmem:[%s0 + $0x4a4] sm:$0xff]
  %v206 = vld [vmem:[%s0 + $0x4ac] sm:$0xf]
  %v207 = vld [vmem:[%s0 + $0x4b0] sm:$0xff]
  %v208 = vld [vmem:[%s0 + $0x4b8] sm:$0xff]
  %v209 = vld [vmem:[%s0 + $0x4c0] sm:$0xf]
  %v210 = vld [vmem:[%s0 + $0x4c4] sm:$0xff]
  %v211 = vld [vmem:[%s0 + $0x4cc] sm:$0xff]
  %v212 = vld [vmem:[%s0 + $0x4d4] sm:$0xf]
  %v213 = vld [vmem:[%s0 + $0x4d8] sm:$0xff]
  %v214 = vld [vmem:[%s0 + $0x4e0] sm:$0xff]
  %v215 = vld [vmem:[%s0 + $0x4e8] sm:$0xf]
  %v216 = vld [vmem:[%s0 + $0x4ec] sm:$0xff]
  %v217 = vld [vmem:[%s0 + $0x4f4] sm:$0xff]
  %v218 = vld [vmem:[%s0 + $0x4fc] sm:$0xf]
  %v219 = vld [vmem:[%s2] sm:$0xff]
  %v220 = vld [vmem:[%s2 + $0x8] sm:$0xff]
  %v221 = vld [vmem:[%s2 + $0x10] sm:$0xff]
  %v222 = vld [vmem:[%s2 + $0x18] sm:$0xff]
  %224 = vset.pattern.permute.xlu0 0
  %225 = vperm.xlu0 %224, %v219
  %v226 = vpop.permute.xlu0 %225
  %229 = vset.pattern.permute.xlu0 0
  %230 = vperm.xlu0 %229, %v220
  %v231 = vpop.permute.xlu0 %230
  %234 = vset.pattern.permute.xlu0 0
  %235 = vperm.xlu0 %234, %v221
  %v236 = vpop.permute.xlu0 %235
  %239 = vset.pattern.permute.xlu0 0
  %240 = vperm.xlu0 %239, %v222
  %v241 = vpop.permute.xlu0 %240
  %v255 = vunpack.c.l.b16 %v15
  %v256 = vunpack.c.h.b16 %v15
  %v257 = vunpack.c.l.b16 %v16
  %v258 = vunpack.c.h.b16 %v16
  %v259 = vunpack.c.l.b16 %v17
  %v260 = vunpack.c.l.b16 %v18
  %v261 = vunpack.c.h.b16 %v18
  %v262 = vunpack.c.l.b16 %v19
  %v263 = vunpack.c.h.b16 %v19
  %v264 = vunpack.c.l.b16 %v20
  %v265 = vunpack.c.l.b16 %v21
  %v266 = vunpack.c.h.b16 %v21
  %v267 = vunpack.c.l.b16 %v22
  %v268 = vunpack.c.h.b16 %v22
  %v269 = vunpack.c.l.b16 %v23
  %v270 = vunpack.c.l.b16 %v24
  %v271 = vunpack.c.h.b16 %v24
  %v272 = vunpack.c.l.b16 %v25
  %v273 = vunpack.c.h.b16 %v25
  %v274 = vunpack.c.l.b16 %v26
  %v275 = vpack.c.b16 %v260, %v255
  %v276 = vpack.c.b16 %v261, %v256
  %v277 = vpack.c.b16 %v262, %v257
  %v278 = vpack.c.b16 %v263, %v258
  %v279 = vpack.c.b16 %v264, %v259
  %v280 = vpack.c.b16 %v270, %v265
  %v281 = vpack.c.b16 %v271, %v266
  %v282 = vpack.c.b16 %v272, %v267
  %v283 = vpack.c.b16 %v273, %v268
  %v284 = vpack.c.b16 %v274, %v269
  %v485 = vunpack.c.l.b16 %v27
  %v486 = vunpack.c.h.b16 %v27
  %v487 = vunpack.c.l.b16 %v28
  %v488 = vunpack.c.h.b16 %v28
  %v489 = vunpack.c.l.b16 %v29
  %v490 = vunpack.c.l.b16 %v30
  %v491 = vunpack.c.h.b16 %v30
  %v492 = vunpack.c.l.b16 %v31
  %v493 = vunpack.c.h.b16 %v31
  %v494 = vunpack.c.l.b16 %v32
  %v495 = vunpack.c.l.b16 %v33
  %v496 = vunpack.c.h.b16 %v33
  %v497 = vunpack.c.l.b16 %v34
  %v498 = vunpack.c.h.b16 %v34
  %v499 = vunpack.c.l.b16 %v35
  %v500 = vunpack.c.l.b16 %v36
  %v501 = vunpack.c.h.b16 %v36
  %v502 = vunpack.c.l.b16 %v37
  %v503 = vunpack.c.h.b16 %v37
  %v504 = vunpack.c.l.b16 %v38
  %v505 = vunpack.c.l.b16 %v39
  %v506 = vunpack.c.h.b16 %v39
  %v507 = vunpack.c.l.b16 %v40
  %v508 = vunpack.c.h.b16 %v40
  %v509 = vunpack.c.l.b16 %v41
  %v510 = vunpack.c.l.b16 %v42
  %v511 = vunpack.c.h.b16 %v42
  %v512 = vunpack.c.l.b16 %v43
  %v513 = vunpack.c.h.b16 %v43
  %v514 = vunpack.c.l.b16 %v44
  %v515 = vunpack.c.l.b16 %v45
  %v516 = vunpack.c.h.b16 %v45
  %v517 = vunpack.c.l.b16 %v46
  %v518 = vunpack.c.h.b16 %v46
  %v519 = vunpack.c.l.b16 %v47
  %v520 = vunpack.c.l.b16 %v48
  %v521 = vunpack.c.h.b16 %v48
  %v522 = vunpack.c.l.b16 %v49
  %v523 = vunpack.c.h.b16 %v49
  %v524 = vunpack.c.l.b16 %v50
  %v525 = vunpack.c.l.b16 %v51
  %v526 = vunpack.c.h.b16 %v51
  %v527 = vunpack.c.l.b16 %v52
  %v528 = vunpack.c.h.b16 %v52
  %v529 = vunpack.c.l.b16 %v53
  %v530 = vunpack.c.l.b16 %v54
  %v531 = vunpack.c.h.b16 %v54
  %v532 = vunpack.c.l.b16 %v55
  %v533 = vunpack.c.h.b16 %v55
  %v534 = vunpack.c.l.b16 %v56
  %v535 = vunpack.c.l.b16 %v57
  %v536 = vunpack.c.h.b16 %v57
  %v537 = vunpack.c.l.b16 %v58
  %v538 = vunpack.c.h.b16 %v58
  %v539 = vunpack.c.l.b16 %v59
  %v540 = vunpack.c.l.b16 %v60
  %v541 = vunpack.c.h.b16 %v60
  %v542 = vunpack.c.l.b16 %v61
  %v543 = vunpack.c.h.b16 %v61
  %v544 = vunpack.c.l.b16 %v62
  %v545 = vunpack.c.l.b16 %v63
  %v546 = vunpack.c.h.b16 %v63
  %v547 = vunpack.c.l.b16 %v64
  %v548 = vunpack.c.h.b16 %v64
  %v549 = vunpack.c.l.b16 %v65
  %v550 = vunpack.c.l.b16 %v66
  %v551 = vunpack.c.h.b16 %v66
  %v552 = vunpack.c.l.b16 %v67
  %v553 = vunpack.c.h.b16 %v67
  %v554 = vunpack.c.l.b16 %v68
  %v555 = vunpack.c.l.b16 %v69
  %v556 = vunpack.c.h.b16 %v69
  %v557 = vunpack.c.l.b16 %v70
  %v558 = vunpack.c.h.b16 %v70
  %v559 = vunpack.c.l.b16 %v71
  %v560 = vunpack.c.l.b16 %v72
  %v561 = vunpack.c.h.b16 %v72
  %v562 = vunpack.c.l.b16 %v73
  %v563 = vunpack.c.h.b16 %v73
  %v564 = vunpack.c.l.b16 %v74
  %v565 = vunpack.c.l.b16 %v75
  %v566 = vunpack.c.h.b16 %v75
  %v567 = vunpack.c.l.b16 %v76
  %v568 = vunpack.c.h.b16 %v76
  %v569 = vunpack.c.l.b16 %v77
  %v570 = vunpack.c.l.b16 %v78
  %v571 = vunpack.c.h.b16 %v78
  %v572 = vunpack.c.l.b16 %v79
  %v573 = vunpack.c.h.b16 %v79
  %v574 = vunpack.c.l.b16 %v80
  %v575 = vunpack.c.l.b16 %v81
  %v576 = vunpack.c.h.b16 %v81
  %v577 = vunpack.c.l.b16 %v82
  %v578 = vunpack.c.h.b16 %v82
  %v579 = vunpack.c.l.b16 %v83
  %v580 = vunpack.c.l.b16 %v84
  %v581 = vunpack.c.h.b16 %v84
  %v582 = vunpack.c.l.b16 %v85
  %v583 = vunpack.c.h.b16 %v85
  %v584 = vunpack.c.l.b16 %v86
  %v585 = vunpack.c.l.b16 %v87
  %v586 = vunpack.c.h.b16 %v87
  %v587 = vunpack.c.l.b16 %v88
  %v588 = vunpack.c.h.b16 %v88
  %v589 = vunpack.c.l.b16 %v89
  %v590 = vunpack.c.l.b16 %v90
  %v591 = vunpack.c.h.b16 %v90
  %v592 = vunpack.c.l.b16 %v91
  %v593 = vunpack.c.h.b16 %v91
  %v594 = vunpack.c.l.b16 %v92
  %v595 = vunpack.c.l.b16 %v93
  %v596 = vunpack.c.h.b16 %v93
  %v597 = vunpack.c.l.b16 %v94
  %v598 = vunpack.c.h.b16 %v94
  %v599 = vunpack.c.l.b16 %v95
  %v600 = vunpack.c.l.b16 %v96
  %v601 = vunpack.c.h.b16 %v96
  %v602 = vunpack.c.l.b16 %v97
  %v603 = vunpack.c.h.b16 %v97
  %v604 = vunpack.c.l.b16 %v98
  %v605 = vunpack.c.l.b16 %v99
  %v606 = vunpack.c.h.b16 %v99
  %v607 = vunpack.c.l.b16 %v100
  %v608 = vunpack.c.h.b16 %v100
  %v609 = vunpack.c.l.b16 %v101
  %v610 = vunpack.c.l.b16 %v102
  %v611 = vunpack.c.h.b16 %v102
  %v612 = vunpack.c.l.b16 %v103
  %v613 = vunpack.c.h.b16 %v103
  %v614 = vunpack.c.l.b16 %v104
  %v615 = vunpack.c.l.b16 %v105
  %v616 = vunpack.c.h.b16 %v105
  %v617 = vunpack.c.l.b16 %v106
  %v618 = vunpack.c.h.b16 %v106
  %v619 = vunpack.c.l.b16 %v107
  %v620 = vunpack.c.l.b16 %v108
  %v621 = vunpack.c.h.b16 %v108
  %v622 = vunpack.c.l.b16 %v109
  %v623 = vunpack.c.h.b16 %v109
  %v624 = vunpack.c.l.b16 %v110
  %v625 = vunpack.c.l.b16 %v111
  %v626 = vunpack.c.h.b16 %v111
  %v627 = vunpack.c.l.b16 %v112
  %v628 = vunpack.c.h.b16 %v112
  %v629 = vunpack.c.l.b16 %v113
  %v630 = vunpack.c.l.b16 %v114
  %v631 = vunpack.c.h.b16 %v114
  %v632 = vunpack.c.l.b16 %v115
  %v633 = vunpack.c.h.b16 %v115
  %v634 = vunpack.c.l.b16 %v116
  %v635 = vunpack.c.l.b16 %v117
  %v636 = vunpack.c.h.b16 %v117
  %v637 = vunpack.c.l.b16 %v118
  %v638 = vunpack.c.h.b16 %v118
  %v639 = vunpack.c.l.b16 %v119
  %v640 = vunpack.c.l.b16 %v120
  %v641 = vunpack.c.h.b16 %v120
  %v642 = vunpack.c.l.b16 %v121
  %v643 = vunpack.c.h.b16 %v121
  %v644 = vunpack.c.l.b16 %v122
  %v645 = vunpack.c.l.b16 %v123
  %v646 = vunpack.c.h.b16 %v123
  %v647 = vunpack.c.l.b16 %v124
  %v648 = vunpack.c.h.b16 %v124
  %v649 = vunpack.c.l.b16 %v125
  %v650 = vunpack.c.l.b16 %v126
  %v651 = vunpack.c.h.b16 %v126
  %v652 = vunpack.c.l.b16 %v127
  %v653 = vunpack.c.h.b16 %v127
  %v654 = vunpack.c.l.b16 %v128
  %v655 = vunpack.c.l.b16 %v129
  %v656 = vunpack.c.h.b16 %v129
  %v657 = vunpack.c.l.b16 %v130
  %v658 = vunpack.c.h.b16 %v130
  %v659 = vunpack.c.l.b16 %v131
  %v660 = vunpack.c.l.b16 %v132
  %v661 = vunpack.c.h.b16 %v132
  %v662 = vunpack.c.l.b16 %v133
  %v663 = vunpack.c.h.b16 %v133
  %v664 = vunpack.c.l.b16 %v134
  %v665 = vunpack.c.l.b16 %v135
  %v666 = vunpack.c.h.b16 %v135
  %v667 = vunpack.c.l.b16 %v136
  %v668 = vunpack.c.h.b16 %v136
  %v669 = vunpack.c.l.b16 %v137
  %v670 = vunpack.c.l.b16 %v138
  %v671 = vunpack.c.h.b16 %v138
  %v672 = vunpack.c.l.b16 %v139
  %v673 = vunpack.c.h.b16 %v139
  %v674 = vunpack.c.l.b16 %v140
  %v675 = vunpack.c.l.b16 %v141
  %v676 = vunpack.c.h.b16 %v141
  %v677 = vunpack.c.l.b16 %v142
  %v678 = vunpack.c.h.b16 %v142
  %v679 = vunpack.c.l.b16 %v143
  %v680 = vunpack.c.l.b16 %v144
  %v681 = vunpack.c.h.b16 %v144
  %v682 = vunpack.c.l.b16 %v145
  %v683 = vunpack.c.h.b16 %v145
  %v684 = vunpack.c.l.b16 %v146
  %v685 = vunpack.c.l.b16 %v147
  %v686 = vunpack.c.h.b16 %v147
  %v687 = vunpack.c.l.b16 %v148
  %v688 = vunpack.c.h.b16 %v148
  %v689 = vunpack.c.l.b16 %v149
  %v690 = vunpack.c.l.b16 %v150
  %v691 = vunpack.c.h.b16 %v150
  %v692 = vunpack.c.l.b16 %v151
  %v693 = vunpack.c.h.b16 %v151
  %v694 = vunpack.c.l.b16 %v152
  %v695 = vunpack.c.l.b16 %v153
  %v696 = vunpack.c.h.b16 %v153
  %v697 = vunpack.c.l.b16 %v154
  %v698 = vunpack.c.h.b16 %v154
  %v699 = vunpack.c.l.b16 %v155
  %v700 = vunpack.c.l.b16 %v156
  %v701 = vunpack.c.h.b16 %v156
  %v702 = vunpack.c.l.b16 %v157
  %v703 = vunpack.c.h.b16 %v157
  %v704 = vunpack.c.l.b16 %v158
  %v705 = vunpack.c.l.b16 %v159
  %v706 = vunpack.c.h.b16 %v159
  %v707 = vunpack.c.l.b16 %v160
  %v708 = vunpack.c.h.b16 %v160
  %v709 = vunpack.c.l.b16 %v161
  %v710 = vunpack.c.l.b16 %v162
  %v711 = vunpack.c.h.b16 %v162
  %v712 = vunpack.c.l.b16 %v163
  %v713 = vunpack.c.h.b16 %v163
  %v714 = vunpack.c.l.b16 %v164
  %v715 = vunpack.c.l.b16 %v165
  %v716 = vunpack.c.h.b16 %v165
  %v717 = vunpack.c.l.b16 %v166
  %v718 = vunpack.c.h.b16 %v166
  %v719 = vunpack.c.l.b16 %v167
  %v720 = vunpack.c.l.b16 %v168
  %v721 = vunpack.c.h.b16 %v168
  %v722 = vunpack.c.l.b16 %v169
  %v723 = vunpack.c.h.b16 %v169
  %v724 = vunpack.c.l.b16 %v170
  %v725 = vunpack.c.l.b16 %v171
  %v726 = vunpack.c.h.b16 %v171
  %v727 = vunpack.c.l.b16 %v172
  %v728 = vunpack.c.h.b16 %v172
  %v729 = vunpack.c.l.b16 %v173
  %v730 = vunpack.c.l.b16 %v174
  %v731 = vunpack.c.h.b16 %v174
  %v732 = vunpack.c.l.b16 %v175
  %v733 = vunpack.c.h.b16 %v175
  %v734 = vunpack.c.l.b16 %v176
  %v735 = vunpack.c.l.b16 %v177
  %v736 = vunpack.c.h.b16 %v177
  %v737 = vunpack.c.l.b16 %v178
  %v738 = vunpack.c.h.b16 %v178
  %v739 = vunpack.c.l.b16 %v179
  %v740 = vunpack.c.l.b16 %v180
  %v741 = vunpack.c.h.b16 %v180
  %v742 = vunpack.c.l.b16 %v181
  %v743 = vunpack.c.h.b16 %v181
  %v744 = vunpack.c.l.b16 %v182
  %v745 = vunpack.c.l.b16 %v183
  %v746 = vunpack.c.h.b16 %v183
  %v747 = vunpack.c.l.b16 %v184
  %v748 = vunpack.c.h.b16 %v184
  %v749 = vunpack.c.l.b16 %v185
  %v750 = vunpack.c.l.b16 %v186
  %v751 = vunpack.c.h.b16 %v186
  %v752 = vunpack.c.l.b16 %v187
  %v753 = vunpack.c.h.b16 %v187
  %v754 = vunpack.c.l.b16 %v188
  %v755 = vunpack.c.l.b16 %v189
  %v756 = vunpack.c.h.b16 %v189
  %v757 = vunpack.c.l.b16 %v190
  %v758 = vunpack.c.h.b16 %v190
  %v759 = vunpack.c.l.b16 %v191
  %v760 = vunpack.c.l.b16 %v192
  %v761 = vunpack.c.h.b16 %v192
  %v762 = vunpack.c.l.b16 %v193
  %v763 = vunpack.c.h.b16 %v193
  %v764 = vunpack.c.l.b16 %v194
  %v765 = vunpack.c.l.b16 %v195
  %v766 = vunpack.c.h.b16 %v195
  %v767 = vunpack.c.l.b16 %v196
  %v768 = vunpack.c.h.b16 %v196
  %v769 = vunpack.c.l.b16 %v197
  %v770 = vunpack.c.l.b16 %v198
  %v771 = vunpack.c.h.b16 %v198
  %v772 = vunpack.c.l.b16 %v199
  %v773 = vunpack.c.h.b16 %v199
  %v774 = vunpack.c.l.b16 %v200
  %v775 = vunpack.c.l.b16 %v201
  %v776 = vunpack.c.h.b16 %v201
  %v777 = vunpack.c.l.b16 %v202
  %v778 = vunpack.c.h.b16 %v202
  %v779 = vunpack.c.l.b16 %v203
  %v780 = vunpack.c.l.b16 %v204
  %v781 = vunpack.c.h.b16 %v204
  %v782 = vunpack.c.l.b16 %v205
  %v783 = vunpack.c.h.b16 %v205
  %v784 = vunpack.c.l.b16 %v206
  %v785 = vunpack.c.l.b16 %v207
  %v786 = vunpack.c.h.b16 %v207
  %v787 = vunpack.c.l.b16 %v208
  %v788 = vunpack.c.h.b16 %v208
  %v789 = vunpack.c.l.b16 %v209
  %v790 = vunpack.c.l.b16 %v210
  %v791 = vunpack.c.h.b16 %v210
  %v792 = vunpack.c.l.b16 %v211
  %v793 = vunpack.c.h.b16 %v211
  %v794 = vunpack.c.l.b16 %v212
  %v795 = vunpack.c.l.b16 %v213
  %v796 = vunpack.c.h.b16 %v213
  %v797 = vunpack.c.l.b16 %v214
  %v798 = vunpack.c.h.b16 %v214
  %v799 = vunpack.c.l.b16 %v215
  %v800 = vunpack.c.l.b16 %v216
  %v801 = vunpack.c.h.b16 %v216
  %v802 = vunpack.c.l.b16 %v217
  %v803 = vunpack.c.h.b16 %v217
  %v804 = vunpack.c.l.b16 %v218
  %v805 = vpack.c.b16 %v490, %v485
  %v806 = vpack.c.b16 %v491, %v486
  %v807 = vpack.c.b16 %v492, %v487
  %v808 = vpack.c.b16 %v493, %v488
  %v809 = vpack.c.b16 %v494, %v489
  %v810 = vpack.c.b16 %v500, %v495
  %v811 = vpack.c.b16 %v501, %v496
  %v812 = vpack.c.b16 %v502, %v497
  %v813 = vpack.c.b16 %v503, %v498
  %v814 = vpack.c.b16 %v504, %v499
  %v815 = vpack.c.b16 %v510, %v505
  %v816 = vpack.c.b16 %v511, %v506
  %v817 = vpack.c.b16 %v512, %v507
  %v818 = vpack.c.b16 %v513, %v508
  %v819 = vpack.c.b16 %v514, %v509
  %v820 = vpack.c.b16 %v520, %v515
  %v821 = vpack.c.b16 %v521, %v516
  %v822 = vpack.c.b16 %v522, %v517
  %v823 = vpack.c.b16 %v523, %v518
  %v824 = vpack.c.b16 %v524, %v519
  %v825 = vpack.c.b16 %v530, %v525
  %v826 = vpack.c.b16 %v531, %v526
  %v827 = vpack.c.b16 %v532, %v527
  %v828 = vpack.c.b16 %v533, %v528
  %v829 = vpack.c.b16 %v534, %v529
  %v830 = vpack.c.b16 %v540, %v535
  %v831 = vpack.c.b16 %v541, %v536
  %v832 = vpack.c.b16 %v542, %v537
  %v833 = vpack.c.b16 %v543, %v538
  %v834 = vpack.c.b16 %v544, %v539
  %v835 = vpack.c.b16 %v550, %v545
  %v836 = vpack.c.b16 %v551, %v546
  %v837 = vpack.c.b16 %v552, %v547
  %v838 = vpack.c.b16 %v553, %v548
  %v839 = vpack.c.b16 %v554, %v549
  %v840 = vpack.c.b16 %v560, %v555
  %v841 = vpack.c.b16 %v561, %v556
  %v842 = vpack.c.b16 %v562, %v557
  %v843 = vpack.c.b16 %v563, %v558
  %v844 = vpack.c.b16 %v564, %v559
  %v845 = vpack.c.b16 %v570, %v565
  %v846 = vpack.c.b16 %v571, %v566
  %v847 = vpack.c.b16 %v572, %v567
  %v848 = vpack.c.b16 %v573, %v568
  %v849 = vpack.c.b16 %v574, %v569
  %v850 = vpack.c.b16 %v580, %v575
  %v851 = vpack.c.b16 %v581, %v576
  %v852 = vpack.c.b16 %v582, %v577
  %v853 = vpack.c.b16 %v583, %v578
  %v854 = vpack.c.b16 %v584, %v579
  %v855 = vpack.c.b16 %v590, %v585
  %v856 = vpack.c.b16 %v591, %v586
  %v857 = vpack.c.b16 %v592, %v587
  %v858 = vpack.c.b16 %v593, %v588
  %v859 = vpack.c.b16 %v594, %v589
  %v860 = vpack.c.b16 %v600, %v595
  %v861 = vpack.c.b16 %v601, %v596
  %v862 = vpack.c.b16 %v602, %v597
  %v863 = vpack.c.b16 %v603, %v598
  %v864 = vpack.c.b16 %v604, %v599
  %v865 = vpack.c.b16 %v610, %v605
  %v866 = vpack.c.b16 %v611, %v606
  %v867 = vpack.c.b16 %v612, %v607
  %v868 = vpack.c.b16 %v613, %v608
  %v869 = vpack.c.b16 %v614, %v609
  %v870 = vpack.c.b16 %v620, %v615
  %v871 = vpack.c.b16 %v621, %v616
  %v872 = vpack.c.b16 %v622, %v617
  %v873 = vpack.c.b16 %v623, %v618
  %v874 = vpack.c.b16 %v624, %v619
  %v875 = vpack.c.b16 %v630, %v625
  %v876 = vpack.c.b16 %v631, %v626
  %v877 = vpack.c.b16 %v632, %v627
  %v878 = vpack.c.b16 %v633, %v628
  %v879 = vpack.c.b16 %v634, %v629
  %v880 = vpack.c.b16 %v640, %v635
  %v881 = vpack.c.b16 %v641, %v636
  %v882 = vpack.c.b16 %v642, %v637
  %v883 = vpack.c.b16 %v643, %v638
  %v884 = vpack.c.b16 %v644, %v639
  %v885 = vpack.c.b16 %v650, %v645
  %v886 = vpack.c.b16 %v651, %v646
  %v887 = vpack.c.b16 %v652, %v647
  %v888 = vpack.c.b16 %v653, %v648
  %v889 = vpack.c.b16 %v654, %v649
  %v890 = vpack.c.b16 %v660, %v655
  %v891 = vpack.c.b16 %v661, %v656
  %v892 = vpack.c.b16 %v662, %v657
  %v893 = vpack.c.b16 %v663, %v658
  %v894 = vpack.c.b16 %v664, %v659
  %v895 = vpack.c.b16 %v670, %v665
  %v896 = vpack.c.b16 %v671, %v666
  %v897 = vpack.c.b16 %v672, %v667
  %v898 = vpack.c.b16 %v673, %v668
  %v899 = vpack.c.b16 %v674, %v669
  %v900 = vpack.c.b16 %v680, %v675
  %v901 = vpack.c.b16 %v681, %v676
  %v902 = vpack.c.b16 %v682, %v677
  %v903 = vpack.c.b16 %v683, %v678
  %v904 = vpack.c.b16 %v684, %v679
  %v905 = vpack.c.b16 %v690, %v685
  %v906 = vpack.c.b16 %v691, %v686
  %v907 = vpack.c.b16 %v692, %v687
  %v908 = vpack.c.b16 %v693, %v688
  %v909 = vpack.c.b16 %v694, %v689
  %v910 = vpack.c.b16 %v700, %v695
  %v911 = vpack.c.b16 %v701, %v696
  %v912 = vpack.c.b16 %v702, %v697
  %v913 = vpack.c.b16 %v703, %v698
  %v914 = vpack.c.b16 %v704, %v699
  %v915 = vpack.c.b16 %v710, %v705
  %v916 = vpack.c.b16 %v711, %v706
  %v917 = vpack.c.b16 %v712, %v707
  %v918 = vpack.c.b16 %v713, %v708
  %v919 = vpack.c.b16 %v714, %v709
  %v920 = vpack.c.b16 %v720, %v715
  %v921 = vpack.c.b16 %v721, %v716
  %v922 = vpack.c.b16 %v722, %v717
  %v923 = vpack.c.b16 %v723, %v718
  %v924 = vpack.c.b16 %v724, %v719
  %v925 = vpack.c.b16 %v730, %v725
  %v926 = vpack.c.b16 %v731, %v726
  %v927 = vpack.c.b16 %v732, %v727
  %v928 = vpack.c.b16 %v733, %v728
  %v929 = vpack.c.b16 %v734, %v729
  %v930 = vpack.c.b16 %v740, %v735
  %v931 = vpack.c.b16 %v741, %v736
  %v932 = vpack.c.b16 %v742, %v737
  %v933 = vpack.c.b16 %v743, %v738
  %v934 = vpack.c.b16 %v744, %v739
  %v935 = vpack.c.b16 %v750, %v745
  %v936 = vpack.c.b16 %v751, %v746
  %v937 = vpack.c.b16 %v752, %v747
  %v938 = vpack.c.b16 %v753, %v748
  %v939 = vpack.c.b16 %v754, %v749
  %v940 = vpack.c.b16 %v760, %v755
  %v941 = vpack.c.b16 %v761, %v756
  %v942 = vpack.c.b16 %v762, %v757
  %v943 = vpack.c.b16 %v763, %v758
  %v944 = vpack.c.b16 %v764, %v759
  %v945 = vpack.c.b16 %v770, %v765
  %v946 = vpack.c.b16 %v771, %v766
  %v947 = vpack.c.b16 %v772, %v767
  %v948 = vpack.c.b16 %v773, %v768
  %v949 = vpack.c.b16 %v774, %v769
  %v950 = vpack.c.b16 %v780, %v775
  %v951 = vpack.c.b16 %v781, %v776
  %v952 = vpack.c.b16 %v782, %v777
  %v953 = vpack.c.b16 %v783, %v778
  %v954 = vpack.c.b16 %v784, %v779
  %v955 = vpack.c.b16 %v790, %v785
  %v956 = vpack.c.b16 %v791, %v786
  %v957 = vpack.c.b16 %v792, %v787
  %v958 = vpack.c.b16 %v793, %v788
  %v959 = vpack.c.b16 %v794, %v789
  %v960 = vpack.c.b16 %v800, %v795
  %v961 = vpack.c.b16 %v801, %v796
  %v962 = vpack.c.b16 %v802, %v797
  %v963 = vpack.c.b16 %v803, %v798
  %v964 = vpack.c.b16 %v804, %v799
  %vm1093 = vcmask 523264
  %v1095 = vsel %vm1093, %v279, 0
  %v1098 = vsel %vm1093, %v284, 0
  %v1101 = vsel %vm1093, %v809, 0
  %v1104 = vsel %vm1093, %v814, 0
  %v1107 = vsel %vm1093, %v819, 0
  %v1110 = vsel %vm1093, %v824, 0
  %v1113 = vsel %vm1093, %v829, 0
  %v1116 = vsel %vm1093, %v834, 0
  %v1119 = vsel %vm1093, %v839, 0
  %v1122 = vsel %vm1093, %v844, 0
  %v1125 = vsel %vm1093, %v849, 0
  %v1128 = vsel %vm1093, %v854, 0
  %v1131 = vsel %vm1093, %v859, 0
  %v1134 = vsel %vm1093, %v864, 0
  %v1137 = vsel %vm1093, %v869, 0
  %v1140 = vsel %vm1093, %v874, 0
  %v1143 = vsel %vm1093, %v879, 0
  %v1146 = vsel %vm1093, %v884, 0
  %v1149 = vsel %vm1093, %v889, 0
  %v1152 = vsel %vm1093, %v894, 0
  %v1155 = vsel %vm1093, %v899, 0
  %v1158 = vsel %vm1093, %v904, 0
  %v1161 = vsel %vm1093, %v909, 0
  %v1164 = vsel %vm1093, %v914, 0
  %v1167 = vsel %vm1093, %v919, 0
  %v1170 = vsel %vm1093, %v924, 0
  %v1173 = vsel %vm1093, %v929, 0
  %v1176 = vsel %vm1093, %v934, 0
  %v1179 = vsel %vm1093, %v939, 0
  %v1182 = vsel %vm1093, %v944, 0
  %v1185 = vsel %vm1093, %v949, 0
  %v1188 = vsel %vm1093, %v954, 0
  %v1191 = vsel %vm1093, %v959, 0
  %v1194 = vsel %vm1093, %v964, 0
  %1196 = vmatprep.subr.bf16.mxu0 %v841
  %1197 = vmatpush1.bf16.xpose.msra.mxu0 %v840
  %1198 = vmatprep.subr.bf16.mxu0 %v836
  %1199 = vmatpush1.bf16.xpose.msra.mxu0 %v835
  %1200 = vmatprep.subr.bf16.mxu0 %v831
  %1201 = vmatpush1.bf16.xpose.msra.mxu0 %v830
  %1202 = vmatprep.subr.bf16.mxu0 %v826
  %1203 = vmatpush1.bf16.xpose.msra.mxu0 %v825
  %1204 = vmatprep.subr.bf16.mxu0 %v821
  %1205 = vmatpush1.bf16.xpose.msra.mxu0 %v820
  %1206 = vmatprep.subr.bf16.mxu0 %v816
  %1207 = vmatpush1.bf16.xpose.msra.mxu0 %v815
  %1208 = vmatprep.subr.bf16.mxu0 %v811
  %1209 = vmatpush1.bf16.xpose.msra.mxu0 %v810
  %1210 = vmatprep.subr.bf16.mxu0 %v806
  %1211 = vmatpush1.bf16.xpose.msra.mxu0 %v805
  %1212 = vmatprep.subr.bf16.mxu0 %v881
  %1213 = vmatpush2.bf16.xpose.msra.mxu0 %v880
  %1214 = vmatprep.subr.bf16.mxu0 %v876
  %1215 = vmatpush2.bf16.xpose.msra.mxu0 %v875
  %1216 = vmatprep.subr.bf16.mxu0 %v871
  %1217 = vmatpush2.bf16.xpose.msra.mxu0 %v870
  %1218 = vmatprep.subr.bf16.mxu0 %v866
  %1219 = vmatpush2.bf16.xpose.msra.mxu0 %v865
  %1220 = vmatprep.subr.bf16.mxu0 %v861
  %1221 = vmatpush2.bf16.xpose.msra.mxu0 %v860
  %1222 = vmatprep.subr.bf16.mxu0 %v856
  %1223 = vmatpush2.bf16.xpose.msra.mxu0 %v855
  %1224 = vmatprep.subr.bf16.mxu0 %v851
  %1225 = vmatpush2.bf16.xpose.msra.mxu0 %v850
  %1226 = vmatprep.subr.bf16.mxu0 %v846
  %1227 = vmatpush2.bf16.xpose.msra.mxu0 %v845
  %1228 = vmatprep.mubr.bf16.mxu0 %v276
  %1229 = vmatmul.mubr.bf16.gmra.mxu0 %v275
  %v1230 = vpop.f32.mrf.mxu0
  %v1231 = vadd.f32 %v226, %v1230
  %v1232 = vpop.f32.mrf.mxu0
  %v1233 = vadd.f32 %v226, %v1232
  %v1234 = vpop.f32.mrf.mxu0
  %v1235 = vadd.f32 %v231, %v1234
  %v1236 = vpop.f32.mrf.mxu0
  %v1237 = vadd.f32 %v231, %v1236
  %1238 = vmatprep.mubr.bf16.mxu0 %v281
  %1239 = vmatmul.mubr.bf16.gmra.mxu0 %v280
  %v1240 = vpop.f32.mrf.mxu0
  %v1241 = vadd.f32 %v236, %v1240
  %v1242 = vpop.f32.mrf.mxu0
  %v1243 = vadd.f32 %v236, %v1242
  %v1244 = vpop.f32.mrf.mxu0
  %v1245 = vadd.f32 %v241, %v1244
  %v1246 = vpop.f32.mrf.mxu0
  %v1247 = vadd.f32 %v241, %v1246
  %1248 = vdwg.mxu0
  %1249 = vmatprep.subr.bf16.mxu0 %v843
  %1250 = vmatpush1.bf16.xpose.msra.mxu0 %v842
  %1251 = vmatprep.subr.bf16.mxu0 %v838
  %1252 = vmatpush1.bf16.xpose.msra.mxu0 %v837
  %1253 = vmatprep.subr.bf16.mxu0 %v833
  %1254 = vmatpush1.bf16.xpose.msra.mxu0 %v832
  %1255 = vmatprep.subr.bf16.mxu0 %v828
  %1256 = vmatpush1.bf16.xpose.msra.mxu0 %v827
  %1257 = vmatprep.subr.bf16.mxu0 %v823
  %1258 = vmatpush1.bf16.xpose.msra.mxu0 %v822
  %1259 = vmatprep.subr.bf16.mxu0 %v818
  %1260 = vmatpush1.bf16.xpose.msra.mxu0 %v817
  %1261 = vmatprep.subr.bf16.mxu0 %v813
  %1262 = vmatpush1.bf16.xpose.msra.mxu0 %v812
  %1263 = vmatprep.subr.bf16.mxu0 %v808
  %1264 = vmatpush1.bf16.xpose.msra.mxu0 %v807
  %1265 = vmatprep.subr.bf16.mxu0 %v883
  %1266 = vmatpush2.bf16.xpose.msra.mxu0 %v882
  %1267 = vmatprep.subr.bf16.mxu0 %v878
  %1268 = vmatpush2.bf16.xpose.msra.mxu0 %v877
  %1269 = vmatprep.subr.bf16.mxu0 %v873
  %1270 = vmatpush2.bf16.xpose.msra.mxu0 %v872
  %1271 = vmatprep.subr.bf16.mxu0 %v868
  %1272 = vmatpush2.bf16.xpose.msra.mxu0 %v867
  %1273 = vmatprep.subr.bf16.mxu0 %v863
  %1274 = vmatpush2.bf16.xpose.msra.mxu0 %v862
  %1275 = vmatprep.subr.bf16.mxu0 %v858
  %1276 = vmatpush2.bf16.xpose.msra.mxu0 %v857
  %1277 = vmatprep.subr.bf16.mxu0 %v853
  %1278 = vmatpush2.bf16.xpose.msra.mxu0 %v852
  %1279 = vmatprep.subr.bf16.mxu0 %v848
  %1280 = vmatpush2.bf16.xpose.msra.mxu0 %v847
  %1281 = vmatprep.mubr.bf16.mxu0 %v278
  %1282 = vmatmul.mubr.bf16.gmra.mxu0 %v277
  %v1283 = vpop.f32.mrf.mxu0
  %v1284 = vadd.f32 %v1231, %v1283
  %v1285 = vpop.f32.mrf.mxu0
  %v1286 = vadd.f32 %v1233, %v1285
  %v1287 = vpop.f32.mrf.mxu0
  %v1288 = vadd.f32 %v1235, %v1287
  %v1289 = vpop.f32.mrf.mxu0
  %v1290 = vadd.f32 %v1237, %v1289
  %1291 = vmatprep.mubr.bf16.mxu0 %v283
  %1292 = vmatmul.mubr.bf16.gmra.mxu0 %v282
  %v1293 = vpop.f32.mrf.mxu0
  %v1294 = vadd.f32 %v1241, %v1293
  %v1295 = vpop.f32.mrf.mxu0
  %v1296 = vadd.f32 %v1243, %v1295
  %v1297 = vpop.f32.mrf.mxu0
  %v1298 = vadd.f32 %v1245, %v1297
  %v1299 = vpop.f32.mrf.mxu0
  %v1300 = vadd.f32 %v1247, %v1299
  %1301 = vdwg.mxu0
  %1302 = vmatprep.subr.bf16.mxu0 0
  %1303 = vmatpush1.bf16.xpose.msra.mxu0 %v1122
  %1304 = vmatprep.subr.bf16.mxu0 0
  %1305 = vmatpush1.bf16.xpose.msra.mxu0 %v1119
  %1306 = vmatprep.subr.bf16.mxu0 0
  %1307 = vmatpush1.bf16.xpose.msra.mxu0 %v1116
  %1308 = vmatprep.subr.bf16.mxu0 0
  %1309 = vmatpush1.bf16.xpose.msra.mxu0 %v1113
  %1310 = vmatprep.subr.bf16.mxu0 0
  %1311 = vmatpush1.bf16.xpose.msra.mxu0 %v1110
  %1312 = vmatprep.subr.bf16.mxu0 0
  %1313 = vmatpush1.bf16.xpose.msra.mxu0 %v1107
  %1314 = vmatprep.subr.bf16.mxu0 0
  %1315 = vmatpush1.bf16.xpose.msra.mxu0 %v1104
  %1316 = vmatprep.subr.bf16.mxu0 0
  %1317 = vmatpush1.bf16.xpose.msra.mxu0 %v1101
  %1318 = vmatprep.subr.bf16.mxu0 0
  %1319 = vmatpush2.bf16.xpose.msra.mxu0 %v1146
  %1320 = vmatprep.subr.bf16.mxu0 0
  %1321 = vmatpush2.bf16.xpose.msra.mxu0 %v1143
  %1322 = vmatprep.subr.bf16.mxu0 0
  %1323 = vmatpush2.bf16.xpose.msra.mxu0 %v1140
  %1324 = vmatprep.subr.bf16.mxu0 0
  %1325 = vmatpush2.bf16.xpose.msra.mxu0 %v1137
  %1326 = vmatprep.subr.bf16.mxu0 0
  %1327 = vmatpush2.bf16.xpose.msra.mxu0 %v1134
  %1328 = vmatprep.subr.bf16.mxu0 0
  %1329 = vmatpush2.bf16.xpose.msra.mxu0 %v1131
  %1330 = vmatprep.subr.bf16.mxu0 0
  %1331 = vmatpush2.bf16.xpose.msra.mxu0 %v1128
  %1332 = vmatprep.subr.bf16.mxu0 0
  %1333 = vmatpush2.bf16.xpose.msra.mxu0 %v1125
  %1334 = vmatprep.mubr.bf16.mxu0 0
  %1335 = vmatmul.mubr.bf16.gmra.mxu0 %v1095
  %v1336 = vpop.f32.mrf.mxu0
  %v1337 = vadd.f32 %v1284, %v1336
  %v1338 = vpop.f32.mrf.mxu0
  %v1339 = vadd.f32 %v1286, %v1338
  %v1340 = vpop.f32.mrf.mxu0
  %v1341 = vadd.f32 %v1288, %v1340
  %v1342 = vpop.f32.mrf.mxu0
  %v1343 = vadd.f32 %v1290, %v1342
  %1344 = vmatprep.mubr.bf16.mxu0 0
  %1345 = vmatmul.mubr.bf16.gmra.mxu0 %v1098
  %v1346 = vpop.f32.mrf.mxu0
  %v1347 = vadd.f32 %v1294, %v1346
  %v1348 = vpop.f32.mrf.mxu0
  %v1349 = vadd.f32 %v1296, %v1348
  %v1350 = vpop.f32.mrf.mxu0
  %v1351 = vadd.f32 %v1298, %v1350
  %v1352 = vpop.f32.mrf.mxu0
  %v1353 = vadd.f32 %v1300, %v1352
  %1354 = vdwg.mxu0
  %1355 = vmatprep.subr.bf16.mxu0 %v921
  %1356 = vmatpush1.bf16.xpose.msra.mxu0 %v920
  %1357 = vmatprep.subr.bf16.mxu0 %v916
  %1358 = vmatpush1.bf16.xpose.msra.mxu0 %v915
  %1359 = vmatprep.subr.bf16.mxu0 %v911
  %1360 = vmatpush1.bf16.xpose.msra.mxu0 %v910
  %1361 = vmatprep.subr.bf16.mxu0 %v906
  %1362 = vmatpush1.bf16.xpose.msra.mxu0 %v905
  %1363 = vmatprep.subr.bf16.mxu0 %v901
  %1364 = vmatpush1.bf16.xpose.msra.mxu0 %v900
  %1365 = vmatprep.subr.bf16.mxu0 %v896
  %1366 = vmatpush1.bf16.xpose.msra.mxu0 %v895
  %1367 = vmatprep.subr.bf16.mxu0 %v891
  %1368 = vmatpush1.bf16.xpose.msra.mxu0 %v890
  %1369 = vmatprep.subr.bf16.mxu0 %v886
  %1370 = vmatpush1.bf16.xpose.msra.mxu0 %v885
  %1371 = vmatprep.subr.bf16.mxu0 %v961
  %1372 = vmatpush2.bf16.xpose.msra.mxu0 %v960
  %1373 = vmatprep.subr.bf16.mxu0 %v956
  %1374 = vmatpush2.bf16.xpose.msra.mxu0 %v955
  %1375 = vmatprep.subr.bf16.mxu0 %v951
  %1376 = vmatpush2.bf16.xpose.msra.mxu0 %v950
  %1377 = vmatprep.subr.bf16.mxu0 %v946
  %1378 = vmatpush2.bf16.xpose.msra.mxu0 %v945
  %1379 = vmatprep.subr.bf16.mxu0 %v941
  %1380 = vmatpush2.bf16.xpose.msra.mxu0 %v940
  %1381 = vmatprep.subr.bf16.mxu0 %v936
  %1382 = vmatpush2.bf16.xpose.msra.mxu0 %v935
  %1383 = vmatprep.subr.bf16.mxu0 %v931
  %1384 = vmatpush2.bf16.xpose.msra.mxu0 %v930
  %1385 = vmatprep.subr.bf16.mxu0 %v926
  %1386 = vmatpush2.bf16.xpose.msra.mxu0 %v925
  %1387 = vmatprep.mubr.bf16.mxu0 %v276
  %1388 = vmatmul.mubr.bf16.gmra.mxu0 %v275
  %v1389 = vpop.f32.mrf.mxu0
  %v1390 = vadd.f32 %v226, %v1389
  %v1391 = vpop.f32.mrf.mxu0
  %v1392 = vadd.f32 %v226, %v1391
  %v1393 = vpop.f32.mrf.mxu0
  %v1394 = vadd.f32 %v231, %v1393
  %v1395 = vpop.f32.mrf.mxu0
  %v1396 = vadd.f32 %v231, %v1395
  %1397 = vmatprep.mubr.bf16.mxu0 %v281
  %1398 = vmatmul.mubr.bf16.gmra.mxu0 %v280
  %v1399 = vpop.f32.mrf.mxu0
  %v1400 = vadd.f32 %v236, %v1399
  %v1401 = vpop.f32.mrf.mxu0
  %v1402 = vadd.f32 %v236, %v1401
  %v1403 = vpop.f32.mrf.mxu0
  %v1404 = vadd.f32 %v241, %v1403
  %v1405 = vpop.f32.mrf.mxu0
  %v1406 = vadd.f32 %v241, %v1405
  %1407 = vdwg.mxu0
  %1408 = vmatprep.subr.bf16.mxu0 %v923
  %1409 = vmatpush1.bf16.xpose.msra.mxu0 %v922
  %1410 = vmatprep.subr.bf16.mxu0 %v918
  %1411 = vmatpush1.bf16.xpose.msra.mxu0 %v917
  %1412 = vmatprep.subr.bf16.mxu0 %v913
  %1413 = vmatpush1.bf16.xpose.msra.mxu0 %v912
  %1414 = vmatprep.subr.bf16.mxu0 %v908
  %1415 = vmatpush1.bf16.xpose.msra.mxu0 %v907
  %1416 = vmatprep.subr.bf16.mxu0 %v903
  %1417 = vmatpush1.bf16.xpose.msra.mxu0 %v902
  %1418 = vmatprep.subr.bf16.mxu0 %v898
  %1419 = vmatpush1.bf16.xpose.msra.mxu0 %v897
  %1420 = vmatprep.subr.bf16.mxu0 %v893
  %1421 = vmatpush1.bf16.xpose.msra.mxu0 %v892
  %1422 = vmatprep.subr.bf16.mxu0 %v888
  %1423 = vmatpush1.bf16.xpose.msra.mxu0 %v887
  %1424 = vmatprep.subr.bf16.mxu0 %v963
  %1425 = vmatpush2.bf16.xpose.msra.mxu0 %v962
  %1426 = vmatprep.subr.bf16.mxu0 %v958
  %1427 = vmatpush2.bf16.xpose.msra.mxu0 %v957
  %1428 = vmatprep.subr.bf16.mxu0 %v953
  %1429 = vmatpush2.bf16.xpose.msra.mxu0 %v952
  %1430 = vmatprep.subr.bf16.mxu0 %v948
  %1431 = vmatpush2.bf16.xpose.msra.mxu0 %v947
  %1432 = vmatprep.subr.bf16.mxu0 %v943
  %1433 = vmatpush2.bf16.xpose.msra.mxu0 %v942
  %1434 = vmatprep.subr.bf16.mxu0 %v938
  %1435 = vmatpush2.bf16.xpose.msra.mxu0 %v937
  %1436 = vmatprep.subr.bf16.mxu0 %v933
  %1437 = vmatpush2.bf16.xpose.msra.mxu0 %v932
  %1438 = vmatprep.subr.bf16.mxu0 %v928
  %1439 = vmatpush2.bf16.xpose.msra.mxu0 %v927
  %1440 = vmatprep.mubr.bf16.mxu0 %v278
  %1441 = vmatmul.mubr.bf16.gmra.mxu0 %v277
  %v1442 = vpop.f32.mrf.mxu0
  %v1443 = vadd.f32 %v1390, %v1442
  %v1444 = vpop.f32.mrf.mxu0
  %v1445 = vadd.f32 %v1392, %v1444
  %v1446 = vpop.f32.mrf.mxu0
  %v1447 = vadd.f32 %v1394, %v1446
  %v1448 = vpop.f32.mrf.mxu0
  %v1449 = vadd.f32 %v1396, %v1448
  %1450 = vmatprep.mubr.bf16.mxu0 %v283
  %1451 = vmatmul.mubr.bf16.gmra.mxu0 %v282
  %v1452 = vpop.f32.mrf.mxu0
  %v1453 = vadd.f32 %v1400, %v1452
  %v1454 = vpop.f32.mrf.mxu0
  %v1455 = vadd.f32 %v1402, %v1454
  %v1456 = vpop.f32.mrf.mxu0
  %v1457 = vadd.f32 %v1404, %v1456
  %v1458 = vpop.f32.mrf.mxu0
  %v1459 = vadd.f32 %v1406, %v1458
  %1460 = vdwg.mxu0
  %1461 = vmatprep.subr.bf16.mxu0 0
  %1462 = vmatpush1.bf16.xpose.msra.mxu0 %v1170
  %1463 = vmatprep.subr.bf16.mxu0 0
  %1464 = vmatpush1.bf16.xpose.msra.mxu0 %v1167
  %1465 = vmatprep.subr.bf16.mxu0 0
  %1466 = vmatpush1.bf16.xpose.msra.mxu0 %v1164
  %1467 = vmatprep.subr.bf16.mxu0 0
  %1468 = vmatpush1.bf16.xpose.msra.mxu0 %v1161
  %1469 = vmatprep.subr.bf16.mxu0 0
  %1470 = vmatpush1.bf16.xpose.msra.mxu0 %v1158
  %1471 = vmatprep.subr.bf16.mxu0 0
  %1472 = vmatpush1.bf16.xpose.msra.mxu0 %v1155
  %1473 = vmatprep.subr.bf16.mxu0 0
  %1474 = vmatpush1.bf16.xpose.msra.mxu0 %v1152
  %1475 = vmatprep.subr.bf16.mxu0 0
  %1476 = vmatpush1.bf16.xpose.msra.mxu0 %v1149
  %1477 = vmatprep.subr.bf16.mxu0 0
  %1478 = vmatpush2.bf16.xpose.msra.mxu0 %v1194
  %1479 = vmatprep.subr.bf16.mxu0 0
  %1480 = vmatpush2.bf16.xpose.msra.mxu0 %v1191
  %1481 = vmatprep.subr.bf16.mxu0 0
  %1482 = vmatpush2.bf16.xpose.msra.mxu0 %v1188
  %1483 = vmatprep.subr.bf16.mxu0 0
  %1484 = vmatpush2.bf16.xpose.msra.mxu0 %v1185
  %1485 = vmatprep.subr.bf16.mxu0 0
  %1486 = vmatpush2.bf16.xpose.msra.mxu0 %v1182
  %1487 = vmatprep.subr.bf16.mxu0 0
  %1488 = vmatpush2.bf16.xpose.msra.mxu0 %v1179
  %1489 = vmatprep.subr.bf16.mxu0 0
  %1490 = vmatpush2.bf16.xpose.msra.mxu0 %v1176
  %1491 = vmatprep.subr.bf16.mxu0 0
  %1492 = vmatpush2.bf16.xpose.msra.mxu0 %v1173
  %1493 = vmatprep.mubr.bf16.mxu0 0
  %1494 = vmatmul.mubr.bf16.gmra.mxu0 %v1095
  %v1495 = vpop.f32.mrf.mxu0
  %v1496 = vadd.f32 %v1443, %v1495
  %v1497 = vpop.f32.mrf.mxu0
  %v1498 = vadd.f32 %v1445, %v1497
  %v1499 = vpop.f32.mrf.mxu0
  %v1500 = vadd.f32 %v1447, %v1499
  %v1501 = vpop.f32.mrf.mxu0
  %v1502 = vadd.f32 %v1449, %v1501
  %1503 = vmatprep.mubr.bf16.mxu0 0
  %1504 = vmatmul.mubr.bf16.gmra.mxu0 %v1098
  %v1505 = vpop.f32.mrf.mxu0
  %v1506 = vadd.f32 %v1453, %v1505
  %v1507 = vpop.f32.mrf.mxu0
  %v1508 = vadd.f32 %v1455, %v1507
  %v1509 = vpop.f32.mrf.mxu0
  %v1510 = vadd.f32 %v1457, %v1509
  %v1511 = vpop.f32.mrf.mxu0
  %v1512 = vadd.f32 %v1459, %v1511
  %1513 = vdwg.mxu0
  %vm1514 = vcmp.ge.f32.partialorder %v1337, 0.0
  %vm1515 = vcmp.ge.f32.partialorder %v1339, 0.0
  %vm1516 = vcmp.ge.f32.partialorder %v1496, 0.0
  %vm1517 = vcmp.ge.f32.partialorder %v1498, 0.0
  %vm1518 = vcmp.ge.f32.partialorder %v1341, 0.0
  %vm1519 = vcmp.ge.f32.partialorder %v1343, 0.0
  %vm1520 = vcmp.ge.f32.partialorder %v1500, 0.0
  %vm1521 = vcmp.ge.f32.partialorder %v1502, 0.0
  %vm1522 = vcmp.ge.f32.partialorder %v1347, 0.0
  %vm1523 = vcmp.ge.f32.partialorder %v1349, 0.0
  %vm1524 = vcmp.ge.f32.partialorder %v1506, 0.0
  %vm1525 = vcmp.ge.f32.partialorder %v1508, 0.0
  %vm1526 = vcmp.ge.f32.partialorder %v1351, 0.0
  %vm1527 = vcmp.ge.f32.partialorder %v1353, 0.0
  %vm1528 = vcmp.ge.f32.partialorder %v1510, 0.0
  %vm1529 = vcmp.ge.f32.partialorder %v1512, 0.0
  %v1530 = vmul.f32 %v1337, 0.1
  %v1531 = vmul.f32 %v1339, 0.1
  %v1532 = vmul.f32 %v1496, 0.1
  %v1533 = vmul.f32 %v1498, 0.1
  %v1534 = vmul.f32 %v1341, 0.1
  %v1535 = vmul.f32 %v1343, 0.1
  %v1536 = vmul.f32 %v1500, 0.1
  %v1537 = vmul.f32 %v1502, 0.1
  %v1538 = vmul.f32 %v1347, 0.1
  %v1539 = vmul.f32 %v1349, 0.1
  %v1540 = vmul.f32 %v1506, 0.1
  %v1541 = vmul.f32 %v1508, 0.1
  %v1542 = vmul.f32 %v1351, 0.1
  %v1543 = vmul.f32 %v1353, 0.1
  %v1544 = vmul.f32 %v1510, 0.1
  %v1545 = vmul.f32 %v1512, 0.1
  %v1546 = vsel %vm1514, %v1337, %v1530
  %v1547 = vsel %vm1515, %v1339, %v1531
  %v1548 = vsel %vm1516, %v1496, %v1532
  %v1549 = vsel %vm1517, %v1498, %v1533
  %v1550 = vsel %vm1518, %v1341, %v1534
  %v1551 = vsel %vm1519, %v1343, %v1535
  %v1552 = vsel %vm1520, %v1500, %v1536
  %v1553 = vsel %vm1521, %v1502, %v1537
  %v1554 = vsel %vm1522, %v1347, %v1538
  %v1555 = vsel %vm1523, %v1349, %v1539
  %v1556 = vsel %vm1524, %v1506, %v1540
  %v1557 = vsel %vm1525, %v1508, %v1541
  %v1558 = vsel %vm1526, %v1351, %v1542
  %v1559 = vsel %vm1527, %v1353, %v1543
  %v1560 = vsel %vm1528, %v1510, %v1544
  %v1561 = vsel %vm1529, %v1512, %v1545
  %1562 = vst [vmem:[%s3] sm:$0xff] %v1546
  %1563 = vst [vmem:[%s3 + $0x8] sm:$0xff] %v1547
  %1564 = vst [vmem:[%s3 + $0x10] sm:$0xff] %v1548
  %1565 = vst [vmem:[%s3 + $0x18] sm:$0xff] %v1549
  %1566 = vst [vmem:[%s3 + $0x20] sm:$0xff] %v1550
  %1567 = vst [vmem:[%s3 + $0x28] sm:$0xff] %v1551
  %1568 = vst [vmem:[%s3 + $0x30] sm:$0xff] %v1552
  %1569 = vst [vmem:[%s3 + $0x38] sm:$0xff] %v1553
  %1570 = vst [vmem:[%s3 + $0x40] sm:$0xff] %v1554
  %1571 = vst [vmem:[%s3 + $0x48] sm:$0xff] %v1555
  %1572 = vst [vmem:[%s3 + $0x50] sm:$0xff] %v1556
  %1573 = vst [vmem:[%s3 + $0x58] sm:$0xff] %v1557
  %1574 = vst [vmem:[%s3 + $0x60] sm:$0xff] %v1558
  %1575 = vst [vmem:[%s3 + $0x68] sm:$0xff] %v1559
  %1576 = vst [vmem:[%s3 + $0x70] sm:$0xff] %v1560
  %1577 = vst [vmem:[%s3 + $0x78] sm:$0xff] %v1561
  // Predicated region
  $region14: #{alignnet_forward.52} parent=0 // pred_check
    _
  $region15: #{alignnet_forward.52} parent=0 // pred_check_branch
    %1579 = sbr.rel (0) target = $region17
  $region16: #{alignnet_forward.52} parent=0 // pred_region
    _
  $region17: #{alignnet_forward.52} parent=0 // pred_fallthru
    _
  // Predicated region
  $region18: #{alignnet_forward.52} parent=0 // pred_check
    _
  $region19: #{alignnet_forward.52} parent=0 // pred_check_branch
    %1581 = sbr.rel (0) target = $region21
  $region20: #{alignnet_forward.52} parent=0 // pred_region
    _
  $region21: #{alignnet_forward.52} parent=0 // pred_fallthru
    _

// kernel: alignnet_forward.53
$region0: #{alignnet_forward.53}
  #allocation0 [shape = 'u32[]', space=smem, size = 0x4, offset = 0x4, fixed_abs, tag = 'smem constant byte address 0x4 - core index']
  #allocation1 [shape = 'u32[144,128]{1,0:T(1,128)}', space=vmem, size = 0x12000, scoped, tag = 'internal scratch']
  %s0 = inlined_call_operand.vmem [shape: bf16[512,288], index: 0, kind: input, shape index: {}]
  %s1 = inlined_call_operand.vmem [shape: bf16[32,288], index: 1, kind: input, shape index: {}]
  %s2 = inlined_call_operand.vmem [shape: f32[32,1], index: 2, kind: input, shape index: {}]
  %s3 = inlined_call_operand.vmem [shape: f32[32,512], index: 3, kind: output, shape index: {}]
  %s4 = sld [smem:[#allocation0]]
  $region22: #{alignnet_forward.53} parent=0
    _
  %s6 = ssub.s32 1, %s4
  %s7 = scalar_select 0, %s6, %s4
  // Predicated region
  $region2: #{alignnet_forward.53} parent=0 // pred_check
    _
  $region3: #{alignnet_forward.53} parent=0 // pred_check_branch
    %9 = sbr.rel (0) target = $region5
  $region4: #{alignnet_forward.53} parent=0 // pred_region
    _
  $region5: #{alignnet_forward.53} parent=0 // pred_fallthru
    _
  // Predicated region
  $region6: #{alignnet_forward.53} parent=0 // pred_check
    _
  $region7: #{alignnet_forward.53} parent=0 // pred_check_branch
    %11 = sbr.rel (0) target = $region9
  $region8: #{alignnet_forward.53} parent=0 // pred_region
    _
  $region9: #{alignnet_forward.53} parent=0 // pred_fallthru
    _
  // Predicated region
  $region10: #{alignnet_forward.53} parent=0 // pred_check
    _
  $region11: #{alignnet_forward.53} parent=0 // pred_check_branch
    %13 = sbr.rel (0) target = $region13
  $region12: #{alignnet_forward.53} parent=0 // pred_region
    _
  $region13: #{alignnet_forward.53} parent=0 // pred_fallthru
    _
  %v15 = vld [vmem:[%s1] sm:$0xff]
  %v16 = vld [vmem:[%s1 + $0x8] sm:$0xf]
  %v17 = vld [vmem:[%s1 + $0xc] sm:$0xff]
  %v18 = vld [vmem:[%s1 + $0x14] sm:$0xf]
  %v19 = vld [vmem:[%s1 + $0x18] sm:$0xff]
  %v20 = vld [vmem:[%s1 + $0x20] sm:$0xf]
  %v21 = vld [vmem:[%s1 + $0x24] sm:$0xff]
  %v22 = vld [vmem:[%s1 + $0x2c] sm:$0xf]
  %v23 = vld [vmem:[%s0] sm:$0xff]
  %v24 = vld [vmem:[%s0 + $0x8] sm:$0xf]
  %v25 = vld [vmem:[%s0 + $0xc] sm:$0xff]
  %v26 = vld [vmem:[%s0 + $0x14] sm:$0xf]
  %v27 = vld [vmem:[%s0 + $0x18] sm:$0xff]
  %v28 = vld [vmem:[%s0 + $0x20] sm:$0xf]
  %v29 = vld [vmem:[%s0 + $0x24] sm:$0xff]
  %v30 = vld [vmem:[%s0 + $0x2c] sm:$0xf]
  %v31 = vld [vmem:[%s0 + $0x30] sm:$0xff]
  %v32 = vld [vmem:[%s0 + $0x38] sm:$0xf]
  %v33 = vld [vmem:[%s0 + $0x3c] sm:$0xff]
  %v34 = vld [vmem:[%s0 + $0x44] sm:$0xf]
  %v35 = vld [vmem:[%s0 + $0x48] sm:$0xff]
  %v36 = vld [vmem:[%s0 + $0x50] sm:$0xf]
  %v37 = vld [vmem:[%s0 + $0x54] sm:$0xff]
  %v38 = vld [vmem:[%s0 + $0x5c] sm:$0xf]
  %v39 = vld [vmem:[%s0 + $0x60] sm:$0xff]
  %v40 = vld [vmem:[%s0 + $0x68] sm:$0xf]
  %v41 = vld [vmem:[%s0 + $0x6c] sm:$0xff]
  %v42 = vld [vmem:[%s0 + $0x74] sm:$0xf]
  %v43 = vld [vmem:[%s0 + $0x78] sm:$0xff]
  %v44 = vld [vmem:[%s0 + $0x80] sm:$0xf]
  %v45 = vld [vmem:[%s0 + $0x84] sm:$0xff]
  %v46 = vld [vmem:[%s0 + $0x8c] sm:$0xf]
  %v47 = vld [vmem:[%s0 + $0x90] sm:$0xff]
  %v48 = vld [vmem:[%s0 + $0x98] sm:$0xf]
  %v49 = vld [vmem:[%s0 + $0x9c] sm:$0xff]
  %v50 = vld [vmem:[%s0 + $0xa4] sm:$0xf]
  %v51 = vld [vmem:[%s0 + $0xa8] sm:$0xff]
  %v52 = vld [vmem:[%s0 + $0xb0] sm:$0xf]
  %v53 = vld [vmem:[%s0 + $0xb4] sm:$0xff]
  %v54 = vld [vmem:[%s0 + $0xbc] sm:$0xf]
  %v55 = vld [vmem:[%s0 + $0xc0] sm:$0xff]
  %v56 = vld [vmem:[%s0 + $0xc8] sm:$0xf]
  %v57 = vld [vmem:[%s0 + $0xcc] sm:$0xff]
  %v58 = vld [vmem:[%s0 + $0xd4] sm:$0xf]
  %v59 = vld [vmem:[%s0 + $0xd8] sm:$0xff]
  %v60 = vld [vmem:[%s0 + $0xe0] sm:$0xf]
  %v61 = vld [vmem:[%s0 + $0xe4] sm:$0xff]
  %v62 = vld [vmem:[%s0 + $0xec] sm:$0xf]
  %v63 = vld [vmem:[%s0 + $0xf0] sm:$0xff]
  %v64 = vld [vmem:[%s0 + $0xf8] sm:$0xf]
  %v65 = vld [vmem:[%s0 + $0xfc] sm:$0xff]
  %v66 = vld [vmem:[%s0 + $0x104] sm:$0xf]
  %v67 = vld [vmem:[%s0 + $0x108] sm:$0xff]
  %v68 = vld [vmem:[%s0 + $0x110] sm:$0xf]
  %v69 = vld [vmem:[%s0 + $0x114] sm:$0xff]
  %v70 = vld [vmem:[%s0 + $0x11c] sm:$0xf]
  %v71 = vld [vmem:[%s0 + $0x120] sm:$0xff]
  %v72 = vld [vmem:[%s0 + $0x128] sm:$0xf]
  %v73 = vld [vmem:[%s0 + $0x12c] sm:$0xff]
  %v74 = vld [vmem:[%s0 + $0x134] sm:$0xf]
  %v75 = vld [vmem:[%s0 + $0x138] sm:$0xff]
  %v76 = vld [vmem:[%s0 + $0x140] sm:$0xf]
  %v77 = vld [vmem:[%s0 + $0x144] sm:$0xff]
  %v78 = vld [vmem:[%s0 + $0x14c] sm:$0xf]
  %v79 = vld [vmem:[%s0 + $0x150] sm:$0xff]
  %v80 = vld [vmem:[%s0 + $0x158] sm:$0xf]
  %v81 = vld [vmem:[%s0 + $0x15c] sm:$0xff]
  %v82 = vld [vmem:[%s0 + $0x164] sm:$0xf]
  %v83 = vld [vmem:[%s0 + $0x168] sm:$0xff]
  %v84 = vld [vmem:[%s0 + $0x170] sm:$0xf]
  %v85 = vld [vmem:[%s0 + $0x174] sm:$0xff]
  %v86 = vld [vmem:[%s0 + $0x17c] sm:$0xf]
  %v87 = vld [vmem:[%s0 + $0x180] sm:$0xff]
  %v88 = vld [vmem:[%s0 + $0x188] sm:$0xf]
  %v89 = vld [vmem:[%s0 + $0x18c] sm:$0xff]
  %v90 = vld [vmem:[%s0 + $0x194] sm:$0xf]
  %v91 = vld [vmem:[%s0 + $0x198] sm:$0xff]
  %v92 = vld [vmem:[%s0 + $0x1a0] sm:$0xf]
  %v93 = vld [vmem:[%s0 + $0x1a4] sm:$0xff]
  %v94 = vld [vmem:[%s0 + $0x1ac] sm:$0xf]
  %v95 = vld [vmem:[%s0 + $0x1b0] sm:$0xff]
  %v96 = vld [vmem:[%s0 + $0x1b8] sm:$0xf]
  %v97 = vld [vmem:[%s0 + $0x1bc] sm:$0xff]
  %v98 = vld [vmem:[%s0 + $0x1c4] sm:$0xf]
  %v99 = vld [vmem:[%s0 + $0x1c8] sm:$0xff]
  %v100 = vld [vmem:[%s0 + $0x1d0] sm:$0xf]
  %v101 = vld [vmem:[%s0 + $0x1d4] sm:$0xff]
  %v102 = vld [vmem:[%s0 + $0x1dc] sm:$0xf]
  %v103 = vld [vmem:[%s0 + $0x1e0] sm:$0xff]
  %v104 = vld [vmem:[%s0 + $0x1e8] sm:$0xf]
  %v105 = vld [vmem:[%s0 + $0x1ec] sm:$0xff]
  %v106 = vld [vmem:[%s0 + $0x1f4] sm:$0xf]
  %v107 = vld [vmem:[%s0 + $0x1f8] sm:$0xff]
  %v108 = vld [vmem:[%s0 + $0x200] sm:$0xf]
  %v109 = vld [vmem:[%s0 + $0x204] sm:$0xff]
  %v110 = vld [vmem:[%s0 + $0x20c] sm:$0xf]
  %v111 = vld [vmem:[%s0 + $0x210] sm:$0xff]
  %v112 = vld [vmem:[%s0 + $0x218] sm:$0xf]
  %v113 = vld [vmem:[%s0 + $0x21c] sm:$0xff]
  %v114 = vld [vmem:[%s0 + $0x224] sm:$0xf]
  %v115 = vld [vmem:[%s0 + $0x228] sm:$0xff]
  %v116 = vld [vmem:[%s0 + $0x230] sm:$0xf]
  %v117 = vld [vmem:[%s0 + $0x234] sm:$0xff]
  %v118 = vld [vmem:[%s0 + $0x23c] sm:$0xf]
  %v119 = vld [vmem:[%s0 + $0x240] sm:$0xff]
  %v120 = vld [vmem:[%s0 + $0x248] sm:$0xf]
  %v121 = vld [vmem:[%s0 + $0x24c] sm:$0xff]
  %v122 = vld [vmem:[%s0 + $0x254] sm:$0xf]
  %v123 = vld [vmem:[%s0 + $0x258] sm:$0xff]
  %v124 = vld [vmem:[%s0 + $0x260] sm:$0xf]
  %v125 = vld [vmem:[%s0 + $0x264] sm:$0xff]
  %v126 = vld [vmem:[%s0 + $0x26c] sm:$0xf]
  %v127 = vld [vmem:[%s0 + $0x270] sm:$0xff]
  %v128 = vld [vmem:[%s0 + $0x278] sm:$0xf]
  %v129 = vld [vmem:[%s0 + $0x27c] sm:$0xff]
  %v130 = vld [vmem:[%s0 + $0x284] sm:$0xf]
  %v131 = vld [vmem:[%s0 + $0x288] sm:$0xff]
  %v132 = vld [vmem:[%s0 + $0x290] sm:$0xf]
  %v133 = vld [vmem:[%s0 + $0x294] sm:$0xff]
  %v134 = vld [vmem:[%s0 + $0x29c] sm:$0xf]
  %v135 = vld [vmem:[%s0 + $0x2a0] sm:$0xff]
  %v136 = vld [vmem:[%s0 + $0x2a8] sm:$0xf]
  %v137 = vld [vmem:[%s0 + $0x2ac] sm:$0xff]
  %v138 = vld [vmem:[%s0 + $0x2b4] sm:$0xf]
  %v139 = vld [vmem:[%s0 + $0x2b8] sm:$0xff]
  %v140 = vld [vmem:[%s0 + $0x2c0] sm:$0xf]
  %v141 = vld [vmem:[%s0 + $0x2c4] sm:$0xff]
  %v142 = vld [vmem:[%s0 + $0x2cc] sm:$0xf]
  %v143 = vld [vmem:[%s0 + $0x2d0] sm:$0xff]
  %v144 = vld [vmem:[%s0 + $0x2d8] sm:$0xf]
  %v145 = vld [vmem:[%s0 + $0x2dc] sm:$0xff]
  %v146 = vld [vmem:[%s0 + $0x2e4] sm:$0xf]
  %v147 = vld [vmem:[%s0 + $0x2e8] sm:$0xff]
  %v148 = vld [vmem:[%s0 + $0x2f0] sm:$0xf]
  %v149 = vld [vmem:[%s0 + $0x2f4] sm:$0xff]
  %v150 = vld [vmem:[%s0 + $0x2fc] sm:$0xf]
  %v151 = vld [vmem:[%s2] sm:$0xff]
  %v152 = vld [vmem:[%s2 + $0x8] sm:$0xff]
  %v153 = vld [vmem:[%s2 + $0x10] sm:$0xff]
  %v154 = vld [vmem:[%s2 + $0x18] sm:$0xff]
  %156 = vset.pattern.permute.xlu0 0
  %157 = vperm.xlu0 %156, %v151
  %v158 = vpop.permute.xlu0 %157
  %161 = vset.pattern.permute.xlu0 0
  %162 = vperm.xlu0 %161, %v152
  %v163 = vpop.permute.xlu0 %162
  %166 = vset.pattern.permute.xlu0 0
  %167 = vperm.xlu0 %166, %v153
  %v168 = vpop.permute.xlu0 %167
  %171 = vset.pattern.permute.xlu0 0
  %172 = vperm.xlu0 %171, %v154
  %v173 = vpop.permute.xlu0 %172
  %v183 = vunpack.c.l.b16 %v15
  %v184 = vunpack.c.h.b16 %v15
  %v185 = vunpack.c.l.b16 %v16
  %v186 = vunpack.c.l.b16 %v17
  %v187 = vunpack.c.h.b16 %v17
  %v188 = vunpack.c.l.b16 %v18
  %v189 = vunpack.c.l.b16 %v19
  %v190 = vunpack.c.h.b16 %v19
  %v191 = vunpack.c.l.b16 %v20
  %v192 = vunpack.c.l.b16 %v21
  %v193 = vunpack.c.h.b16 %v21
  %v194 = vunpack.c.l.b16 %v22
  %v195 = vpack.c.b16 %v186, %v183
  %v196 = vpack.c.b16 %v187, %v184
  %v197 = vpack.c.b16 %v188, %v185
  %v198 = vpack.c.b16 %v192, %v189
  %v199 = vpack.c.b16 %v193, %v190
  %v200 = vpack.c.b16 %v194, %v191
  %v333 = vunpack.c.l.b16 %v23
  %v334 = vunpack.c.h.b16 %v23
  %v335 = vunpack.c.l.b16 %v24
  %v336 = vunpack.c.l.b16 %v25
  %v337 = vunpack.c.h.b16 %v25
  %v338 = vunpack.c.l.b16 %v26
  %v339 = vunpack.c.l.b16 %v27
  %v340 = vunpack.c.h.b16 %v27
  %v341 = vunpack.c.l.b16 %v28
  %v342 = vunpack.c.l.b16 %v29
  %v343 = vunpack.c.h.b16 %v29
  %v344 = vunpack.c.l.b16 %v30
  %v345 = vunpack.c.l.b16 %v31
  %v346 = vunpack.c.h.b16 %v31
  %v347 = vunpack.c.l.b16 %v32
  %v348 = vunpack.c.l.b16 %v33
  %v349 = vunpack.c.h.b16 %v33
  %v350 = vunpack.c.l.b16 %v34
  %v351 = vunpack.c.l.b16 %v35
  %v352 = vunpack.c.h.b16 %v35
  %v353 = vunpack.c.l.b16 %v36
  %v354 = vunpack.c.l.b16 %v37
  %v355 = vunpack.c.h.b16 %v37
  %v356 = vunpack.c.l.b16 %v38
  %v357 = vunpack.c.l.b16 %v39
  %v358 = vunpack.c.h.b16 %v39
  %v359 = vunpack.c.l.b16 %v40
  %v360 = vunpack.c.l.b16 %v41
  %v361 = vunpack.c.h.b16 %v41
  %v362 = vunpack.c.l.b16 %v42
  %v363 = vunpack.c.l.b16 %v43
  %v364 = vunpack.c.h.b16 %v43
  %v365 = vunpack.c.l.b16 %v44
  %v366 = vunpack.c.l.b16 %v45
  %v367 = vunpack.c.h.b16 %v45
  %v368 = vunpack.c.l.b16 %v46
  %v369 = vunpack.c.l.b16 %v47
  %v370 = vunpack.c.h.b16 %v47
  %v371 = vunpack.c.l.b16 %v48
  %v372 = vunpack.c.l.b16 %v49
  %v373 = vunpack.c.h.b16 %v49
  %v374 = vunpack.c.l.b16 %v50
  %v375 = vunpack.c.l.b16 %v51
  %v376 = vunpack.c.h.b16 %v51
  %v377 = vunpack.c.l.b16 %v52
  %v378 = vunpack.c.l.b16 %v53
  %v379 = vunpack.c.h.b16 %v53
  %v380 = vunpack.c.l.b16 %v54
  %v381 = vunpack.c.l.b16 %v55
  %v382 = vunpack.c.h.b16 %v55
  %v383 = vunpack.c.l.b16 %v56
  %v384 = vunpack.c.l.b16 %v57
  %v385 = vunpack.c.h.b16 %v57
  %v386 = vunpack.c.l.b16 %v58
  %v387 = vunpack.c.l.b16 %v59
  %v388 = vunpack.c.h.b16 %v59
  %v389 = vunpack.c.l.b16 %v60
  %v390 = vunpack.c.l.b16 %v61
  %v391 = vunpack.c.h.b16 %v61
  %v392 = vunpack.c.l.b16 %v62
  %v393 = vunpack.c.l.b16 %v63
  %v394 = vunpack.c.h.b16 %v63
  %v395 = vunpack.c.l.b16 %v64
  %v396 = vunpack.c.l.b16 %v65
  %v397 = vunpack.c.h.b16 %v65
  %v398 = vunpack.c.l.b16 %v66
  %v399 = vunpack.c.l.b16 %v67
  %v400 = vunpack.c.h.b16 %v67
  %v401 = vunpack.c.l.b16 %v68
  %v402 = vunpack.c.l.b16 %v69
  %v403 = vunpack.c.h.b16 %v69
  %v404 = vunpack.c.l.b16 %v70
  %v405 = vunpack.c.l.b16 %v71
  %v406 = vunpack.c.h.b16 %v71
  %v407 = vunpack.c.l.b16 %v72
  %v408 = vunpack.c.l.b16 %v73
  %v409 = vunpack.c.h.b16 %v73
  %v410 = vunpack.c.l.b16 %v74
  %v411 = vunpack.c.l.b16 %v75
  %v412 = vunpack.c.h.b16 %v75
  %v413 = vunpack.c.l.b16 %v76
  %v414 = vunpack.c.l.b16 %v77
  %v415 = vunpack.c.h.b16 %v77
  %v416 = vunpack.c.l.b16 %v78
  %v417 = vunpack.c.l.b16 %v79
  %v418 = vunpack.c.h.b16 %v79
  %v419 = vunpack.c.l.b16 %v80
  %v420 = vunpack.c.l.b16 %v81
  %v421 = vunpack.c.h.b16 %v81
  %v422 = vunpack.c.l.b16 %v82
  %v423 = vunpack.c.l.b16 %v83
  %v424 = vunpack.c.h.b16 %v83
  %v425 = vunpack.c.l.b16 %v84
  %v426 = vunpack.c.l.b16 %v85
  %v427 = vunpack.c.h.b16 %v85
  %v428 = vunpack.c.l.b16 %v86
  %v429 = vunpack.c.l.b16 %v87
  %v430 = vunpack.c.h.b16 %v87
  %v431 = vunpack.c.l.b16 %v88
  %v432 = vunpack.c.l.b16 %v89
  %v433 = vunpack.c.h.b16 %v89
  %v434 = vunpack.c.l.b16 %v90
  %v435 = vunpack.c.l.b16 %v91
  %v436 = vunpack.c.h.b16 %v91
  %v437 = vunpack.c.l.b16 %v92
  %v438 = vunpack.c.l.b16 %v93
  %v439 = vunpack.c.h.b16 %v93
  %v440 = vunpack.c.l.b16 %v94
  %v441 = vunpack.c.l.b16 %v95
  %v442 = vunpack.c.h.b16 %v95
  %v443 = vunpack.c.l.b16 %v96
  %v444 = vunpack.c.l.b16 %v97
  %v445 = vunpack.c.h.b16 %v97
  %v446 = vunpack.c.l.b16 %v98
  %v447 = vunpack.c.l.b16 %v99
  %v448 = vunpack.c.h.b16 %v99
  %v449 = vunpack.c.l.b16 %v100
  %v450 = vunpack.c.l.b16 %v101
  %v451 = vunpack.c.h.b16 %v101
  %v452 = vunpack.c.l.b16 %v102
  %v453 = vunpack.c.l.b16 %v103
  %v454 = vunpack.c.h.b16 %v103
  %v455 = vunpack.c.l.b16 %v104
  %v456 = vunpack.c.l.b16 %v105
  %v457 = vunpack.c.h.b16 %v105
  %v458 = vunpack.c.l.b16 %v106
  %v459 = vunpack.c.l.b16 %v107
  %v460 = vunpack.c.h.b16 %v107
  %v461 = vunpack.c.l.b16 %v108
  %v462 = vunpack.c.l.b16 %v109
  %v463 = vunpack.c.h.b16 %v109
  %v464 = vunpack.c.l.b16 %v110
  %v465 = vunpack.c.l.b16 %v111
  %v466 = vunpack.c.h.b16 %v111
  %v467 = vunpack.c.l.b16 %v112
  %v468 = vunpack.c.l.b16 %v113
  %v469 = vunpack.c.h.b16 %v113
  %v470 = vunpack.c.l.b16 %v114
  %v471 = vunpack.c.l.b16 %v115
  %v472 = vunpack.c.h.b16 %v115
  %v473 = vunpack.c.l.b16 %v116
  %v474 = vunpack.c.l.b16 %v117
  %v475 = vunpack.c.h.b16 %v117
  %v476 = vunpack.c.l.b16 %v118
  %v477 = vunpack.c.l.b16 %v119
  %v478 = vunpack.c.h.b16 %v119
  %v479 = vunpack.c.l.b16 %v120
  %v480 = vunpack.c.l.b16 %v121
  %v481 = vunpack.c.h.b16 %v121
  %v482 = vunpack.c.l.b16 %v122
  %v483 = vunpack.c.l.b16 %v123
  %v484 = vunpack.c.h.b16 %v123
  %v485 = vunpack.c.l.b16 %v124
  %v486 = vunpack.c.l.b16 %v125
  %v487 = vunpack.c.h.b16 %v125
  %v488 = vunpack.c.l.b16 %v126
  %v489 = vunpack.c.l.b16 %v127
  %v490 = vunpack.c.h.b16 %v127
  %v491 = vunpack.c.l.b16 %v128
  %v492 = vunpack.c.l.b16 %v129
  %v493 = vunpack.c.h.b16 %v129
  %v494 = vunpack.c.l.b16 %v130
  %v495 = vunpack.c.l.b16 %v131
  %v496 = vunpack.c.h.b16 %v131
  %v497 = vunpack.c.l.b16 %v132
  %v498 = vunpack.c.l.b16 %v133
  %v499 = vunpack.c.h.b16 %v133
  %v500 = vunpack.c.l.b16 %v134
  %v501 = vunpack.c.l.b16 %v135
  %v502 = vunpack.c.h.b16 %v135
  %v503 = vunpack.c.l.b16 %v136
  %v504 = vunpack.c.l.b16 %v137
  %v505 = vunpack.c.h.b16 %v137
  %v506 = vunpack.c.l.b16 %v138
  %v507 = vunpack.c.l.b16 %v139
  %v508 = vunpack.c.h.b16 %v139
  %v509 = vunpack.c.l.b16 %v140
  %v510 = vunpack.c.l.b16 %v141
  %v511 = vunpack.c.h.b16 %v141
  %v512 = vunpack.c.l.b16 %v142
  %v513 = vunpack.c.l.b16 %v143
  %v514 = vunpack.c.h.b16 %v143
  %v515 = vunpack.c.l.b16 %v144
  %v516 = vunpack.c.l.b16 %v145
  %v517 = vunpack.c.h.b16 %v145
  %v518 = vunpack.c.l.b16 %v146
  %v519 = vunpack.c.l.b16 %v147
  %v520 = vunpack.c.h.b16 %v147
  %v521 = vunpack.c.l.b16 %v148
  %v522 = vunpack.c.l.b16 %v149
  %v523 = vunpack.c.h.b16 %v149
  %v524 = vunpack.c.l.b16 %v150
  %v525 = vpack.c.b16 %v336, %v333
  %v526 = vpack.c.b16 %v337, %v334
  %v527 = vpack.c.b16 %v338, %v335
  %v528 = vpack.c.b16 %v342, %v339
  %v529 = vpack.c.b16 %v343, %v340
  %v530 = vpack.c.b16 %v344, %v341
  %v531 = vpack.c.b16 %v348, %v345
  %v532 = vpack.c.b16 %v349, %v346
  %v533 = vpack.c.b16 %v350, %v347
  %v534 = vpack.c.b16 %v354, %v351
  %v535 = vpack.c.b16 %v355, %v352
  %v536 = vpack.c.b16 %v356, %v353
  %v537 = vpack.c.b16 %v360, %v357
  %v538 = vpack.c.b16 %v361, %v358
  %v539 = vpack.c.b16 %v362, %v359
  %v540 = vpack.c.b16 %v366, %v363
  %v541 = vpack.c.b16 %v367, %v364
  %v542 = vpack.c.b16 %v368, %v365
  %v543 = vpack.c.b16 %v372, %v369
  %v544 = vpack.c.b16 %v373, %v370
  %v545 = vpack.c.b16 %v374, %v371
  %v546 = vpack.c.b16 %v378, %v375
  %v547 = vpack.c.b16 %v379, %v376
  %v548 = vpack.c.b16 %v380, %v377
  %v549 = vpack.c.b16 %v384, %v381
  %v550 = vpack.c.b16 %v385, %v382
  %v551 = vpack.c.b16 %v386, %v383
  %v552 = vpack.c.b16 %v390, %v387
  %v553 = vpack.c.b16 %v391, %v388
  %v554 = vpack.c.b16 %v392, %v389
  %v555 = vpack.c.b16 %v396, %v393
  %v556 = vpack.c.b16 %v397, %v394
  %v557 = vpack.c.b16 %v398, %v395
  %v558 = vpack.c.b16 %v402, %v399
  %v559 = vpack.c.b16 %v403, %v400
  %v560 = vpack.c.b16 %v404, %v401
  %v561 = vpack.c.b16 %v408, %v405
  %v562 = vpack.c.b16 %v409, %v406
  %v563 = vpack.c.b16 %v410, %v407
  %v564 = vpack.c.b16 %v414, %v411
  %v565 = vpack.c.b16 %v415, %v412
  %v566 = vpack.c.b16 %v416, %v413
  %v567 = vpack.c.b16 %v420, %v417
  %v568 = vpack.c.b16 %v421, %v418
  %v569 = vpack.c.b16 %v422, %v419
  %v570 = vpack.c.b16 %v426, %v423
  %v571 = vpack.c.b16 %v427, %v424
  %v572 = vpack.c.b16 %v428, %v425
  %v573 = vpack.c.b16 %v432, %v429
  %v574 = vpack.c.b16 %v433, %v430
  %v575 = vpack.c.b16 %v434, %v431
  %v576 = vpack.c.b16 %v438, %v435
  %v577 = vpack.c.b16 %v439, %v436
  %v578 = vpack.c.b16 %v440, %v437
  %v579 = vpack.c.b16 %v444, %v441
  %v580 = vpack.c.b16 %v445, %v442
  %v581 = vpack.c.b16 %v446, %v443
  %v582 = vpack.c.b16 %v450, %v447
  %v583 = vpack.c.b16 %v451, %v448
  %v584 = vpack.c.b16 %v452, %v449
  %v585 = vpack.c.b16 %v456, %v453
  %v586 = vpack.c.b16 %v457, %v454
  %v587 = vpack.c.b16 %v458, %v455
  %v588 = vpack.c.b16 %v462, %v459
  %v589 = vpack.c.b16 %v463, %v460
  %v590 = vpack.c.b16 %v464, %v461
  %v591 = vpack.c.b16 %v468, %v465
  %v592 = vpack.c.b16 %v469, %v466
  %v593 = vpack.c.b16 %v470, %v467
  %v594 = vpack.c.b16 %v474, %v471
  %v595 = vpack.c.b16 %v475, %v472
  %v596 = vpack.c.b16 %v476, %v473
  %v597 = vpack.c.b16 %v480, %v477
  %v598 = vpack.c.b16 %v481, %v478
  %v599 = vpack.c.b16 %v482, %v479
  %v600 = vpack.c.b16 %v486, %v483
  %v601 = vpack.c.b16 %v487, %v484
  %v602 = vpack.c.b16 %v488, %v485
  %v603 = vpack.c.b16 %v492, %v489
  %v604 = vpack.c.b16 %v493, %v490
  %v605 = vpack.c.b16 %v494, %v491
  %v606 = vpack.c.b16 %v498, %v495
  %v607 = vpack.c.b16 %v499, %v496
  %v608 = vpack.c.b16 %v500, %v497
  %v609 = vpack.c.b16 %v504, %v501
  %v610 = vpack.c.b16 %v505, %v502
  %v611 = vpack.c.b16 %v506, %v503
  %v612 = vpack.c.b16 %v510, %v507
  %v613 = vpack.c.b16 %v511, %v508
  %v614 = vpack.c.b16 %v512, %v509
  %v615 = vpack.c.b16 %v516, %v513
  %v616 = vpack.c.b16 %v517, %v514
  %v617 = vpack.c.b16 %v518, %v515
  %v618 = vpack.c.b16 %v522, %v519
  %v619 = vpack.c.b16 %v523, %v520
  %v620 = vpack.c.b16 %v524, %v521
  %vm685 = vcmask 261120
  %v687 = vsel %vm685, %v197, 0
  %v690 = vsel %vm685, %v200, 0
  %v693 = vsel %vm685, %v527, 0
  %v696 = vsel %vm685, %v530, 0
  %v699 = vsel %vm685, %v533, 0
  %v702 = vsel %vm685, %v536, 0
  %v705 = vsel %vm685, %v539, 0
  %v708 = vsel %vm685, %v542, 0
  %v711 = vsel %vm685, %v545, 0
  %v714 = vsel %vm685, %v548, 0
  %v717 = vsel %vm685, %v551, 0
  %v720 = vsel %vm685, %v554, 0
  %v723 = vsel %vm685, %v557, 0
  %v726 = vsel %vm685, %v560, 0
  %v729 = vsel %vm685, %v563, 0
  %v732 = vsel %vm685, %v566, 0
  %v735 = vsel %vm685, %v569, 0
  %v738 = vsel %vm685, %v572, 0
  %v741 = vsel %vm685, %v575, 0
  %v744 = vsel %vm685, %v578, 0
  %v747 = vsel %vm685, %v581, 0
  %v750 = vsel %vm685, %v584, 0
  %v753 = vsel %vm685, %v587, 0
  %v756 = vsel %vm685, %v590, 0
  %v759 = vsel %vm685, %v593, 0
  %v762 = vsel %vm685, %v596, 0
  %v765 = vsel %vm685, %v599, 0
  %v768 = vsel %vm685, %v602, 0
  %v771 = vsel %vm685, %v605, 0
  %v774 = vsel %vm685, %v608, 0
  %v777 = vsel %vm685, %v611, 0
  %v780 = vsel %vm685, %v614, 0
  %v783 = vsel %vm685, %v617, 0
  %v786 = vsel %vm685, %v620, 0
  %788 = vmatprep.subr.bf16.mxu0 %v547
  %789 = vmatpush1.bf16.xpose.msra.mxu0 %v546
  %790 = vmatprep.subr.bf16.mxu0 %v544
  %791 = vmatpush1.bf16.xpose.msra.mxu0 %v543
  %792 = vmatprep.subr.bf16.mxu0 %v541
  %793 = vmatpush1.bf16.xpose.msra.mxu0 %v540
  %794 = vmatprep.subr.bf16.mxu0 %v538
  %795 = vmatpush1.bf16.xpose.msra.mxu0 %v537
  %796 = vmatprep.subr.bf16.mxu0 %v535
  %797 = vmatpush1.bf16.xpose.msra.mxu0 %v534
  %798 = vmatprep.subr.bf16.mxu0 %v532
  %799 = vmatpush1.bf16.xpose.msra.mxu0 %v531
  %800 = vmatprep.subr.bf16.mxu0 %v529
  %801 = vmatpush1.bf16.xpose.msra.mxu0 %v528
  %802 = vmatprep.subr.bf16.mxu0 %v526
  %803 = vmatpush1.bf16.xpose.msra.mxu0 %v525
  %804 = vmatprep.subr.bf16.mxu0 %v571
  %805 = vmatpush2.bf16.xpose.msra.mxu0 %v570
  %806 = vmatprep.subr.bf16.mxu0 %v568
  %807 = vmatpush2.bf16.xpose.msra.mxu0 %v567
  %808 = vmatprep.subr.bf16.mxu0 %v565
  %809 = vmatpush2.bf16.xpose.msra.mxu0 %v564
  %810 = vmatprep.subr.bf16.mxu0 %v562
  %811 = vmatpush2.bf16.xpose.msra.mxu0 %v561
  %812 = vmatprep.subr.bf16.mxu0 %v559
  %813 = vmatpush2.bf16.xpose.msra.mxu0 %v558
  %814 = vmatprep.subr.bf16.mxu0 %v556
  %815 = vmatpush2.bf16.xpose.msra.mxu0 %v555
  %816 = vmatprep.subr.bf16.mxu0 %v553
  %817 = vmatpush2.bf16.xpose.msra.mxu0 %v552
  %818 = vmatprep.subr.bf16.mxu0 %v550
  %819 = vmatpush2.bf16.xpose.msra.mxu0 %v549
  %820 = vmatprep.mubr.bf16.mxu0 %v196
  %821 = vmatmul.mubr.bf16.gmra.mxu0 %v195
  %v822 = vpop.f32.mrf.mxu0
  %v823 = vadd.f32 %v158, %v822
  %v824 = vpop.f32.mrf.mxu0
  %v825 = vadd.f32 %v158, %v824
  %v826 = vpop.f32.mrf.mxu0
  %v827 = vadd.f32 %v163, %v826
  %v828 = vpop.f32.mrf.mxu0
  %v829 = vadd.f32 %v163, %v828
  %830 = vmatprep.mubr.bf16.mxu0 %v199
  %831 = vmatmul.mubr.bf16.gmra.mxu0 %v198
  %v832 = vpop.f32.mrf.mxu0
  %v833 = vadd.f32 %v168, %v832
  %v834 = vpop.f32.mrf.mxu0
  %v835 = vadd.f32 %v168, %v834
  %v836 = vpop.f32.mrf.mxu0
  %v837 = vadd.f32 %v173, %v836
  %v838 = vpop.f32.mrf.mxu0
  %v839 = vadd.f32 %v173, %v838
  %840 = vdwg.mxu0
  %841 = vmatprep.subr.bf16.mxu0 0
  %842 = vmatpush1.bf16.xpose.msra.mxu0 %v714
  %843 = vmatprep.subr.bf16.mxu0 0
  %844 = vmatpush1.bf16.xpose.msra.mxu0 %v711
  %845 = vmatprep.subr.bf16.mxu0 0
  %846 = vmatpush1.bf16.xpose.msra.mxu0 %v708
  %847 = vmatprep.subr.bf16.mxu0 0
  %848 = vmatpush1.bf16.xpose.msra.mxu0 %v705
  %849 = vmatprep.subr.bf16.mxu0 0
  %850 = vmatpush1.bf16.xpose.msra.mxu0 %v702
  %851 = vmatprep.subr.bf16.mxu0 0
  %852 = vmatpush1.bf16.xpose.msra.mxu0 %v699
  %853 = vmatprep.subr.bf16.mxu0 0
  %854 = vmatpush1.bf16.xpose.msra.mxu0 %v696
  %855 = vmatprep.subr.bf16.mxu0 0
  %856 = vmatpush1.bf16.xpose.msra.mxu0 %v693
  %857 = vmatprep.subr.bf16.mxu0 0
  %858 = vmatpush2.bf16.xpose.msra.mxu0 %v738
  %859 = vmatprep.subr.bf16.mxu0 0
  %860 = vmatpush2.bf16.xpose.msra.mxu0 %v735
  %861 = vmatprep.subr.bf16.mxu0 0
  %862 = vmatpush2.bf16.xpose.msra.mxu0 %v732
  %863 = vmatprep.subr.bf16.mxu0 0
  %864 = vmatpush2.bf16.xpose.msra.mxu0 %v729
  %865 = vmatprep.subr.bf16.mxu0 0
  %866 = vmatpush2.bf16.xpose.msra.mxu0 %v726
  %867 = vmatprep.subr.bf16.mxu0 0
  %868 = vmatpush2.bf16.xpose.msra.mxu0 %v723
  %869 = vmatprep.subr.bf16.mxu0 0
  %870 = vmatpush2.bf16.xpose.msra.mxu0 %v720
  %871 = vmatprep.subr.bf16.mxu0 0
  %872 = vmatpush2.bf16.xpose.msra.mxu0 %v717
  %873 = vmatprep.mubr.bf16.mxu0 0
  %874 = vmatmul.mubr.bf16.gmra.mxu0 %v687
  %v875 = vpop.f32.mrf.mxu0
  %v876 = vadd.f32 %v823, %v875
  %v877 = vpop.f32.mrf.mxu0
  %v878 = vadd.f32 %v825, %v877
  %v879 = vpop.f32.mrf.mxu0
  %v880 = vadd.f32 %v827, %v879
  %v881 = vpop.f32.mrf.mxu0
  %v882 = vadd.f32 %v829, %v881
  %883 = vmatprep.mubr.bf16.mxu0 0
  %884 = vmatmul.mubr.bf16.gmra.mxu0 %v690
  %v885 = vpop.f32.mrf.mxu0
  %v886 = vadd.f32 %v833, %v885
  %v887 = vpop.f32.mrf.mxu0
  %v888 = vadd.f32 %v835, %v887
  %v889 = vpop.f32.mrf.mxu0
  %v890 = vadd.f32 %v837, %v889
  %v891 = vpop.f32.mrf.mxu0
  %v892 = vadd.f32 %v839, %v891
  %893 = vdwg.mxu0
  %894 = vmatprep.subr.bf16.mxu0 %v595
  %895 = vmatpush1.bf16.xpose.msra.mxu0 %v594
  %896 = vmatprep.subr.bf16.mxu0 %v592
  %897 = vmatpush1.bf16.xpose.msra.mxu0 %v591
  %898 = vmatprep.subr.bf16.mxu0 %v589
  %899 = vmatpush1.bf16.xpose.msra.mxu0 %v588
  %900 = vmatprep.subr.bf16.mxu0 %v586
  %901 = vmatpush1.bf16.xpose.msra.mxu0 %v585
  %902 = vmatprep.subr.bf16.mxu0 %v583
  %903 = vmatpush1.bf16.xpose.msra.mxu0 %v582
  %904 = vmatprep.subr.bf16.mxu0 %v580
  %905 = vmatpush1.bf16.xpose.msra.mxu0 %v579
  %906 = vmatprep.subr.bf16.mxu0 %v577
  %907 = vmatpush1.bf16.xpose.msra.mxu0 %v576
  %908 = vmatprep.subr.bf16.mxu0 %v574
  %909 = vmatpush1.bf16.xpose.msra.mxu0 %v573
  %910 = vmatprep.subr.bf16.mxu0 %v619
  %911 = vmatpush2.bf16.xpose.msra.mxu0 %v618
  %912 = vmatprep.subr.bf16.mxu0 %v616
  %913 = vmatpush2.bf16.xpose.msra.mxu0 %v615
  %914 = vmatprep.subr.bf16.mxu0 %v613
  %915 = vmatpush2.bf16.xpose.msra.mxu0 %v612
  %916 = vmatprep.subr.bf16.mxu0 %v610
  %917 = vmatpush2.bf16.xpose.msra.mxu0 %v609
  %918 = vmatprep.subr.bf16.mxu0 %v607
  %919 = vmatpush2.bf16.xpose.msra.mxu0 %v606
  %920 = vmatprep.subr.bf16.mxu0 %v604
  %921 = vmatpush2.bf16.xpose.msra.mxu0 %v603
  %922 = vmatprep.subr.bf16.mxu0 %v601
  %923 = vmatpush2.bf16.xpose.msra.mxu0 %v600
  %924 = vmatprep.subr.bf16.mxu0 %v598
  %925 = vmatpush2.bf16.xpose.msra.mxu0 %v597
  %926 = vmatprep.mubr.bf16.mxu0 %v196
  %927 = vmatmul.mubr.bf16.gmra.mxu0 %v195
  %v928 = vpop.f32.mrf.mxu0
  %v929 = vadd.f32 %v158, %v928
  %v930 = vpop.f32.mrf.mxu0
  %v931 = vadd.f32 %v158, %v930
  %v932 = vpop.f32.mrf.mxu0
  %v933 = vadd.f32 %v163, %v932
  %v934 = vpop.f32.mrf.mxu0
  %v935 = vadd.f32 %v163, %v934
  %936 = vmatprep.mubr.bf16.mxu0 %v199
  %937 = vmatmul.mubr.bf16.gmra.mxu0 %v198
  %v938 = vpop.f32.mrf.mxu0
  %v939 = vadd.f32 %v168, %v938
  %v940 = vpop.f32.mrf.mxu0
  %v941 = vadd.f32 %v168, %v940
  %v942 = vpop.f32.mrf.mxu0
  %v943 = vadd.f32 %v173, %v942
  %v944 = vpop.f32.mrf.mxu0
  %v945 = vadd.f32 %v173, %v944
  %946 = vdwg.mxu0
  %947 = vmatprep.subr.bf16.mxu0 0
  %948 = vmatpush1.bf16.xpose.msra.mxu0 %v762
  %949 = vmatprep.subr.bf16.mxu0 0
  %950 = vmatpush1.bf16.xpose.msra.mxu0 %v759
  %951 = vmatprep.subr.bf16.mxu0 0
  %952 = vmatpush1.bf16.xpose.msra.mxu0 %v756
  %953 = vmatprep.subr.bf16.mxu0 0
  %954 = vmatpush1.bf16.xpose.msra.mxu0 %v753
  %955 = vmatprep.subr.bf16.mxu0 0
  %956 = vmatpush1.bf16.xpose.msra.mxu0 %v750
  %957 = vmatprep.subr.bf16.mxu0 0
  %958 = vmatpush1.bf16.xpose.msra.mxu0 %v747
  %959 = vmatprep.subr.bf16.mxu0 0
  %960 = vmatpush1.bf16.xpose.msra.mxu0 %v744
  %961 = vmatprep.subr.bf16.mxu0 0
  %962 = vmatpush1.bf16.xpose.msra.mxu0 %v741
  %963 = vmatprep.subr.bf16.mxu0 0
  %964 = vmatpush2.bf16.xpose.msra.mxu0 %v786
  %965 = vmatprep.subr.bf16.mxu0 0
  %966 = vmatpush2.bf16.xpose.msra.mxu0 %v783
  %967 = vmatprep.subr.bf16.mxu0 0
  %968 = vmatpush2.bf16.xpose.msra.mxu0 %v780
  %969 = vmatprep.subr.bf16.mxu0 0
  %970 = vmatpush2.bf16.xpose.msra.mxu0 %v777
  %971 = vmatprep.subr.bf16.mxu0 0
  %972 = vmatpush2.bf16.xpose.msra.mxu0 %v774
  %973 = vmatprep.subr.bf16.mxu0 0
  %974 = vmatpush2.bf16.xpose.msra.mxu0 %v771
  %975 = vmatprep.subr.bf16.mxu0 0
  %976 = vmatpush2.bf16.xpose.msra.mxu0 %v768
  %977 = vmatprep.subr.bf16.mxu0 0
  %978 = vmatpush2.bf16.xpose.msra.mxu0 %v765
  %979 = vmatprep.mubr.bf16.mxu0 0
  %980 = vmatmul.mubr.bf16.gmra.mxu0 %v687
  %v981 = vpop.f32.mrf.mxu0
  %v982 = vadd.f32 %v929, %v981
  %v983 = vpop.f32.mrf.mxu0
  %v984 = vadd.f32 %v931, %v983
  %v985 = vpop.f32.mrf.mxu0
  %v986 = vadd.f32 %v933, %v985
  %v987 = vpop.f32.mrf.mxu0
  %v988 = vadd.f32 %v935, %v987
  %989 = vmatprep.mubr.bf16.mxu0 0
  %990 = vmatmul.mubr.bf16.gmra.mxu0 %v690
  %v991 = vpop.f32.mrf.mxu0
  %v992 = vadd.f32 %v939, %v991
  %v993 = vpop.f32.mrf.mxu0
  %v994 = vadd.f32 %v941, %v993
  %v995 = vpop.f32.mrf.mxu0
  %v996 = vadd.f32 %v943, %v995
  %v997 = vpop.f32.mrf.mxu0
  %v998 = vadd.f32 %v945, %v997
  %999 = vdwg.mxu0
  %vm1000 = vcmp.ge.f32.partialorder %v876, 0.0
  %vm1001 = vcmp.ge.f32.partialorder %v878, 0.0
  %vm1002 = vcmp.ge.f32.partialorder %v982, 0.0
  %vm1003 = vcmp.ge.f32.partialorder %v984, 0.0
  %vm1004 = vcmp.ge.f32.partialorder %v880, 0.0
  %vm1005 = vcmp.ge.f32.partialorder %v882, 0.0
  %vm1006 = vcmp.ge.f32.partialorder %v986, 0.0
  %vm1007 = vcmp.ge.f32.partialorder %v988, 0.0
  %vm1008 = vcmp.ge.f32.partialorder %v886, 0.0
  %vm1009 = vcmp.ge.f32.partialorder %v888, 0.0
  %vm1010 = vcmp.ge.f32.partialorder %v992, 0.0
  %vm1011 = vcmp.ge.f32.partialorder %v994, 0.0
  %vm1012 = vcmp.ge.f32.partialorder %v890, 0.0
  %vm1013 = vcmp.ge.f32.partialorder %v892, 0.0
  %vm1014 = vcmp.ge.f32.partialorder %v996, 0.0
  %vm1015 = vcmp.ge.f32.partialorder %v998, 0.0
  %v1016 = vmul.f32 %v876, 0.1
  %v1017 = vmul.f32 %v878, 0.1
  %v1018 = vmul.f32 %v982, 0.1
  %v1019 = vmul.f32 %v984, 0.1
  %v1020 = vmul.f32 %v880, 0.1
  %v1021 = vmul.f32 %v882, 0.1
  %v1022 = vmul.f32 %v986, 0.1
  %v1023 = vmul.f32 %v988, 0.1
  %v1024 = vmul.f32 %v886, 0.1
  %v1025 = vmul.f32 %v888, 0.1
  %v1026 = vmul.f32 %v992, 0.1
  %v1027 = vmul.f32 %v994, 0.1
  %v1028 = vmul.f32 %v890, 0.1
  %v1029 = vmul.f32 %v892, 0.1
  %v1030 = vmul.f32 %v996, 0.1
  %v1031 = vmul.f32 %v998, 0.1
  %v1032 = vsel %vm1000, %v876, %v1016
  %v1033 = vsel %vm1001, %v878, %v1017
  %v1034 = vsel %vm1002, %v982, %v1018
  %v1035 = vsel %vm1003, %v984, %v1019
  %v1036 = vsel %vm1004, %v880, %v1020
  %v1037 = vsel %vm1005, %v882, %v1021
  %v1038 = vsel %vm1006, %v986, %v1022
  %v1039 = vsel %vm1007, %v988, %v1023
  %v1040 = vsel %vm1008, %v886, %v1024
  %v1041 = vsel %vm1009, %v888, %v1025
  %v1042 = vsel %vm1010, %v992, %v1026
  %v1043 = vsel %vm1011, %v994, %v1027
  %v1044 = vsel %vm1012, %v890, %v1028
  %v1045 = vsel %vm1013, %v892, %v1029
  %v1046 = vsel %vm1014, %v996, %v1030
  %v1047 = vsel %vm1015, %v998, %v1031
  %1048 = vst [vmem:[%s3] sm:$0xff] %v1032
  %1049 = vst [vmem:[%s3 + $0x8] sm:$0xff] %v1033
  %1050 = vst [vmem:[%s3 + $0x10] sm:$0xff] %v1034
  %1051 = vst [vmem:[%s3 + $0x18] sm:$0xff] %v1035
  %1052 = vst [vmem:[%s3 + $0x20] sm:$0xff] %v1036
  %1053 = vst [vmem:[%s3 + $0x28] sm:$0xff] %v1037
  %1054 = vst [vmem:[%s3 + $0x30] sm:$0xff] %v1038
  %1055 = vst [vmem:[%s3 + $0x38] sm:$0xff] %v1039
  %1056 = vst [vmem:[%s3 + $0x40] sm:$0xff] %v1040
  %1057 = vst [vmem:[%s3 + $0x48] sm:$0xff] %v1041
  %1058 = vst [vmem:[%s3 + $0x50] sm:$0xff] %v1042
  %1059 = vst [vmem:[%s3 + $0x58] sm:$0xff] %v1043
  %1060 = vst [vmem:[%s3 + $0x60] sm:$0xff] %v1044
  %1061 = vst [vmem:[%s3 + $0x68] sm:$0xff] %v1045
  %1062 = vst [vmem:[%s3 + $0x70] sm:$0xff] %v1046
  %1063 = vst [vmem:[%s3 + $0x78] sm:$0xff] %v1047
  // Predicated region
  $region14: #{alignnet_forward.53} parent=0 // pred_check
    _
  $region15: #{alignnet_forward.53} parent=0 // pred_check_branch
    %1065 = sbr.rel (0) target = $region17
  $region16: #{alignnet_forward.53} parent=0 // pred_region
    _
  $region17: #{alignnet_forward.53} parent=0 // pred_fallthru
    _
  // Predicated region
  $region18: #{alignnet_forward.53} parent=0 // pred_check
    _
  $region19: #{alignnet_forward.53} parent=0 // pred_check_branch
    %1067 = sbr.rel (0) target = $region21
  $region20: #{alignnet_forward.53} parent=0 // pred_region
    _
  $region21: #{alignnet_forward.53} parent=0 // pred_fallthru
    _

</llo_original>
